<compile_context>
chip_gen: v7x
topology: tpu7x:2x2x1
jax: 0.10.0
libtpu: 0.0.40
codegen_flags: <defaults>
</compile_context>

<pallas_src>
import functools

import jax
import jax.numpy as jnp
from jax.experimental import pallas as pl
from jax.experimental.pallas import tpu as pltpu


CONV1_CIN_PAD = 16  # pad conv1's 3 input channels to 16 -> bf16-tile-aligned offsets


# ---------------------------------------------------------------------------
# Fused 3x3 conv kernel (valid padding), stride 1 or 2.
#   activations: (B, H, Cin, W) bf16   (W on lanes, C on sublanes)
#   weight:      (Cout, 9*Cin)  bf16   (K index = (3*i + j)*Cin + cin)
#   bias:        (Cout, 1)      f32
#   output:      (B, Ho, Cout, Wo) bf16
# Grid = (batch, 2 row-halves).  One MXU dot per output row with K = 9*Cin.
# ---------------------------------------------------------------------------
def _conv3x3_kernel(*refs, relu, stride):
    if stride == 1:
        x_ref, w_ref, b_ref, o_ref, patch_ref = refs
    else:
        xe_ref, xo_ref, w_ref, b_ref, o_ref, patch_ref = refs

    Rb, Cout, Wo = o_ref.shape[1], o_ref.shape[2], o_ref.shape[3]
    Cin = w_ref.shape[1] // 9
    row0 = pl.program_id(1) * Rb                          # first output row of block

    w = w_ref[...]                                        # (Cout, 9*Cin) bf16, hoisted
    bias = jnp.broadcast_to(b_ref[...], (Cout, Wo))       # hoisted f32 broadcast

    def body(r, carry):
        y = row0 + r
        for i in range(3):
            if stride == 1:
                xr = x_ref[0, y + i]                      # (Cin, W) bf16
                taps = (xr[:, 0:Wo], xr[:, 1:Wo + 1], xr[:, 2:Wo + 2])
            else:
                ri = 2 * y + i
                xe = xe_ref[0, ri]                        # (Cin, W//2) even columns
                xo = xo_ref[0, ri]                        # (Cin, W//2) odd columns
                taps = (xe[:, 0:Wo], xo[:, 0:Wo], xe[:, 1:Wo + 1])
            for j in range(3):
                k = 3 * i + j
                patch_ref[k * Cin:(k + 1) * Cin, :] = taps[j]   # 16-aligned stores
        acc = jnp.dot(w, patch_ref[...],                  # one dot, K = 9*Cin
                      preferred_element_type=jnp.float32) + bias
        if relu:
            acc = jnp.maximum(acc, 0.0)
        o_ref[0, r] = acc.astype(o_ref.dtype)             # lane-dense (Cout, Wo) store
        return carry

    jax.lax.fori_loop(0, Rb, body, 0)


def conv3x3_pallas(x, w, b, *, stride, relu):
    """x: (B, H, Cin, W) bf16; w: (Cout, 9*Cin) bf16; b: (Cout, 1) f32."""
    B, H, Cin, W = x.shape
    Cout = w.shape[0]
    assert w.shape[1] == 9 * Cin
    Ho = (H - 3) // stride + 1
    Wo = (W - 3) // stride + 1
    assert Ho % 2 == 0, Ho                                # holds for 32/64/128/256 paths
    Rb = Ho // 2

    kern = functools.partial(_conv3x3_kernel, relu=relu, stride=stride)
    w_spec = pl.BlockSpec((Cout, 9 * Cin), lambda bi, ti: (0, 0))
    b_spec = pl.BlockSpec((Cout, 1), lambda bi, ti: (0, 0))

    if stride == 1:
        in_specs = [pl.BlockSpec((1, H, Cin, W), lambda bi, ti: (bi, 0, 0, 0)),
                    w_spec, b_spec]
        operands = (x, w, b)
    else:
        assert W % 2 == 0, W
        Wh = W // 2
        # Even/odd column planes (wrapper-side; kept for lowering robustness).
        xe = x[:, :, :, 0::2]
        xo = x[:, :, :, 1::2]
        plane_spec = pl.BlockSpec((1, H, Cin, Wh), lambda bi, ti: (bi, 0, 0, 0))
        in_specs = [plane_spec, plane_spec, w_spec, b_spec]
        operands = (xe, xo, w, b)

    return pl.pallas_call(
        kern,
        out_shape=jax.ShapeDtypeStruct((B, Ho, Cout, Wo), jnp.bfloat16),
        grid=(B, 2),
        in_specs=in_specs,
        out_specs=pl.BlockSpec((1, Rb, Cout, Wo), lambda bi, ti: (bi, ti, 0, 0)),
        scratch_shapes=[pltpu.VMEM((9 * Cin, Wo), jnp.bfloat16)],
        compiler_params=pltpu.CompilerParams(
            dimension_semantics=("parallel", "parallel"),
            vmem_limit_bytes=32 * 1024 * 1024),
    )(*operands)


# ---------------------------------------------------------------------------
# Fused FC chain: circle_reg(fc2(relu(fc1(relu(fcNN(x)))))).
# Grid over 8 tiles: step t computes fcNN column-tile t and immediately folds
# it into fc1's accumulator (streaming W0 column tiles and W1 K tiles through
# the pipeline); the last step applies fc1 bias+ReLU, fc2 and circle_reg.
# ---------------------------------------------------------------------------
def _fc_chain_kernel(x_ref, w0_ref, b0_ref, w1_ref, b1_ref, w2_ref, b2_ref,
                     w3_ref, b3_ref, o_ref, acc_ref):
    t = pl.program_id(0)

    @pl.when(t == 0)
    def _():
        acc_ref[...] = jnp.zeros_like(acc_ref)

    h0 = jnp.dot(x_ref[...], w0_ref[...],
                 preferred_element_type=jnp.float32)
    h0 = jnp.maximum(h0 + b0_ref[...], 0.0)                          # fcNN tile + ReLU
    acc_ref[...] += jnp.dot(h0.astype(jnp.bfloat16), w1_ref[...],
                            preferred_element_type=jnp.float32)      # fc1 K-partial

    @pl.when(t == pl.num_programs(0) - 1)
    def _():
        h1 = jnp.maximum(acc_ref[...] + b1_ref[...], 0.0)            # fc1 bias + ReLU
        h2 = jnp.dot(h1.astype(jnp.bfloat16), w2_ref[...],
                     preferred_element_type=jnp.float32) + b2_ref[...]   # fc2
        out = jnp.dot(h2.astype(jnp.bfloat16), w3_ref[...],
                      preferred_element_type=jnp.float32) + b3_ref[...]  # circle_reg
        o_ref[...] = out.astype(o_ref.dtype)


def fc_chain_pallas(x, fc_first, fc1, fc2, creg, *, tn=128):
    (w0, b0), (w1, b1), (w2, b2), (w3, b3) = fc_first, fc1, fc2, creg
    B, Din = x.shape
    Dh = w0.shape[1]
    Dout = w3.shape[1]
    assert Dh % tn == 0
    T = Dh // tn
    return pl.pallas_call(
        _fc_chain_kernel,
        out_shape=jax.ShapeDtypeStruct((B, Dout), jnp.float32),
        grid=(T,),
        in_specs=[
            pl.BlockSpec((B, Din), lambda t: (0, 0)),        # x (resident)
            pl.BlockSpec((Din, tn), lambda t: (0, t)),       # W0 column tile (streamed)
            pl.BlockSpec((1, tn), lambda t: (0, t)),         # b0 tile
            pl.BlockSpec((tn, Dh), lambda t: (t, 0)),        # W1 K tile (streamed)
            pl.BlockSpec((1, Dh), lambda t: (0, 0)),         # b1
            pl.BlockSpec((Dh, Dh), lambda t: (0, 0)),        # W2 (resident)
            pl.BlockSpec((1, Dh), lambda t: (0, 0)),         # b2
            pl.BlockSpec((Dh, Dout), lambda t: (0, 0)),      # W3
            pl.BlockSpec((1, Dout), lambda t: (0, 0)),       # b3
        ],
        out_specs=pl.BlockSpec((B, Dout), lambda t: (0, 0)),
        scratch_shapes=[pltpu.VMEM((B, Dh), jnp.float32)],
        compiler_params=pltpu.CompilerParams(
            dimension_semantics=("arbitrary",)),
    )(x, w0, b0, w1, b1, w2, b2, w3, b3)


# ---------------------------------------------------------------------------
# Parameters (deterministic, synthetic init).  Matmul weights stored bf16 in
# the kernel layouts: conv (Cout, 9*Cin) with K = (3*i+j)*Cin + cin; linear
# (Din, Dout).
# ---------------------------------------------------------------------------
def init_params(key):
    keys = iter(jax.random.split(key, 32))

    def conv_p(cin, cout, cin_pad=None):
        cp = cin if cin_pad is None else cin_pad
        w = jax.random.normal(next(keys), (cout, cin, 3, 3), jnp.float32)
        w = w * (1.0 / float(9 * cin) ** 0.5)
        if cp > cin:
            w = jnp.pad(w, ((0, 0), (0, cp - cin), (0, 0), (0, 0)))
        w_mat = jnp.transpose(w, (0, 2, 3, 1)).reshape(cout, 9 * cp)
        b = 0.01 * jax.random.normal(next(keys), (cout,), jnp.float32)
        return (w_mat.astype(jnp.bfloat16), b.reshape(cout, 1).astype(jnp.float32))

    def lin_p(din, dout):
        w = jax.random.normal(next(keys), (din, dout), jnp.float32)
        w = w * (1.0 / float(din) ** 0.5)
        b = 0.01 * jax.random.normal(next(keys), (dout,), jnp.float32)
        return (w.astype(jnp.bfloat16), b.reshape(1, dout).astype(jnp.float32))

    return {
        "con1": conv_p(3, 16, cin_pad=CONV1_CIN_PAD),
        "con2": conv_p(16, 32),
        "con3": conv_p(32, 32),
        "con4": conv_p(32, 32),
        "con5": conv_p(32, 32),
        "con6": conv_p(32, 32),
        "fc32": lin_p(1152, 1024),
        "fc64": lin_p(1152, 1024),
        "fc128": lin_p(1152, 1024),
        "fc256": lin_p(1152, 1024),
        "fc1": lin_p(1024, 1024),
        "fc2": lin_p(1024, 1024),
        "circle_reg": lin_p(1024, 3),
        "points_reg": lin_p(1024, 64),  # unused by forward(), kept for parity
    }


# ---------------------------------------------------------------------------
# Model forward (CraterModel.forward == regress_circle)
# ---------------------------------------------------------------------------
def crater_forward(params, x_nchw):
    img_dim = x_nchw.shape[-1]
    if img_dim not in (32, 64, 128, 256):
        raise Exception(
            "Invalid input image dimension: %d\nplease choose one of: "
            "32, 64, 128, 256" % img_dim)

    B = x_nchw.shape[0]
    # NCHW -> (B, H, C, W) lane-dense conv layout; pad channels 3 -> 16 so the
    # in-kernel bf16 sublane stores stay tile-aligned; activations in bf16.
    x = jnp.transpose(x_nchw, (0, 2, 1, 3))
    x = jnp.pad(x, ((0, 0), (0, 0), (0, CONV1_CIN_PAD - x.shape[2]), (0, 0)))
    x = x.astype(jnp.bfloat16)

    # surface_fts: con1/con2/con3, each followed by ReLU
    x = conv3x3_pallas(x, *params["con1"], stride=1, relu=True)
    x = conv3x3_pallas(x, *params["con2"], stride=2, relu=True)
    x = conv3x3_pallas(x, *params["con3"], stride=2, relu=True)

    if img_dim == 32:
        fc = params["fc32"]
    else:
        # con4/con5/con6 have no activation in the reference torch code.
        x = conv3x3_pallas(x, *params["con4"], stride=2, relu=False)
        if img_dim == 64:
            fc = params["fc64"]
        else:
            x = conv3x3_pallas(x, *params["con5"], stride=2, relu=False)
            if img_dim == 128:
                fc = params["fc128"]
            else:
                x = conv3x3_pallas(x, *params["con6"], stride=2, relu=False)
                fc = params["fc256"]

    # (B, Ho, Cout, Wo) -> torch (B, Cout, Ho, Wo) flatten order (tiny tensor).
    flat = jnp.transpose(x, (0, 2, 1, 3)).reshape(B, -1)

    # fcNN -> ReLU -> fc1 -> ReLU -> fc2 -> circle_reg, one streamed kernel.
    return fc_chain_pallas(flat, fc, params["fc1"], params["fc2"],
                           params["circle_reg"])


if __name__ == "__main__":
    key = jax.random.PRNGKey(0)
    pkey, xkey = jax.random.split(key)
    params = init_params(pkey)

    # Smallest valid input per process_inputs: img_dim = 32, batch = 2.
    x = jax.random.normal(xkey, (2, 3, 32, 32), jnp.float32)

    fwd = jax.jit(crater_forward)
    out = jax.block_until_ready(fwd(params, x))
    assert out.shape == (2, 3), out.shape
    assert out.dtype == jnp.float32
    print("KERNEL_OK")
</pallas_src>

<mosaic_0001>
module attributes {stable_mosaic.version = 11 : i64} {
  func.func @_conv3x3_kernel(%arg0: i32, %arg1: i32, %arg2: memref<1x32x16x32xbf16, #tpu.memory_space<vmem>>, %arg3: memref<16x144xbf16, #tpu.memory_space<vmem>>, %arg4: memref<16x1xf32, #tpu.memory_space<vmem>>, %arg5: memref<1x15x16x30xbf16, #tpu.memory_space<vmem>>, %arg6: memref<144x30xbf16, #tpu.memory_space<vmem>>) attributes {dimension_semantics = [#tpu.dimension_semantics<parallel>, #tpu.dimension_semantics<parallel>], iteration_bounds = array<i64: 2, 2>, scalar_prefetch = 0 : i64, scratch_operands = 1 : i64, tpu.core_type = #tpu.core_type<tc>, window_params = [{transform_indices = @transform_0, window_bounds = array<i64: 1, 32, 16, 32>}, {pipeline_mode = #tpu.pipeline_mode<synchronous>, transform_indices = @transform_1, window_bounds = array<i64: 16, 144>}, {pipeline_mode = #tpu.pipeline_mode<synchronous>, transform_indices = @transform_2, window_bounds = array<i64: 16, 1>}, {transform_indices = @transform_3, window_bounds = array<i64: 1, 15, 16, 30>}]} {
    %c15_i32 = arith.constant 15 : i32
    %0 = arith.muli %arg1, %c15_i32 : i32
    %c0 = arith.constant 0 : index
    %c0_0 = arith.constant 0 : index
    %1 = vector.load %arg3[%c0, %c0_0] : memref<16x144xbf16, #tpu.memory_space<vmem>>, vector<16x144xbf16>
    %c0_1 = arith.constant 0 : index
    %c0_2 = arith.constant 0 : index
    %2 = vector.load %arg4[%c0_1, %c0_2] : memref<16x1xf32, #tpu.memory_space<vmem>>, vector<16x1xf32>
    %3 = vector.shape_cast %2 : vector<16x1xf32> to vector<16x1xf32>
    %4 = vector.broadcast %3 : vector<16x1xf32> to vector<16x30xf32>
    %c0_i32 = arith.constant 0 : i32
    %c15_i32_3 = arith.constant 15 : i32
    %5 = arith.addi %c0_i32, %c15_i32_3 : i32
    %c1_i32 = arith.constant 1 : i32
    scf.for %arg7 = %c0_i32 to %5 step %c1_i32  : i32 {
      %6 = arith.addi %0, %arg7 : i32
      %c0_i32_5 = arith.constant 0 : i32
      %7 = arith.addi %6, %c0_i32_5 : i32
      %c0_6 = arith.constant 0 : index
      %8 = arith.index_cast %7 : i32 to index
      %c0_7 = arith.constant 0 : index
      %c0_8 = arith.constant 0 : index
      %9 = vector.load %arg2[%c0_6, %8, %c0_7, %c0_8] : memref<1x32x16x32xbf16, #tpu.memory_space<vmem>>, vector<1x1x16x32xbf16>
      %10 = vector.shape_cast %9 : vector<1x1x16x32xbf16> to vector<16x32xbf16>
      %11 = vector.extract_strided_slice %10 {offsets = [0, 0], sizes = [16, 30], strides = [1, 1]} : vector<16x32xbf16> to vector<16x30xbf16>
      %12 = vector.extract_strided_slice %10 {offsets = [0, 1], sizes = [16, 30], strides = [1, 1]} : vector<16x32xbf16> to vector<16x30xbf16>
      %13 = vector.extract_strided_slice %10 {offsets = [0, 2], sizes = [16, 30], strides = [1, 1]} : vector<16x32xbf16> to vector<16x30xbf16>
      %c0_9 = arith.constant 0 : index
      %c0_10 = arith.constant 0 : index
      %14 = vector.load %arg6[%c0_9, %c0_10] : memref<144x30xbf16, #tpu.memory_space<vmem>>, vector<16x30xbf16>
      tpu.vector_store %arg6[%c0_9, %c0_10], %11 {strides = array<i32>} : memref<144x30xbf16, #tpu.memory_space<vmem>>, vector<16x30xbf16>,
      %c16 = arith.constant 16 : index
      %c0_11 = arith.constant 0 : index
      %15 = vector.load %arg6[%c16, %c0_11] : memref<144x30xbf16, #tpu.memory_space<vmem>>, vector<16x30xbf16>
      tpu.vector_store %arg6[%c16, %c0_11], %12 {strides = array<i32>} : memref<144x30xbf16, #tpu.memory_space<vmem>>, vector<16x30xbf16>,
      %c32 = arith.constant 32 : index
      %c0_12 = arith.constant 0 : index
      %16 = vector.load %arg6[%c32, %c0_12] : memref<144x30xbf16, #tpu.memory_space<vmem>>, vector<16x30xbf16>
      tpu.vector_store %arg6[%c32, %c0_12], %13 {strides = array<i32>} : memref<144x30xbf16, #tpu.memory_space<vmem>>, vector<16x30xbf16>,
      %c1_i32_13 = arith.constant 1 : i32
      %17 = arith.addi %6, %c1_i32_13 : i32
      %c0_14 = arith.constant 0 : index
      %18 = arith.index_cast %17 : i32 to index
      %c0_15 = arith.constant 0 : index
      %c0_16 = arith.constant 0 : index
      %19 = vector.load %arg2[%c0_14, %18, %c0_15, %c0_16] : memref<1x32x16x32xbf16, #tpu.memory_space<vmem>>, vector<1x1x16x32xbf16>
      %20 = vector.shape_cast %19 : vector<1x1x16x32xbf16> to vector<16x32xbf16>
      %21 = vector.extract_strided_slice %20 {offsets = [0, 0], sizes = [16, 30], strides = [1, 1]} : vector<16x32xbf16> to vector<16x30xbf16>
      %22 = vector.extract_strided_slice %20 {offsets = [0, 1], sizes = [16, 30], strides = [1, 1]} : vector<16x32xbf16> to vector<16x30xbf16>
      %23 = vector.extract_strided_slice %20 {offsets = [0, 2], sizes = [16, 30], strides = [1, 1]} : vector<16x32xbf16> to vector<16x30xbf16>
      %c48 = arith.constant 48 : index
      %c0_17 = arith.constant 0 : index
      %24 = vector.load %arg6[%c48, %c0_17] : memref<144x30xbf16, #tpu.memory_space<vmem>>, vector<16x30xbf16>
      tpu.vector_store %arg6[%c48, %c0_17], %21 {strides = array<i32>} : memref<144x30xbf16, #tpu.memory_space<vmem>>, vector<16x30xbf16>,
      %c64 = arith.constant 64 : index
      %c0_18 = arith.constant 0 : index
      %25 = vector.load %arg6[%c64, %c0_18] : memref<144x30xbf16, #tpu.memory_space<vmem>>, vector<16x30xbf16>
      tpu.vector_store %arg6[%c64, %c0_18], %22 {strides = array<i32>} : memref<144x30xbf16, #tpu.memory_space<vmem>>, vector<16x30xbf16>,
      %c80 = arith.constant 80 : index
      %c0_19 = arith.constant 0 : index
      %26 = vector.load %arg6[%c80, %c0_19] : memref<144x30xbf16, #tpu.memory_space<vmem>>, vector<16x30xbf16>
      tpu.vector_store %arg6[%c80, %c0_19], %23 {strides = array<i32>} : memref<144x30xbf16, #tpu.memory_space<vmem>>, vector<16x30xbf16>,
      %c2_i32 = arith.constant 2 : i32
      %27 = arith.addi %6, %c2_i32 : i32
      %c0_20 = arith.constant 0 : index
      %28 = arith.index_cast %27 : i32 to index
      %c0_21 = arith.constant 0 : index
      %c0_22 = arith.constant 0 : index
      %29 = vector.load %arg2[%c0_20, %28, %c0_21, %c0_22] : memref<1x32x16x32xbf16, #tpu.memory_space<vmem>>, vector<1x1x16x32xbf16>
      %30 = vector.shape_cast %29 : vector<1x1x16x32xbf16> to vector<16x32xbf16>
      %31 = vector.extract_strided_slice %30 {offsets = [0, 0], sizes = [16, 30], strides = [1, 1]} : vector<16x32xbf16> to vector<16x30xbf16>
      %32 = vector.extract_strided_slice %30 {offsets = [0, 1], sizes = [16, 30], strides = [1, 1]} : vector<16x32xbf16> to vector<16x30xbf16>
      %33 = vector.extract_strided_slice %30 {offsets = [0, 2], sizes = [16, 30], strides = [1, 1]} : vector<16x32xbf16> to vector<16x30xbf16>
      %c96 = arith.constant 96 : index
      %c0_23 = arith.constant 0 : index
      %34 = vector.load %arg6[%c96, %c0_23] : memref<144x30xbf16, #tpu.memory_space<vmem>>, vector<16x30xbf16>
      tpu.vector_store %arg6[%c96, %c0_23], %31 {strides = array<i32>} : memref<144x30xbf16, #tpu.memory_space<vmem>>, vector<16x30xbf16>,
      %c112 = arith.constant 112 : index
      %c0_24 = arith.constant 0 : index
      %35 = vector.load %arg6[%c112, %c0_24] : memref<144x30xbf16, #tpu.memory_space<vmem>>, vector<16x30xbf16>
      tpu.vector_store %arg6[%c112, %c0_24], %32 {strides = array<i32>} : memref<144x30xbf16, #tpu.memory_space<vmem>>, vector<16x30xbf16>,
      %c128 = arith.constant 128 : index
      %c0_25 = arith.constant 0 : index
      %36 = vector.load %arg6[%c128, %c0_25] : memref<144x30xbf16, #tpu.memory_space<vmem>>, vector<16x30xbf16>
      tpu.vector_store %arg6[%c128, %c0_25], %33 {strides = array<i32>} : memref<144x30xbf16, #tpu.memory_space<vmem>>, vector<16x30xbf16>,
      %c0_26 = arith.constant 0 : index
      %c0_27 = arith.constant 0 : index
      %37 = vector.load %arg6[%c0_26, %c0_27] : memref<144x30xbf16, #tpu.memory_space<vmem>>, vector<144x30xbf16>
      %cst = arith.constant dense<0.000000e+00> : vector<16x30xf32>
      %38 = tpu.matmul %1, %37, %cst {dimension_numbers = #tpu.dot_dimension_numbers<[1], [0], [0], [1], [0, 0, 1, 1], [], []>} : vector<16x144xbf16>, vector<144x30xbf16>, vector<16x30xf32> -> vector<16x30xf32>
      %39 = arith.addf %38, %4 : vector<16x30xf32>
      %cst_28 = arith.constant 0.000000e+00 : f32
      %40 = vector.broadcast %cst_28 : f32 to vector<16x30xf32>
      %41 = arith.maximumf %39, %40 : vector<16x30xf32>
      %42 = arith.truncf %41 : vector<16x30xf32> to vector<16x30xbf16>
      %c0_29 = arith.constant 0 : index
      %43 = arith.index_cast %arg7 : i32 to index
      %c0_30 = arith.constant 0 : index
      %c0_31 = arith.constant 0 : index
      %44 = vector.load %arg5[%c0_29, %43, %c0_30, %c0_31] : memref<1x15x16x30xbf16, #tpu.memory_space<vmem>>, vector<1x1x16x30xbf16>
      %45 = vector.shape_cast %44 : vector<1x1x16x30xbf16> to vector<16x30xbf16>
      %46 = vector.shape_cast %42 : vector<16x30xbf16> to vector<1x1x16x30xbf16>
      tpu.vector_store %arg5[%c0_29, %43, %c0_30, %c0_31], %46 {strides = array<i32>} : memref<1x15x16x30xbf16, #tpu.memory_space<vmem>>, vector<1x1x16x30xbf16>,
    }
    %c15_i32_4 = arith.constant 15 : i32
    return
  }
  func.func @transform_0(%arg0: i32, %arg1: i32) -> (i32, i32, i32, i32) {
    %c0_i32 = arith.constant 0 : i32
    %c0_i32_0 = arith.constant 0 : i32
    %c0_i32_1 = arith.constant 0 : i32
    %c0_i32_2 = arith.constant 0 : i32
    return %arg0, %c0_i32, %c0_i32_0, %c0_i32_1 : i32, i32, i32, i32
  }
  func.func @transform_1(%arg0: i32, %arg1: i32) -> (i32, i32) {
    %c0_i32 = arith.constant 0 : i32
    %c0_i32_0 = arith.constant 0 : i32
    %c0_i32_1 = arith.constant 0 : i32
    return %c0_i32, %c0_i32_0 : i32, i32
  }
  func.func @transform_2(%arg0: i32, %arg1: i32) -> (i32, i32) {
    %c0_i32 = arith.constant 0 : i32
    %c0_i32_0 = arith.constant 0 : i32
    %c0_i32_1 = arith.constant 0 : i32
    return %c0_i32, %c0_i32_0 : i32, i32
  }
  func.func @transform_3(%arg0: i32, %arg1: i32) -> (i32, i32, i32, i32) {
    %c0_i32 = arith.constant 0 : i32
    %c0_i32_0 = arith.constant 0 : i32
    %c0_i32_1 = arith.constant 0 : i32
    return %arg0, %arg1, %c0_i32, %c0_i32_0 : i32, i32, i32, i32
  }
}

module attributes {stable_mosaic.version = 11 : i64} {
  func.func @_conv3x3_kernel(%arg0: i32, %arg1: i32, %arg2: memref<1x30x16x15xbf16, #tpu.memory_space<vmem>>, %arg3: memref<1x30x16x15xbf16, #tpu.memory_space<vmem>>, %arg4: memref<32x144xbf16, #tpu.memory_space<vmem>>, %arg5: memref<32x1xf32, #tpu.memory_space<vmem>>, %arg6: memref<1x7x32x14xbf16, #tpu.memory_space<vmem>>, %arg7: memref<144x14xbf16, #tpu.memory_space<vmem>>) attributes {dimension_semantics = [#tpu.dimension_semantics<parallel>, #tpu.dimension_semantics<parallel>], iteration_bounds = array<i64: 2, 2>, scalar_prefetch = 0 : i64, scratch_operands = 1 : i64, tpu.core_type = #tpu.core_type<tc>, window_params = [{transform_indices = @transform_0, window_bounds = array<i64: 1, 30, 16, 15>}, {transform_indices = @transform_1, window_bounds = array<i64: 1, 30, 16, 15>}, {pipeline_mode = #tpu.pipeline_mode<synchronous>, transform_indices = @transform_2, window_bounds = array<i64: 32, 144>}, {pipeline_mode = #tpu.pipeline_mode<synchronous>, transform_indices = @transform_3, window_bounds = array<i64: 32, 1>}, {transform_indices = @transform_4, window_bounds = array<i64: 1, 7, 32, 14>}]} {
    %c7_i32 = arith.constant 7 : i32
    %0 = arith.muli %arg1, %c7_i32 : i32
    %c0 = arith.constant 0 : index
    %c0_0 = arith.constant 0 : index
    %1 = vector.load %arg4[%c0, %c0_0] : memref<32x144xbf16, #tpu.memory_space<vmem>>, vector<32x144xbf16>
    %c0_1 = arith.constant 0 : index
    %c0_2 = arith.constant 0 : index
    %2 = vector.load %arg5[%c0_1, %c0_2] : memref<32x1xf32, #tpu.memory_space<vmem>>, vector<32x1xf32>
    %3 = vector.shape_cast %2 : vector<32x1xf32> to vector<32x1xf32>
    %4 = vector.broadcast %3 : vector<32x1xf32> to vector<32x14xf32>
    %c0_i32 = arith.constant 0 : i32
    %c7_i32_3 = arith.constant 7 : i32
    %5 = arith.addi %c0_i32, %c7_i32_3 : i32
    %c1_i32 = arith.constant 1 : i32
    scf.for %arg8 = %c0_i32 to %5 step %c1_i32  : i32 {
      %6 = arith.addi %0, %arg8 : i32
      %c2_i32 = arith.constant 2 : i32
      %7 = arith.muli %c2_i32, %6 : i32
      %c0_i32_5 = arith.constant 0 : i32
      %8 = arith.addi %7, %c0_i32_5 : i32
      %c0_6 = arith.constant 0 : index
      %9 = arith.index_cast %8 : i32 to index
      %c0_7 = arith.constant 0 : index
      %c0_8 = arith.constant 0 : index
      %10 = vector.load %arg2[%c0_6, %9, %c0_7, %c0_8] : memref<1x30x16x15xbf16, #tpu.memory_space<vmem>>, vector<1x1x16x15xbf16>
      %11 = vector.shape_cast %10 : vector<1x1x16x15xbf16> to vector<16x15xbf16>
      %c0_9 = arith.constant 0 : index
      %12 = arith.index_cast %8 : i32 to index
      %c0_10 = arith.constant 0 : index
      %c0_11 = arith.constant 0 : index
      %13 = vector.load %arg3[%c0_9, %12, %c0_10, %c0_11] : memref<1x30x16x15xbf16, #tpu.memory_space<vmem>>, vector<1x1x16x15xbf16>
      %14 = vector.shape_cast %13 : vector<1x1x16x15xbf16> to vector<16x15xbf16>
      %15 = vector.extract_strided_slice %11 {offsets = [0, 0], sizes = [16, 14], strides = [1, 1]} : vector<16x15xbf16> to vector<16x14xbf16>
      %16 = vector.extract_strided_slice %14 {offsets = [0, 0], sizes = [16, 14], strides = [1, 1]} : vector<16x15xbf16> to vector<16x14xbf16>
      %17 = vector.extract_strided_slice %11 {offsets = [0, 1], sizes = [16, 14], strides = [1, 1]} : vector<16x15xbf16> to vector<16x14xbf16>
      %c0_12 = arith.constant 0 : index
      %c0_13 = arith.constant 0 : index
      %18 = vector.load %arg7[%c0_12, %c0_13] : memref<144x14xbf16, #tpu.memory_space<vmem>>, vector<16x14xbf16>
      tpu.vector_store %arg7[%c0_12, %c0_13], %15 {strides = array<i32>} : memref<144x14xbf16, #tpu.memory_space<vmem>>, vector<16x14xbf16>,
      %c16 = arith.constant 16 : index
      %c0_14 = arith.constant 0 : index
      %19 = vector.load %arg7[%c16, %c0_14] : memref<144x14xbf16, #tpu.memory_space<vmem>>, vector<16x14xbf16>
      tpu.vector_store %arg7[%c16, %c0_14], %16 {strides = array<i32>} : memref<144x14xbf16, #tpu.memory_space<vmem>>, vector<16x14xbf16>,
      %c32 = arith.constant 32 : index
      %c0_15 = arith.constant 0 : index
      %20 = vector.load %arg7[%c32, %c0_15] : memref<144x14xbf16, #tpu.memory_space<vmem>>, vector<16x14xbf16>
      tpu.vector_store %arg7[%c32, %c0_15], %17 {strides = array<i32>} : memref<144x14xbf16, #tpu.memory_space<vmem>>, vector<16x14xbf16>,
      %c2_i32_16 = arith.constant 2 : i32
      %21 = arith.muli %c2_i32_16, %6 : i32
      %c1_i32_17 = arith.constant 1 : i32
      %22 = arith.addi %21, %c1_i32_17 : i32
      %c0_18 = arith.constant 0 : index
      %23 = arith.index_cast %22 : i32 to index
      %c0_19 = arith.constant 0 : index
      %c0_20 = arith.constant 0 : index
      %24 = vector.load %arg2[%c0_18, %23, %c0_19, %c0_20] : memref<1x30x16x15xbf16, #tpu.memory_space<vmem>>, vector<1x1x16x15xbf16>
      %25 = vector.shape_cast %24 : vector<1x1x16x15xbf16> to vector<16x15xbf16>
      %c0_21 = arith.constant 0 : index
      %26 = arith.index_cast %22 : i32 to index
      %c0_22 = arith.constant 0 : index
      %c0_23 = arith.constant 0 : index
      %27 = vector.load %arg3[%c0_21, %26, %c0_22, %c0_23] : memref<1x30x16x15xbf16, #tpu.memory_space<vmem>>, vector<1x1x16x15xbf16>
      %28 = vector.shape_cast %27 : vector<1x1x16x15xbf16> to vector<16x15xbf16>
      %29 = vector.extract_strided_slice %25 {offsets = [0, 0], sizes = [16, 14], strides = [1, 1]} : vector<16x15xbf16> to vector<16x14xbf16>
      %30 = vector.extract_strided_slice %28 {offsets = [0, 0], sizes = [16, 14], strides = [1, 1]} : vector<16x15xbf16> to vector<16x14xbf16>
      %31 = vector.extract_strided_slice %25 {offsets = [0, 1], sizes = [16, 14], strides = [1, 1]} : vector<16x15xbf16> to vector<16x14xbf16>
      %c48 = arith.constant 48 : index
      %c0_24 = arith.constant 0 : index
      %32 = vector.load %arg7[%c48, %c0_24] : memref<144x14xbf16, #tpu.memory_space<vmem>>, vector<16x14xbf16>
      tpu.vector_store %arg7[%c48, %c0_24], %29 {strides = array<i32>} : memref<144x14xbf16, #tpu.memory_space<vmem>>, vector<16x14xbf16>,
      %c64 = arith.constant 64 : index
      %c0_25 = arith.constant 0 : index
      %33 = vector.load %arg7[%c64, %c0_25] : memref<144x14xbf16, #tpu.memory_space<vmem>>, vector<16x14xbf16>
      tpu.vector_store %arg7[%c64, %c0_25], %30 {strides = array<i32>} : memref<144x14xbf16, #tpu.memory_space<vmem>>, vector<16x14xbf16>,
      %c80 = arith.constant 80 : index
      %c0_26 = arith.constant 0 : index
      %34 = vector.load %arg7[%c80, %c0_26] : memref<144x14xbf16, #tpu.memory_space<vmem>>, vector<16x14xbf16>
      tpu.vector_store %arg7[%c80, %c0_26], %31 {strides = array<i32>} : memref<144x14xbf16, #tpu.memory_space<vmem>>, vector<16x14xbf16>,
      %c2_i32_27 = arith.constant 2 : i32
      %35 = arith.muli %c2_i32_27, %6 : i32
      %c2_i32_28 = arith.constant 2 : i32
      %36 = arith.addi %35, %c2_i32_28 : i32
      %c0_29 = arith.constant 0 : index
      %37 = arith.index_cast %36 : i32 to index
      %c0_30 = arith.constant 0 : index
      %c0_31 = arith.constant 0 : index
      %38 = vector.load %arg2[%c0_29, %37, %c0_30, %c0_31] : memref<1x30x16x15xbf16, #tpu.memory_space<vmem>>, vector<1x1x16x15xbf16>
      %39 = vector.shape_cast %38 : vector<1x1x16x15xbf16> to vector<16x15xbf16>
      %c0_32 = arith.constant 0 : index
      %40 = arith.index_cast %36 : i32 to index
      %c0_33 = arith.constant 0 : index
      %c0_34 = arith.constant 0 : index
      %41 = vector.load %arg3[%c0_32, %40, %c0_33, %c0_34] : memref<1x30x16x15xbf16, #tpu.memory_space<vmem>>, vector<1x1x16x15xbf16>
      %42 = vector.shape_cast %41 : vector<1x1x16x15xbf16> to vector<16x15xbf16>
      %43 = vector.extract_strided_slice %39 {offsets = [0, 0], sizes = [16, 14], strides = [1, 1]} : vector<16x15xbf16> to vector<16x14xbf16>
      %44 = vector.extract_strided_slice %42 {offsets = [0, 0], sizes = [16, 14], strides = [1, 1]} : vector<16x15xbf16> to vector<16x14xbf16>
      %45 = vector.extract_strided_slice %39 {offsets = [0, 1], sizes = [16, 14], strides = [1, 1]} : vector<16x15xbf16> to vector<16x14xbf16>
      %c96 = arith.constant 96 : index
      %c0_35 = arith.constant 0 : index
      %46 = vector.load %arg7[%c96, %c0_35] : memref<144x14xbf16, #tpu.memory_space<vmem>>, vector<16x14xbf16>
      tpu.vector_store %arg7[%c96, %c0_35], %43 {strides = array<i32>} : memref<144x14xbf16, #tpu.memory_space<vmem>>, vector<16x14xbf16>,
      %c112 = arith.constant 112 : index
      %c0_36 = arith.constant 0 : index
      %47 = vector.load %arg7[%c112, %c0_36] : memref<144x14xbf16, #tpu.memory_space<vmem>>, vector<16x14xbf16>
      tpu.vector_store %arg7[%c112, %c0_36], %44 {strides = array<i32>} : memref<144x14xbf16, #tpu.memory_space<vmem>>, vector<16x14xbf16>,
      %c128 = arith.constant 128 : index
      %c0_37 = arith.constant 0 : index
      %48 = vector.load %arg7[%c128, %c0_37] : memref<144x14xbf16, #tpu.memory_space<vmem>>, vector<16x14xbf16>
      tpu.vector_store %arg7[%c128, %c0_37], %45 {strides = array<i32>} : memref<144x14xbf16, #tpu.memory_space<vmem>>, vector<16x14xbf16>,
      %c0_38 = arith.constant 0 : index
      %c0_39 = arith.constant 0 : index
      %49 = vector.load %arg7[%c0_38, %c0_39] : memref<144x14xbf16, #tpu.memory_space<vmem>>, vector<144x14xbf16>
      %cst = arith.constant dense<0.000000e+00> : vector<32x14xf32>
      %50 = tpu.matmul %1, %49, %cst {dimension_numbers = #tpu.dot_dimension_numbers<[1], [0], [0], [1], [0, 0, 1, 1], [], []>} : vector<32x144xbf16>, vector<144x14xbf16>, vector<32x14xf32> -> vector<32x14xf32>
      %51 = arith.addf %50, %4 : vector<32x14xf32>
      %cst_40 = arith.constant 0.000000e+00 : f32
      %52 = vector.broadcast %cst_40 : f32 to vector<32x14xf32>
      %53 = arith.maximumf %51, %52 : vector<32x14xf32>
      %54 = arith.truncf %53 : vector<32x14xf32> to vector<32x14xbf16>
      %c0_41 = arith.constant 0 : index
      %55 = arith.index_cast %arg8 : i32 to index
      %c0_42 = arith.constant 0 : index
      %c0_43 = arith.constant 0 : index
      %56 = vector.load %arg6[%c0_41, %55, %c0_42, %c0_43] : memref<1x7x32x14xbf16, #tpu.memory_space<vmem>>, vector<1x1x32x14xbf16>
      %57 = vector.shape_cast %56 : vector<1x1x32x14xbf16> to vector<32x14xbf16>
      %58 = vector.shape_cast %54 : vector<32x14xbf16> to vector<1x1x32x14xbf16>
      tpu.vector_store %arg6[%c0_41, %55, %c0_42, %c0_43], %58 {strides = array<i32>} : memref<1x7x32x14xbf16, #tpu.memory_space<vmem>>, vector<1x1x32x14xbf16>,
    }
    %c7_i32_4 = arith.constant 7 : i32
    return
  }
  func.func @transform_0(%arg0: i32, %arg1: i32) -> (i32, i32, i32, i32) {
    %c0_i32 = arith.constant 0 : i32
    %c0_i32_0 = arith.constant 0 : i32
    %c0_i32_1 = arith.constant 0 : i32
    %c0_i32_2 = arith.constant 0 : i32
    return %arg0, %c0_i32, %c0_i32_0, %c0_i32_1 : i32, i32, i32, i32
  }
  func.func @transform_1(%arg0: i32, %arg1: i32) -> (i32, i32, i32, i32) {
    %c0_i32 = arith.constant 0 : i32
    %c0_i32_0 = arith.constant 0 : i32
    %c0_i32_1 = arith.constant 0 : i32
    %c0_i32_2 = arith.constant 0 : i32
    return %arg0, %c0_i32, %c0_i32_0, %c0_i32_1 : i32, i32, i32, i32
  }
  func.func @transform_2(%arg0: i32, %arg1: i32) -> (i32, i32) {
    %c0_i32 = arith.constant 0 : i32
    %c0_i32_0 = arith.constant 0 : i32
    %c0_i32_1 = arith.constant 0 : i32
    return %c0_i32, %c0_i32_0 : i32, i32
  }
  func.func @transform_3(%arg0: i32, %arg1: i32) -> (i32, i32) {
    %c0_i32 = arith.constant 0 : i32
    %c0_i32_0 = arith.constant 0 : i32
    %c0_i32_1 = arith.constant 0 : i32
    return %c0_i32, %c0_i32_0 : i32, i32
  }
  func.func @transform_4(%arg0: i32, %arg1: i32) -> (i32, i32, i32, i32) {
    %c0_i32 = arith.constant 0 : i32
    %c0_i32_0 = arith.constant 0 : i32
    %c0_i32_1 = arith.constant 0 : i32
    return %arg0, %arg1, %c0_i32, %c0_i32_0 : i32, i32, i32, i32
  }
}

module attributes {stable_mosaic.version = 11 : i64} {
  func.func @_conv3x3_kernel(%arg0: i32, %arg1: i32, %arg2: memref<1x14x32x7xbf16, #tpu.memory_space<vmem>>, %arg3: memref<1x14x32x7xbf16, #tpu.memory_space<vmem>>, %arg4: memref<32x288xbf16, #tpu.memory_space<vmem>>, %arg5: memref<32x1xf32, #tpu.memory_space<vmem>>, %arg6: memref<1x3x32x6xbf16, #tpu.memory_space<vmem>>, %arg7: memref<288x6xbf16, #tpu.memory_space<vmem>>) attributes {dimension_semantics = [#tpu.dimension_semantics<parallel>, #tpu.dimension_semantics<parallel>], iteration_bounds = array<i64: 2, 2>, scalar_prefetch = 0 : i64, scratch_operands = 1 : i64, tpu.core_type = #tpu.core_type<tc>, window_params = [{transform_indices = @transform_0, window_bounds = array<i64: 1, 14, 32, 7>}, {transform_indices = @transform_1, window_bounds = array<i64: 1, 14, 32, 7>}, {pipeline_mode = #tpu.pipeline_mode<synchronous>, transform_indices = @transform_2, window_bounds = array<i64: 32, 288>}, {pipeline_mode = #tpu.pipeline_mode<synchronous>, transform_indices = @transform_3, window_bounds = array<i64: 32, 1>}, {transform_indices = @transform_4, window_bounds = array<i64: 1, 3, 32, 6>}]} {
    %c3_i32 = arith.constant 3 : i32
    %0 = arith.muli %arg1, %c3_i32 : i32
    %c0 = arith.constant 0 : index
    %c0_0 = arith.constant 0 : index
    %1 = vector.load %arg4[%c0, %c0_0] : memref<32x288xbf16, #tpu.memory_space<vmem>>, vector<32x288xbf16>
    %c0_1 = arith.constant 0 : index
    %c0_2 = arith.constant 0 : index
    %2 = vector.load %arg5[%c0_1, %c0_2] : memref<32x1xf32, #tpu.memory_space<vmem>>, vector<32x1xf32>
    %3 = vector.shape_cast %2 : vector<32x1xf32> to vector<32x1xf32>
    %4 = vector.broadcast %3 : vector<32x1xf32> to vector<32x6xf32>
    %c0_i32 = arith.constant 0 : i32
    %c3_i32_3 = arith.constant 3 : i32
    %5 = arith.addi %c0_i32, %c3_i32_3 : i32
    %c1_i32 = arith.constant 1 : i32
    scf.for %arg8 = %c0_i32 to %5 step %c1_i32  : i32 {
      %6 = arith.addi %0, %arg8 : i32
      %c2_i32 = arith.constant 2 : i32
      %7 = arith.muli %c2_i32, %6 : i32
      %c0_i32_5 = arith.constant 0 : i32
      %8 = arith.addi %7, %c0_i32_5 : i32
      %c0_6 = arith.constant 0 : index
      %9 = arith.index_cast %8 : i32 to index
      %c0_7 = arith.constant 0 : index
      %c0_8 = arith.constant 0 : index
      %10 = vector.load %arg2[%c0_6, %9, %c0_7, %c0_8] : memref<1x14x32x7xbf16, #tpu.memory_space<vmem>>, vector<1x1x32x7xbf16>
      %11 = vector.shape_cast %10 : vector<1x1x32x7xbf16> to vector<32x7xbf16>
      %c0_9 = arith.constant 0 : index
      %12 = arith.index_cast %8 : i32 to index
      %c0_10 = arith.constant 0 : index
      %c0_11 = arith.constant 0 : index
      %13 = vector.load %arg3[%c0_9, %12, %c0_10, %c0_11] : memref<1x14x32x7xbf16, #tpu.memory_space<vmem>>, vector<1x1x32x7xbf16>
      %14 = vector.shape_cast %13 : vector<1x1x32x7xbf16> to vector<32x7xbf16>
      %15 = vector.extract_strided_slice %11 {offsets = [0, 0], sizes = [32, 6], strides = [1, 1]} : vector<32x7xbf16> to vector<32x6xbf16>
      %16 = vector.extract_strided_slice %14 {offsets = [0, 0], sizes = [32, 6], strides = [1, 1]} : vector<32x7xbf16> to vector<32x6xbf16>
      %17 = vector.extract_strided_slice %11 {offsets = [0, 1], sizes = [32, 6], strides = [1, 1]} : vector<32x7xbf16> to vector<32x6xbf16>
      %c0_12 = arith.constant 0 : index
      %c0_13 = arith.constant 0 : index
      %18 = vector.load %arg7[%c0_12, %c0_13] : memref<288x6xbf16, #tpu.memory_space<vmem>>, vector<32x6xbf16>
      tpu.vector_store %arg7[%c0_12, %c0_13], %15 {strides = array<i32>} : memref<288x6xbf16, #tpu.memory_space<vmem>>, vector<32x6xbf16>,
      %c32 = arith.constant 32 : index
      %c0_14 = arith.constant 0 : index
      %19 = vector.load %arg7[%c32, %c0_14] : memref<288x6xbf16, #tpu.memory_space<vmem>>, vector<32x6xbf16>
      tpu.vector_store %arg7[%c32, %c0_14], %16 {strides = array<i32>} : memref<288x6xbf16, #tpu.memory_space<vmem>>, vector<32x6xbf16>,
      %c64 = arith.constant 64 : index
      %c0_15 = arith.constant 0 : index
      %20 = vector.load %arg7[%c64, %c0_15] : memref<288x6xbf16, #tpu.memory_space<vmem>>, vector<32x6xbf16>
      tpu.vector_store %arg7[%c64, %c0_15], %17 {strides = array<i32>} : memref<288x6xbf16, #tpu.memory_space<vmem>>, vector<32x6xbf16>,
      %c2_i32_16 = arith.constant 2 : i32
      %21 = arith.muli %c2_i32_16, %6 : i32
      %c1_i32_17 = arith.constant 1 : i32
      %22 = arith.addi %21, %c1_i32_17 : i32
      %c0_18 = arith.constant 0 : index
      %23 = arith.index_cast %22 : i32 to index
      %c0_19 = arith.constant 0 : index
      %c0_20 = arith.constant 0 : index
      %24 = vector.load %arg2[%c0_18, %23, %c0_19, %c0_20] : memref<1x14x32x7xbf16, #tpu.memory_space<vmem>>, vector<1x1x32x7xbf16>
      %25 = vector.shape_cast %24 : vector<1x1x32x7xbf16> to vector<32x7xbf16>
      %c0_21 = arith.constant 0 : index
      %26 = arith.index_cast %22 : i32 to index
      %c0_22 = arith.constant 0 : index
      %c0_23 = arith.constant 0 : index
      %27 = vector.load %arg3[%c0_21, %26, %c0_22, %c0_23] : memref<1x14x32x7xbf16, #tpu.memory_space<vmem>>, vector<1x1x32x7xbf16>
      %28 = vector.shape_cast %27 : vector<1x1x32x7xbf16> to vector<32x7xbf16>
      %29 = vector.extract_strided_slice %25 {offsets = [0, 0], sizes = [32, 6], strides = [1, 1]} : vector<32x7xbf16> to vector<32x6xbf16>
      %30 = vector.extract_strided_slice %28 {offsets = [0, 0], sizes = [32, 6], strides = [1, 1]} : vector<32x7xbf16> to vector<32x6xbf16>
      %31 = vector.extract_strided_slice %25 {offsets = [0, 1], sizes = [32, 6], strides = [1, 1]} : vector<32x7xbf16> to vector<32x6xbf16>
      %c96 = arith.constant 96 : index
      %c0_24 = arith.constant 0 : index
      %32 = vector.load %arg7[%c96, %c0_24] : memref<288x6xbf16, #tpu.memory_space<vmem>>, vector<32x6xbf16>
      tpu.vector_store %arg7[%c96, %c0_24], %29 {strides = array<i32>} : memref<288x6xbf16, #tpu.memory_space<vmem>>, vector<32x6xbf16>,
      %c128 = arith.constant 128 : index
      %c0_25 = arith.constant 0 : index
      %33 = vector.load %arg7[%c128, %c0_25] : memref<288x6xbf16, #tpu.memory_space<vmem>>, vector<32x6xbf16>
      tpu.vector_store %arg7[%c128, %c0_25], %30 {strides = array<i32>} : memref<288x6xbf16, #tpu.memory_space<vmem>>, vector<32x6xbf16>,
      %c160 = arith.constant 160 : index
      %c0_26 = arith.constant 0 : index
      %34 = vector.load %arg7[%c160, %c0_26] : memref<288x6xbf16, #tpu.memory_space<vmem>>, vector<32x6xbf16>
      tpu.vector_store %arg7[%c160, %c0_26], %31 {strides = array<i32>} : memref<288x6xbf16, #tpu.memory_space<vmem>>, vector<32x6xbf16>,
      %c2_i32_27 = arith.constant 2 : i32
      %35 = arith.muli %c2_i32_27, %6 : i32
      %c2_i32_28 = arith.constant 2 : i32
      %36 = arith.addi %35, %c2_i32_28 : i32
      %c0_29 = arith.constant 0 : index
      %37 = arith.index_cast %36 : i32 to index
      %c0_30 = arith.constant 0 : index
      %c0_31 = arith.constant 0 : index
      %38 = vector.load %arg2[%c0_29, %37, %c0_30, %c0_31] : memref<1x14x32x7xbf16, #tpu.memory_space<vmem>>, vector<1x1x32x7xbf16>
      %39 = vector.shape_cast %38 : vector<1x1x32x7xbf16> to vector<32x7xbf16>
      %c0_32 = arith.constant 0 : index
      %40 = arith.index_cast %36 : i32 to index
      %c0_33 = arith.constant 0 : index
      %c0_34 = arith.constant 0 : index
      %41 = vector.load %arg3[%c0_32, %40, %c0_33, %c0_34] : memref<1x14x32x7xbf16, #tpu.memory_space<vmem>>, vector<1x1x32x7xbf16>
      %42 = vector.shape_cast %41 : vector<1x1x32x7xbf16> to vector<32x7xbf16>
      %43 = vector.extract_strided_slice %39 {offsets = [0, 0], sizes = [32, 6], strides = [1, 1]} : vector<32x7xbf16> to vector<32x6xbf16>
      %44 = vector.extract_strided_slice %42 {offsets = [0, 0], sizes = [32, 6], strides = [1, 1]} : vector<32x7xbf16> to vector<32x6xbf16>
      %45 = vector.extract_strided_slice %39 {offsets = [0, 1], sizes = [32, 6], strides = [1, 1]} : vector<32x7xbf16> to vector<32x6xbf16>
      %c192 = arith.constant 192 : index
      %c0_35 = arith.constant 0 : index
      %46 = vector.load %arg7[%c192, %c0_35] : memref<288x6xbf16, #tpu.memory_space<vmem>>, vector<32x6xbf16>
      tpu.vector_store %arg7[%c192, %c0_35], %43 {strides = array<i32>} : memref<288x6xbf16, #tpu.memory_space<vmem>>, vector<32x6xbf16>,
      %c224 = arith.constant 224 : index
      %c0_36 = arith.constant 0 : index
      %47 = vector.load %arg7[%c224, %c0_36] : memref<288x6xbf16, #tpu.memory_space<vmem>>, vector<32x6xbf16>
      tpu.vector_store %arg7[%c224, %c0_36], %44 {strides = array<i32>} : memref<288x6xbf16, #tpu.memory_space<vmem>>, vector<32x6xbf16>,
      %c256 = arith.constant 256 : index
      %c0_37 = arith.constant 0 : index
      %48 = vector.load %arg7[%c256, %c0_37] : memref<288x6xbf16, #tpu.memory_space<vmem>>, vector<32x6xbf16>
      tpu.vector_store %arg7[%c256, %c0_37], %45 {strides = array<i32>} : memref<288x6xbf16, #tpu.memory_space<vmem>>, vector<32x6xbf16>,
      %c0_38 = arith.constant 0 : index
      %c0_39 = arith.constant 0 : index
      %49 = vector.load %arg7[%c0_38, %c0_39] : memref<288x6xbf16, #tpu.memory_space<vmem>>, vector<288x6xbf16>
      %cst = arith.constant dense<0.000000e+00> : vector<32x6xf32>
      %50 = tpu.matmul %1, %49, %cst {dimension_numbers = #tpu.dot_dimension_numbers<[1], [0], [0], [1], [0, 0, 1, 1], [], []>} : vector<32x288xbf16>, vector<288x6xbf16>, vector<32x6xf32> -> vector<32x6xf32>
      %51 = arith.addf %50, %4 : vector<32x6xf32>
      %cst_40 = arith.constant 0.000000e+00 : f32
      %52 = vector.broadcast %cst_40 : f32 to vector<32x6xf32>
      %53 = arith.maximumf %51, %52 : vector<32x6xf32>
      %54 = arith.truncf %53 : vector<32x6xf32> to vector<32x6xbf16>
      %c0_41 = arith.constant 0 : index
      %55 = arith.index_cast %arg8 : i32 to index
      %c0_42 = arith.constant 0 : index
      %c0_43 = arith.constant 0 : index
      %56 = vector.load %arg6[%c0_41, %55, %c0_42, %c0_43] : memref<1x3x32x6xbf16, #tpu.memory_space<vmem>>, vector<1x1x32x6xbf16>
      %57 = vector.shape_cast %56 : vector<1x1x32x6xbf16> to vector<32x6xbf16>
      %58 = vector.shape_cast %54 : vector<32x6xbf16> to vector<1x1x32x6xbf16>
      tpu.vector_store %arg6[%c0_41, %55, %c0_42, %c0_43], %58 {strides = array<i32>} : memref<1x3x32x6xbf16, #tpu.memory_space<vmem>>, vector<1x1x32x6xbf16>,
    }
    %c3_i32_4 = arith.constant 3 : i32
    return
  }
  func.func @transform_0(%arg0: i32, %arg1: i32) -> (i32, i32, i32, i32) {
    %c0_i32 = arith.constant 0 : i32
    %c0_i32_0 = arith.constant 0 : i32
    %c0_i32_1 = arith.constant 0 : i32
    %c0_i32_2 = arith.constant 0 : i32
    return %arg0, %c0_i32, %c0_i32_0, %c0_i32_1 : i32, i32, i32, i32
  }
  func.func @transform_1(%arg0: i32, %arg1: i32) -> (i32, i32, i32, i32) {
    %c0_i32 = arith.constant 0 : i32
    %c0_i32_0 = arith.constant 0 : i32
    %c0_i32_1 = arith.constant 0 : i32
    %c0_i32_2 = arith.constant 0 : i32
    return %arg0, %c0_i32, %c0_i32_0, %c0_i32_1 : i32, i32, i32, i32
  }
  func.func @transform_2(%arg0: i32, %arg1: i32) -> (i32, i32) {
    %c0_i32 = arith.constant 0 : i32
    %c0_i32_0 = arith.constant 0 : i32
    %c0_i32_1 = arith.constant 0 : i32
    return %c0_i32, %c0_i32_0 : i32, i32
  }
  func.func @transform_3(%arg0: i32, %arg1: i32) -> (i32, i32) {
    %c0_i32 = arith.constant 0 : i32
    %c0_i32_0 = arith.constant 0 : i32
    %c0_i32_1 = arith.constant 0 : i32
    return %c0_i32, %c0_i32_0 : i32, i32
  }
  func.func @transform_4(%arg0: i32, %arg1: i32) -> (i32, i32, i32, i32) {
    %c0_i32 = arith.constant 0 : i32
    %c0_i32_0 = arith.constant 0 : i32
    %c0_i32_1 = arith.constant 0 : i32
    return %arg0, %arg1, %c0_i32, %c0_i32_0 : i32, i32, i32, i32
  }
}

module attributes {stable_mosaic.version = 11 : i64} {
  func.func @_fc_chain_kernel(%arg0: i32, %arg1: memref<2x1152xbf16, #tpu.memory_space<vmem>>, %arg2: memref<1152x128xbf16, #tpu.memory_space<vmem>>, %arg3: memref<1x128xf32, #tpu.memory_space<vmem>>, %arg4: memref<128x1024xbf16, #tpu.memory_space<vmem>>, %arg5: memref<1x1024xf32, #tpu.memory_space<vmem>>, %arg6: memref<1024x1024xbf16, #tpu.memory_space<vmem>>, %arg7: memref<1x1024xf32, #tpu.memory_space<vmem>>, %arg8: memref<1024x3xbf16, #tpu.memory_space<vmem>>, %arg9: memref<1x3xf32, #tpu.memory_space<vmem>>, %arg10: memref<2x3xf32, #tpu.memory_space<vmem>>, %arg11: memref<2x1024xf32, #tpu.memory_space<vmem>>) attributes {dimension_semantics = [#tpu.dimension_semantics<arbitrary>], iteration_bounds = array<i64: 8>, scalar_prefetch = 0 : i64, scratch_operands = 1 : i64, tpu.core_type = #tpu.core_type<tc>, window_params = [{pipeline_mode = #tpu.pipeline_mode<synchronous>, transform_indices = @transform_0, window_bounds = array<i64: 2, 1152>}, {transform_indices = @transform_1, window_bounds = array<i64: 1152, 128>}, {transform_indices = @transform_2, window_bounds = array<i64: 1, 128>}, {transform_indices = @transform_3, window_bounds = array<i64: 128, 1024>}, {pipeline_mode = #tpu.pipeline_mode<synchronous>, transform_indices = @transform_4, window_bounds = array<i64: 1, 1024>}, {pipeline_mode = #tpu.pipeline_mode<synchronous>, transform_indices = @transform_5, window_bounds = array<i64: 1024, 1024>}, {pipeline_mode = #tpu.pipeline_mode<synchronous>, transform_indices = @transform_6, window_bounds = array<i64: 1, 1024>}, {pipeline_mode = #tpu.pipeline_mode<synchronous>, transform_indices = @transform_7, window_bounds = array<i64: 1024, 3>}, {pipeline_mode = #tpu.pipeline_mode<synchronous>, transform_indices = @transform_8, window_bounds = array<i64: 1, 3>}, {pipeline_mode = #tpu.pipeline_mode<synchronous>, transform_indices = @transform_9, window_bounds = array<i64: 2, 3>}]} {
    %c0_i32 = arith.constant 0 : i32
    %0 = arith.cmpi eq, %arg0, %c0_i32 : i32
    %1 = arith.extui %0 : i1 to i32
    %c0_i32_0 = arith.constant 0 : i32
    %2 = arith.cmpi ne, %1, %c0_i32_0 : i32
    scf.if %2 {
      %cst_15 = arith.constant 0.000000e+00 : f32
      %20 = vector.broadcast %cst_15 : f32 to vector<2x1024xf32>
      %c0_16 = arith.constant 0 : index
      %c0_17 = arith.constant 0 : index
      %21 = vector.load %arg11[%c0_16, %c0_17] : memref<2x1024xf32, #tpu.memory_space<vmem>>, vector<2x1024xf32>
      tpu.vector_store %arg11[%c0_16, %c0_17], %20 {strides = array<i32>} : memref<2x1024xf32, #tpu.memory_space<vmem>>, vector<2x1024xf32>,
    } else {
    }
    %c0 = arith.constant 0 : index
    %c0_1 = arith.constant 0 : index
    %3 = vector.load %arg1[%c0, %c0_1] : memref<2x1152xbf16, #tpu.memory_space<vmem>>, vector<2x1152xbf16>
    %c0_2 = arith.constant 0 : index
    %c0_3 = arith.constant 0 : index
    %4 = vector.load %arg2[%c0_2, %c0_3] : memref<1152x128xbf16, #tpu.memory_space<vmem>>, vector<1152x128xbf16>
    %cst = arith.constant dense<0.000000e+00> : vector<2x128xf32>
    %5 = tpu.matmul %3, %4, %cst {dimension_numbers = #tpu.dot_dimension_numbers<[1], [0], [0], [1], [0, 0, 1, 1], [], []>} : vector<2x1152xbf16>, vector<1152x128xbf16>, vector<2x128xf32> -> vector<2x128xf32>
    %c0_4 = arith.constant 0 : index
    %c0_5 = arith.constant 0 : index
    %6 = vector.load %arg3[%c0_4, %c0_5] : memref<1x128xf32, #tpu.memory_space<vmem>>, vector<1x128xf32>
    %7 = vector.broadcast %6 : vector<1x128xf32> to vector<2x128xf32>
    %8 = arith.addf %5, %7 : vector<2x128xf32>
    %cst_6 = arith.constant 0.000000e+00 : f32
    %9 = vector.broadcast %cst_6 : f32 to vector<2x128xf32>
    %10 = arith.maximumf %8, %9 : vector<2x128xf32>
    %c0_7 = arith.constant 0 : index
    %c0_8 = arith.constant 0 : index
    %11 = vector.load %arg11[%c0_7, %c0_8] : memref<2x1024xf32, #tpu.memory_space<vmem>>, vector<2x1024xf32>
    %12 = arith.truncf %10 : vector<2x128xf32> to vector<2x128xbf16>
    %c0_9 = arith.constant 0 : index
    %c0_10 = arith.constant 0 : index
    %13 = vector.load %arg4[%c0_9, %c0_10] : memref<128x1024xbf16, #tpu.memory_space<vmem>>, vector<128x1024xbf16>
    %cst_11 = arith.constant dense<0.000000e+00> : vector<2x1024xf32>
    %14 = tpu.matmul %12, %13, %cst_11 {dimension_numbers = #tpu.dot_dimension_numbers<[1], [0], [0], [1], [0, 0, 1, 1], [], []>} : vector<2x128xbf16>, vector<128x1024xbf16>, vector<2x1024xf32> -> vector<2x1024xf32>
    %15 = arith.addf %11, %14 : vector<2x1024xf32>
    %c0_12 = arith.constant 0 : index
    %c0_13 = arith.constant 0 : index
    %16 = vector.load %arg11[%c0_12, %c0_13] : memref<2x1024xf32, #tpu.memory_space<vmem>>, vector<2x1024xf32>
    tpu.vector_store %arg11[%c0_12, %c0_13], %15 {strides = array<i32>} : memref<2x1024xf32, #tpu.memory_space<vmem>>, vector<2x1024xf32>,
    %c7_i32 = arith.constant 7 : i32
    %17 = arith.cmpi eq, %arg0, %c7_i32 : i32
    %18 = arith.extui %17 : i1 to i32
    %c0_i32_14 = arith.constant 0 : i32
    %19 = arith.cmpi ne, %18, %c0_i32_14 : i32
    scf.if %19 {
      %c0_15 = arith.constant 0 : index
      %c0_16 = arith.constant 0 : index
      %20 = vector.load %arg11[%c0_15, %c0_16] : memref<2x1024xf32, #tpu.memory_space<vmem>>, vector<2x1024xf32>
      %c0_17 = arith.constant 0 : index
      %c0_18 = arith.constant 0 : index
      %21 = vector.load %arg5[%c0_17, %c0_18] : memref<1x1024xf32, #tpu.memory_space<vmem>>, vector<1x1024xf32>
      %22 = vector.broadcast %21 : vector<1x1024xf32> to vector<2x1024xf32>
      %23 = arith.addf %20, %22 : vector<2x1024xf32>
      %cst_19 = arith.constant 0.000000e+00 : f32
      %24 = vector.broadcast %cst_19 : f32 to vector<2x1024xf32>
      %25 = arith.maximumf %23, %24 : vector<2x1024xf32>
      %26 = arith.truncf %25 : vector<2x1024xf32> to vector<2x1024xbf16>
      %c0_20 = arith.constant 0 : index
      %c0_21 = arith.constant 0 : index
      %27 = vector.load %arg6[%c0_20, %c0_21] : memref<1024x1024xbf16, #tpu.memory_space<vmem>>, vector<1024x1024xbf16>
      %cst_22 = arith.constant dense<0.000000e+00> : vector<2x1024xf32>
      %28 = tpu.matmul %26, %27, %cst_22 {dimension_numbers = #tpu.dot_dimension_numbers<[1], [0], [0], [1], [0, 0, 1, 1], [], []>} : vector<2x1024xbf16>, vector<1024x1024xbf16>, vector<2x1024xf32> -> vector<2x1024xf32>
      %c0_23 = arith.constant 0 : index
      %c0_24 = arith.constant 0 : index
      %29 = vector.load %arg7[%c0_23, %c0_24] : memref<1x1024xf32, #tpu.memory_space<vmem>>, vector<1x1024xf32>
      %30 = vector.broadcast %29 : vector<1x1024xf32> to vector<2x1024xf32>
      %31 = arith.addf %28, %30 : vector<2x1024xf32>
      %32 = arith.truncf %31 : vector<2x1024xf32> to vector<2x1024xbf16>
      %c0_25 = arith.constant 0 : index
      %c0_26 = arith.constant 0 : index
      %33 = vector.load %arg8[%c0_25, %c0_26] : memref<1024x3xbf16, #tpu.memory_space<vmem>>, vector<1024x3xbf16>
      %cst_27 = arith.constant dense<0.000000e+00> : vector<2x3xf32>
      %34 = tpu.matmul %32, %33, %cst_27 {dimension_numbers = #tpu.dot_dimension_numbers<[1], [0], [0], [1], [0, 0, 1, 1], [], []>} : vector<2x1024xbf16>, vector<1024x3xbf16>, vector<2x3xf32> -> vector<2x3xf32>
      %c0_28 = arith.constant 0 : index
      %c0_29 = arith.constant 0 : index
      %35 = vector.load %arg9[%c0_28, %c0_29] : memref<1x3xf32, #tpu.memory_space<vmem>>, vector<1x3xf32>
      %36 = vector.broadcast %35 : vector<1x3xf32> to vector<2x3xf32>
      %37 = arith.addf %34, %36 : vector<2x3xf32>
      %c0_30 = arith.constant 0 : index
      %c0_31 = arith.constant 0 : index
      %38 = vector.load %arg10[%c0_30, %c0_31] : memref<2x3xf32, #tpu.memory_space<vmem>>, vector<2x3xf32>
      tpu.vector_store %arg10[%c0_30, %c0_31], %37 {strides = array<i32>} : memref<2x3xf32, #tpu.memory_space<vmem>>, vector<2x3xf32>,
    } else {
    }
    return
  }
  func.func @transform_0(%arg0: i32) -> (i32, i32) {
    %c0_i32 = arith.constant 0 : i32
    %c0_i32_0 = arith.constant 0 : i32
    %c0_i32_1 = arith.constant 0 : i32
    return %c0_i32, %c0_i32_0 : i32, i32
  }
  func.func @transform_1(%arg0: i32) -> (i32, i32) {
    %c0_i32 = arith.constant 0 : i32
    %c0_i32_0 = arith.constant 0 : i32
    return %c0_i32, %arg0 : i32, i32
  }
  func.func @transform_2(%arg0: i32) -> (i32, i32) {
    %c0_i32 = arith.constant 0 : i32
    %c0_i32_0 = arith.constant 0 : i32
    return %c0_i32, %arg0 : i32, i32
  }
  func.func @transform_3(%arg0: i32) -> (i32, i32) {
    %c0_i32 = arith.constant 0 : i32
    %c0_i32_0 = arith.constant 0 : i32
    return %arg0, %c0_i32 : i32, i32
  }
  func.func @transform_4(%arg0: i32) -> (i32, i32) {
    %c0_i32 = arith.constant 0 : i32
    %c0_i32_0 = arith.constant 0 : i32
    %c0_i32_1 = arith.constant 0 : i32
    return %c0_i32, %c0_i32_0 : i32, i32
  }
  func.func @transform_5(%arg0: i32) -> (i32, i32) {
    %c0_i32 = arith.constant 0 : i32
    %c0_i32_0 = arith.constant 0 : i32
    %c0_i32_1 = arith.constant 0 : i32
    return %c0_i32, %c0_i32_0 : i32, i32
  }
  func.func @transform_6(%arg0: i32) -> (i32, i32) {
    %c0_i32 = arith.constant 0 : i32
    %c0_i32_0 = arith.constant 0 : i32
    %c0_i32_1 = arith.constant 0 : i32
    return %c0_i32, %c0_i32_0 : i32, i32
  }
  func.func @transform_7(%arg0: i32) -> (i32, i32) {
    %c0_i32 = arith.constant 0 : i32
    %c0_i32_0 = arith.constant 0 : i32
    %c0_i32_1 = arith.constant 0 : i32
    return %c0_i32, %c0_i32_0 : i32, i32
  }
  func.func @transform_8(%arg0: i32) -> (i32, i32) {
    %c0_i32 = arith.constant 0 : i32
    %c0_i32_0 = arith.constant 0 : i32
    %c0_i32_1 = arith.constant 0 : i32
    return %c0_i32, %c0_i32_0 : i32, i32
  }
  func.func @transform_9(%arg0: i32) -> (i32, i32) {
    %c0_i32 = arith.constant 0 : i32
    %c0_i32_0 = arith.constant 0 : i32
    %c0_i32_1 = arith.constant 0 : i32
    return %c0_i32, %c0_i32_0 : i32, i32
  }
}

</mosaic_0001>

<llo_original>
// kernel: crater_forward.4
$region0: #{crater_forward.4}
  #allocation0 [shape = 'u32[]', space=smem, size = 0x4, offset = 0x4, fixed_abs, tag = 'smem constant byte address 0x4 - core index']
  #allocation1 [shape = 'u32[144,128]{1,0:T(1,128)}', space=vmem, size = 0x12000, scoped, tag = 'internal scratch']
  #allocation2 [shape = 'bf16[144,30]{1,0:T(16,128)(2,1)}', space=vmem, size = 0x9000, scoped, tag = 'scratch operand']
  %s0 = inlined_call_operand.vmem [shape: bf16[2,32,16,32], index: 0, kind: input, shape index: {}]
  %s1 = inlined_call_operand.hbm [shape: bf16[16,144], index: 1, kind: input, shape index: {}]
  %s2 = inlined_call_operand.vmem [shape: f32[16,1], index: 2, kind: input, shape index: {}]
  %s3 = inlined_call_operand.vmem [shape: bf16[2,30,16,30], index: 3, kind: output, shape index: {}]
  %s4 = sld [smem:[#allocation0]]
  $region56: #{crater_forward.4} parent=0
    _
  %s6 = ssub.s32 1, %s4
  %s7 = scalar_select 0, %s6, %s4
  $region1: #{crater_forward.4} parent=0
    #allocation3 [shape = 'u8[8192]{0}', space=vmem, size = 0x2000, scoped, tag = 'input window, operand 1, single buffered']
    #allocation4 [shape = 's32[2]{0}', space=sflag, size = 0x8, scoped, tag = 'scoped memory for crater_forward.4']
    %8 = vsyncpa [#allocation4], 0
    loop: start=0, step=1, limit=6
    $region2: #{crater_forward.4} parent=1 // loop_pre_header
      _
    $region3: #{crater_forward.4} parent=1 // loop_header
      %s10 = sphi 0, %s14
      %p11 = scmp.ge.s32.totalorder %s10, 6
      %s17 = sphi 0, %s29
      %s18 = sphi 0, %s25
      %s19 = sphi 0, %s17
      %s20 = sphi 0, %s18
      %s21 = sphi 0, %s19
      %s22 = sphi 0, %s20
      %s32 = sphi 0, %s34
      %s35 = sphi 0, %s32
      %s36 = sphi 0, %s35
      %s52 = sphi 0, %s36
      %s56 = sphi 0, %s56
      %s58 = sphi 0, %s56
      %s59 = sphi 0, %s58
      %s73 = sphi 0, %s59
      %s77 = sphi 0, %s77
      %s79 = sphi 0, %s77
      %s80 = sphi 0, %s79
      %s94 = sphi 0, %s80
      %s102 = sphi 0, %s104
      %s105 = sphi 0, %s102
      %s106 = sphi 0, %s105
      %s122 = sphi 0, %s106
    $region4: #{crater_forward.4} parent=1 // loop_header_branch
      %13 = sbr.rel (%p11) target = $region8
    $region5: #{crater_forward.4} parent=1 // loop_body
      %s15 = ssub.s32 %s10, 1
      %s16 = ssub.s32 %s10, 2
      %s23 = sadd.s32 1, %s18
      %p24 = scmp.ge.s32.totalorder %s23, 2
      %s25 = scalar_select %p24, 0, %s23
      %s26 = sadd.s32 1, %s17
      %s27 = scalar_select %p24, %s26, %s17
      %p28 = scmp.ge.s32.totalorder %s27, 2
      %s29 = scalar_select %p28, 0, %s27
      %s30 = ssub.s32 %s17, %s29
      %p31 = scmp.eq.s32.totalorder %s30, 0
      %s33 = sadd.s32 %s32, 1
      %s34 = scalar_select %p31, %s32, %s33
      %p37 = pneg %p31
      %p38 = scmp.eq.s32.totalorder %s10, 3
      %p39 = por %p37, %p38
      %p40 = scmp.ne.s32.totalorder %s32, %s35
      %p41 = scmp.eq.s32.totalorder %s10, 0
      %p42 = por %p40, %p41
      %p43 = scmp.ne.s32.totalorder %s32, %s35
      %p44 = scmp.eq.s32.totalorder %s15, 3
      %p45 = por %p43, %p44
      %p46 = scmp.ne.s32.totalorder %s35, %s36
      %p47 = scmp.eq.s32.totalorder %s15, 0
      %p48 = por %p46, %p47
      %p49 = scmp.ne.s32.totalorder %s35, %s36
      %p50 = scmp.eq.s32.totalorder %s16, 3
      %p51 = por %p49, %p50
      %p53 = scmp.ne.s32.totalorder %s36, %s52
      %p54 = scmp.eq.s32.totalorder %s16, 0
      %p55 = por %p53, %p54
      %s57 = sadd.s32 %s56, 1
      %p60 = scmp.eq.s32.totalorder %s10, 3
      %p61 = scmp.ne.s32.totalorder %s56, %s58
      %p62 = scmp.eq.s32.totalorder %s10, 0
      %p63 = por %p61, %p62
      %p64 = scmp.ne.s32.totalorder %s56, %s58
      %p65 = scmp.eq.s32.totalorder %s15, 3
      %p66 = por %p64, %p65
      %p67 = scmp.ne.s32.totalorder %s58, %s59
      %p68 = scmp.eq.s32.totalorder %s15, 0
      %p69 = por %p67, %p68
      %p70 = scmp.ne.s32.totalorder %s58, %s59
      %p71 = scmp.eq.s32.totalorder %s16, 3
      %p72 = por %p70, %p71
      %p74 = scmp.ne.s32.totalorder %s59, %s73
      %p75 = scmp.eq.s32.totalorder %s16, 0
      %p76 = por %p74, %p75
      %s78 = sadd.s32 %s77, 1
      %p81 = scmp.eq.s32.totalorder %s10, 3
      %p82 = scmp.ne.s32.totalorder %s77, %s79
      %p83 = scmp.eq.s32.totalorder %s10, 0
      %p84 = por %p82, %p83
      %p85 = scmp.ne.s32.totalorder %s77, %s79
      %p86 = scmp.eq.s32.totalorder %s15, 3
      %p87 = por %p85, %p86
      %p88 = scmp.ne.s32.totalorder %s79, %s80
      %p89 = scmp.eq.s32.totalorder %s15, 0
      %p90 = por %p88, %p89
      %p91 = scmp.ne.s32.totalorder %s79, %s80
      %p92 = scmp.eq.s32.totalorder %s16, 3
      %p93 = por %p91, %p92
      %p95 = scmp.ne.s32.totalorder %s80, %s94
      %p96 = scmp.eq.s32.totalorder %s16, 0
      %p97 = por %p95, %p96
      %s98 = ssub.s32 %s17, %s29
      %s99 = ssub.s32 %s18, %s25
      %s100 = sor.u32 %s98, %s99
      %p101 = scmp.eq.s32.totalorder %s100, 0
      %s103 = sadd.s32 %s102, 1
      %s104 = scalar_select %p101, %s102, %s103
      %p107 = pneg %p101
      %p108 = scmp.eq.s32.totalorder %s10, 3
      %p109 = por %p107, %p108
      %p110 = scmp.ne.s32.totalorder %s102, %s105
      %p111 = scmp.eq.s32.totalorder %s10, 0
      %p112 = por %p110, %p111
      %p113 = scmp.ne.s32.totalorder %s102, %s105
      %p114 = scmp.eq.s32.totalorder %s15, 3
      %p115 = por %p113, %p114
      %p116 = scmp.ne.s32.totalorder %s105, %s106
      %p117 = scmp.eq.s32.totalorder %s15, 0
      %p118 = por %p116, %p117
      %p119 = scmp.ne.s32.totalorder %s105, %s106
      %p120 = scmp.eq.s32.totalorder %s16, 3
      %p121 = por %p119, %p120
      %p123 = scmp.ne.s32.totalorder %s106, %s122
      %p124 = scmp.eq.s32.totalorder %s16, 0
      %p125 = por %p123, %p124
      %p126 = scmp.le.s32.totalorder 1, %s10
      %p127 = scmp.lt.s32.totalorder %s10, 5
      %p128 = pnand %p126, %p127
      %p129 = pneg %p128
      // Predicated region
      $region9: #{crater_forward.4} parent=5 // pred_check
        _
      $region10: #{crater_forward.4} parent=5 // pred_check_branch
        %131 = sbr.rel (%p128) target = $region12
      $region11: #{crater_forward.4} parent=5 // pred_region
        %s132 = ssub.s32 %s10, 1
        // Predicated region
        $region13: #{crater_forward.4} parent=11 // pred_check
          %p133 = pneg %p69
        $region14: #{crater_forward.4} parent=11 // pred_check_branch
          %135 = sbr.rel (%p133) target = $region16
        $region15: #{crater_forward.4} parent=11 // pred_region
          %s137 = ssub.s32 256, 256
          %138 = vsyncadd [#allocation4], %s137
          %s139 = sshll.u32 [#allocation3], 4
          %s140 = int_to_ptr.vmem [resolvable:$true] %s139
          %145 = dma.hbm_to_vmem [thread:$0]  %s1, 256, %s140, [#allocation4], 128, 128, 8
        $region16: #{crater_forward.4} parent=11 // pred_fallthru
          _
        // Predicated region
        $region17: #{crater_forward.4} parent=11 // pred_check
          %p146 = pneg %p90
        $region18: #{crater_forward.4} parent=11 // pred_check_branch
          %148 = sbr.rel (%p146) target = $region20
        $region19: #{crater_forward.4} parent=11 // pred_region
          _
        $region20: #{crater_forward.4} parent=11 // pred_fallthru
          _
      $region12: #{crater_forward.4} parent=5 // pred_fallthru
        _
      %p149 = scmp.lt.s32.totalorder %s10, 4
      // Predicated region
      $region21: #{crater_forward.4} parent=5 // pred_check
        %p150 = pneg %p149
      $region22: #{crater_forward.4} parent=5 // pred_check_branch
        %152 = sbr.rel (%p150) target = $region24
      $region23: #{crater_forward.4} parent=5 // pred_region
        // Predicated region
        $region25: #{crater_forward.4} parent=23 // pred_check
          %p153 = pneg %p42
        $region26: #{crater_forward.4} parent=23 // pred_check_branch
          %155 = sbr.rel (%p153) target = $region28
        $region27: #{crater_forward.4} parent=23 // pred_region
          %p156 = scmp.lt.s32.totalorder %s17, 1
          %s157 = scalar_select %p156, %s17, 1
          %s158 = smul.addr %s157, 64
          %s159 = smul.addr %s158, 4
          %s160 = scalar_lea.vmem %s0, %s159
        $region28: #{crater_forward.4} parent=23 // pred_fallthru
          _
      $region24: #{crater_forward.4} parent=5 // pred_fallthru
        _
      %p161 = scmp.le.s32.totalorder 1, %s10
      %p162 = scmp.lt.s32.totalorder %s10, 5
      %p163 = pnand %p161, %p162
      %p164 = pneg %p163
      // Predicated region
      $region29: #{crater_forward.4} parent=5 // pred_check
        _
      $region30: #{crater_forward.4} parent=5 // pred_check_branch
        %166 = sbr.rel (%p163) target = $region32
      $region31: #{crater_forward.4} parent=5 // pred_region
        %s167 = ssub.s32 %s10, 1
        // Predicated region
        $region33: #{crater_forward.4} parent=31 // pred_check
          %p168 = pneg %p69
        $region34: #{crater_forward.4} parent=31 // pred_check_branch
          %170 = sbr.rel (%p168) target = $region36
        $region35: #{crater_forward.4} parent=31 // pred_region
          %171 = dma.done [#allocation4], 256
        $region36: #{crater_forward.4} parent=31 // pred_fallthru
          _
        %p172 = scmp.lt.s32.totalorder %s19, 1
        %s173 = scalar_select %p172, %s19, 1
        %s174 = smul.addr %s173, 64
        %s175 = smul.addr %s174, 4
        %s176 = scalar_lea.vmem %s0, %s175
        %p177 = pneg %p48
        %p178 = pneg %p45
        %p179 = pneg %p69
        %p180 = pneg %p66
        %p181 = pneg %p90
        %p182 = pneg %p87
        %p183 = pneg %p118
        %p184 = pneg %p115
        %s185 = smul.u32 15, %s20
        %p186 = scmp.lt.s32.totalorder %s19, 1
        %s187 = scalar_select %p186, %s19, 1
        %p188 = scmp.lt.s32.totalorder %s185, 29
        %s189 = scalar_select %p188, %s185, 29
        %s190 = smul.addr %s189, 2
        %s191 = smul.addr %s187, 60
        %s192 = sadd.s32 %s190, %s191
        %s193 = smul.addr %s192, 4
        %s194 = scalar_lea.vmem %s3, %s193
        %p195 = scmp.lt.s32.totalorder %s19, 1
        %s196 = scalar_select %p195, %s19, 1
        %s197 = smul.addr %s196, 64
        %s198 = smul.addr %s197, 4
        %s199 = scalar_lea.vmem %s0, %s198
        %s200 = smul.u32 15, %s20
        %p201 = scmp.lt.s32.totalorder %s19, 1
        %s202 = scalar_select %p201, %s19, 1
        %p203 = scmp.lt.s32.totalorder %s200, 29
        %s204 = scalar_select %p203, %s200, 29
        %s205 = smul.addr %s204, 2
        %s206 = smul.addr %s202, 60
        %s207 = sadd.s32 %s205, %s206
        %s208 = smul.addr %s207, 4
        %s209 = scalar_lea.vmem %s3, %s208
        %s210 = smul.u32 15, %s20
        %s212 = smul.u32 %s20, 15
        %v213 = vld [vmem:[#allocation3] sm:$0xff]
        %v214 = vld [vmem:[#allocation3 + $0x8] sm:$0xff]
        %v215 = vld [vmem:[%s2] sm:$0xff]
        %v216 = vld [vmem:[%s2 + $0x8] sm:$0xff]
        %218 = vset.pattern.permute.xlu0 0
        %219 = vperm.xlu0 %218, %v215
        %v220 = vpop.permute.xlu0 %219
        %223 = vset.pattern.permute.xlu0 0
        %224 = vperm.xlu0 %223, %v216
        %v225 = vpop.permute.xlu0 %224
        loop: start=0, step=1, limit=15
        $region37: #{crater_forward.4} parent=31 // loop_pre_header
          _
        $region38: #{crater_forward.4} parent=31 // loop_header
          %s228 = sphi 0, %s232
          %p229 = scmp.ge.s32.totalorder %s228, 15
        $region39: #{crater_forward.4} parent=31 // loop_header_branch
          %231 = sbr.rel (%p229) target = $region43
        $region40: #{crater_forward.4} parent=31 // loop_body
          %s233 = sadd.s32 %s212, %s228
          %s234 = smul.u32 %s233, 2
          %s235 = smul.addr %s234, 4
          %s236 = scalar_lea.vmem %s199, %s235
          %v237 = vld [vmem:[%s236] sm:$0xf]
          %v238 = vld [vmem:[%s236 + $0x4] sm:$0xf]
          %v241 = vunpack.c.l.b16 %v237
          %v242 = vunpack.c.l.b16 %v238
          %v243 = vpack.c.b16 %v242, %v241
          %vm245 = vcmask 244736
          %246 = vst.msk [vmem:[#allocation2] sm:$0xff] %vm245, %v243
          %247 = vrot.lane.b32.xlu0 %v243, 127
          %v248 = vpop.permute.xlu0 %247
          %250 = vst.msk [vmem:[#allocation2 + $0x8] sm:$0xff] %vm245, %v248
          %251 = vrot.lane.b32.xlu0 %v243, 126
          %v252 = vpop.permute.xlu0 %251
          %254 = vst.msk [vmem:[#allocation2 + $0x10] sm:$0xff] %vm245, %v252
          %s255 = sadd.s32 %s233, 1
          %s256 = smul.u32 %s255, 2
          %s257 = smul.addr %s256, 4
          %s258 = scalar_lea.vmem %s199, %s257
          %v259 = vld [vmem:[%s258] sm:$0xf]
          %v260 = vld [vmem:[%s258 + $0x4] sm:$0xf]
          %v263 = vunpack.c.l.b16 %v259
          %v264 = vunpack.c.l.b16 %v260
          %v265 = vpack.c.b16 %v264, %v263
          %267 = vst.msk [vmem:[#allocation2 + $0x18] sm:$0xff] %vm245, %v265
          %268 = vrot.lane.b32.xlu0 %v265, 127
          %v269 = vpop.permute.xlu0 %268
          %271 = vst.msk [vmem:[#allocation2 + $0x20] sm:$0xff] %vm245, %v269
          %272 = vrot.lane.b32.xlu0 %v265, 126
          %v273 = vpop.permute.xlu0 %272
          %275 = vst.msk [vmem:[#allocation2 + $0x28] sm:$0xff] %vm245, %v273
          %s276 = sadd.s32 %s233, 2
          %s277 = smul.u32 %s276, 2
          %s278 = smul.addr %s277, 4
          %s279 = scalar_lea.vmem %s199, %s278
          %v280 = vld [vmem:[%s279] sm:$0xf]
          %v281 = vld [vmem:[%s279 + $0x4] sm:$0xf]
          %v284 = vunpack.c.l.b16 %v280
          %v285 = vunpack.c.l.b16 %v281
          %v286 = vpack.c.b16 %v285, %v284
          %288 = vst.msk [vmem:[#allocation2 + $0x30] sm:$0xff] %vm245, %v286
          %289 = vrot.lane.b32.xlu0 %v286, 127
          %v290 = vpop.permute.xlu0 %289
          %292 = vst.msk [vmem:[#allocation2 + $0x38] sm:$0xff] %vm245, %v290
          %293 = vrot.lane.b32.xlu0 %v286, 126
          %v294 = vpop.permute.xlu0 %293
          %296 = vst.msk [vmem:[#allocation2 + $0x40] sm:$0xff] %vm245, %v294
          %v297 = vld [vmem:[#allocation2] sm:$0xff]
          %v298 = vld [vmem:[#allocation2 + $0x8] sm:$0xff]
          %v299 = vld [vmem:[#allocation2 + $0x10] sm:$0xff]
          %v300 = vld [vmem:[#allocation2 + $0x18] sm:$0xff]
          %v301 = vld [vmem:[#allocation2 + $0x20] sm:$0xff]
          %v302 = vld [vmem:[#allocation2 + $0x28] sm:$0xff]
          %v303 = vld [vmem:[#allocation2 + $0x30] sm:$0xff]
          %v304 = vld [vmem:[#allocation2 + $0x38] sm:$0xff]
          %v305 = vld [vmem:[#allocation2 + $0x40] sm:$0xff]
          %v308 = vunpack.c.l.b16 %v213
          %v309 = vunpack.c.h.b16 %v213
          %v310 = vunpack.c.l.b16 %v214
          %v311 = vunpack.c.h.b16 %v214
          %v312 = vpack.c.b16 %v310, %v308
          %v313 = vpack.c.b16 %v311, %v309
          %vm315 = vcmask 130048
          %v317 = vsel %vm315, %v313, 0
          %319 = vmatprep.subr.bf16.mxu0 0
          %320 = vmatpush1.bf16.msra.mxu0 %v297
          %321 = vmatprep.subr.bf16.mxu0 0
          %322 = vmatpush1.bf16.msra.mxu0 %v298
          %323 = vmatprep.subr.bf16.mxu0 0
          %324 = vmatpush1.bf16.msra.mxu0 %v299
          %325 = vmatprep.subr.bf16.mxu0 0
          %326 = vmatpush1.bf16.msra.mxu0 %v300
          %327 = vmatprep.subr.bf16.mxu0 0
          %328 = vmatpush1.bf16.msra.mxu0 %v301
          %329 = vmatprep.subr.bf16.mxu0 0
          %330 = vmatpush1.bf16.msra.mxu0 %v302
          %331 = vmatprep.subr.bf16.mxu0 0
          %332 = vmatpush1.bf16.msra.mxu0 %v303
          %333 = vmatprep.subr.bf16.mxu0 0
          %334 = vmatpush1.bf16.msra.mxu0 %v304
          %335 = vmatprep.subr.bf16.mxu0 0
          %336 = vmatpush1.bf16.msra.mxu0 %v305
          %337 = vmatprep.subr.bf16.mxu0 0
          %338 = vmatpush1.bf16.msra.mxu0 0
          %339 = vmatprep.subr.bf16.mxu0 0
          %340 = vmatpush1.bf16.msra.mxu0 0
          %341 = vmatprep.subr.bf16.mxu0 0
          %342 = vmatpush1.bf16.msra.mxu0 0
          %343 = vmatprep.subr.bf16.mxu0 0
          %344 = vmatpush1.bf16.msra.mxu0 0
          %345 = vmatprep.subr.bf16.mxu0 0
          %346 = vmatpush1.bf16.msra.mxu0 0
          %347 = vmatprep.subr.bf16.mxu0 0
          %348 = vmatpush1.bf16.msra.mxu0 0
          %349 = vmatprep.subr.bf16.mxu0 0
          %350 = vmatpush1.bf16.msra.mxu0 0
          %351 = vmatprep.mubr.bf16.mxu0 %v317
          %352 = vmatmul.mubr.bf16.gmra.mrb[0].mxu0 %v312
          %v353 = vpop.f32.mrb[0].mxu0
          %v354 = vadd.f32 %v220, %v353
          %v355 = vpop.f32.mrb[0].mxu0
          %v356 = vpop.f32.mrb[0].mxu0
          %v357 = vadd.f32 %v225, %v356
          %v358 = vpop.f32.mrb[0].mxu0
          %359 = vdwg.mxu0
          %v360 = vmax.f32 %v354, 0.0
          %v361 = vmax.f32 %v357, 0.0
          %v362 = vpack.c.bf16 %v361, %v360
          %v364 = vunpack.c.l.b16 %v362
          %v365 = vunpack.c.h.b16 %v362
          %v366 = vpack.c.b16 %v364, %v364
          %v367 = vpack.c.b16 %v365, %v365
          %s370 = smul.u32 %s228, 2
          %s371 = smul.addr %s370, 4
          %s372 = scalar_lea.vmem %s209, %s371
          %vm373 = vcmask 240640
          %374 = vst.msk [vmem:[%s372] sm:$0xf] %vm373, %v366
          %375 = vst.msk [vmem:[%s372 + $0x4] sm:$0xf] %vm373, %v367
        $region41: #{crater_forward.4} parent=31 // loop_footer
          %s232 = sadd.s32 1, %s228
        $region42: #{crater_forward.4} parent=31 // loop_footer_branch
          %227 = sbr.rel target = $region38
        $region43: #{crater_forward.4} parent=31 // loop_exit
          _
        %s376 = smul.u32 15, %s20
        %p377 = scmp.lt.s32.totalorder %s19, 1
        %s378 = scalar_select %p377, %s19, 1
        %p379 = scmp.lt.s32.totalorder %s376, 29
        %s380 = scalar_select %p379, %s376, 29
        %s381 = smul.addr %s380, 2
        %s382 = smul.addr %s378, 60
        %s383 = sadd.s32 %s381, %s382
        %s384 = smul.addr %s383, 4
        %s385 = scalar_lea.vmem %s3, %s384
        // Predicated region
        $region44: #{crater_forward.4} parent=31 // pred_check
          %p386 = pneg %p115
        $region45: #{crater_forward.4} parent=31 // pred_check_branch
          %388 = sbr.rel (%p386) target = $region47
        $region46: #{crater_forward.4} parent=31 // pred_region
          %s389 = smul.u32 15, %s20
        $region47: #{crater_forward.4} parent=31 // pred_fallthru
          _
      $region32: #{crater_forward.4} parent=5 // pred_fallthru
        _
      %p390 = scmp.le.s32.totalorder 2, %s10
      // Predicated region
      $region48: #{crater_forward.4} parent=5 // pred_check
        %p391 = pneg %p390
      $region49: #{crater_forward.4} parent=5 // pred_check_branch
        %393 = sbr.rel (%p391) target = $region51
      $region50: #{crater_forward.4} parent=5 // pred_region
        %s394 = ssub.s32 %s10, 2
        // Predicated region
        $region52: #{crater_forward.4} parent=50 // pred_check
          %p395 = pneg %p121
        $region53: #{crater_forward.4} parent=50 // pred_check_branch
          %397 = sbr.rel (%p395) target = $region55
        $region54: #{crater_forward.4} parent=50 // pred_region
          %s398 = smul.u32 15, %s22
          %p399 = scmp.lt.s32.totalorder %s21, 1
          %s400 = scalar_select %p399, %s21, 1
          %p401 = scmp.lt.s32.totalorder %s398, 29
          %s402 = scalar_select %p401, %s398, 29
          %s403 = smul.addr %s402, 2
          %s404 = smul.addr %s400, 60
          %s405 = sadd.s32 %s403, %s404
          %s406 = smul.addr %s405, 4
          %s407 = scalar_lea.vmem %s3, %s406
        $region55: #{crater_forward.4} parent=50 // pred_fallthru
          _
      $region51: #{crater_forward.4} parent=5 // pred_fallthru
        _
    $region6: #{crater_forward.4} parent=1 // loop_footer
      %s14 = sadd.s32 1, %s10
    $region7: #{crater_forward.4} parent=1 // loop_footer_branch
      %9 = sbr.rel target = $region3
    $region8: #{crater_forward.4} parent=1 // loop_exit
      _
    %408 = vsyncpa [#allocation4], 1
    %s409 = scalar_lea.sflag [#allocation4], 1
    %410 = vsyncpa %s409, 1

// kernel: crater_forward.5
$region0: #{crater_forward.5}
  #allocation0 [shape = 'u32[]', space=smem, size = 0x4, offset = 0x4, fixed_abs, tag = 'smem constant byte address 0x4 - core index']
  #allocation1 [shape = 'u32[144,128]{1,0:T(1,128)}', space=vmem, size = 0x12000, scoped, tag = 'internal scratch']
  #allocation2 [shape = 'bf16[144,14]{1,0:T(16,128)(2,1)}', space=vmem, size = 0x9000, scoped, tag = 'scratch operand']
  %s0 = inlined_call_operand.vmem [shape: bf16[2,30,16,15], index: 0, kind: input, shape index: {}]
  %s1 = inlined_call_operand.vmem [shape: bf16[2,30,16,15], index: 1, kind: input, shape index: {}]
  %s2 = inlined_call_operand.vmem [shape: bf16[32,144], index: 2, kind: input, shape index: {}]
  %s3 = inlined_call_operand.vmem [shape: f32[32,1], index: 3, kind: input, shape index: {}]
  %s4 = inlined_call_operand.vmem [shape: bf16[2,14,32,14], index: 4, kind: output, shape index: {}]
  %s5 = sld [smem:[#allocation0]]
  $region56: #{crater_forward.5} parent=0
    _
  %s7 = ssub.s32 1, %s5
  %s8 = scalar_select 0, %s7, %s5
  loop: start=0, step=1, limit=6
  $region2: #{crater_forward.5} parent=0 // loop_pre_header
    _
  $region3: #{crater_forward.5} parent=0 // loop_header
    %s10 = sphi 0, %s14
    %p11 = scmp.ge.s32.totalorder %s10, 6
    %s17 = sphi 0, %s29
    %s18 = sphi 0, %s25
    %s19 = sphi 0, %s17
    %s20 = sphi 0, %s18
    %s21 = sphi 0, %s19
    %s22 = sphi 0, %s20
    %s32 = sphi 0, %s34
    %s35 = sphi 0, %s32
    %s36 = sphi 0, %s35
    %s52 = sphi 0, %s36
    %s58 = sphi 0, %s60
    %s61 = sphi 0, %s58
    %s62 = sphi 0, %s61
    %s78 = sphi 0, %s62
    %s82 = sphi 0, %s82
    %s84 = sphi 0, %s82
    %s85 = sphi 0, %s84
    %s99 = sphi 0, %s85
    %s103 = sphi 0, %s103
    %s105 = sphi 0, %s103
    %s106 = sphi 0, %s105
    %s120 = sphi 0, %s106
    %s128 = sphi 0, %s130
    %s131 = sphi 0, %s128
    %s132 = sphi 0, %s131
    %s148 = sphi 0, %s132
  $region4: #{crater_forward.5} parent=0 // loop_header_branch
    %13 = sbr.rel (%p11) target = $region8
  $region5: #{crater_forward.5} parent=0 // loop_body
    %s15 = ssub.s32 %s10, 1
    %s16 = ssub.s32 %s10, 2
    %s23 = sadd.s32 1, %s18
    %p24 = scmp.ge.s32.totalorder %s23, 2
    %s25 = scalar_select %p24, 0, %s23
    %s26 = sadd.s32 1, %s17
    %s27 = scalar_select %p24, %s26, %s17
    %p28 = scmp.ge.s32.totalorder %s27, 2
    %s29 = scalar_select %p28, 0, %s27
    %s30 = ssub.s32 %s17, %s29
    %p31 = scmp.eq.s32.totalorder %s30, 0
    %s33 = sadd.s32 %s32, 1
    %s34 = scalar_select %p31, %s32, %s33
    %p37 = pneg %p31
    %p38 = scmp.eq.s32.totalorder %s10, 3
    %p39 = por %p37, %p38
    %p40 = scmp.ne.s32.totalorder %s32, %s35
    %p41 = scmp.eq.s32.totalorder %s10, 0
    %p42 = por %p40, %p41
    %p43 = scmp.ne.s32.totalorder %s32, %s35
    %p44 = scmp.eq.s32.totalorder %s15, 3
    %p45 = por %p43, %p44
    %p46 = scmp.ne.s32.totalorder %s35, %s36
    %p47 = scmp.eq.s32.totalorder %s15, 0
    %p48 = por %p46, %p47
    %p49 = scmp.ne.s32.totalorder %s35, %s36
    %p50 = scmp.eq.s32.totalorder %s16, 3
    %p51 = por %p49, %p50
    %p53 = scmp.ne.s32.totalorder %s36, %s52
    %p54 = scmp.eq.s32.totalorder %s16, 0
    %p55 = por %p53, %p54
    %s56 = ssub.s32 %s17, %s29
    %p57 = scmp.eq.s32.totalorder %s56, 0
    %s59 = sadd.s32 %s58, 1
    %s60 = scalar_select %p57, %s58, %s59
    %p63 = pneg %p57
    %p64 = scmp.eq.s32.totalorder %s10, 3
    %p65 = por %p63, %p64
    %p66 = scmp.ne.s32.totalorder %s58, %s61
    %p67 = scmp.eq.s32.totalorder %s10, 0
    %p68 = por %p66, %p67
    %p69 = scmp.ne.s32.totalorder %s58, %s61
    %p70 = scmp.eq.s32.totalorder %s15, 3
    %p71 = por %p69, %p70
    %p72 = scmp.ne.s32.totalorder %s61, %s62
    %p73 = scmp.eq.s32.totalorder %s15, 0
    %p74 = por %p72, %p73
    %p75 = scmp.ne.s32.totalorder %s61, %s62
    %p76 = scmp.eq.s32.totalorder %s16, 3
    %p77 = por %p75, %p76
    %p79 = scmp.ne.s32.totalorder %s62, %s78
    %p80 = scmp.eq.s32.totalorder %s16, 0
    %p81 = por %p79, %p80
    %s83 = sadd.s32 %s82, 1
    %p86 = scmp.eq.s32.totalorder %s10, 3
    %p87 = scmp.ne.s32.totalorder %s82, %s84
    %p88 = scmp.eq.s32.totalorder %s10, 0
    %p89 = por %p87, %p88
    %p90 = scmp.ne.s32.totalorder %s82, %s84
    %p91 = scmp.eq.s32.totalorder %s15, 3
    %p92 = por %p90, %p91
    %p93 = scmp.ne.s32.totalorder %s84, %s85
    %p94 = scmp.eq.s32.totalorder %s15, 0
    %p95 = por %p93, %p94
    %p96 = scmp.ne.s32.totalorder %s84, %s85
    %p97 = scmp.eq.s32.totalorder %s16, 3
    %p98 = por %p96, %p97
    %p100 = scmp.ne.s32.totalorder %s85, %s99
    %p101 = scmp.eq.s32.totalorder %s16, 0
    %p102 = por %p100, %p101
    %s104 = sadd.s32 %s103, 1
    %p107 = scmp.eq.s32.totalorder %s10, 3
    %p108 = scmp.ne.s32.totalorder %s103, %s105
    %p109 = scmp.eq.s32.totalorder %s10, 0
    %p110 = por %p108, %p109
    %p111 = scmp.ne.s32.totalorder %s103, %s105
    %p112 = scmp.eq.s32.totalorder %s15, 3
    %p113 = por %p111, %p112
    %p114 = scmp.ne.s32.totalorder %s105, %s106
    %p115 = scmp.eq.s32.totalorder %s15, 0
    %p116 = por %p114, %p115
    %p117 = scmp.ne.s32.totalorder %s105, %s106
    %p118 = scmp.eq.s32.totalorder %s16, 3
    %p119 = por %p117, %p118
    %p121 = scmp.ne.s32.totalorder %s106, %s120
    %p122 = scmp.eq.s32.totalorder %s16, 0
    %p123 = por %p121, %p122
    %s124 = ssub.s32 %s17, %s29
    %s125 = ssub.s32 %s18, %s25
    %s126 = sor.u32 %s124, %s125
    %p127 = scmp.eq.s32.totalorder %s126, 0
    %s129 = sadd.s32 %s128, 1
    %s130 = scalar_select %p127, %s128, %s129
    %p133 = pneg %p127
    %p134 = scmp.eq.s32.totalorder %s10, 3
    %p135 = por %p133, %p134
    %p136 = scmp.ne.s32.totalorder %s128, %s131
    %p137 = scmp.eq.s32.totalorder %s10, 0
    %p138 = por %p136, %p137
    %p139 = scmp.ne.s32.totalorder %s128, %s131
    %p140 = scmp.eq.s32.totalorder %s15, 3
    %p141 = por %p139, %p140
    %p142 = scmp.ne.s32.totalorder %s131, %s132
    %p143 = scmp.eq.s32.totalorder %s15, 0
    %p144 = por %p142, %p143
    %p145 = scmp.ne.s32.totalorder %s131, %s132
    %p146 = scmp.eq.s32.totalorder %s16, 3
    %p147 = por %p145, %p146
    %p149 = scmp.ne.s32.totalorder %s132, %s148
    %p150 = scmp.eq.s32.totalorder %s16, 0
    %p151 = por %p149, %p150
    %p152 = scmp.le.s32.totalorder 1, %s10
    %p153 = scmp.lt.s32.totalorder %s10, 5
    %p154 = pnand %p152, %p153
    %p155 = pneg %p154
    // Predicated region
    $region9: #{crater_forward.5} parent=5 // pred_check
      _
    $region10: #{crater_forward.5} parent=5 // pred_check_branch
      %157 = sbr.rel (%p154) target = $region12
    $region11: #{crater_forward.5} parent=5 // pred_region
      %s158 = ssub.s32 %s10, 1
      // Predicated region
      $region13: #{crater_forward.5} parent=11 // pred_check
        %p159 = pneg %p95
      $region14: #{crater_forward.5} parent=11 // pred_check_branch
        %161 = sbr.rel (%p159) target = $region16
      $region15: #{crater_forward.5} parent=11 // pred_region
        _
      $region16: #{crater_forward.5} parent=11 // pred_fallthru
        _
      // Predicated region
      $region17: #{crater_forward.5} parent=11 // pred_check
        %p162 = pneg %p116
      $region18: #{crater_forward.5} parent=11 // pred_check_branch
        %164 = sbr.rel (%p162) target = $region20
      $region19: #{crater_forward.5} parent=11 // pred_region
        _
      $region20: #{crater_forward.5} parent=11 // pred_fallthru
        _
    $region12: #{crater_forward.5} parent=5 // pred_fallthru
      _
    %p165 = scmp.lt.s32.totalorder %s10, 4
    // Predicated region
    $region21: #{crater_forward.5} parent=5 // pred_check
      %p166 = pneg %p165
    $region22: #{crater_forward.5} parent=5 // pred_check_branch
      %168 = sbr.rel (%p166) target = $region24
    $region23: #{crater_forward.5} parent=5 // pred_region
      // Predicated region
      $region25: #{crater_forward.5} parent=23 // pred_check
        %p169 = pneg %p42
      $region26: #{crater_forward.5} parent=23 // pred_check_branch
        %171 = sbr.rel (%p169) target = $region28
      $region27: #{crater_forward.5} parent=23 // pred_region
        %p172 = scmp.lt.s32.totalorder %s17, 1
        %s173 = scalar_select %p172, %s17, 1
        %s174 = smul.addr %s173, 60
        %s175 = smul.addr %s174, 4
        %s176 = scalar_lea.vmem %s0, %s175
      $region28: #{crater_forward.5} parent=23 // pred_fallthru
        _
      // Predicated region
      $region29: #{crater_forward.5} parent=23 // pred_check
        %p177 = pneg %p68
      $region30: #{crater_forward.5} parent=23 // pred_check_branch
        %179 = sbr.rel (%p177) target = $region32
      $region31: #{crater_forward.5} parent=23 // pred_region
        %p180 = scmp.lt.s32.totalorder %s17, 1
        %s181 = scalar_select %p180, %s17, 1
        %s182 = smul.addr %s181, 60
        %s183 = smul.addr %s182, 4
        %s184 = scalar_lea.vmem %s1, %s183
      $region32: #{crater_forward.5} parent=23 // pred_fallthru
        _
    $region24: #{crater_forward.5} parent=5 // pred_fallthru
      _
    %p185 = scmp.le.s32.totalorder 1, %s10
    %p186 = scmp.lt.s32.totalorder %s10, 5
    %p187 = pnand %p185, %p186
    %p188 = pneg %p187
    // Predicated region
    $region33: #{crater_forward.5} parent=5 // pred_check
      _
    $region34: #{crater_forward.5} parent=5 // pred_check_branch
      %190 = sbr.rel (%p187) target = $region36
    $region35: #{crater_forward.5} parent=5 // pred_region
      %s191 = ssub.s32 %s10, 1
      %p192 = scmp.lt.s32.totalorder %s19, 1
      %s193 = scalar_select %p192, %s19, 1
      %s194 = smul.addr %s193, 60
      %s195 = smul.addr %s194, 4
      %s196 = scalar_lea.vmem %s0, %s195
      %p197 = pneg %p48
      %p198 = pneg %p45
      %p199 = scmp.lt.s32.totalorder %s19, 1
      %s200 = scalar_select %p199, %s19, 1
      %s201 = smul.addr %s200, 60
      %s202 = smul.addr %s201, 4
      %s203 = scalar_lea.vmem %s1, %s202
      %p204 = pneg %p74
      %p205 = pneg %p71
      %p206 = pneg %p95
      %p207 = pneg %p92
      %p208 = pneg %p116
      %p209 = pneg %p113
      %p210 = pneg %p144
      %p211 = pneg %p141
      %s212 = smul.u32 7, %s20
      %p213 = scmp.lt.s32.totalorder %s19, 1
      %s214 = scalar_select %p213, %s19, 1
      %p215 = scmp.lt.s32.totalorder %s212, 13
      %s216 = scalar_select %p215, %s212, 13
      %s217 = smul.addr %s216, 4
      %s218 = smul.addr %s214, 56
      %s219 = sadd.s32 %s217, %s218
      %s220 = smul.addr %s219, 4
      %s221 = scalar_lea.vmem %s4, %s220
      %p222 = scmp.lt.s32.totalorder %s19, 1
      %s223 = scalar_select %p222, %s19, 1
      %s224 = smul.addr %s223, 60
      %s225 = smul.addr %s224, 4
      %s226 = scalar_lea.vmem %s0, %s225
      %p227 = scmp.lt.s32.totalorder %s19, 1
      %s228 = scalar_select %p227, %s19, 1
      %s229 = smul.addr %s228, 60
      %s230 = smul.addr %s229, 4
      %s231 = scalar_lea.vmem %s1, %s230
      %s232 = smul.u32 7, %s20
      %p233 = scmp.lt.s32.totalorder %s19, 1
      %s234 = scalar_select %p233, %s19, 1
      %p235 = scmp.lt.s32.totalorder %s232, 13
      %s236 = scalar_select %p235, %s232, 13
      %s237 = smul.addr %s236, 4
      %s238 = smul.addr %s234, 56
      %s239 = sadd.s32 %s237, %s238
      %s240 = smul.addr %s239, 4
      %s241 = scalar_lea.vmem %s4, %s240
      %s242 = smul.u32 7, %s20
      %s244 = smul.u32 %s20, 7
      %v245 = vld [vmem:[%s2] sm:$0xff]
      %v246 = vld [vmem:[%s2 + $0x8] sm:$0xff]
      %v247 = vld [vmem:[%s2 + $0x10] sm:$0xff]
      %v248 = vld [vmem:[%s2 + $0x18] sm:$0xff]
      %v249 = vld [vmem:[%s3] sm:$0xff]
      %v250 = vld [vmem:[%s3 + $0x8] sm:$0xff]
      %v251 = vld [vmem:[%s3 + $0x10] sm:$0xff]
      %v252 = vld [vmem:[%s3 + $0x18] sm:$0xff]
      %254 = vset.pattern.permute.xlu0 0
      %255 = vperm.xlu0 %254, %v249
      %v256 = vpop.permute.xlu0 %255
      %259 = vset.pattern.permute.xlu0 0
      %260 = vperm.xlu0 %259, %v250
      %v261 = vpop.permute.xlu0 %260
      %264 = vset.pattern.permute.xlu0 0
      %265 = vperm.xlu0 %264, %v251
      %v266 = vpop.permute.xlu0 %265
      %269 = vset.pattern.permute.xlu0 0
      %270 = vperm.xlu0 %269, %v252
      %v271 = vpop.permute.xlu0 %270
      loop: start=0, step=1, limit=7
      $region37: #{crater_forward.5} parent=35 // loop_pre_header
        _
      $region38: #{crater_forward.5} parent=35 // loop_header
        %s274 = sphi 0, %s278
        %p275 = scmp.ge.s32.totalorder %s274, 7
      $region39: #{crater_forward.5} parent=35 // loop_header_branch
        %277 = sbr.rel (%p275) target = $region43
      $region40: #{crater_forward.5} parent=35 // loop_body
        %s279 = sadd.s32 %s244, %s274
        %s280 = smul.u32 %s279, 2
        %s281 = smul.u32 %s280, 2
        %s282 = smul.addr %s281, 4
        %s283 = scalar_lea.vmem %s226, %s282
        %v284 = vld [vmem:[%s283] sm:$0xf]
        %v285 = vld [vmem:[%s283 + $0x4] sm:$0xf]
        %s286 = smul.addr %s281, 4
        %s287 = scalar_lea.vmem %s231, %s286
        %v288 = vld [vmem:[%s287] sm:$0xf]
        %v289 = vld [vmem:[%s287 + $0x4] sm:$0xf]
        %v292 = vunpack.c.l.b16 %v284
        %v293 = vunpack.c.l.b16 %v285
        %v294 = vpack.c.b16 %v293, %v292
        %vm296 = vcmask 113664
        %297 = vst.msk [vmem:[#allocation2] sm:$0xff] %vm296, %v294
        %v300 = vunpack.c.l.b16 %v288
        %v301 = vunpack.c.l.b16 %v289
        %v302 = vpack.c.b16 %v301, %v300
        %304 = vst.msk [vmem:[#allocation2 + $0x8] sm:$0xff] %vm296, %v302
        %305 = vrot.lane.b32.xlu0 %v294, 127
        %v306 = vpop.permute.xlu0 %305
        %308 = vst.msk [vmem:[#allocation2 + $0x10] sm:$0xff] %vm296, %v306
        %s309 = sadd.s32 %s280, 1
        %s310 = smul.u32 %s309, 2
        %s311 = smul.addr %s310, 4
        %s312 = scalar_lea.vmem %s226, %s311
        %v313 = vld [vmem:[%s312] sm:$0xf]
        %v314 = vld [vmem:[%s312 + $0x4] sm:$0xf]
        %s315 = smul.addr %s310, 4
        %s316 = scalar_lea.vmem %s231, %s315
        %v317 = vld [vmem:[%s316] sm:$0xf]
        %v318 = vld [vmem:[%s316 + $0x4] sm:$0xf]
        %v321 = vunpack.c.l.b16 %v313
        %v322 = vunpack.c.l.b16 %v314
        %v323 = vpack.c.b16 %v322, %v321
        %325 = vst.msk [vmem:[#allocation2 + $0x18] sm:$0xff] %vm296, %v323
        %v328 = vunpack.c.l.b16 %v317
        %v329 = vunpack.c.l.b16 %v318
        %v330 = vpack.c.b16 %v329, %v328
        %332 = vst.msk [vmem:[#allocation2 + $0x20] sm:$0xff] %vm296, %v330
        %333 = vrot.lane.b32.xlu0 %v323, 127
        %v334 = vpop.permute.xlu0 %333
        %336 = vst.msk [vmem:[#allocation2 + $0x28] sm:$0xff] %vm296, %v334
        %s337 = sadd.s32 %s280, 2
        %s338 = smul.u32 %s337, 2
        %s339 = smul.addr %s338, 4
        %s340 = scalar_lea.vmem %s226, %s339
        %v341 = vld [vmem:[%s340] sm:$0xf]
        %v342 = vld [vmem:[%s340 + $0x4] sm:$0xf]
        %s343 = smul.addr %s338, 4
        %s344 = scalar_lea.vmem %s231, %s343
        %v345 = vld [vmem:[%s344] sm:$0xf]
        %v346 = vld [vmem:[%s344 + $0x4] sm:$0xf]
        %v349 = vunpack.c.l.b16 %v341
        %v350 = vunpack.c.l.b16 %v342
        %v351 = vpack.c.b16 %v350, %v349
        %353 = vst.msk [vmem:[#allocation2 + $0x30] sm:$0xff] %vm296, %v351
        %v356 = vunpack.c.l.b16 %v345
        %v357 = vunpack.c.l.b16 %v346
        %v358 = vpack.c.b16 %v357, %v356
        %360 = vst.msk [vmem:[#allocation2 + $0x38] sm:$0xff] %vm296, %v358
        %361 = vrot.lane.b32.xlu0 %v351, 127
        %v362 = vpop.permute.xlu0 %361
        %364 = vst.msk [vmem:[#allocation2 + $0x40] sm:$0xff] %vm296, %v362
        %v365 = vld [vmem:[#allocation2] sm:$0xff]
        %v366 = vld [vmem:[#allocation2 + $0x8] sm:$0xff]
        %v367 = vld [vmem:[#allocation2 + $0x10] sm:$0xff]
        %v368 = vld [vmem:[#allocation2 + $0x18] sm:$0xff]
        %v369 = vld [vmem:[#allocation2 + $0x20] sm:$0xff]
        %v370 = vld [vmem:[#allocation2 + $0x28] sm:$0xff]
        %v371 = vld [vmem:[#allocation2 + $0x30] sm:$0xff]
        %v372 = vld [vmem:[#allocation2 + $0x38] sm:$0xff]
        %v373 = vld [vmem:[#allocation2 + $0x40] sm:$0xff]
        %v378 = vunpack.c.l.b16 %v245
        %v379 = vunpack.c.h.b16 %v245
        %v380 = vunpack.c.l.b16 %v246
        %v381 = vunpack.c.h.b16 %v246
        %v382 = vunpack.c.l.b16 %v247
        %v383 = vunpack.c.h.b16 %v247
        %v384 = vunpack.c.l.b16 %v248
        %v385 = vunpack.c.h.b16 %v248
        %v386 = vpack.c.b16 %v380, %v378
        %v387 = vpack.c.b16 %v381, %v379
        %v388 = vpack.c.b16 %v384, %v382
        %v389 = vpack.c.b16 %v385, %v383
        %vm392 = vcmask 130048
        %v394 = vsel %vm392, %v387, 0
        %v397 = vsel %vm392, %v389, 0
        %399 = vmatprep.subr.bf16.mxu0 0
        %400 = vmatpush1.bf16.msra.mxu0 %v365
        %401 = vmatprep.subr.bf16.mxu0 0
        %402 = vmatpush1.bf16.msra.mxu0 %v366
        %403 = vmatprep.subr.bf16.mxu0 0
        %404 = vmatpush1.bf16.msra.mxu0 %v367
        %405 = vmatprep.subr.bf16.mxu0 0
        %406 = vmatpush1.bf16.msra.mxu0 %v368
        %407 = vmatprep.subr.bf16.mxu0 0
        %408 = vmatpush1.bf16.msra.mxu0 %v369
        %409 = vmatprep.subr.bf16.mxu0 0
        %410 = vmatpush1.bf16.msra.mxu0 %v370
        %411 = vmatprep.subr.bf16.mxu0 0
        %412 = vmatpush1.bf16.msra.mxu0 %v371
        %413 = vmatprep.subr.bf16.mxu0 0
        %414 = vmatpush1.bf16.msra.mxu0 %v372
        %415 = vmatprep.subr.bf16.mxu0 0
        %416 = vmatpush1.bf16.msra.mxu0 %v373
        %417 = vmatprep.subr.bf16.mxu0 0
        %418 = vmatpush1.bf16.msra.mxu0 0
        %419 = vmatprep.subr.bf16.mxu0 0
        %420 = vmatpush1.bf16.msra.mxu0 0
        %421 = vmatprep.subr.bf16.mxu0 0
        %422 = vmatpush1.bf16.msra.mxu0 0
        %423 = vmatprep.subr.bf16.mxu0 0
        %424 = vmatpush1.bf16.msra.mxu0 0
        %425 = vmatprep.subr.bf16.mxu0 0
        %426 = vmatpush1.bf16.msra.mxu0 0
        %427 = vmatprep.subr.bf16.mxu0 0
        %428 = vmatpush1.bf16.msra.mxu0 0
        %429 = vmatprep.subr.bf16.mxu0 0
        %430 = vmatpush1.bf16.msra.mxu0 0
        %431 = vmatprep.mubr.bf16.mxu0 %v394
        %432 = vmatmul.mubr.bf16.gmra.mrb[0].mxu0 %v386
        %v433 = vpop.f32.mrb[0].mxu0
        %v434 = vadd.f32 %v256, %v433
        %v435 = vpop.f32.mrb[0].mxu0
        %v436 = vpop.f32.mrb[0].mxu0
        %v437 = vadd.f32 %v261, %v436
        %v438 = vpop.f32.mrb[0].mxu0
        %439 = vmatprep.mubr.bf16.mxu0 %v397
        %440 = vmatmul.mubr.bf16.gmra.mrb[0].mxu0 %v388
        %v441 = vpop.f32.mrb[0].mxu0
        %v442 = vadd.f32 %v266, %v441
        %v443 = vpop.f32.mrb[0].mxu0
        %v444 = vpop.f32.mrb[0].mxu0
        %v445 = vadd.f32 %v271, %v444
        %v446 = vpop.f32.mrb[0].mxu0
        %447 = vdwg.mxu0
        %v448 = vmax.f32 %v434, 0.0
        %v449 = vmax.f32 %v437, 0.0
        %v450 = vmax.f32 %v442, 0.0
        %v451 = vmax.f32 %v445, 0.0
        %v452 = vpack.c.bf16 %v449, %v448
        %v453 = vpack.c.bf16 %v451, %v450
        %v456 = vunpack.c.l.b16 %v452
        %v457 = vunpack.c.h.b16 %v452
        %v458 = vunpack.c.l.b16 %v453
        %v459 = vunpack.c.h.b16 %v453
        %v460 = vpack.c.b16 %v456, %v456
        %v461 = vpack.c.b16 %v457, %v457
        %v462 = vpack.c.b16 %v458, %v458
        %v463 = vpack.c.b16 %v459, %v459
        %s468 = smul.u32 %s274, 4
        %s469 = smul.addr %s468, 4
        %s470 = scalar_lea.vmem %s241, %s469
        %vm471 = vcmask 109568
        %472 = vst.msk [vmem:[%s470] sm:$0xf] %vm471, %v460
        %473 = vst.msk [vmem:[%s470 + $0x4] sm:$0xf] %vm471, %v461
        %474 = vst.msk [vmem:[%s470 + $0x8] sm:$0xf] %vm471, %v462
        %475 = vst.msk [vmem:[%s470 + $0xc] sm:$0xf] %vm471, %v463
      $region41: #{crater_forward.5} parent=35 // loop_footer
        %s278 = sadd.s32 1, %s274
      $region42: #{crater_forward.5} parent=35 // loop_footer_branch
        %273 = sbr.rel target = $region38
      $region43: #{crater_forward.5} parent=35 // loop_exit
        _
      %s476 = smul.u32 7, %s20
      %p477 = scmp.lt.s32.totalorder %s19, 1
      %s478 = scalar_select %p477, %s19, 1
      %p479 = scmp.lt.s32.totalorder %s476, 13
      %s480 = scalar_select %p479, %s476, 13
      %s481 = smul.addr %s480, 4
      %s482 = smul.addr %s478, 56
      %s483 = sadd.s32 %s481, %s482
      %s484 = smul.addr %s483, 4
      %s485 = scalar_lea.vmem %s4, %s484
      // Predicated region
      $region44: #{crater_forward.5} parent=35 // pred_check
        %p486 = pneg %p141
      $region45: #{crater_forward.5} parent=35 // pred_check_branch
        %488 = sbr.rel (%p486) target = $region47
      $region46: #{crater_forward.5} parent=35 // pred_region
        %s489 = smul.u32 7, %s20
      $region47: #{crater_forward.5} parent=35 // pred_fallthru
        _
    $region36: #{crater_forward.5} parent=5 // pred_fallthru
      _
    %p490 = scmp.le.s32.totalorder 2, %s10
    // Predicated region
    $region48: #{crater_forward.5} parent=5 // pred_check
      %p491 = pneg %p490
    $region49: #{crater_forward.5} parent=5 // pred_check_branch
      %493 = sbr.rel (%p491) target = $region51
    $region50: #{crater_forward.5} parent=5 // pred_region
      %s494 = ssub.s32 %s10, 2
      // Predicated region
      $region52: #{crater_forward.5} parent=50 // pred_check
        %p495 = pneg %p147
      $region53: #{crater_forward.5} parent=50 // pred_check_branch
        %497 = sbr.rel (%p495) target = $region55
      $region54: #{crater_forward.5} parent=50 // pred_region
        %s498 = smul.u32 7, %s22
        %p499 = scmp.lt.s32.totalorder %s21, 1
        %s500 = scalar_select %p499, %s21, 1
        %p501 = scmp.lt.s32.totalorder %s498, 13
        %s502 = scalar_select %p501, %s498, 13
        %s503 = smul.addr %s502, 4
        %s504 = smul.addr %s500, 56
        %s505 = sadd.s32 %s503, %s504
        %s506 = smul.addr %s505, 4
        %s507 = scalar_lea.vmem %s4, %s506
      $region55: #{crater_forward.5} parent=50 // pred_fallthru
        _
    $region51: #{crater_forward.5} parent=5 // pred_fallthru
      _
  $region6: #{crater_forward.5} parent=0 // loop_footer
    %s14 = sadd.s32 1, %s10
  $region7: #{crater_forward.5} parent=0 // loop_footer_branch
    %9 = sbr.rel target = $region3
  $region8: #{crater_forward.5} parent=0 // loop_exit
    _

// kernel: crater_forward.6
$region0: #{crater_forward.6}
  #allocation0 [shape = 'u32[]', space=smem, size = 0x4, offset = 0x4, fixed_abs, tag = 'smem constant byte address 0x4 - core index']
  #allocation1 [shape = 'u32[144,128]{1,0:T(1,128)}', space=vmem, size = 0x12000, scoped, tag = 'internal scratch']
  #allocation2 [shape = 'bf16[288,6]{1,0:T(16,128)(2,1)}', space=vmem, size = 0x12000, scoped, tag = 'scratch operand']
  %s0 = inlined_call_operand.vmem [shape: bf16[2,14,32,7], index: 0, kind: input, shape index: {}]
  %s1 = inlined_call_operand.vmem [shape: bf16[2,14,32,7], index: 1, kind: input, shape index: {}]
  %s2 = inlined_call_operand.vmem [shape: bf16[32,288], index: 2, kind: input, shape index: {}]
  %s3 = inlined_call_operand.vmem [shape: f32[32,1], index: 3, kind: input, shape index: {}]
  %s4 = inlined_call_operand.vmem [shape: bf16[2,6,32,6], index: 4, kind: output, shape index: {}]
  %s5 = sld [smem:[#allocation0]]
  $region56: #{crater_forward.6} parent=0
    _
  %s7 = ssub.s32 1, %s5
  %s8 = scalar_select 0, %s7, %s5
  loop: start=0, step=1, limit=6
  $region2: #{crater_forward.6} parent=0 // loop_pre_header
    _
  $region3: #{crater_forward.6} parent=0 // loop_header
    %s10 = sphi 0, %s14
    %p11 = scmp.ge.s32.totalorder %s10, 6
    %s17 = sphi 0, %s29
    %s18 = sphi 0, %s25
    %s19 = sphi 0, %s17
    %s20 = sphi 0, %s18
    %s21 = sphi 0, %s19
    %s22 = sphi 0, %s20
    %s32 = sphi 0, %s34
    %s35 = sphi 0, %s32
    %s36 = sphi 0, %s35
    %s52 = sphi 0, %s36
    %s58 = sphi 0, %s60
    %s61 = sphi 0, %s58
    %s62 = sphi 0, %s61
    %s78 = sphi 0, %s62
    %s82 = sphi 0, %s82
    %s84 = sphi 0, %s82
    %s85 = sphi 0, %s84
    %s99 = sphi 0, %s85
    %s103 = sphi 0, %s103
    %s105 = sphi 0, %s103
    %s106 = sphi 0, %s105
    %s120 = sphi 0, %s106
    %s128 = sphi 0, %s130
    %s131 = sphi 0, %s128
    %s132 = sphi 0, %s131
    %s148 = sphi 0, %s132
  $region4: #{crater_forward.6} parent=0 // loop_header_branch
    %13 = sbr.rel (%p11) target = $region8
  $region5: #{crater_forward.6} parent=0 // loop_body
    %s15 = ssub.s32 %s10, 1
    %s16 = ssub.s32 %s10, 2
    %s23 = sadd.s32 1, %s18
    %p24 = scmp.ge.s32.totalorder %s23, 2
    %s25 = scalar_select %p24, 0, %s23
    %s26 = sadd.s32 1, %s17
    %s27 = scalar_select %p24, %s26, %s17
    %p28 = scmp.ge.s32.totalorder %s27, 2
    %s29 = scalar_select %p28, 0, %s27
    %s30 = ssub.s32 %s17, %s29
    %p31 = scmp.eq.s32.totalorder %s30, 0
    %s33 = sadd.s32 %s32, 1
    %s34 = scalar_select %p31, %s32, %s33
    %p37 = pneg %p31
    %p38 = scmp.eq.s32.totalorder %s10, 3
    %p39 = por %p37, %p38
    %p40 = scmp.ne.s32.totalorder %s32, %s35
    %p41 = scmp.eq.s32.totalorder %s10, 0
    %p42 = por %p40, %p41
    %p43 = scmp.ne.s32.totalorder %s32, %s35
    %p44 = scmp.eq.s32.totalorder %s15, 3
    %p45 = por %p43, %p44
    %p46 = scmp.ne.s32.totalorder %s35, %s36
    %p47 = scmp.eq.s32.totalorder %s15, 0
    %p48 = por %p46, %p47
    %p49 = scmp.ne.s32.totalorder %s35, %s36
    %p50 = scmp.eq.s32.totalorder %s16, 3
    %p51 = por %p49, %p50
    %p53 = scmp.ne.s32.totalorder %s36, %s52
    %p54 = scmp.eq.s32.totalorder %s16, 0
    %p55 = por %p53, %p54
    %s56 = ssub.s32 %s17, %s29
    %p57 = scmp.eq.s32.totalorder %s56, 0
    %s59 = sadd.s32 %s58, 1
    %s60 = scalar_select %p57, %s58, %s59
    %p63 = pneg %p57
    %p64 = scmp.eq.s32.totalorder %s10, 3
    %p65 = por %p63, %p64
    %p66 = scmp.ne.s32.totalorder %s58, %s61
    %p67 = scmp.eq.s32.totalorder %s10, 0
    %p68 = por %p66, %p67
    %p69 = scmp.ne.s32.totalorder %s58, %s61
    %p70 = scmp.eq.s32.totalorder %s15, 3
    %p71 = por %p69, %p70
    %p72 = scmp.ne.s32.totalorder %s61, %s62
    %p73 = scmp.eq.s32.totalorder %s15, 0
    %p74 = por %p72, %p73
    %p75 = scmp.ne.s32.totalorder %s61, %s62
    %p76 = scmp.eq.s32.totalorder %s16, 3
    %p77 = por %p75, %p76
    %p79 = scmp.ne.s32.totalorder %s62, %s78
    %p80 = scmp.eq.s32.totalorder %s16, 0
    %p81 = por %p79, %p80
    %s83 = sadd.s32 %s82, 1
    %p86 = scmp.eq.s32.totalorder %s10, 3
    %p87 = scmp.ne.s32.totalorder %s82, %s84
    %p88 = scmp.eq.s32.totalorder %s10, 0
    %p89 = por %p87, %p88
    %p90 = scmp.ne.s32.totalorder %s82, %s84
    %p91 = scmp.eq.s32.totalorder %s15, 3
    %p92 = por %p90, %p91
    %p93 = scmp.ne.s32.totalorder %s84, %s85
    %p94 = scmp.eq.s32.totalorder %s15, 0
    %p95 = por %p93, %p94
    %p96 = scmp.ne.s32.totalorder %s84, %s85
    %p97 = scmp.eq.s32.totalorder %s16, 3
    %p98 = por %p96, %p97
    %p100 = scmp.ne.s32.totalorder %s85, %s99
    %p101 = scmp.eq.s32.totalorder %s16, 0
    %p102 = por %p100, %p101
    %s104 = sadd.s32 %s103, 1
    %p107 = scmp.eq.s32.totalorder %s10, 3
    %p108 = scmp.ne.s32.totalorder %s103, %s105
    %p109 = scmp.eq.s32.totalorder %s10, 0
    %p110 = por %p108, %p109
    %p111 = scmp.ne.s32.totalorder %s103, %s105
    %p112 = scmp.eq.s32.totalorder %s15, 3
    %p113 = por %p111, %p112
    %p114 = scmp.ne.s32.totalorder %s105, %s106
    %p115 = scmp.eq.s32.totalorder %s15, 0
    %p116 = por %p114, %p115
    %p117 = scmp.ne.s32.totalorder %s105, %s106
    %p118 = scmp.eq.s32.totalorder %s16, 3
    %p119 = por %p117, %p118
    %p121 = scmp.ne.s32.totalorder %s106, %s120
    %p122 = scmp.eq.s32.totalorder %s16, 0
    %p123 = por %p121, %p122
    %s124 = ssub.s32 %s17, %s29
    %s125 = ssub.s32 %s18, %s25
    %s126 = sor.u32 %s124, %s125
    %p127 = scmp.eq.s32.totalorder %s126, 0
    %s129 = sadd.s32 %s128, 1
    %s130 = scalar_select %p127, %s128, %s129
    %p133 = pneg %p127
    %p134 = scmp.eq.s32.totalorder %s10, 3
    %p135 = por %p133, %p134
    %p136 = scmp.ne.s32.totalorder %s128, %s131
    %p137 = scmp.eq.s32.totalorder %s10, 0
    %p138 = por %p136, %p137
    %p139 = scmp.ne.s32.totalorder %s128, %s131
    %p140 = scmp.eq.s32.totalorder %s15, 3
    %p141 = por %p139, %p140
    %p142 = scmp.ne.s32.totalorder %s131, %s132
    %p143 = scmp.eq.s32.totalorder %s15, 0
    %p144 = por %p142, %p143
    %p145 = scmp.ne.s32.totalorder %s131, %s132
    %p146 = scmp.eq.s32.totalorder %s16, 3
    %p147 = por %p145, %p146
    %p149 = scmp.ne.s32.totalorder %s132, %s148
    %p150 = scmp.eq.s32.totalorder %s16, 0
    %p151 = por %p149, %p150
    %p152 = scmp.le.s32.totalorder 1, %s10
    %p153 = scmp.lt.s32.totalorder %s10, 5
    %p154 = pnand %p152, %p153
    %p155 = pneg %p154
    // Predicated region
    $region9: #{crater_forward.6} parent=5 // pred_check
      _
    $region10: #{crater_forward.6} parent=5 // pred_check_branch
      %157 = sbr.rel (%p154) target = $region12
    $region11: #{crater_forward.6} parent=5 // pred_region
      %s158 = ssub.s32 %s10, 1
      // Predicated region
      $region13: #{crater_forward.6} parent=11 // pred_check
        %p159 = pneg %p95
      $region14: #{crater_forward.6} parent=11 // pred_check_branch
        %161 = sbr.rel (%p159) target = $region16
      $region15: #{crater_forward.6} parent=11 // pred_region
        _
      $region16: #{crater_forward.6} parent=11 // pred_fallthru
        _
      // Predicated region
      $region17: #{crater_forward.6} parent=11 // pred_check
        %p162 = pneg %p116
      $region18: #{crater_forward.6} parent=11 // pred_check_branch
        %164 = sbr.rel (%p162) target = $region20
      $region19: #{crater_forward.6} parent=11 // pred_region
        _
      $region20: #{crater_forward.6} parent=11 // pred_fallthru
        _
    $region12: #{crater_forward.6} parent=5 // pred_fallthru
      _
    %p165 = scmp.lt.s32.totalorder %s10, 4
    // Predicated region
    $region21: #{crater_forward.6} parent=5 // pred_check
      %p166 = pneg %p165
    $region22: #{crater_forward.6} parent=5 // pred_check_branch
      %168 = sbr.rel (%p166) target = $region24
    $region23: #{crater_forward.6} parent=5 // pred_region
      // Predicated region
      $region25: #{crater_forward.6} parent=23 // pred_check
        %p169 = pneg %p42
      $region26: #{crater_forward.6} parent=23 // pred_check_branch
        %171 = sbr.rel (%p169) target = $region28
      $region27: #{crater_forward.6} parent=23 // pred_region
        %p172 = scmp.lt.s32.totalorder %s17, 1
        %s173 = scalar_select %p172, %s17, 1
        %s174 = smul.addr %s173, 56
        %s175 = smul.addr %s174, 4
        %s176 = scalar_lea.vmem %s0, %s175
      $region28: #{crater_forward.6} parent=23 // pred_fallthru
        _
      // Predicated region
      $region29: #{crater_forward.6} parent=23 // pred_check
        %p177 = pneg %p68
      $region30: #{crater_forward.6} parent=23 // pred_check_branch
        %179 = sbr.rel (%p177) target = $region32
      $region31: #{crater_forward.6} parent=23 // pred_region
        %p180 = scmp.lt.s32.totalorder %s17, 1
        %s181 = scalar_select %p180, %s17, 1
        %s182 = smul.addr %s181, 56
        %s183 = smul.addr %s182, 4
        %s184 = scalar_lea.vmem %s1, %s183
      $region32: #{crater_forward.6} parent=23 // pred_fallthru
        _
    $region24: #{crater_forward.6} parent=5 // pred_fallthru
      _
    %p185 = scmp.le.s32.totalorder 1, %s10
    %p186 = scmp.lt.s32.totalorder %s10, 5
    %p187 = pnand %p185, %p186
    %p188 = pneg %p187
    // Predicated region
    $region33: #{crater_forward.6} parent=5 // pred_check
      _
    $region34: #{crater_forward.6} parent=5 // pred_check_branch
      %190 = sbr.rel (%p187) target = $region36
    $region35: #{crater_forward.6} parent=5 // pred_region
      %s191 = ssub.s32 %s10, 1
      %p192 = scmp.lt.s32.totalorder %s19, 1
      %s193 = scalar_select %p192, %s19, 1
      %s194 = smul.addr %s193, 56
      %s195 = smul.addr %s194, 4
      %s196 = scalar_lea.vmem %s0, %s195
      %p197 = pneg %p48
      %p198 = pneg %p45
      %p199 = scmp.lt.s32.totalorder %s19, 1
      %s200 = scalar_select %p199, %s19, 1
      %s201 = smul.addr %s200, 56
      %s202 = smul.addr %s201, 4
      %s203 = scalar_lea.vmem %s1, %s202
      %p204 = pneg %p74
      %p205 = pneg %p71
      %p206 = pneg %p95
      %p207 = pneg %p92
      %p208 = pneg %p116
      %p209 = pneg %p113
      %p210 = pneg %p144
      %p211 = pneg %p141
      %s212 = smul.u32 3, %s20
      %p213 = scmp.lt.s32.totalorder %s19, 1
      %s214 = scalar_select %p213, %s19, 1
      %p215 = scmp.lt.s32.totalorder %s212, 5
      %s216 = scalar_select %p215, %s212, 5
      %s217 = smul.addr %s216, 4
      %s218 = smul.addr %s214, 24
      %s219 = sadd.s32 %s217, %s218
      %s220 = smul.addr %s219, 4
      %s221 = scalar_lea.vmem %s4, %s220
      %p222 = scmp.lt.s32.totalorder %s19, 1
      %s223 = scalar_select %p222, %s19, 1
      %s224 = smul.addr %s223, 56
      %s225 = smul.addr %s224, 4
      %s226 = scalar_lea.vmem %s0, %s225
      %p227 = scmp.lt.s32.totalorder %s19, 1
      %s228 = scalar_select %p227, %s19, 1
      %s229 = smul.addr %s228, 56
      %s230 = smul.addr %s229, 4
      %s231 = scalar_lea.vmem %s1, %s230
      %s232 = smul.u32 3, %s20
      %p233 = scmp.lt.s32.totalorder %s19, 1
      %s234 = scalar_select %p233, %s19, 1
      %p235 = scmp.lt.s32.totalorder %s232, 5
      %s236 = scalar_select %p235, %s232, 5
      %s237 = smul.addr %s236, 4
      %s238 = smul.addr %s234, 24
      %s239 = sadd.s32 %s237, %s238
      %s240 = smul.addr %s239, 4
      %s241 = scalar_lea.vmem %s4, %s240
      %s242 = smul.u32 3, %s20
      %s244 = smul.u32 %s20, 3
      %v245 = vld [vmem:[%s2] sm:$0xff]
      %v246 = vld [vmem:[%s2 + $0x8] sm:$0xf]
      %v247 = vld [vmem:[%s2 + $0xc] sm:$0xff]
      %v248 = vld [vmem:[%s2 + $0x14] sm:$0xf]
      %v249 = vld [vmem:[%s2 + $0x18] sm:$0xff]
      %v250 = vld [vmem:[%s2 + $0x20] sm:$0xf]
      %v251 = vld [vmem:[%s2 + $0x24] sm:$0xff]
      %v252 = vld [vmem:[%s2 + $0x2c] sm:$0xf]
      %v253 = vld [vmem:[%s3] sm:$0xff]
      %v254 = vld [vmem:[%s3 + $0x8] sm:$0xff]
      %v255 = vld [vmem:[%s3 + $0x10] sm:$0xff]
      %v256 = vld [vmem:[%s3 + $0x18] sm:$0xff]
      %258 = vset.pattern.permute.xlu0 0
      %259 = vperm.xlu0 %258, %v253
      %v260 = vpop.permute.xlu0 %259
      %263 = vset.pattern.permute.xlu0 0
      %264 = vperm.xlu0 %263, %v254
      %v265 = vpop.permute.xlu0 %264
      %268 = vset.pattern.permute.xlu0 0
      %269 = vperm.xlu0 %268, %v255
      %v270 = vpop.permute.xlu0 %269
      %273 = vset.pattern.permute.xlu0 0
      %274 = vperm.xlu0 %273, %v256
      %v275 = vpop.permute.xlu0 %274
      loop: start=0, step=1, limit=3
      $region37: #{crater_forward.6} parent=35 // loop_pre_header
        _
      $region38: #{crater_forward.6} parent=35 // loop_header
        %s278 = sphi 0, %s282
        %p279 = scmp.ge.s32.totalorder %s278, 3
      $region39: #{crater_forward.6} parent=35 // loop_header_branch
        %281 = sbr.rel (%p279) target = $region43
      $region40: #{crater_forward.6} parent=35 // loop_body
        %s283 = sadd.s32 %s244, %s278
        %s284 = smul.u32 %s283, 2
        %s285 = smul.u32 %s284, 4
        %s286 = smul.addr %s285, 4
        %s287 = scalar_lea.vmem %s226, %s286
        %v288 = vld [vmem:[%s287] sm:$0xf]
        %v289 = vld [vmem:[%s287 + $0x4] sm:$0xf]
        %v290 = vld [vmem:[%s287 + $0x8] sm:$0xf]
        %v291 = vld [vmem:[%s287 + $0xc] sm:$0xf]
        %s292 = smul.addr %s285, 4
        %s293 = scalar_lea.vmem %s231, %s292
        %v294 = vld [vmem:[%s293] sm:$0xf]
        %v295 = vld [vmem:[%s293 + $0x4] sm:$0xf]
        %v296 = vld [vmem:[%s293 + $0x8] sm:$0xf]
        %v297 = vld [vmem:[%s293 + $0xc] sm:$0xf]
        %v302 = vunpack.c.l.b16 %v288
        %v303 = vunpack.c.l.b16 %v289
        %v304 = vunpack.c.l.b16 %v290
        %v305 = vunpack.c.l.b16 %v291
        %v306 = vpack.c.b16 %v303, %v302
        %v307 = vpack.c.b16 %v305, %v304
        %vm310 = vcmask 48128
        %311 = vst.msk [vmem:[#allocation2] sm:$0xff] %vm310, %v306
        %312 = vst.msk [vmem:[#allocation2 + $0x8] sm:$0xff] %vm310, %v307
        %v317 = vunpack.c.l.b16 %v294
        %v318 = vunpack.c.l.b16 %v295
        %v319 = vunpack.c.l.b16 %v296
        %v320 = vunpack.c.l.b16 %v297
        %v321 = vpack.c.b16 %v318, %v317
        %v322 = vpack.c.b16 %v320, %v319
        %325 = vst.msk [vmem:[#allocation2 + $0x10] sm:$0xff] %vm310, %v321
        %326 = vst.msk [vmem:[#allocation2 + $0x18] sm:$0xff] %vm310, %v322
        %327 = vrot.lane.b32.xlu0 %v306, 127
        %v328 = vpop.permute.xlu0 %327
        %329 = vrot.lane.b32.xlu0 %v307, 127
        %v330 = vpop.permute.xlu0 %329
        %333 = vst.msk [vmem:[#allocation2 + $0x20] sm:$0xff] %vm310, %v328
        %334 = vst.msk [vmem:[#allocation2 + $0x28] sm:$0xff] %vm310, %v330
        %s335 = sadd.s32 %s284, 1
        %s336 = smul.u32 %s335, 4
        %s337 = smul.addr %s336, 4
        %s338 = scalar_lea.vmem %s226, %s337
        %v339 = vld [vmem:[%s338] sm:$0xf]
        %v340 = vld [vmem:[%s338 + $0x4] sm:$0xf]
        %v341 = vld [vmem:[%s338 + $0x8] sm:$0xf]
        %v342 = vld [vmem:[%s338 + $0xc] sm:$0xf]
        %s343 = smul.addr %s336, 4
        %s344 = scalar_lea.vmem %s231, %s343
        %v345 = vld [vmem:[%s344] sm:$0xf]
        %v346 = vld [vmem:[%s344 + $0x4] sm:$0xf]
        %v347 = vld [vmem:[%s344 + $0x8] sm:$0xf]
        %v348 = vld [vmem:[%s344 + $0xc] sm:$0xf]
        %v353 = vunpack.c.l.b16 %v339
        %v354 = vunpack.c.l.b16 %v340
        %v355 = vunpack.c.l.b16 %v341
        %v356 = vunpack.c.l.b16 %v342
        %v357 = vpack.c.b16 %v354, %v353
        %v358 = vpack.c.b16 %v356, %v355
        %361 = vst.msk [vmem:[#allocation2 + $0x30] sm:$0xff] %vm310, %v357
        %362 = vst.msk [vmem:[#allocation2 + $0x38] sm:$0xff] %vm310, %v358
        %v367 = vunpack.c.l.b16 %v345
        %v368 = vunpack.c.l.b16 %v346
        %v369 = vunpack.c.l.b16 %v347
        %v370 = vunpack.c.l.b16 %v348
        %v371 = vpack.c.b16 %v368, %v367
        %v372 = vpack.c.b16 %v370, %v369
        %375 = vst.msk [vmem:[#allocation2 + $0x40] sm:$0xff] %vm310, %v371
        %376 = vst.msk [vmem:[#allocation2 + $0x48] sm:$0xff] %vm310, %v372
        %377 = vrot.lane.b32.xlu0 %v357, 127
        %v378 = vpop.permute.xlu0 %377
        %379 = vrot.lane.b32.xlu0 %v358, 127
        %v380 = vpop.permute.xlu0 %379
        %383 = vst.msk [vmem:[#allocation2 + $0x50] sm:$0xff] %vm310, %v378
        %384 = vst.msk [vmem:[#allocation2 + $0x58] sm:$0xff] %vm310, %v380
        %s385 = sadd.s32 %s284, 2
        %s386 = smul.u32 %s385, 4
        %s387 = smul.addr %s386, 4
        %s388 = scalar_lea.vmem %s226, %s387
        %v389 = vld [vmem:[%s388] sm:$0xf]
        %v390 = vld [vmem:[%s388 + $0x4] sm:$0xf]
        %v391 = vld [vmem:[%s388 + $0x8] sm:$0xf]
        %v392 = vld [vmem:[%s388 + $0xc] sm:$0xf]
        %s393 = smul.addr %s386, 4
        %s394 = scalar_lea.vmem %s231, %s393
        %v395 = vld [vmem:[%s394] sm:$0xf]
        %v396 = vld [vmem:[%s394 + $0x4] sm:$0xf]
        %v397 = vld [vmem:[%s394 + $0x8] sm:$0xf]
        %v398 = vld [vmem:[%s394 + $0xc] sm:$0xf]
        %v403 = vunpack.c.l.b16 %v389
        %v404 = vunpack.c.l.b16 %v390
        %v405 = vunpack.c.l.b16 %v391
        %v406 = vunpack.c.l.b16 %v392
        %v407 = vpack.c.b16 %v404, %v403
        %v408 = vpack.c.b16 %v406, %v405
        %411 = vst.msk [vmem:[#allocation2 + $0x60] sm:$0xff] %vm310, %v407
        %412 = vst.msk [vmem:[#allocation2 + $0x68] sm:$0xff] %vm310, %v408
        %v417 = vunpack.c.l.b16 %v395
        %v418 = vunpack.c.l.b16 %v396
        %v419 = vunpack.c.l.b16 %v397
        %v420 = vunpack.c.l.b16 %v398
        %v421 = vpack.c.b16 %v418, %v417
        %v422 = vpack.c.b16 %v420, %v419
        %425 = vst.msk [vmem:[#allocation2 + $0x70] sm:$0xff] %vm310, %v421
        %426 = vst.msk [vmem:[#allocation2 + $0x78] sm:$0xff] %vm310, %v422
        %427 = vrot.lane.b32.xlu0 %v407, 127
        %v428 = vpop.permute.xlu0 %427
        %429 = vrot.lane.b32.xlu0 %v408, 127
        %v430 = vpop.permute.xlu0 %429
        %433 = vst.msk [vmem:[#allocation2 + $0x80] sm:$0xff] %vm310, %v428
        %434 = vst.msk [vmem:[#allocation2 + $0x88] sm:$0xff] %vm310, %v430
        %v435 = vld [vmem:[#allocation2] sm:$0xff]
        %v436 = vld [vmem:[#allocation2 + $0x8] sm:$0xff]
        %v437 = vld [vmem:[#allocation2 + $0x10] sm:$0xff]
        %v438 = vld [vmem:[#allocation2 + $0x18] sm:$0xff]
        %v439 = vld [vmem:[#allocation2 + $0x20] sm:$0xff]
        %v440 = vld [vmem:[#allocation2 + $0x28] sm:$0xff]
        %v441 = vld [vmem:[#allocation2 + $0x30] sm:$0xff]
        %v442 = vld [vmem:[#allocation2 + $0x38] sm:$0xff]
        %v443 = vld [vmem:[#allocation2 + $0x40] sm:$0xff]
        %v444 = vld [vmem:[#allocation2 + $0x48] sm:$0xff]
        %v445 = vld [vmem:[#allocation2 + $0x50] sm:$0xff]
        %v446 = vld [vmem:[#allocation2 + $0x58] sm:$0xff]
        %v447 = vld [vmem:[#allocation2 + $0x60] sm:$0xff]
        %v448 = vld [vmem:[#allocation2 + $0x68] sm:$0xff]
        %v449 = vld [vmem:[#allocation2 + $0x70] sm:$0xff]
        %v450 = vld [vmem:[#allocation2 + $0x78] sm:$0xff]
        %v451 = vld [vmem:[#allocation2 + $0x80] sm:$0xff]
        %v452 = vld [vmem:[#allocation2 + $0x88] sm:$0xff]
        %v461 = vunpack.c.l.b16 %v245
        %v462 = vunpack.c.h.b16 %v245
        %v463 = vunpack.c.l.b16 %v246
        %v464 = vunpack.c.l.b16 %v247
        %v465 = vunpack.c.h.b16 %v247
        %v466 = vunpack.c.l.b16 %v248
        %v467 = vunpack.c.l.b16 %v249
        %v468 = vunpack.c.h.b16 %v249
        %v469 = vunpack.c.l.b16 %v250
        %v470 = vunpack.c.l.b16 %v251
        %v471 = vunpack.c.h.b16 %v251
        %v472 = vunpack.c.l.b16 %v252
        %v473 = vpack.c.b16 %v464, %v461
        %v474 = vpack.c.b16 %v465, %v462
        %v475 = vpack.c.b16 %v466, %v463
        %v476 = vpack.c.b16 %v470, %v467
        %v477 = vpack.c.b16 %v471, %v468
        %v478 = vpack.c.b16 %v472, %v469
        %vm483 = vcmask 261120
        %v485 = vsel %vm483, %v475, 0
        %v488 = vsel %vm483, %v478, 0
        %490 = vmatprep.subr.bf16.mxu0 0
        %491 = vmatpush1.bf16.msra.mxu0 %v435
        %492 = vmatprep.subr.bf16.mxu0 0
        %493 = vmatpush1.bf16.msra.mxu0 %v436
        %494 = vmatprep.subr.bf16.mxu0 0
        %495 = vmatpush1.bf16.msra.mxu0 %v437
        %496 = vmatprep.subr.bf16.mxu0 0
        %497 = vmatpush1.bf16.msra.mxu0 %v438
        %498 = vmatprep.subr.bf16.mxu0 0
        %499 = vmatpush1.bf16.msra.mxu0 %v439
        %500 = vmatprep.subr.bf16.mxu0 0
        %501 = vmatpush1.bf16.msra.mxu0 %v440
        %502 = vmatprep.subr.bf16.mxu0 0
        %503 = vmatpush1.bf16.msra.mxu0 %v441
        %504 = vmatprep.subr.bf16.mxu0 0
        %505 = vmatpush1.bf16.msra.mxu0 %v442
        %506 = vmatprep.subr.bf16.mxu0 0
        %507 = vmatpush1.bf16.msra.mxu0 %v443
        %508 = vmatprep.subr.bf16.mxu0 0
        %509 = vmatpush1.bf16.msra.mxu0 %v444
        %510 = vmatprep.subr.bf16.mxu0 0
        %511 = vmatpush1.bf16.msra.mxu0 %v445
        %512 = vmatprep.subr.bf16.mxu0 0
        %513 = vmatpush1.bf16.msra.mxu0 %v446
        %514 = vmatprep.subr.bf16.mxu0 0
        %515 = vmatpush1.bf16.msra.mxu0 %v447
        %516 = vmatprep.subr.bf16.mxu0 0
        %517 = vmatpush1.bf16.msra.mxu0 %v448
        %518 = vmatprep.subr.bf16.mxu0 0
        %519 = vmatpush1.bf16.msra.mxu0 %v449
        %520 = vmatprep.subr.bf16.mxu0 0
        %521 = vmatpush1.bf16.msra.mxu0 %v450
        %522 = vmatprep.mubr.bf16.mxu0 %v474
        %523 = vmatmul.mubr.bf16.gmra.mrb[0].mxu0 %v473
        %v524 = vpop.f32.mrb[0].mxu0
        %v525 = vadd.f32 %v260, %v524
        %v526 = vpop.f32.mrb[0].mxu0
        %v527 = vpop.f32.mrb[0].mxu0
        %v528 = vadd.f32 %v265, %v527
        %v529 = vpop.f32.mrb[0].mxu0
        %530 = vmatprep.mubr.bf16.mxu0 %v477
        %531 = vmatmul.mubr.bf16.gmra.mrb[0].mxu0 %v476
        %v532 = vpop.f32.mrb[0].mxu0
        %v533 = vadd.f32 %v270, %v532
        %v534 = vpop.f32.mrb[0].mxu0
        %v535 = vpop.f32.mrb[0].mxu0
        %v536 = vadd.f32 %v275, %v535
        %v537 = vpop.f32.mrb[0].mxu0
        %538 = vdwg.mxu0
        %539 = vmatprep.subr.bf16.mxu0 0
        %540 = vmatpush1.bf16.msra.mxu0 %v451
        %541 = vmatprep.subr.bf16.mxu0 0
        %542 = vmatpush1.bf16.msra.mxu0 %v452
        %543 = vmatprep.subr.bf16.mxu0 0
        %544 = vmatpush1.bf16.msra.mxu0 0
        %545 = vmatprep.subr.bf16.mxu0 0
        %546 = vmatpush1.bf16.msra.mxu0 0
        %547 = vmatprep.subr.bf16.mxu0 0
        %548 = vmatpush1.bf16.msra.mxu0 0
        %549 = vmatprep.subr.bf16.mxu0 0
        %550 = vmatpush1.bf16.msra.mxu0 0
        %551 = vmatprep.subr.bf16.mxu0 0
        %552 = vmatpush1.bf16.msra.mxu0 0
        %553 = vmatprep.subr.bf16.mxu0 0
        %554 = vmatpush1.bf16.msra.mxu0 0
        %555 = vmatprep.subr.bf16.mxu0 0
        %556 = vmatpush1.bf16.msra.mxu0 0
        %557 = vmatprep.subr.bf16.mxu0 0
        %558 = vmatpush1.bf16.msra.mxu0 0
        %559 = vmatprep.subr.bf16.mxu0 0
        %560 = vmatpush1.bf16.msra.mxu0 0
        %561 = vmatprep.subr.bf16.mxu0 0
        %562 = vmatpush1.bf16.msra.mxu0 0
        %563 = vmatprep.subr.bf16.mxu0 0
        %564 = vmatpush1.bf16.msra.mxu0 0
        %565 = vmatprep.subr.bf16.mxu0 0
        %566 = vmatpush1.bf16.msra.mxu0 0
        %567 = vmatprep.subr.bf16.mxu0 0
        %568 = vmatpush1.bf16.msra.mxu0 0
        %569 = vmatprep.subr.bf16.mxu0 0
        %570 = vmatpush1.bf16.msra.mxu0 0
        %571 = vmatprep.mubr.bf16.mxu0 0
        %572 = vmatmul.mubr.bf16.gmra.mrb[0].mxu0 %v485
        %v573 = vpop.f32.mrb[0].mxu0
        %v574 = vadd.f32 %v525, %v573
        %v575 = vpop.f32.mrb[0].mxu0
        %v576 = vpop.f32.mrb[0].mxu0
        %v577 = vadd.f32 %v528, %v576
        %v578 = vpop.f32.mrb[0].mxu0
        %579 = vmatprep.mubr.bf16.mxu0 0
        %580 = vmatmul.mubr.bf16.gmra.mrb[0].mxu0 %v488
        %v581 = vpop.f32.mrb[0].mxu0
        %v582 = vadd.f32 %v533, %v581
        %v583 = vpop.f32.mrb[0].mxu0
        %v584 = vpop.f32.mrb[0].mxu0
        %v585 = vadd.f32 %v536, %v584
        %v586 = vpop.f32.mrb[0].mxu0
        %587 = vdwg.mxu0
        %v588 = vmax.f32 %v574, 0.0
        %v589 = vmax.f32 %v577, 0.0
        %v590 = vmax.f32 %v582, 0.0
        %v591 = vmax.f32 %v585, 0.0
        %v592 = vpack.c.bf16 %v589, %v588
        %v593 = vpack.c.bf16 %v591, %v590
        %v596 = vunpack.c.l.b16 %v592
        %v597 = vunpack.c.h.b16 %v592
        %v598 = vunpack.c.l.b16 %v593
        %v599 = vunpack.c.h.b16 %v593
        %v600 = vpack.c.b16 %v596, %v596
        %v601 = vpack.c.b16 %v597, %v597
        %v602 = vpack.c.b16 %v598, %v598
        %v603 = vpack.c.b16 %v599, %v599
        %s608 = smul.u32 %s278, 4
        %s609 = smul.addr %s608, 4
        %s610 = scalar_lea.vmem %s241, %s609
        %vm611 = vcmask 44032
        %612 = vst.msk [vmem:[%s610] sm:$0xf] %vm611, %v600
        %613 = vst.msk [vmem:[%s610 + $0x4] sm:$0xf] %vm611, %v601
        %614 = vst.msk [vmem:[%s610 + $0x8] sm:$0xf] %vm611, %v602
        %615 = vst.msk [vmem:[%s610 + $0xc] sm:$0xf] %vm611, %v603
      $region41: #{crater_forward.6} parent=35 // loop_footer
        %s282 = sadd.s32 1, %s278
      $region42: #{crater_forward.6} parent=35 // loop_footer_branch
        %277 = sbr.rel target = $region38
      $region43: #{crater_forward.6} parent=35 // loop_exit
        _
      %s616 = smul.u32 3, %s20
      %p617 = scmp.lt.s32.totalorder %s19, 1
      %s618 = scalar_select %p617, %s19, 1
      %p619 = scmp.lt.s32.totalorder %s616, 5
      %s620 = scalar_select %p619, %s616, 5
      %s621 = smul.addr %s620, 4
      %s622 = smul.addr %s618, 24
      %s623 = sadd.s32 %s621, %s622
      %s624 = smul.addr %s623, 4
      %s625 = scalar_lea.vmem %s4, %s624
      // Predicated region
      $region44: #{crater_forward.6} parent=35 // pred_check
        %p626 = pneg %p141
      $region45: #{crater_forward.6} parent=35 // pred_check_branch
        %628 = sbr.rel (%p626) target = $region47
      $region46: #{crater_forward.6} parent=35 // pred_region
        %s629 = smul.u32 3, %s20
      $region47: #{crater_forward.6} parent=35 // pred_fallthru
        _
    $region36: #{crater_forward.6} parent=5 // pred_fallthru
      _
    %p630 = scmp.le.s32.totalorder 2, %s10
    // Predicated region
    $region48: #{crater_forward.6} parent=5 // pred_check
      %p631 = pneg %p630
    $region49: #{crater_forward.6} parent=5 // pred_check_branch
      %633 = sbr.rel (%p631) target = $region51
    $region50: #{crater_forward.6} parent=5 // pred_region
      %s634 = ssub.s32 %s10, 2
      // Predicated region
      $region52: #{crater_forward.6} parent=50 // pred_check
        %p635 = pneg %p147
      $region53: #{crater_forward.6} parent=50 // pred_check_branch
        %637 = sbr.rel (%p635) target = $region55
      $region54: #{crater_forward.6} parent=50 // pred_region
        %s638 = smul.u32 3, %s22
        %p639 = scmp.lt.s32.totalorder %s21, 1
        %s640 = scalar_select %p639, %s21, 1
        %p641 = scmp.lt.s32.totalorder %s638, 5
        %s642 = scalar_select %p641, %s638, 5
        %s643 = smul.addr %s642, 4
        %s644 = smul.addr %s640, 24
        %s645 = sadd.s32 %s643, %s644
        %s646 = smul.addr %s645, 4
        %s647 = scalar_lea.vmem %s4, %s646
      $region55: #{crater_forward.6} parent=50 // pred_fallthru
        _
    $region51: #{crater_forward.6} parent=5 // pred_fallthru
      _
  $region6: #{crater_forward.6} parent=0 // loop_footer
    %s14 = sadd.s32 1, %s10
  $region7: #{crater_forward.6} parent=0 // loop_footer_branch
    %9 = sbr.rel target = $region3
  $region8: #{crater_forward.6} parent=0 // loop_exit
    _

// kernel: crater_forward.7
$region0: #{crater_forward.7}
  #allocation0 [shape = 'u32[]', space=smem, size = 0x4, offset = 0x4, fixed_abs, tag = 'smem constant byte address 0x4 - core index']
  #allocation1 [shape = 'u32[144,128]{1,0:T(1,128)}', space=vmem, size = 0x12000, scoped, tag = 'internal scratch']
  #allocation2 [shape = 'f32[2,1024]{1,0:T(2,128)}', space=vmem, size = 0x2000, scoped, tag = 'scratch operand']
  %s0 = inlined_call_operand.vmem [shape: bf16[2,1152], index: 0, kind: input, shape index: {}]
  %s1 = inlined_call_operand.vmem [shape: bf16[1152,1024], index: 1, kind: input, shape index: {}]
  %s2 = inlined_call_operand.vmem [shape: f32[1,1024], index: 2, kind: input, shape index: {}]
  %s3 = inlined_call_operand.vmem [shape: bf16[1024,1024], index: 3, kind: input, shape index: {}]
  %s4 = inlined_call_operand.vmem [shape: f32[1,1024], index: 4, kind: input, shape index: {}]
  %s5 = inlined_call_operand.hbm [shape: bf16[1024,1024], index: 5, kind: input, shape index: {}]
  %s6 = inlined_call_operand.vmem [shape: f32[1,1024], index: 6, kind: input, shape index: {}]
  %s7 = inlined_call_operand.vmem [shape: bf16[1024,3], index: 7, kind: input, shape index: {}]
  %s8 = inlined_call_operand.vmem [shape: f32[1,3], index: 8, kind: input, shape index: {}]
  %s9 = inlined_call_operand.hbm [shape: f32[2,3], index: 9, kind: output, shape index: {}]
  %s10 = sld [smem:[#allocation0]]
  $region122: #{crater_forward.7} parent=0
    _
  %s12 = ssub.s32 1, %s10
  %s13 = scalar_select 0, %s12, %s10
  $region1: #{crater_forward.7} parent=0
    #allocation3 [shape = 'u8[589824]{0}', space=vmem, size = 0x90000, scoped, tag = 'input window, operand 1']
    #allocation4 [shape = 'u8[2097152]{0}', space=vmem, size = 0x200000, scoped, tag = 'input window, operand 5, single buffered']
    #allocation5 [shape = 's32[2]{0}', space=sflag, size = 0x8, scoped, tag = 'scoped memory for crater_forward.7']
    #allocation6 [shape = 's32[2]{0}', space=sflag, size = 0x8, scoped, tag = 'scoped memory for crater_forward.7']
    #allocation7 [shape = 'u8[1024]{0}', space=vmem, size = 0x400, scoped, tag = 'output window, operand 0, single buffered']
    %14 = vsyncpa [#allocation5], 0
    %15 = vsyncpa [#allocation6], 0
    loop: start=0, step=1, limit=10
    $region2: #{crater_forward.7} parent=1 // loop_pre_header
      _
    $region3: #{crater_forward.7} parent=1 // loop_header
      %s17 = sphi 0, %s21
      %p18 = scmp.ge.s32.totalorder %s17, 10
      %s25 = sphi 0, %s25
      %s27 = sphi 0, %s25
      %s28 = sphi 0, %s27
      %s42 = sphi 0, %s28
      %s48 = sphi 0, %s50
      %s51 = sphi 0, %s48
      %s52 = sphi 0, %s51
      %s68 = sphi 0, %s52
      %s74 = sphi 0, %s76
      %s77 = sphi 0, %s74
      %s78 = sphi 0, %s77
      %s94 = sphi 0, %s78
      %s100 = sphi 0, %s102
      %s103 = sphi 0, %s100
      %s104 = sphi 0, %s103
      %s120 = sphi 0, %s104
      %s124 = sphi 0, %s124
      %s126 = sphi 0, %s124
      %s127 = sphi 0, %s126
      %s141 = sphi 0, %s127
      %s145 = sphi 0, %s145
      %s147 = sphi 0, %s145
      %s148 = sphi 0, %s147
      %s162 = sphi 0, %s148
      %s166 = sphi 0, %s166
      %s168 = sphi 0, %s166
      %s169 = sphi 0, %s168
      %s183 = sphi 0, %s169
      %s187 = sphi 0, %s187
      %s189 = sphi 0, %s187
      %s190 = sphi 0, %s189
      %s204 = sphi 0, %s190
      %s208 = sphi 0, %s208
      %s210 = sphi 0, %s208
      %s211 = sphi 0, %s210
      %s225 = sphi 0, %s211
      %s229 = sphi 0, %s229
      %s231 = sphi 0, %s229
      %s232 = sphi 0, %s231
      %s246 = sphi 0, %s232
    $region4: #{crater_forward.7} parent=1 // loop_header_branch
      %20 = sbr.rel (%p18) target = $region8
    $region5: #{crater_forward.7} parent=1 // loop_body
      %s22 = ssub.s32 %s17, 1
      %s23 = ssub.s32 %s17, 2
      %s24 = sadd.s32 %s17, 1
      %s26 = sadd.s32 %s25, 1
      %p29 = scmp.eq.s32.totalorder %s17, 7
      %p30 = scmp.ne.s32.totalorder %s25, %s27
      %p31 = scmp.eq.s32.totalorder %s17, 0
      %p32 = por %p30, %p31
      %p33 = scmp.ne.s32.totalorder %s25, %s27
      %p34 = scmp.eq.s32.totalorder %s22, 7
      %p35 = por %p33, %p34
      %p36 = scmp.ne.s32.totalorder %s27, %s28
      %p37 = scmp.eq.s32.totalorder %s22, 0
      %p38 = por %p36, %p37
      %p39 = scmp.ne.s32.totalorder %s27, %s28
      %p40 = scmp.eq.s32.totalorder %s23, 7
      %p41 = por %p39, %p40
      %p43 = scmp.ne.s32.totalorder %s28, %s42
      %p44 = scmp.eq.s32.totalorder %s23, 0
      %p45 = por %p43, %p44
      %s46 = ssub.s32 %s17, %s24
      %p47 = scmp.eq.s32.totalorder %s46, 0
      %s49 = sadd.s32 %s48, 1
      %s50 = scalar_select %p47, %s48, %s49
      %p53 = pneg %p47
      %p54 = scmp.eq.s32.totalorder %s17, 7
      %p55 = por %p53, %p54
      %p56 = scmp.ne.s32.totalorder %s48, %s51
      %p57 = scmp.eq.s32.totalorder %s17, 0
      %p58 = por %p56, %p57
      %p59 = scmp.ne.s32.totalorder %s48, %s51
      %p60 = scmp.eq.s32.totalorder %s22, 7
      %p61 = por %p59, %p60
      %p62 = scmp.ne.s32.totalorder %s51, %s52
      %p63 = scmp.eq.s32.totalorder %s22, 0
      %p64 = por %p62, %p63
      %p65 = scmp.ne.s32.totalorder %s51, %s52
      %p66 = scmp.eq.s32.totalorder %s23, 7
      %p67 = por %p65, %p66
      %p69 = scmp.ne.s32.totalorder %s52, %s68
      %p70 = scmp.eq.s32.totalorder %s23, 0
      %p71 = por %p69, %p70
      %s72 = ssub.s32 %s17, %s24
      %p73 = scmp.eq.s32.totalorder %s72, 0
      %s75 = sadd.s32 %s74, 1
      %s76 = scalar_select %p73, %s74, %s75
      %p79 = pneg %p73
      %p80 = scmp.eq.s32.totalorder %s17, 7
      %p81 = por %p79, %p80
      %p82 = scmp.ne.s32.totalorder %s74, %s77
      %p83 = scmp.eq.s32.totalorder %s17, 0
      %p84 = por %p82, %p83
      %p85 = scmp.ne.s32.totalorder %s74, %s77
      %p86 = scmp.eq.s32.totalorder %s22, 7
      %p87 = por %p85, %p86
      %p88 = scmp.ne.s32.totalorder %s77, %s78
      %p89 = scmp.eq.s32.totalorder %s22, 0
      %p90 = por %p88, %p89
      %p91 = scmp.ne.s32.totalorder %s77, %s78
      %p92 = scmp.eq.s32.totalorder %s23, 7
      %p93 = por %p91, %p92
      %p95 = scmp.ne.s32.totalorder %s78, %s94
      %p96 = scmp.eq.s32.totalorder %s23, 0
      %p97 = por %p95, %p96
      %s98 = ssub.s32 %s17, %s24
      %p99 = scmp.eq.s32.totalorder %s98, 0
      %s101 = sadd.s32 %s100, 1
      %s102 = scalar_select %p99, %s100, %s101
      %p105 = pneg %p99
      %p106 = scmp.eq.s32.totalorder %s17, 7
      %p107 = por %p105, %p106
      %p108 = scmp.ne.s32.totalorder %s100, %s103
      %p109 = scmp.eq.s32.totalorder %s17, 0
      %p110 = por %p108, %p109
      %p111 = scmp.ne.s32.totalorder %s100, %s103
      %p112 = scmp.eq.s32.totalorder %s22, 7
      %p113 = por %p111, %p112
      %p114 = scmp.ne.s32.totalorder %s103, %s104
      %p115 = scmp.eq.s32.totalorder %s22, 0
      %p116 = por %p114, %p115
      %p117 = scmp.ne.s32.totalorder %s103, %s104
      %p118 = scmp.eq.s32.totalorder %s23, 7
      %p119 = por %p117, %p118
      %p121 = scmp.ne.s32.totalorder %s104, %s120
      %p122 = scmp.eq.s32.totalorder %s23, 0
      %p123 = por %p121, %p122
      %s125 = sadd.s32 %s124, 1
      %p128 = scmp.eq.s32.totalorder %s17, 7
      %p129 = scmp.ne.s32.totalorder %s124, %s126
      %p130 = scmp.eq.s32.totalorder %s17, 0
      %p131 = por %p129, %p130
      %p132 = scmp.ne.s32.totalorder %s124, %s126
      %p133 = scmp.eq.s32.totalorder %s22, 7
      %p134 = por %p132, %p133
      %p135 = scmp.ne.s32.totalorder %s126, %s127
      %p136 = scmp.eq.s32.totalorder %s22, 0
      %p137 = por %p135, %p136
      %p138 = scmp.ne.s32.totalorder %s126, %s127
      %p139 = scmp.eq.s32.totalorder %s23, 7
      %p140 = por %p138, %p139
      %p142 = scmp.ne.s32.totalorder %s127, %s141
      %p143 = scmp.eq.s32.totalorder %s23, 0
      %p144 = por %p142, %p143
      %s146 = sadd.s32 %s145, 1
      %p149 = scmp.eq.s32.totalorder %s17, 7
      %p150 = scmp.ne.s32.totalorder %s145, %s147
      %p151 = scmp.eq.s32.totalorder %s17, 0
      %p152 = por %p150, %p151
      %p153 = scmp.ne.s32.totalorder %s145, %s147
      %p154 = scmp.eq.s32.totalorder %s22, 7
      %p155 = por %p153, %p154
      %p156 = scmp.ne.s32.totalorder %s147, %s148
      %p157 = scmp.eq.s32.totalorder %s22, 0
      %p158 = por %p156, %p157
      %p159 = scmp.ne.s32.totalorder %s147, %s148
      %p160 = scmp.eq.s32.totalorder %s23, 7
      %p161 = por %p159, %p160
      %p163 = scmp.ne.s32.totalorder %s148, %s162
      %p164 = scmp.eq.s32.totalorder %s23, 0
      %p165 = por %p163, %p164
      %s167 = sadd.s32 %s166, 1
      %p170 = scmp.eq.s32.totalorder %s17, 7
      %p171 = scmp.ne.s32.totalorder %s166, %s168
      %p172 = scmp.eq.s32.totalorder %s17, 0
      %p173 = por %p171, %p172
      %p174 = scmp.ne.s32.totalorder %s166, %s168
      %p175 = scmp.eq.s32.totalorder %s22, 7
      %p176 = por %p174, %p175
      %p177 = scmp.ne.s32.totalorder %s168, %s169
      %p178 = scmp.eq.s32.totalorder %s22, 0
      %p179 = por %p177, %p178
      %p180 = scmp.ne.s32.totalorder %s168, %s169
      %p181 = scmp.eq.s32.totalorder %s23, 7
      %p182 = por %p180, %p181
      %p184 = scmp.ne.s32.totalorder %s169, %s183
      %p185 = scmp.eq.s32.totalorder %s23, 0
      %p186 = por %p184, %p185
      %s188 = sadd.s32 %s187, 1
      %p191 = scmp.eq.s32.totalorder %s17, 7
      %p192 = scmp.ne.s32.totalorder %s187, %s189
      %p193 = scmp.eq.s32.totalorder %s17, 0
      %p194 = por %p192, %p193
      %p195 = scmp.ne.s32.totalorder %s187, %s189
      %p196 = scmp.eq.s32.totalorder %s22, 7
      %p197 = por %p195, %p196
      %p198 = scmp.ne.s32.totalorder %s189, %s190
      %p199 = scmp.eq.s32.totalorder %s22, 0
      %p200 = por %p198, %p199
      %p201 = scmp.ne.s32.totalorder %s189, %s190
      %p202 = scmp.eq.s32.totalorder %s23, 7
      %p203 = por %p201, %p202
      %p205 = scmp.ne.s32.totalorder %s190, %s204
      %p206 = scmp.eq.s32.totalorder %s23, 0
      %p207 = por %p205, %p206
      %s209 = sadd.s32 %s208, 1
      %p212 = scmp.eq.s32.totalorder %s17, 7
      %p213 = scmp.ne.s32.totalorder %s208, %s210
      %p214 = scmp.eq.s32.totalorder %s17, 0
      %p215 = por %p213, %p214
      %p216 = scmp.ne.s32.totalorder %s208, %s210
      %p217 = scmp.eq.s32.totalorder %s22, 7
      %p218 = por %p216, %p217
      %p219 = scmp.ne.s32.totalorder %s210, %s211
      %p220 = scmp.eq.s32.totalorder %s22, 0
      %p221 = por %p219, %p220
      %p222 = scmp.ne.s32.totalorder %s210, %s211
      %p223 = scmp.eq.s32.totalorder %s23, 7
      %p224 = por %p222, %p223
      %p226 = scmp.ne.s32.totalorder %s211, %s225
      %p227 = scmp.eq.s32.totalorder %s23, 0
      %p228 = por %p226, %p227
      %s230 = sadd.s32 %s229, 1
      %p233 = scmp.eq.s32.totalorder %s17, 7
      %p234 = scmp.ne.s32.totalorder %s229, %s231
      %p235 = scmp.eq.s32.totalorder %s17, 0
      %p236 = por %p234, %p235
      %p237 = scmp.ne.s32.totalorder %s229, %s231
      %p238 = scmp.eq.s32.totalorder %s22, 7
      %p239 = por %p237, %p238
      %p240 = scmp.ne.s32.totalorder %s231, %s232
      %p241 = scmp.eq.s32.totalorder %s22, 0
      %p242 = por %p240, %p241
      %p243 = scmp.ne.s32.totalorder %s231, %s232
      %p244 = scmp.eq.s32.totalorder %s23, 7
      %p245 = por %p243, %p244
      %p247 = scmp.ne.s32.totalorder %s232, %s246
      %p248 = scmp.eq.s32.totalorder %s23, 0
      %p249 = por %p247, %p248
      %p250 = scmp.le.s32.totalorder 1, %s17
      %p251 = scmp.lt.s32.totalorder %s17, 9
      %p252 = pnand %p250, %p251
      %p253 = pneg %p252
      // Predicated region
      $region9: #{crater_forward.7} parent=5 // pred_check
        _
      $region10: #{crater_forward.7} parent=5 // pred_check_branch
        %255 = sbr.rel (%p252) target = $region12
      $region11: #{crater_forward.7} parent=5 // pred_region
        %s256 = ssub.s32 %s17, 1
        // Predicated region
        $region13: #{crater_forward.7} parent=11 // pred_check
          %p257 = pneg %p38
        $region14: #{crater_forward.7} parent=11 // pred_check_branch
          %259 = sbr.rel (%p257) target = $region16
        $region15: #{crater_forward.7} parent=11 // pred_region
          _
        $region16: #{crater_forward.7} parent=11 // pred_fallthru
          _
        // Predicated region
        $region17: #{crater_forward.7} parent=11 // pred_check
          %p260 = pneg %p137
        $region18: #{crater_forward.7} parent=11 // pred_check_branch
          %262 = sbr.rel (%p260) target = $region20
        $region19: #{crater_forward.7} parent=11 // pred_region
          _
        $region20: #{crater_forward.7} parent=11 // pred_fallthru
          _
        // Predicated region
        $region21: #{crater_forward.7} parent=11 // pred_check
          %p263 = pneg %p158
        $region22: #{crater_forward.7} parent=11 // pred_check_branch
          %265 = sbr.rel (%p263) target = $region24
        $region23: #{crater_forward.7} parent=11 // pred_region
          %s267 = ssub.s32 65536, 65536
          %268 = vsyncadd [#allocation5], %s267
          %s269 = sshll.u32 [#allocation4], 4
          %s270 = int_to_ptr.vmem [resolvable:$true] %s269
          %275 = dma.hbm_to_vmem [thread:$0]  %s5, 65536, %s270, [#allocation5], 512, 512, 32
        $region24: #{crater_forward.7} parent=11 // pred_fallthru
          _
        // Predicated region
        $region25: #{crater_forward.7} parent=11 // pred_check
          %p276 = pneg %p179
        $region26: #{crater_forward.7} parent=11 // pred_check_branch
          %278 = sbr.rel (%p276) target = $region28
        $region27: #{crater_forward.7} parent=11 // pred_region
          _
        $region28: #{crater_forward.7} parent=11 // pred_fallthru
          _
        // Predicated region
        $region29: #{crater_forward.7} parent=11 // pred_check
          %p279 = pneg %p200
        $region30: #{crater_forward.7} parent=11 // pred_check_branch
          %281 = sbr.rel (%p279) target = $region32
        $region31: #{crater_forward.7} parent=11 // pred_region
          _
        $region32: #{crater_forward.7} parent=11 // pred_fallthru
          _
        // Predicated region
        $region33: #{crater_forward.7} parent=11 // pred_check
          %p282 = pneg %p221
        $region34: #{crater_forward.7} parent=11 // pred_check_branch
          %284 = sbr.rel (%p282) target = $region36
        $region35: #{crater_forward.7} parent=11 // pred_region
          _
        $region36: #{crater_forward.7} parent=11 // pred_fallthru
          _
      $region12: #{crater_forward.7} parent=5 // pred_fallthru
        _
      %p285 = scmp.lt.s32.totalorder %s17, 8
      // Predicated region
      $region37: #{crater_forward.7} parent=5 // pred_check
        %p286 = pneg %p285
      $region38: #{crater_forward.7} parent=5 // pred_check_branch
        %288 = sbr.rel (%p286) target = $region40
      $region39: #{crater_forward.7} parent=5 // pred_region
        // Predicated region
        $region41: #{crater_forward.7} parent=39 // pred_check
          %p289 = pneg %p58
        $region42: #{crater_forward.7} parent=39 // pred_check_branch
          %291 = sbr.rel (%p289) target = $region44
        $region43: #{crater_forward.7} parent=39 // pred_region
          %s292 = sand.u32 %s48, 1
          %s293 = sand.u32 %s48, 1
          %s294 = smul.addr %s293, 576
          %s295 = scalar_lea.vmem [#allocation3], %s294
          %s296 = smul.addr %s17, 4
          %s297 = scalar_lea.vmem %s1, %s296
          // Predicated region
          $region45: #{crater_forward.7} parent=43 // pred_check
            _
          $region46: #{crater_forward.7} parent=43 // pred_check_branch
            %299 = sbr.rel (0) target = $region48
          $region47: #{crater_forward.7} parent=43 // pred_region
            // Predicated region
            $region49: #{crater_forward.7} parent=47 // pred_check
              _
            $region50: #{crater_forward.7} parent=47 // pred_check_branch
              %301 = sbr.rel target = $region52
            $region51: #{crater_forward.7} parent=47 // pred_region
              // Predicated region
              $region64: #{crater_forward.7} parent=51 // pred_check
                _
              $region65: #{crater_forward.7} parent=51 // pred_check_branch
                %602 = sbr.rel (0) target = $region67
              $region66: #{crater_forward.7} parent=51 // pred_region
                loop: start=0, step=1, limit=1
                $region68: #{crater_forward.7} parent=66 // loop_pre_header
                  _
                $region69: #{crater_forward.7} parent=66 // loop_header
                  %s604 = sphi 0, %s608
                  %p605 = scmp.ge.s32.totalorder %s604, 1
                  %s609 = sphi %s297, %s297
                  %s610 = sphi %s295, %s295
                $region70: #{crater_forward.7} parent=66 // loop_header_branch
                  %607 = sbr.rel (%p605) target = $region74
                $region71: #{crater_forward.7} parent=66 // loop_body
                  _
                $region72: #{crater_forward.7} parent=66 // loop_footer
                  %s608 = sadd.s32 1, %s604
                $region73: #{crater_forward.7} parent=66 // loop_footer_branch
                  %603 = sbr.rel target = $region69
                $region74: #{crater_forward.7} parent=66 // loop_exit
                  _
                loop: start=0, step=1, limit=1
                $region75: #{crater_forward.7} parent=66 // loop_pre_header
                  _
                $region76: #{crater_forward.7} parent=66 // loop_header
                  %s613 = sphi 0, %s617
                  %p614 = scmp.ge.s32.totalorder %s613, 1
                  %s618 = sphi %s297, %s297
                  %s619 = sphi %s295, %s295
                $region77: #{crater_forward.7} parent=66 // loop_header_branch
                  %616 = sbr.rel (%p614) target = $region81
                $region78: #{crater_forward.7} parent=66 // loop_body
                  %v620 = vld [vmem:[%s618] sm:$0xf]
                  %621 = vst [vmem:[%s619] sm:$0xf] %v620
                  %v622 = vld [vmem:[%s618 + $0x20] sm:$0xf]
                  %623 = vst [vmem:[%s619 + $0x4] sm:$0xf] %v622
                  %v624 = vld [vmem:[%s618 + $0x40] sm:$0xf]
                  %625 = vst [vmem:[%s619 + $0x8] sm:$0xf] %v624
                  %v626 = vld [vmem:[%s618 + $0x60] sm:$0xf]
                  %627 = vst [vmem:[%s619 + $0xc] sm:$0xf] %v626
                  %v628 = vld [vmem:[%s618 + $0x80] sm:$0xf]
                  %629 = vst [vmem:[%s619 + $0x10] sm:$0xf] %v628
                  %v630 = vld [vmem:[%s618 + $0xa0] sm:$0xf]
                  %631 = vst [vmem:[%s619 + $0x14] sm:$0xf] %v630
                  %v632 = vld [vmem:[%s618 + $0xc0] sm:$0xf]
                  %633 = vst [vmem:[%s619 + $0x18] sm:$0xf] %v632
                  %v634 = vld [vmem:[%s618 + $0xe0] sm:$0xf]
                  %635 = vst [vmem:[%s619 + $0x1c] sm:$0xf] %v634
                  %v636 = vld [vmem:[%s618 + $0x100] sm:$0xf]
                  %637 = vst [vmem:[%s619 + $0x20] sm:$0xf] %v636
                  %v638 = vld [vmem:[%s618 + $0x120] sm:$0xf]
                  %639 = vst [vmem:[%s619 + $0x24] sm:$0xf] %v638
                  %v640 = vld [vmem:[%s618 + $0x140] sm:$0xf]
                  %641 = vst [vmem:[%s619 + $0x28] sm:$0xf] %v640
                  %v642 = vld [vmem:[%s618 + $0x160] sm:$0xf]
                  %643 = vst [vmem:[%s619 + $0x2c] sm:$0xf] %v642
                  %v644 = vld [vmem:[%s618 + $0x180] sm:$0xf]
                  %645 = vst [vmem:[%s619 + $0x30] sm:$0xf] %v644
                  %v646 = vld [vmem:[%s618 + $0x1a0] sm:$0xf]
                  %647 = vst [vmem:[%s619 + $0x34] sm:$0xf] %v646
                  %v648 = vld [vmem:[%s618 + $0x1c0] sm:$0xf]
                  %649 = vst [vmem:[%s619 + $0x38] sm:$0xf] %v648
                  %v650 = vld [vmem:[%s618 + $0x1e0] sm:$0xf]
                  %651 = vst [vmem:[%s619 + $0x3c] sm:$0xf] %v650
                  %v652 = vld [vmem:[%s618 + $0x200] sm:$0xf]
                  %653 = vst [vmem:[%s619 + $0x40] sm:$0xf] %v652
                  %v654 = vld [vmem:[%s618 + $0x220] sm:$0xf]
                  %655 = vst [vmem:[%s619 + $0x44] sm:$0xf] %v654
                  %v656 = vld [vmem:[%s618 + $0x240] sm:$0xf]
                  %657 = vst [vmem:[%s619 + $0x48] sm:$0xf] %v656
                  %v658 = vld [vmem:[%s618 + $0x260] sm:$0xf]
                  %659 = vst [vmem:[%s619 + $0x4c] sm:$0xf] %v658
                  %v660 = vld [vmem:[%s618 + $0x280] sm:$0xf]
                  %661 = vst [vmem:[%s619 + $0x50] sm:$0xf] %v660
                  %v662 = vld [vmem:[%s618 + $0x2a0] sm:$0xf]
                  %663 = vst [vmem:[%s619 + $0x54] sm:$0xf] %v662
                  %v664 = vld [vmem:[%s618 + $0x2c0] sm:$0xf]
                  %665 = vst [vmem:[%s619 + $0x58] sm:$0xf] %v664
                  %v666 = vld [vmem:[%s618 + $0x2e0] sm:$0xf]
                  %667 = vst [vmem:[%s619 + $0x5c] sm:$0xf] %v666
                  %v668 = vld [vmem:[%s618 + $0x300] sm:$0xf]
                  %669 = vst [vmem:[%s619 + $0x60] sm:$0xf] %v668
                  %v670 = vld [vmem:[%s618 + $0x320] sm:$0xf]
                  %671 = vst [vmem:[%s619 + $0x64] sm:$0xf] %v670
                  %v672 = vld [vmem:[%s618 + $0x340] sm:$0xf]
                  %673 = vst [vmem:[%s619 + $0x68] sm:$0xf] %v672
                  %v674 = vld [vmem:[%s618 + $0x360] sm:$0xf]
                  %675 = vst [vmem:[%s619 + $0x6c] sm:$0xf] %v674
                  %v676 = vld [vmem:[%s618 + $0x380] sm:$0xf]
                  %677 = vst [vmem:[%s619 + $0x70] sm:$0xf] %v676
                  %v678 = vld [vmem:[%s618 + $0x3a0] sm:$0xf]
                  %679 = vst [vmem:[%s619 + $0x74] sm:$0xf] %v678
                  %v680 = vld [vmem:[%s618 + $0x3c0] sm:$0xf]
                  %681 = vst [vmem:[%s619 + $0x78] sm:$0xf] %v680
                  %v682 = vld [vmem:[%s618 + $0x3e0] sm:$0xf]
                  %683 = vst [vmem:[%s619 + $0x7c] sm:$0xf] %v682
                  %v684 = vld [vmem:[%s618 + $0x400] sm:$0xf]
                  %685 = vst [vmem:[%s619 + $0x80] sm:$0xf] %v684
                  %v686 = vld [vmem:[%s618 + $0x420] sm:$0xf]
                  %687 = vst [vmem:[%s619 + $0x84] sm:$0xf] %v686
                  %v688 = vld [vmem:[%s618 + $0x440] sm:$0xf]
                  %689 = vst [vmem:[%s619 + $0x88] sm:$0xf] %v688
                  %v690 = vld [vmem:[%s618 + $0x460] sm:$0xf]
                  %691 = vst [vmem:[%s619 + $0x8c] sm:$0xf] %v690
                  %v692 = vld [vmem:[%s618 + $0x480] sm:$0xf]
                  %693 = vst [vmem:[%s619 + $0x90] sm:$0xf] %v692
                  %v694 = vld [vmem:[%s618 + $0x4a0] sm:$0xf]
                  %695 = vst [vmem:[%s619 + $0x94] sm:$0xf] %v694
                  %v696 = vld [vmem:[%s618 + $0x4c0] sm:$0xf]
                  %697 = vst [vmem:[%s619 + $0x98] sm:$0xf] %v696
                  %v698 = vld [vmem:[%s618 + $0x4e0] sm:$0xf]
                  %699 = vst [vmem:[%s619 + $0x9c] sm:$0xf] %v698
                  %v700 = vld [vmem:[%s618 + $0x500] sm:$0xf]
                  %701 = vst [vmem:[%s619 + $0xa0] sm:$0xf] %v700
                  %v702 = vld [vmem:[%s618 + $0x520] sm:$0xf]
                  %703 = vst [vmem:[%s619 + $0xa4] sm:$0xf] %v702
                  %v704 = vld [vmem:[%s618 + $0x540] sm:$0xf]
                  %705 = vst [vmem:[%s619 + $0xa8] sm:$0xf] %v704
                  %v706 = vld [vmem:[%s618 + $0x560] sm:$0xf]
                  %707 = vst [vmem:[%s619 + $0xac] sm:$0xf] %v706
                  %v708 = vld [vmem:[%s618 + $0x580] sm:$0xf]
                  %709 = vst [vmem:[%s619 + $0xb0] sm:$0xf] %v708
                  %v710 = vld [vmem:[%s618 + $0x5a0] sm:$0xf]
                  %711 = vst [vmem:[%s619 + $0xb4] sm:$0xf] %v710
                  %v712 = vld [vmem:[%s618 + $0x5c0] sm:$0xf]
                  %713 = vst [vmem:[%s619 + $0xb8] sm:$0xf] %v712
                  %v714 = vld [vmem:[%s618 + $0x5e0] sm:$0xf]
                  %715 = vst [vmem:[%s619 + $0xbc] sm:$0xf] %v714
                  %v716 = vld [vmem:[%s618 + $0x600] sm:$0xf]
                  %717 = vst [vmem:[%s619 + $0xc0] sm:$0xf] %v716
                  %v718 = vld [vmem:[%s618 + $0x620] sm:$0xf]
                  %719 = vst [vmem:[%s619 + $0xc4] sm:$0xf] %v718
                  %v720 = vld [vmem:[%s618 + $0x640] sm:$0xf]
                  %721 = vst [vmem:[%s619 + $0xc8] sm:$0xf] %v720
                  %v722 = vld [vmem:[%s618 + $0x660] sm:$0xf]
                  %723 = vst [vmem:[%s619 + $0xcc] sm:$0xf] %v722
                  %v724 = vld [vmem:[%s618 + $0x680] sm:$0xf]
                  %725 = vst [vmem:[%s619 + $0xd0] sm:$0xf] %v724
                  %v726 = vld [vmem:[%s618 + $0x6a0] sm:$0xf]
                  %727 = vst [vmem:[%s619 + $0xd4] sm:$0xf] %v726
                  %v728 = vld [vmem:[%s618 + $0x6c0] sm:$0xf]
                  %729 = vst [vmem:[%s619 + $0xd8] sm:$0xf] %v728
                  %v730 = vld [vmem:[%s618 + $0x6e0] sm:$0xf]
                  %731 = vst [vmem:[%s619 + $0xdc] sm:$0xf] %v730
                  %v732 = vld [vmem:[%s618 + $0x700] sm:$0xf]
                  %733 = vst [vmem:[%s619 + $0xe0] sm:$0xf] %v732
                  %v734 = vld [vmem:[%s618 + $0x720] sm:$0xf]
                  %735 = vst [vmem:[%s619 + $0xe4] sm:$0xf] %v734
                  %v736 = vld [vmem:[%s618 + $0x740] sm:$0xf]
                  %737 = vst [vmem:[%s619 + $0xe8] sm:$0xf] %v736
                  %v738 = vld [vmem:[%s618 + $0x760] sm:$0xf]
                  %739 = vst [vmem:[%s619 + $0xec] sm:$0xf] %v738
                  %v740 = vld [vmem:[%s618 + $0x780] sm:$0xf]
                  %741 = vst [vmem:[%s619 + $0xf0] sm:$0xf] %v740
                  %v742 = vld [vmem:[%s618 + $0x7a0] sm:$0xf]
                  %743 = vst [vmem:[%s619 + $0xf4] sm:$0xf] %v742
                  %v744 = vld [vmem:[%s618 + $0x7c0] sm:$0xf]
                  %745 = vst [vmem:[%s619 + $0xf8] sm:$0xf] %v744
                  %v746 = vld [vmem:[%s618 + $0x7e0] sm:$0xf]
                  %747 = vst [vmem:[%s619 + $0xfc] sm:$0xf] %v746
                  %v748 = vld [vmem:[%s618 + $0x800] sm:$0xf]
                  %749 = vst [vmem:[%s619 + $0x100] sm:$0xf] %v748
                  %v750 = vld [vmem:[%s618 + $0x820] sm:$0xf]
                  %751 = vst [vmem:[%s619 + $0x104] sm:$0xf] %v750
                  %v752 = vld [vmem:[%s618 + $0x840] sm:$0xf]
                  %753 = vst [vmem:[%s619 + $0x108] sm:$0xf] %v752
                  %v754 = vld [vmem:[%s618 + $0x860] sm:$0xf]
                  %755 = vst [vmem:[%s619 + $0x10c] sm:$0xf] %v754
                  %v756 = vld [vmem:[%s618 + $0x880] sm:$0xf]
                  %757 = vst [vmem:[%s619 + $0x110] sm:$0xf] %v756
                  %v758 = vld [vmem:[%s618 + $0x8a0] sm:$0xf]
                  %759 = vst [vmem:[%s619 + $0x114] sm:$0xf] %v758
                  %v760 = vld [vmem:[%s618 + $0x8c0] sm:$0xf]
                  %761 = vst [vmem:[%s619 + $0x118] sm:$0xf] %v760
                  %v762 = vld [vmem:[%s618 + $0x8e0] sm:$0xf]
                  %763 = vst [vmem:[%s619 + $0x11c] sm:$0xf] %v762
                  %v764 = vld [vmem:[%s618 + $0x900] sm:$0xf]
                  %765 = vst [vmem:[%s619 + $0x120] sm:$0xf] %v764
                  %v766 = vld [vmem:[%s618 + $0x920] sm:$0xf]
                  %767 = vst [vmem:[%s619 + $0x124] sm:$0xf] %v766
                  %v768 = vld [vmem:[%s618 + $0x940] sm:$0xf]
                  %769 = vst [vmem:[%s619 + $0x128] sm:$0xf] %v768
                  %v770 = vld [vmem:[%s618 + $0x960] sm:$0xf]
                  %771 = vst [vmem:[%s619 + $0x12c] sm:$0xf] %v770
                  %v772 = vld [vmem:[%s618 + $0x980] sm:$0xf]
                  %773 = vst [vmem:[%s619 + $0x130] sm:$0xf] %v772
                  %v774 = vld [vmem:[%s618 + $0x9a0] sm:$0xf]
                  %775 = vst [vmem:[%s619 + $0x134] sm:$0xf] %v774
                  %v776 = vld [vmem:[%s618 + $0x9c0] sm:$0xf]
                  %777 = vst [vmem:[%s619 + $0x138] sm:$0xf] %v776
                  %v778 = vld [vmem:[%s618 + $0x9e0] sm:$0xf]
                  %779 = vst [vmem:[%s619 + $0x13c] sm:$0xf] %v778
                  %v780 = vld [vmem:[%s618 + $0xa00] sm:$0xf]
                  %781 = vst [vmem:[%s619 + $0x140] sm:$0xf] %v780
                  %v782 = vld [vmem:[%s618 + $0xa20] sm:$0xf]
                  %783 = vst [vmem:[%s619 + $0x144] sm:$0xf] %v782
                  %v784 = vld [vmem:[%s618 + $0xa40] sm:$0xf]
                  %785 = vst [vmem:[%s619 + $0x148] sm:$0xf] %v784
                  %v786 = vld [vmem:[%s618 + $0xa60] sm:$0xf]
                  %787 = vst [vmem:[%s619 + $0x14c] sm:$0xf] %v786
                  %v788 = vld [vmem:[%s618 + $0xa80] sm:$0xf]
                  %789 = vst [vmem:[%s619 + $0x150] sm:$0xf] %v788
                  %v790 = vld [vmem:[%s618 + $0xaa0] sm:$0xf]
                  %791 = vst [vmem:[%s619 + $0x154] sm:$0xf] %v790
                  %v792 = vld [vmem:[%s618 + $0xac0] sm:$0xf]
                  %793 = vst [vmem:[%s619 + $0x158] sm:$0xf] %v792
                  %v794 = vld [vmem:[%s618 + $0xae0] sm:$0xf]
                  %795 = vst [vmem:[%s619 + $0x15c] sm:$0xf] %v794
                  %v796 = vld [vmem:[%s618 + $0xb00] sm:$0xf]
                  %797 = vst [vmem:[%s619 + $0x160] sm:$0xf] %v796
                  %v798 = vld [vmem:[%s618 + $0xb20] sm:$0xf]
                  %799 = vst [vmem:[%s619 + $0x164] sm:$0xf] %v798
                  %v800 = vld [vmem:[%s618 + $0xb40] sm:$0xf]
                  %801 = vst [vmem:[%s619 + $0x168] sm:$0xf] %v800
                  %v802 = vld [vmem:[%s618 + $0xb60] sm:$0xf]
                  %803 = vst [vmem:[%s619 + $0x16c] sm:$0xf] %v802
                  %v804 = vld [vmem:[%s618 + $0xb80] sm:$0xf]
                  %805 = vst [vmem:[%s619 + $0x170] sm:$0xf] %v804
                  %v806 = vld [vmem:[%s618 + $0xba0] sm:$0xf]
                  %807 = vst [vmem:[%s619 + $0x174] sm:$0xf] %v806
                  %v808 = vld [vmem:[%s618 + $0xbc0] sm:$0xf]
                  %809 = vst [vmem:[%s619 + $0x178] sm:$0xf] %v808
                  %v810 = vld [vmem:[%s618 + $0xbe0] sm:$0xf]
                  %811 = vst [vmem:[%s619 + $0x17c] sm:$0xf] %v810
                  %v812 = vld [vmem:[%s618 + $0xc00] sm:$0xf]
                  %813 = vst [vmem:[%s619 + $0x180] sm:$0xf] %v812
                  %v814 = vld [vmem:[%s618 + $0xc20] sm:$0xf]
                  %815 = vst [vmem:[%s619 + $0x184] sm:$0xf] %v814
                  %v816 = vld [vmem:[%s618 + $0xc40] sm:$0xf]
                  %817 = vst [vmem:[%s619 + $0x188] sm:$0xf] %v816
                  %v818 = vld [vmem:[%s618 + $0xc60] sm:$0xf]
                  %819 = vst [vmem:[%s619 + $0x18c] sm:$0xf] %v818
                  %v820 = vld [vmem:[%s618 + $0xc80] sm:$0xf]
                  %821 = vst [vmem:[%s619 + $0x190] sm:$0xf] %v820
                  %v822 = vld [vmem:[%s618 + $0xca0] sm:$0xf]
                  %823 = vst [vmem:[%s619 + $0x194] sm:$0xf] %v822
                  %v824 = vld [vmem:[%s618 + $0xcc0] sm:$0xf]
                  %825 = vst [vmem:[%s619 + $0x198] sm:$0xf] %v824
                  %v826 = vld [vmem:[%s618 + $0xce0] sm:$0xf]
                  %827 = vst [vmem:[%s619 + $0x19c] sm:$0xf] %v826
                  %v828 = vld [vmem:[%s618 + $0xd00] sm:$0xf]
                  %829 = vst [vmem:[%s619 + $0x1a0] sm:$0xf] %v828
                  %v830 = vld [vmem:[%s618 + $0xd20] sm:$0xf]
                  %831 = vst [vmem:[%s619 + $0x1a4] sm:$0xf] %v830
                  %v832 = vld [vmem:[%s618 + $0xd40] sm:$0xf]
                  %833 = vst [vmem:[%s619 + $0x1a8] sm:$0xf] %v832
                  %v834 = vld [vmem:[%s618 + $0xd60] sm:$0xf]
                  %835 = vst [vmem:[%s619 + $0x1ac] sm:$0xf] %v834
                  %v836 = vld [vmem:[%s618 + $0xd80] sm:$0xf]
                  %837 = vst [vmem:[%s619 + $0x1b0] sm:$0xf] %v836
                  %v838 = vld [vmem:[%s618 + $0xda0] sm:$0xf]
                  %839 = vst [vmem:[%s619 + $0x1b4] sm:$0xf] %v838
                  %v840 = vld [vmem:[%s618 + $0xdc0] sm:$0xf]
                  %841 = vst [vmem:[%s619 + $0x1b8] sm:$0xf] %v840
                  %v842 = vld [vmem:[%s618 + $0xde0] sm:$0xf]
                  %843 = vst [vmem:[%s619 + $0x1bc] sm:$0xf] %v842
                  %v844 = vld [vmem:[%s618 + $0xe00] sm:$0xf]
                  %845 = vst [vmem:[%s619 + $0x1c0] sm:$0xf] %v844
                  %v846 = vld [vmem:[%s618 + $0xe20] sm:$0xf]
                  %847 = vst [vmem:[%s619 + $0x1c4] sm:$0xf] %v846
                  %v848 = vld [vmem:[%s618 + $0xe40] sm:$0xf]
                  %849 = vst [vmem:[%s619 + $0x1c8] sm:$0xf] %v848
                  %v850 = vld [vmem:[%s618 + $0xe60] sm:$0xf]
                  %851 = vst [vmem:[%s619 + $0x1cc] sm:$0xf] %v850
                  %v852 = vld [vmem:[%s618 + $0xe80] sm:$0xf]
                  %853 = vst [vmem:[%s619 + $0x1d0] sm:$0xf] %v852
                  %v854 = vld [vmem:[%s618 + $0xea0] sm:$0xf]
                  %855 = vst [vmem:[%s619 + $0x1d4] sm:$0xf] %v854
                  %v856 = vld [vmem:[%s618 + $0xec0] sm:$0xf]
                  %857 = vst [vmem:[%s619 + $0x1d8] sm:$0xf] %v856
                  %v858 = vld [vmem:[%s618 + $0xee0] sm:$0xf]
                  %859 = vst [vmem:[%s619 + $0x1dc] sm:$0xf] %v858
                  %v860 = vld [vmem:[%s618 + $0xf00] sm:$0xf]
                  %861 = vst [vmem:[%s619 + $0x1e0] sm:$0xf] %v860
                  %v862 = vld [vmem:[%s618 + $0xf20] sm:$0xf]
                  %863 = vst [vmem:[%s619 + $0x1e4] sm:$0xf] %v862
                  %v864 = vld [vmem:[%s618 + $0xf40] sm:$0xf]
                  %865 = vst [vmem:[%s619 + $0x1e8] sm:$0xf] %v864
                  %v866 = vld [vmem:[%s618 + $0xf60] sm:$0xf]
                  %867 = vst [vmem:[%s619 + $0x1ec] sm:$0xf] %v866
                  %v868 = vld [vmem:[%s618 + $0xf80] sm:$0xf]
                  %869 = vst [vmem:[%s619 + $0x1f0] sm:$0xf] %v868
                  %v870 = vld [vmem:[%s618 + $0xfa0] sm:$0xf]
                  %871 = vst [vmem:[%s619 + $0x1f4] sm:$0xf] %v870
                  %v872 = vld [vmem:[%s618 + $0xfc0] sm:$0xf]
                  %873 = vst [vmem:[%s619 + $0x1f8] sm:$0xf] %v872
                  %v874 = vld [vmem:[%s618 + $0xfe0] sm:$0xf]
                  %875 = vst [vmem:[%s619 + $0x1fc] sm:$0xf] %v874
                  %v876 = vld [vmem:[%s618 + $0x1000] sm:$0xf]
                  %877 = vst [vmem:[%s619 + $0x200] sm:$0xf] %v876
                  %v878 = vld [vmem:[%s618 + $0x1020] sm:$0xf]
                  %879 = vst [vmem:[%s619 + $0x204] sm:$0xf] %v878
                  %v880 = vld [vmem:[%s618 + $0x1040] sm:$0xf]
                  %881 = vst [vmem:[%s619 + $0x208] sm:$0xf] %v880
                  %v882 = vld [vmem:[%s618 + $0x1060] sm:$0xf]
                  %883 = vst [vmem:[%s619 + $0x20c] sm:$0xf] %v882
                  %v884 = vld [vmem:[%s618 + $0x1080] sm:$0xf]
                  %885 = vst [vmem:[%s619 + $0x210] sm:$0xf] %v884
                  %v886 = vld [vmem:[%s618 + $0x10a0] sm:$0xf]
                  %887 = vst [vmem:[%s619 + $0x214] sm:$0xf] %v886
                  %v888 = vld [vmem:[%s618 + $0x10c0] sm:$0xf]
                  %889 = vst [vmem:[%s619 + $0x218] sm:$0xf] %v888
                  %v890 = vld [vmem:[%s618 + $0x10e0] sm:$0xf]
                  %891 = vst [vmem:[%s619 + $0x21c] sm:$0xf] %v890
                  %v892 = vld [vmem:[%s618 + $0x1100] sm:$0xf]
                  %893 = vst [vmem:[%s619 + $0x220] sm:$0xf] %v892
                  %v894 = vld [vmem:[%s618 + $0x1120] sm:$0xf]
                  %895 = vst [vmem:[%s619 + $0x224] sm:$0xf] %v894
                  %v896 = vld [vmem:[%s618 + $0x1140] sm:$0xf]
                  %897 = vst [vmem:[%s619 + $0x228] sm:$0xf] %v896
                  %v898 = vld [vmem:[%s618 + $0x1160] sm:$0xf]
                  %899 = vst [vmem:[%s619 + $0x22c] sm:$0xf] %v898
                  %v900 = vld [vmem:[%s618 + $0x1180] sm:$0xf]
                  %901 = vst [vmem:[%s619 + $0x230] sm:$0xf] %v900
                  %v902 = vld [vmem:[%s618 + $0x11a0] sm:$0xf]
                  %903 = vst [vmem:[%s619 + $0x234] sm:$0xf] %v902
                  %v904 = vld [vmem:[%s618 + $0x11c0] sm:$0xf]
                  %905 = vst [vmem:[%s619 + $0x238] sm:$0xf] %v904
                  %v906 = vld [vmem:[%s618 + $0x11e0] sm:$0xf]
                  %907 = vst [vmem:[%s619 + $0x23c] sm:$0xf] %v906
                $region79: #{crater_forward.7} parent=66 // loop_footer
                  %s617 = sadd.s32 1, %s613
                $region80: #{crater_forward.7} parent=66 // loop_footer_branch
                  %612 = sbr.rel target = $region76
                $region81: #{crater_forward.7} parent=66 // loop_exit
                  _
              $region67: #{crater_forward.7} parent=51 // pred_fallthru
                _
            $region52: #{crater_forward.7} parent=47 // pred_fallthru
              _
            // Predicated region
            $region53: #{crater_forward.7} parent=47 // pred_check
              _
            $region54: #{crater_forward.7} parent=47 // pred_check_branch
              %303 = sbr.rel (0) target = $region56
            $region55: #{crater_forward.7} parent=47 // pred_region
              loop: start=0, step=1, limit=1
              $region57: #{crater_forward.7} parent=55 // loop_pre_header
                _
              $region58: #{crater_forward.7} parent=55 // loop_header
                %s306 = sphi 0, %s310
                %p307 = scmp.ge.s32.totalorder %s306, 1
                %s311 = sphi %s297, %s297
                %s312 = sphi %s295, %s295
              $region59: #{crater_forward.7} parent=55 // loop_header_branch
                %309 = sbr.rel (%p307) target = $region63
              $region60: #{crater_forward.7} parent=55 // loop_body
                %v313 = vld [vmem:[%s311] sm:$0xf]
                %314 = vst [vmem:[%s312] sm:$0xf] %v313
                %v315 = vld [vmem:[%s311 + $0x20] sm:$0xf]
                %316 = vst [vmem:[%s312 + $0x4] sm:$0xf] %v315
                %v317 = vld [vmem:[%s311 + $0x40] sm:$0xf]
                %318 = vst [vmem:[%s312 + $0x8] sm:$0xf] %v317
                %v319 = vld [vmem:[%s311 + $0x60] sm:$0xf]
                %320 = vst [vmem:[%s312 + $0xc] sm:$0xf] %v319
                %v321 = vld [vmem:[%s311 + $0x80] sm:$0xf]
                %322 = vst [vmem:[%s312 + $0x10] sm:$0xf] %v321
                %v323 = vld [vmem:[%s311 + $0xa0] sm:$0xf]
                %324 = vst [vmem:[%s312 + $0x14] sm:$0xf] %v323
                %v325 = vld [vmem:[%s311 + $0xc0] sm:$0xf]
                %326 = vst [vmem:[%s312 + $0x18] sm:$0xf] %v325
                %v327 = vld [vmem:[%s311 + $0xe0] sm:$0xf]
                %328 = vst [vmem:[%s312 + $0x1c] sm:$0xf] %v327
                %v329 = vld [vmem:[%s311 + $0x100] sm:$0xf]
                %330 = vst [vmem:[%s312 + $0x20] sm:$0xf] %v329
                %v331 = vld [vmem:[%s311 + $0x120] sm:$0xf]
                %332 = vst [vmem:[%s312 + $0x24] sm:$0xf] %v331
                %v333 = vld [vmem:[%s311 + $0x140] sm:$0xf]
                %334 = vst [vmem:[%s312 + $0x28] sm:$0xf] %v333
                %v335 = vld [vmem:[%s311 + $0x160] sm:$0xf]
                %336 = vst [vmem:[%s312 + $0x2c] sm:$0xf] %v335
                %v337 = vld [vmem:[%s311 + $0x180] sm:$0xf]
                %338 = vst [vmem:[%s312 + $0x30] sm:$0xf] %v337
                %v339 = vld [vmem:[%s311 + $0x1a0] sm:$0xf]
                %340 = vst [vmem:[%s312 + $0x34] sm:$0xf] %v339
                %v341 = vld [vmem:[%s311 + $0x1c0] sm:$0xf]
                %342 = vst [vmem:[%s312 + $0x38] sm:$0xf] %v341
                %v343 = vld [vmem:[%s311 + $0x1e0] sm:$0xf]
                %344 = vst [vmem:[%s312 + $0x3c] sm:$0xf] %v343
                %v345 = vld [vmem:[%s311 + $0x200] sm:$0xf]
                %346 = vst [vmem:[%s312 + $0x40] sm:$0xf] %v345
                %v347 = vld [vmem:[%s311 + $0x220] sm:$0xf]
                %348 = vst [vmem:[%s312 + $0x44] sm:$0xf] %v347
                %v349 = vld [vmem:[%s311 + $0x240] sm:$0xf]
                %350 = vst [vmem:[%s312 + $0x48] sm:$0xf] %v349
                %v351 = vld [vmem:[%s311 + $0x260] sm:$0xf]
                %352 = vst [vmem:[%s312 + $0x4c] sm:$0xf] %v351
                %v353 = vld [vmem:[%s311 + $0x280] sm:$0xf]
                %354 = vst [vmem:[%s312 + $0x50] sm:$0xf] %v353
                %v355 = vld [vmem:[%s311 + $0x2a0] sm:$0xf]
                %356 = vst [vmem:[%s312 + $0x54] sm:$0xf] %v355
                %v357 = vld [vmem:[%s311 + $0x2c0] sm:$0xf]
                %358 = vst [vmem:[%s312 + $0x58] sm:$0xf] %v357
                %v359 = vld [vmem:[%s311 + $0x2e0] sm:$0xf]
                %360 = vst [vmem:[%s312 + $0x5c] sm:$0xf] %v359
                %v361 = vld [vmem:[%s311 + $0x300] sm:$0xf]
                %362 = vst [vmem:[%s312 + $0x60] sm:$0xf] %v361
                %v363 = vld [vmem:[%s311 + $0x320] sm:$0xf]
                %364 = vst [vmem:[%s312 + $0x64] sm:$0xf] %v363
                %v365 = vld [vmem:[%s311 + $0x340] sm:$0xf]
                %366 = vst [vmem:[%s312 + $0x68] sm:$0xf] %v365
                %v367 = vld [vmem:[%s311 + $0x360] sm:$0xf]
                %368 = vst [vmem:[%s312 + $0x6c] sm:$0xf] %v367
                %v369 = vld [vmem:[%s311 + $0x380] sm:$0xf]
                %370 = vst [vmem:[%s312 + $0x70] sm:$0xf] %v369
                %v371 = vld [vmem:[%s311 + $0x3a0] sm:$0xf]
                %372 = vst [vmem:[%s312 + $0x74] sm:$0xf] %v371
                %v373 = vld [vmem:[%s311 + $0x3c0] sm:$0xf]
                %374 = vst [vmem:[%s312 + $0x78] sm:$0xf] %v373
                %v375 = vld [vmem:[%s311 + $0x3e0] sm:$0xf]
                %376 = vst [vmem:[%s312 + $0x7c] sm:$0xf] %v375
                %v377 = vld [vmem:[%s311 + $0x400] sm:$0xf]
                %378 = vst [vmem:[%s312 + $0x80] sm:$0xf] %v377
                %v379 = vld [vmem:[%s311 + $0x420] sm:$0xf]
                %380 = vst [vmem:[%s312 + $0x84] sm:$0xf] %v379
                %v381 = vld [vmem:[%s311 + $0x440] sm:$0xf]
                %382 = vst [vmem:[%s312 + $0x88] sm:$0xf] %v381
                %v383 = vld [vmem:[%s311 + $0x460] sm:$0xf]
                %384 = vst [vmem:[%s312 + $0x8c] sm:$0xf] %v383
                %v385 = vld [vmem:[%s311 + $0x480] sm:$0xf]
                %386 = vst [vmem:[%s312 + $0x90] sm:$0xf] %v385
                %v387 = vld [vmem:[%s311 + $0x4a0] sm:$0xf]
                %388 = vst [vmem:[%s312 + $0x94] sm:$0xf] %v387
                %v389 = vld [vmem:[%s311 + $0x4c0] sm:$0xf]
                %390 = vst [vmem:[%s312 + $0x98] sm:$0xf] %v389
                %v391 = vld [vmem:[%s311 + $0x4e0] sm:$0xf]
                %392 = vst [vmem:[%s312 + $0x9c] sm:$0xf] %v391
                %v393 = vld [vmem:[%s311 + $0x500] sm:$0xf]
                %394 = vst [vmem:[%s312 + $0xa0] sm:$0xf] %v393
                %v395 = vld [vmem:[%s311 + $0x520] sm:$0xf]
                %396 = vst [vmem:[%s312 + $0xa4] sm:$0xf] %v395
                %v397 = vld [vmem:[%s311 + $0x540] sm:$0xf]
                %398 = vst [vmem:[%s312 + $0xa8] sm:$0xf] %v397
                %v399 = vld [vmem:[%s311 + $0x560] sm:$0xf]
                %400 = vst [vmem:[%s312 + $0xac] sm:$0xf] %v399
                %v401 = vld [vmem:[%s311 + $0x580] sm:$0xf]
                %402 = vst [vmem:[%s312 + $0xb0] sm:$0xf] %v401
                %v403 = vld [vmem:[%s311 + $0x5a0] sm:$0xf]
                %404 = vst [vmem:[%s312 + $0xb4] sm:$0xf] %v403
                %v405 = vld [vmem:[%s311 + $0x5c0] sm:$0xf]
                %406 = vst [vmem:[%s312 + $0xb8] sm:$0xf] %v405
                %v407 = vld [vmem:[%s311 + $0x5e0] sm:$0xf]
                %408 = vst [vmem:[%s312 + $0xbc] sm:$0xf] %v407
                %v409 = vld [vmem:[%s311 + $0x600] sm:$0xf]
                %410 = vst [vmem:[%s312 + $0xc0] sm:$0xf] %v409
                %v411 = vld [vmem:[%s311 + $0x620] sm:$0xf]
                %412 = vst [vmem:[%s312 + $0xc4] sm:$0xf] %v411
                %v413 = vld [vmem:[%s311 + $0x640] sm:$0xf]
                %414 = vst [vmem:[%s312 + $0xc8] sm:$0xf] %v413
                %v415 = vld [vmem:[%s311 + $0x660] sm:$0xf]
                %416 = vst [vmem:[%s312 + $0xcc] sm:$0xf] %v415
                %v417 = vld [vmem:[%s311 + $0x680] sm:$0xf]
                %418 = vst [vmem:[%s312 + $0xd0] sm:$0xf] %v417
                %v419 = vld [vmem:[%s311 + $0x6a0] sm:$0xf]
                %420 = vst [vmem:[%s312 + $0xd4] sm:$0xf] %v419
                %v421 = vld [vmem:[%s311 + $0x6c0] sm:$0xf]
                %422 = vst [vmem:[%s312 + $0xd8] sm:$0xf] %v421
                %v423 = vld [vmem:[%s311 + $0x6e0] sm:$0xf]
                %424 = vst [vmem:[%s312 + $0xdc] sm:$0xf] %v423
                %v425 = vld [vmem:[%s311 + $0x700] sm:$0xf]
                %426 = vst [vmem:[%s312 + $0xe0] sm:$0xf] %v425
                %v427 = vld [vmem:[%s311 + $0x720] sm:$0xf]
                %428 = vst [vmem:[%s312 + $0xe4] sm:$0xf] %v427
                %v429 = vld [vmem:[%s311 + $0x740] sm:$0xf]
                %430 = vst [vmem:[%s312 + $0xe8] sm:$0xf] %v429
                %v431 = vld [vmem:[%s311 + $0x760] sm:$0xf]
                %432 = vst [vmem:[%s312 + $0xec] sm:$0xf] %v431
                %v433 = vld [vmem:[%s311 + $0x780] sm:$0xf]
                %434 = vst [vmem:[%s312 + $0xf0] sm:$0xf] %v433
                %v435 = vld [vmem:[%s311 + $0x7a0] sm:$0xf]
                %436 = vst [vmem:[%s312 + $0xf4] sm:$0xf] %v435
                %v437 = vld [vmem:[%s311 + $0x7c0] sm:$0xf]
                %438 = vst [vmem:[%s312 + $0xf8] sm:$0xf] %v437
                %v439 = vld [vmem:[%s311 + $0x7e0] sm:$0xf]
                %440 = vst [vmem:[%s312 + $0xfc] sm:$0xf] %v439
                %v441 = vld [vmem:[%s311 + $0x800] sm:$0xf]
                %442 = vst [vmem:[%s312 + $0x100] sm:$0xf] %v441
                %v443 = vld [vmem:[%s311 + $0x820] sm:$0xf]
                %444 = vst [vmem:[%s312 + $0x104] sm:$0xf] %v443
                %v445 = vld [vmem:[%s311 + $0x840] sm:$0xf]
                %446 = vst [vmem:[%s312 + $0x108] sm:$0xf] %v445
                %v447 = vld [vmem:[%s311 + $0x860] sm:$0xf]
                %448 = vst [vmem:[%s312 + $0x10c] sm:$0xf] %v447
                %v449 = vld [vmem:[%s311 + $0x880] sm:$0xf]
                %450 = vst [vmem:[%s312 + $0x110] sm:$0xf] %v449
                %v451 = vld [vmem:[%s311 + $0x8a0] sm:$0xf]
                %452 = vst [vmem:[%s312 + $0x114] sm:$0xf] %v451
                %v453 = vld [vmem:[%s311 + $0x8c0] sm:$0xf]
                %454 = vst [vmem:[%s312 + $0x118] sm:$0xf] %v453
                %v455 = vld [vmem:[%s311 + $0x8e0] sm:$0xf]
                %456 = vst [vmem:[%s312 + $0x11c] sm:$0xf] %v455
                %v457 = vld [vmem:[%s311 + $0x900] sm:$0xf]
                %458 = vst [vmem:[%s312 + $0x120] sm:$0xf] %v457
                %v459 = vld [vmem:[%s311 + $0x920] sm:$0xf]
                %460 = vst [vmem:[%s312 + $0x124] sm:$0xf] %v459
                %v461 = vld [vmem:[%s311 + $0x940] sm:$0xf]
                %462 = vst [vmem:[%s312 + $0x128] sm:$0xf] %v461
                %v463 = vld [vmem:[%s311 + $0x960] sm:$0xf]
                %464 = vst [vmem:[%s312 + $0x12c] sm:$0xf] %v463
                %v465 = vld [vmem:[%s311 + $0x980] sm:$0xf]
                %466 = vst [vmem:[%s312 + $0x130] sm:$0xf] %v465
                %v467 = vld [vmem:[%s311 + $0x9a0] sm:$0xf]
                %468 = vst [vmem:[%s312 + $0x134] sm:$0xf] %v467
                %v469 = vld [vmem:[%s311 + $0x9c0] sm:$0xf]
                %470 = vst [vmem:[%s312 + $0x138] sm:$0xf] %v469
                %v471 = vld [vmem:[%s311 + $0x9e0] sm:$0xf]
                %472 = vst [vmem:[%s312 + $0x13c] sm:$0xf] %v471
                %v473 = vld [vmem:[%s311 + $0xa00] sm:$0xf]
                %474 = vst [vmem:[%s312 + $0x140] sm:$0xf] %v473
                %v475 = vld [vmem:[%s311 + $0xa20] sm:$0xf]
                %476 = vst [vmem:[%s312 + $0x144] sm:$0xf] %v475
                %v477 = vld [vmem:[%s311 + $0xa40] sm:$0xf]
                %478 = vst [vmem:[%s312 + $0x148] sm:$0xf] %v477
                %v479 = vld [vmem:[%s311 + $0xa60] sm:$0xf]
                %480 = vst [vmem:[%s312 + $0x14c] sm:$0xf] %v479
                %v481 = vld [vmem:[%s311 + $0xa80] sm:$0xf]
                %482 = vst [vmem:[%s312 + $0x150] sm:$0xf] %v481
                %v483 = vld [vmem:[%s311 + $0xaa0] sm:$0xf]
                %484 = vst [vmem:[%s312 + $0x154] sm:$0xf] %v483
                %v485 = vld [vmem:[%s311 + $0xac0] sm:$0xf]
                %486 = vst [vmem:[%s312 + $0x158] sm:$0xf] %v485
                %v487 = vld [vmem:[%s311 + $0xae0] sm:$0xf]
                %488 = vst [vmem:[%s312 + $0x15c] sm:$0xf] %v487
                %v489 = vld [vmem:[%s311 + $0xb00] sm:$0xf]
                %490 = vst [vmem:[%s312 + $0x160] sm:$0xf] %v489
                %v491 = vld [vmem:[%s311 + $0xb20] sm:$0xf]
                %492 = vst [vmem:[%s312 + $0x164] sm:$0xf] %v491
                %v493 = vld [vmem:[%s311 + $0xb40] sm:$0xf]
                %494 = vst [vmem:[%s312 + $0x168] sm:$0xf] %v493
                %v495 = vld [vmem:[%s311 + $0xb60] sm:$0xf]
                %496 = vst [vmem:[%s312 + $0x16c] sm:$0xf] %v495
                %v497 = vld [vmem:[%s311 + $0xb80] sm:$0xf]
                %498 = vst [vmem:[%s312 + $0x170] sm:$0xf] %v497
                %v499 = vld [vmem:[%s311 + $0xba0] sm:$0xf]
                %500 = vst [vmem:[%s312 + $0x174] sm:$0xf] %v499
                %v501 = vld [vmem:[%s311 + $0xbc0] sm:$0xf]
                %502 = vst [vmem:[%s312 + $0x178] sm:$0xf] %v501
                %v503 = vld [vmem:[%s311 + $0xbe0] sm:$0xf]
                %504 = vst [vmem:[%s312 + $0x17c] sm:$0xf] %v503
                %v505 = vld [vmem:[%s311 + $0xc00] sm:$0xf]
                %506 = vst [vmem:[%s312 + $0x180] sm:$0xf] %v505
                %v507 = vld [vmem:[%s311 + $0xc20] sm:$0xf]
                %508 = vst [vmem:[%s312 + $0x184] sm:$0xf] %v507
                %v509 = vld [vmem:[%s311 + $0xc40] sm:$0xf]
                %510 = vst [vmem:[%s312 + $0x188] sm:$0xf] %v509
                %v511 = vld [vmem:[%s311 + $0xc60] sm:$0xf]
                %512 = vst [vmem:[%s312 + $0x18c] sm:$0xf] %v511
                %v513 = vld [vmem:[%s311 + $0xc80] sm:$0xf]
                %514 = vst [vmem:[%s312 + $0x190] sm:$0xf] %v513
                %v515 = vld [vmem:[%s311 + $0xca0] sm:$0xf]
                %516 = vst [vmem:[%s312 + $0x194] sm:$0xf] %v515
                %v517 = vld [vmem:[%s311 + $0xcc0] sm:$0xf]
                %518 = vst [vmem:[%s312 + $0x198] sm:$0xf] %v517
                %v519 = vld [vmem:[%s311 + $0xce0] sm:$0xf]
                %520 = vst [vmem:[%s312 + $0x19c] sm:$0xf] %v519
                %v521 = vld [vmem:[%s311 + $0xd00] sm:$0xf]
                %522 = vst [vmem:[%s312 + $0x1a0] sm:$0xf] %v521
                %v523 = vld [vmem:[%s311 + $0xd20] sm:$0xf]
                %524 = vst [vmem:[%s312 + $0x1a4] sm:$0xf] %v523
                %v525 = vld [vmem:[%s311 + $0xd40] sm:$0xf]
                %526 = vst [vmem:[%s312 + $0x1a8] sm:$0xf] %v525
                %v527 = vld [vmem:[%s311 + $0xd60] sm:$0xf]
                %528 = vst [vmem:[%s312 + $0x1ac] sm:$0xf] %v527
                %v529 = vld [vmem:[%s311 + $0xd80] sm:$0xf]
                %530 = vst [vmem:[%s312 + $0x1b0] sm:$0xf] %v529
                %v531 = vld [vmem:[%s311 + $0xda0] sm:$0xf]
                %532 = vst [vmem:[%s312 + $0x1b4] sm:$0xf] %v531
                %v533 = vld [vmem:[%s311 + $0xdc0] sm:$0xf]
                %534 = vst [vmem:[%s312 + $0x1b8] sm:$0xf] %v533
                %v535 = vld [vmem:[%s311 + $0xde0] sm:$0xf]
                %536 = vst [vmem:[%s312 + $0x1bc] sm:$0xf] %v535
                %v537 = vld [vmem:[%s311 + $0xe00] sm:$0xf]
                %538 = vst [vmem:[%s312 + $0x1c0] sm:$0xf] %v537
                %v539 = vld [vmem:[%s311 + $0xe20] sm:$0xf]
                %540 = vst [vmem:[%s312 + $0x1c4] sm:$0xf] %v539
                %v541 = vld [vmem:[%s311 + $0xe40] sm:$0xf]
                %542 = vst [vmem:[%s312 + $0x1c8] sm:$0xf] %v541
                %v543 = vld [vmem:[%s311 + $0xe60] sm:$0xf]
                %544 = vst [vmem:[%s312 + $0x1cc] sm:$0xf] %v543
                %v545 = vld [vmem:[%s311 + $0xe80] sm:$0xf]
                %546 = vst [vmem:[%s312 + $0x1d0] sm:$0xf] %v545
                %v547 = vld [vmem:[%s311 + $0xea0] sm:$0xf]
                %548 = vst [vmem:[%s312 + $0x1d4] sm:$0xf] %v547
                %v549 = vld [vmem:[%s311 + $0xec0] sm:$0xf]
                %550 = vst [vmem:[%s312 + $0x1d8] sm:$0xf] %v549
                %v551 = vld [vmem:[%s311 + $0xee0] sm:$0xf]
                %552 = vst [vmem:[%s312 + $0x1dc] sm:$0xf] %v551
                %v553 = vld [vmem:[%s311 + $0xf00] sm:$0xf]
                %554 = vst [vmem:[%s312 + $0x1e0] sm:$0xf] %v553
                %v555 = vld [vmem:[%s311 + $0xf20] sm:$0xf]
                %556 = vst [vmem:[%s312 + $0x1e4] sm:$0xf] %v555
                %v557 = vld [vmem:[%s311 + $0xf40] sm:$0xf]
                %558 = vst [vmem:[%s312 + $0x1e8] sm:$0xf] %v557
                %v559 = vld [vmem:[%s311 + $0xf60] sm:$0xf]
                %560 = vst [vmem:[%s312 + $0x1ec] sm:$0xf] %v559
                %v561 = vld [vmem:[%s311 + $0xf80] sm:$0xf]
                %562 = vst [vmem:[%s312 + $0x1f0] sm:$0xf] %v561
                %v563 = vld [vmem:[%s311 + $0xfa0] sm:$0xf]
                %564 = vst [vmem:[%s312 + $0x1f4] sm:$0xf] %v563
                %v565 = vld [vmem:[%s311 + $0xfc0] sm:$0xf]
                %566 = vst [vmem:[%s312 + $0x1f8] sm:$0xf] %v565
                %v567 = vld [vmem:[%s311 + $0xfe0] sm:$0xf]
                %568 = vst [vmem:[%s312 + $0x1fc] sm:$0xf] %v567
                %v569 = vld [vmem:[%s311 + $0x1000] sm:$0xf]
                %570 = vst [vmem:[%s312 + $0x200] sm:$0xf] %v569
                %v571 = vld [vmem:[%s311 + $0x1020] sm:$0xf]
                %572 = vst [vmem:[%s312 + $0x204] sm:$0xf] %v571
                %v573 = vld [vmem:[%s311 + $0x1040] sm:$0xf]
                %574 = vst [vmem:[%s312 + $0x208] sm:$0xf] %v573
                %v575 = vld [vmem:[%s311 + $0x1060] sm:$0xf]
                %576 = vst [vmem:[%s312 + $0x20c] sm:$0xf] %v575
                %v577 = vld [vmem:[%s311 + $0x1080] sm:$0xf]
                %578 = vst [vmem:[%s312 + $0x210] sm:$0xf] %v577
                %v579 = vld [vmem:[%s311 + $0x10a0] sm:$0xf]
                %580 = vst [vmem:[%s312 + $0x214] sm:$0xf] %v579
                %v581 = vld [vmem:[%s311 + $0x10c0] sm:$0xf]
                %582 = vst [vmem:[%s312 + $0x218] sm:$0xf] %v581
                %v583 = vld [vmem:[%s311 + $0x10e0] sm:$0xf]
                %584 = vst [vmem:[%s312 + $0x21c] sm:$0xf] %v583
                %v585 = vld [vmem:[%s311 + $0x1100] sm:$0xf]
                %586 = vst [vmem:[%s312 + $0x220] sm:$0xf] %v585
                %v587 = vld [vmem:[%s311 + $0x1120] sm:$0xf]
                %588 = vst [vmem:[%s312 + $0x224] sm:$0xf] %v587
                %v589 = vld [vmem:[%s311 + $0x1140] sm:$0xf]
                %590 = vst [vmem:[%s312 + $0x228] sm:$0xf] %v589
                %v591 = vld [vmem:[%s311 + $0x1160] sm:$0xf]
                %592 = vst [vmem:[%s312 + $0x22c] sm:$0xf] %v591
                %v593 = vld [vmem:[%s311 + $0x1180] sm:$0xf]
                %594 = vst [vmem:[%s312 + $0x230] sm:$0xf] %v593
                %v595 = vld [vmem:[%s311 + $0x11a0] sm:$0xf]
                %596 = vst [vmem:[%s312 + $0x234] sm:$0xf] %v595
                %v597 = vld [vmem:[%s311 + $0x11c0] sm:$0xf]
                %598 = vst [vmem:[%s312 + $0x238] sm:$0xf] %v597
                %v599 = vld [vmem:[%s311 + $0x11e0] sm:$0xf]
                %600 = vst [vmem:[%s312 + $0x23c] sm:$0xf] %v599
              $region61: #{crater_forward.7} parent=55 // loop_footer
                %s310 = sadd.s32 1, %s306
              $region62: #{crater_forward.7} parent=55 // loop_footer_branch
                %305 = sbr.rel target = $region58
              $region63: #{crater_forward.7} parent=55 // loop_exit
                _
            $region56: #{crater_forward.7} parent=47 // pred_fallthru
              _
          $region48: #{crater_forward.7} parent=43 // pred_fallthru
            _
          %908 = vnop
        $region44: #{crater_forward.7} parent=39 // pred_fallthru
          _
        // Predicated region
        $region82: #{crater_forward.7} parent=39 // pred_check
          %p909 = pneg %p84
        $region83: #{crater_forward.7} parent=39 // pred_check_branch
          %911 = sbr.rel (%p909) target = $region85
        $region84: #{crater_forward.7} parent=39 // pred_region
          %p912 = scmp.lt.s32.totalorder %s17, 7
          %s913 = scalar_select %p912, %s17, 7
          %s914 = scalar_lea.vmem %s2, %s913
        $region85: #{crater_forward.7} parent=39 // pred_fallthru
          _
        // Predicated region
        $region86: #{crater_forward.7} parent=39 // pred_check
          %p915 = pneg %p110
        $region87: #{crater_forward.7} parent=39 // pred_check_branch
          %917 = sbr.rel (%p915) target = $region89
        $region88: #{crater_forward.7} parent=39 // pred_region
          %s918 = smul.u32 16, %s17
          %p919 = scmp.lt.s32.totalorder %s918, 127
          %s920 = scalar_select %p919, %s918, 127
          %s921 = smul.addr %s920, 8
          %s922 = smul.addr %s921, 4
          %s923 = scalar_lea.vmem %s3, %s922
          %s924 = smul.u32 16, %s17
        $region89: #{crater_forward.7} parent=39 // pred_fallthru
          _
      $region40: #{crater_forward.7} parent=5 // pred_fallthru
        _
      %p925 = scmp.le.s32.totalorder 1, %s17
      %p926 = scmp.lt.s32.totalorder %s17, 9
      %p927 = pnand %p925, %p926
      %p928 = pneg %p927
      // Predicated region
      $region90: #{crater_forward.7} parent=5 // pred_check
        _
      $region91: #{crater_forward.7} parent=5 // pred_check_branch
        %930 = sbr.rel (%p927) target = $region93
      $region92: #{crater_forward.7} parent=5 // pred_region
        %s931 = ssub.s32 %s17, 1
        %s932 = sand.u32 %s51, 1
        %s933 = sand.u32 %s51, 1
        %s934 = smul.addr %s933, 576
        %s935 = scalar_lea.vmem [#allocation3], %s934
        // Predicated region
        $region94: #{crater_forward.7} parent=92 // pred_check
          %p936 = pneg %p64
        $region95: #{crater_forward.7} parent=92 // pred_check_branch
          %938 = sbr.rel (%p936) target = $region97
        $region96: #{crater_forward.7} parent=92 // pred_region
          _
        $region97: #{crater_forward.7} parent=92 // pred_fallthru
          _
        // Predicated region
        $region98: #{crater_forward.7} parent=92 // pred_check
          %p939 = pneg %p158
        $region99: #{crater_forward.7} parent=92 // pred_check_branch
          %941 = sbr.rel (%p939) target = $region101
        $region100: #{crater_forward.7} parent=92 // pred_region
          %942 = dma.done [#allocation5], 65536
        $region101: #{crater_forward.7} parent=92 // pred_fallthru
          _
        %p943 = pneg %p38
        %p944 = pneg %p35
        %s945 = sand.u32 %s51, 1
        %s946 = sand.u32 %s51, 1
        %s947 = smul.addr %s946, 576
        %s948 = scalar_lea.vmem [#allocation3], %s947
        %p949 = pneg %p64
        %p950 = pneg %p61
        %p951 = scmp.lt.s32.totalorder %s22, 7
        %s952 = scalar_select %p951, %s22, 7
        %s953 = scalar_lea.vmem %s2, %s952
        %p954 = pneg %p90
        %p955 = pneg %p87
        %s956 = smul.u32 16, %s22
        %p957 = scmp.lt.s32.totalorder %s956, 127
        %s958 = scalar_select %p957, %s956, 127
        %s959 = smul.addr %s958, 8
        %s960 = smul.addr %s959, 4
        %s961 = scalar_lea.vmem %s3, %s960
        %p962 = pneg %p116
        %p963 = pneg %p113
        %p964 = pneg %p137
        %p965 = pneg %p134
        %p966 = pneg %p158
        %p967 = pneg %p155
        %p968 = pneg %p179
        %p969 = pneg %p176
        %p970 = pneg %p200
        %p971 = pneg %p197
        %p972 = pneg %p221
        %p973 = pneg %p218
        %p974 = pneg %p242
        %p975 = pneg %p239
        %p976 = scmp.lt.s32.totalorder %s22, 7
        %s977 = scalar_select %p976, %s22, 7
        %s978 = scalar_lea.vmem %s2, %s977
        %s979 = smul.u32 16, %s22
        %p980 = scmp.lt.s32.totalorder %s979, 127
        %s981 = scalar_select %p980, %s979, 127
        %s982 = smul.addr %s981, 8
        %s983 = smul.addr %s982, 4
        %s984 = scalar_lea.vmem %s3, %s983
        %s985 = smul.u32 16, %s22
        %p987 = scmp.eq.s32.totalorder %s22, 0
        // Predicated region
        $region102: #{crater_forward.7} parent=92 // pred_check
          %p988 = pneg %p987
        $region103: #{crater_forward.7} parent=92 // pred_check_branch
          %990 = sbr.rel (%p988) target = $region105
        $region104: #{crater_forward.7} parent=92 // pred_region
          %991 = vst [vmem:[#allocation2] sm:$0xff] 0.0
          %992 = vst [vmem:[#allocation2 + $0x8] sm:$0xff] 0.0
        $region105: #{crater_forward.7} parent=92 // pred_fallthru
          _
        %v993 = vld [vmem:[%s0] sm:$0xff]
        %v994 = vld [vmem:[%s0 + $0x8] sm:$0x1]
        %v995 = vld [vmem:[%s935] sm:$0xf]
        %v996 = vld [vmem:[%s935 + $0x4] sm:$0xf]
        %v997 = vld [vmem:[%s935 + $0x8] sm:$0xf]
        %v998 = vld [vmem:[%s935 + $0xc] sm:$0xf]
        %v999 = vld [vmem:[%s935 + $0x10] sm:$0xf]
        %v1000 = vld [vmem:[%s935 + $0x14] sm:$0xf]
        %v1001 = vld [vmem:[%s935 + $0x18] sm:$0xf]
        %v1002 = vld [vmem:[%s935 + $0x1c] sm:$0xf]
        %v1003 = vld [vmem:[%s935 + $0x20] sm:$0xf]
        %v1004 = vld [vmem:[%s935 + $0x24] sm:$0xf]
        %v1005 = vld [vmem:[%s935 + $0x28] sm:$0xf]
        %v1006 = vld [vmem:[%s935 + $0x2c] sm:$0xf]
        %v1007 = vld [vmem:[%s935 + $0x30] sm:$0xf]
        %v1008 = vld [vmem:[%s935 + $0x34] sm:$0xf]
        %v1009 = vld [vmem:[%s935 + $0x38] sm:$0xf]
        %v1010 = vld [vmem:[%s935 + $0x3c] sm:$0xf]
        %v1011 = vld [vmem:[%s935 + $0x40] sm:$0xf]
        %v1012 = vld [vmem:[%s935 + $0x44] sm:$0xf]
        %v1013 = vld [vmem:[%s935 + $0x48] sm:$0xf]
        %v1014 = vld [vmem:[%s935 + $0x4c] sm:$0xf]
        %v1015 = vld [vmem:[%s935 + $0x50] sm:$0xf]
        %v1016 = vld [vmem:[%s935 + $0x54] sm:$0xf]
        %v1017 = vld [vmem:[%s935 + $0x58] sm:$0xf]
        %v1018 = vld [vmem:[%s935 + $0x5c] sm:$0xf]
        %v1019 = vld [vmem:[%s935 + $0x60] sm:$0xf]
        %v1020 = vld [vmem:[%s935 + $0x64] sm:$0xf]
        %v1021 = vld [vmem:[%s935 + $0x68] sm:$0xf]
        %v1022 = vld [vmem:[%s935 + $0x6c] sm:$0xf]
        %v1023 = vld [vmem:[%s935 + $0x70] sm:$0xf]
        %v1024 = vld [vmem:[%s935 + $0x74] sm:$0xf]
        %v1025 = vld [vmem:[%s935 + $0x78] sm:$0xf]
        %v1026 = vld [vmem:[%s935 + $0x7c] sm:$0xf]
        %v1027 = vld [vmem:[%s935 + $0x80] sm:$0xf]
        %v1028 = vld [vmem:[%s935 + $0x84] sm:$0xf]
        %v1029 = vld [vmem:[%s935 + $0x88] sm:$0xf]
        %v1030 = vld [vmem:[%s935 + $0x8c] sm:$0xf]
        %v1031 = vld [vmem:[%s935 + $0x90] sm:$0xf]
        %v1032 = vld [vmem:[%s935 + $0x94] sm:$0xf]
        %v1033 = vld [vmem:[%s935 + $0x98] sm:$0xf]
        %v1034 = vld [vmem:[%s935 + $0x9c] sm:$0xf]
        %v1035 = vld [vmem:[%s935 + $0xa0] sm:$0xf]
        %v1036 = vld [vmem:[%s935 + $0xa4] sm:$0xf]
        %v1037 = vld [vmem:[%s935 + $0xa8] sm:$0xf]
        %v1038 = vld [vmem:[%s935 + $0xac] sm:$0xf]
        %v1039 = vld [vmem:[%s935 + $0xb0] sm:$0xf]
        %v1040 = vld [vmem:[%s935 + $0xb4] sm:$0xf]
        %v1041 = vld [vmem:[%s935 + $0xb8] sm:$0xf]
        %v1042 = vld [vmem:[%s935 + $0xbc] sm:$0xf]
        %v1043 = vld [vmem:[%s935 + $0xc0] sm:$0xf]
        %v1044 = vld [vmem:[%s935 + $0xc4] sm:$0xf]
        %v1045 = vld [vmem:[%s935 + $0xc8] sm:$0xf]
        %v1046 = vld [vmem:[%s935 + $0xcc] sm:$0xf]
        %v1047 = vld [vmem:[%s935 + $0xd0] sm:$0xf]
        %v1048 = vld [vmem:[%s935 + $0xd4] sm:$0xf]
        %v1049 = vld [vmem:[%s935 + $0xd8] sm:$0xf]
        %v1050 = vld [vmem:[%s935 + $0xdc] sm:$0xf]
        %v1051 = vld [vmem:[%s935 + $0xe0] sm:$0xf]
        %v1052 = vld [vmem:[%s935 + $0xe4] sm:$0xf]
        %v1053 = vld [vmem:[%s935 + $0xe8] sm:$0xf]
        %v1054 = vld [vmem:[%s935 + $0xec] sm:$0xf]
        %v1055 = vld [vmem:[%s935 + $0xf0] sm:$0xf]
        %v1056 = vld [vmem:[%s935 + $0xf4] sm:$0xf]
        %v1057 = vld [vmem:[%s935 + $0xf8] sm:$0xf]
        %v1058 = vld [vmem:[%s935 + $0xfc] sm:$0xf]
        %v1059 = vld [vmem:[%s935 + $0x100] sm:$0xf]
        %v1060 = vld [vmem:[%s935 + $0x104] sm:$0xf]
        %v1061 = vld [vmem:[%s935 + $0x108] sm:$0xf]
        %v1062 = vld [vmem:[%s935 + $0x10c] sm:$0xf]
        %v1063 = vld [vmem:[%s935 + $0x110] sm:$0xf]
        %v1064 = vld [vmem:[%s935 + $0x114] sm:$0xf]
        %v1065 = vld [vmem:[%s935 + $0x118] sm:$0xf]
        %v1066 = vld [vmem:[%s935 + $0x11c] sm:$0xf]
        %v1067 = vld [vmem:[%s935 + $0x120] sm:$0xf]
        %v1068 = vld [vmem:[%s935 + $0x124] sm:$0xf]
        %v1069 = vld [vmem:[%s935 + $0x128] sm:$0xf]
        %v1070 = vld [vmem:[%s935 + $0x12c] sm:$0xf]
        %v1071 = vld [vmem:[%s935 + $0x130] sm:$0xf]
        %v1072 = vld [vmem:[%s935 + $0x134] sm:$0xf]
        %v1073 = vld [vmem:[%s935 + $0x138] sm:$0xf]
        %v1074 = vld [vmem:[%s935 + $0x13c] sm:$0xf]
        %v1075 = vld [vmem:[%s935 + $0x140] sm:$0xf]
        %v1076 = vld [vmem:[%s935 + $0x144] sm:$0xf]
        %v1077 = vld [vmem:[%s935 + $0x148] sm:$0xf]
        %v1078 = vld [vmem:[%s935 + $0x14c] sm:$0xf]
        %v1079 = vld [vmem:[%s935 + $0x150] sm:$0xf]
        %v1080 = vld [vmem:[%s935 + $0x154] sm:$0xf]
        %v1081 = vld [vmem:[%s935 + $0x158] sm:$0xf]
        %v1082 = vld [vmem:[%s935 + $0x15c] sm:$0xf]
        %v1083 = vld [vmem:[%s935 + $0x160] sm:$0xf]
        %v1084 = vld [vmem:[%s935 + $0x164] sm:$0xf]
        %v1085 = vld [vmem:[%s935 + $0x168] sm:$0xf]
        %v1086 = vld [vmem:[%s935 + $0x16c] sm:$0xf]
        %v1087 = vld [vmem:[%s935 + $0x170] sm:$0xf]
        %v1088 = vld [vmem:[%s935 + $0x174] sm:$0xf]
        %v1089 = vld [vmem:[%s935 + $0x178] sm:$0xf]
        %v1090 = vld [vmem:[%s935 + $0x17c] sm:$0xf]
        %v1091 = vld [vmem:[%s935 + $0x180] sm:$0xf]
        %v1092 = vld [vmem:[%s935 + $0x184] sm:$0xf]
        %v1093 = vld [vmem:[%s935 + $0x188] sm:$0xf]
        %v1094 = vld [vmem:[%s935 + $0x18c] sm:$0xf]
        %v1095 = vld [vmem:[%s935 + $0x190] sm:$0xf]
        %v1096 = vld [vmem:[%s935 + $0x194] sm:$0xf]
        %v1097 = vld [vmem:[%s935 + $0x198] sm:$0xf]
        %v1098 = vld [vmem:[%s935 + $0x19c] sm:$0xf]
        %v1099 = vld [vmem:[%s935 + $0x1a0] sm:$0xf]
        %v1100 = vld [vmem:[%s935 + $0x1a4] sm:$0xf]
        %v1101 = vld [vmem:[%s935 + $0x1a8] sm:$0xf]
        %v1102 = vld [vmem:[%s935 + $0x1ac] sm:$0xf]
        %v1103 = vld [vmem:[%s935 + $0x1b0] sm:$0xf]
        %v1104 = vld [vmem:[%s935 + $0x1b4] sm:$0xf]
        %v1105 = vld [vmem:[%s935 + $0x1b8] sm:$0xf]
        %v1106 = vld [vmem:[%s935 + $0x1bc] sm:$0xf]
        %v1107 = vld [vmem:[%s935 + $0x1c0] sm:$0xf]
        %v1108 = vld [vmem:[%s935 + $0x1c4] sm:$0xf]
        %v1109 = vld [vmem:[%s935 + $0x1c8] sm:$0xf]
        %v1110 = vld [vmem:[%s935 + $0x1cc] sm:$0xf]
        %v1111 = vld [vmem:[%s935 + $0x1d0] sm:$0xf]
        %v1112 = vld [vmem:[%s935 + $0x1d4] sm:$0xf]
        %v1113 = vld [vmem:[%s935 + $0x1d8] sm:$0xf]
        %v1114 = vld [vmem:[%s935 + $0x1dc] sm:$0xf]
        %v1115 = vld [vmem:[%s935 + $0x1e0] sm:$0xf]
        %v1116 = vld [vmem:[%s935 + $0x1e4] sm:$0xf]
        %v1117 = vld [vmem:[%s935 + $0x1e8] sm:$0xf]
        %v1118 = vld [vmem:[%s935 + $0x1ec] sm:$0xf]
        %v1119 = vld [vmem:[%s935 + $0x1f0] sm:$0xf]
        %v1120 = vld [vmem:[%s935 + $0x1f4] sm:$0xf]
        %v1121 = vld [vmem:[%s935 + $0x1f8] sm:$0xf]
        %v1122 = vld [vmem:[%s935 + $0x1fc] sm:$0xf]
        %v1123 = vld [vmem:[%s935 + $0x200] sm:$0xf]
        %v1124 = vld [vmem:[%s935 + $0x204] sm:$0xf]
        %v1125 = vld [vmem:[%s935 + $0x208] sm:$0xf]
        %v1126 = vld [vmem:[%s935 + $0x20c] sm:$0xf]
        %v1127 = vld [vmem:[%s935 + $0x210] sm:$0xf]
        %v1128 = vld [vmem:[%s935 + $0x214] sm:$0xf]
        %v1129 = vld [vmem:[%s935 + $0x218] sm:$0xf]
        %v1130 = vld [vmem:[%s935 + $0x21c] sm:$0xf]
        %v1131 = vld [vmem:[%s935 + $0x220] sm:$0xf]
        %v1132 = vld [vmem:[%s935 + $0x224] sm:$0xf]
        %v1133 = vld [vmem:[%s935 + $0x228] sm:$0xf]
        %v1134 = vld [vmem:[%s935 + $0x22c] sm:$0xf]
        %v1135 = vld [vmem:[%s935 + $0x230] sm:$0xf]
        %v1136 = vld [vmem:[%s935 + $0x234] sm:$0xf]
        %v1137 = vld [vmem:[%s935 + $0x238] sm:$0xf]
        %v1138 = vld [vmem:[%s935 + $0x23c] sm:$0xf]
        %v1139 = vld [vmem:[%s978] sm:$0x1]
        %v1141 = vlaneseq
        %v1142 = vshrl.u32 %v1141, 7
        %v1143 = vsub.s32 0, %v1142
        %v1144 = vrot.slane %v1139, %v1143
        %v1148 = vcombine.high %v993, %v993
        %v1150 = vunpack.c.l.s4 1966171168
        %v1151 = vunpack.c.0.s8 %v1150
        %v1152 = vlaneseq
        %v1153 = vshrl.u32 %v1152, 7
        %v1154 = vsub.s32 %v1151, %v1153
        %v1155 = vrot.slane %v993, %v1154
        %v1157 = vunpack.c.l.s4 1966171168
        %v1158 = vunpack.c.0.s8 %v1157
        %v1159 = vlaneseq
        %v1160 = vshrl.u32 %v1159, 7
        %v1161 = vsub.s32 %v1158, %v1160
        %v1162 = vrot.slane %v1148, %v1161
        %v1163 = vcombine.high %v1155, %v1155
        %v1164 = vcombine.high %v1162, %v1162
        %v1166 = vunpack.c.l.s4 1966171168
        %v1167 = vunpack.c.0.s8 %v1166
        %v1168 = vlaneseq
        %v1169 = vshrl.u32 %v1168, 7
        %v1170 = vsub.s32 %v1167, %v1169
        %v1171 = vrot.slane %v1155, %v1170
        %v1173 = vunpack.c.l.s4 1966171168
        %v1174 = vunpack.c.0.s8 %v1173
        %v1175 = vlaneseq
        %v1176 = vshrl.u32 %v1175, 7
        %v1177 = vsub.s32 %v1174, %v1176
        %v1178 = vrot.slane %v1162, %v1177
        %v1180 = vunpack.c.l.s4 1966171168
        %v1181 = vunpack.c.0.s8 %v1180
        %v1182 = vlaneseq
        %v1183 = vshrl.u32 %v1182, 7
        %v1184 = vsub.s32 %v1181, %v1183
        %v1185 = vrot.slane %v1163, %v1184
        %v1187 = vunpack.c.l.s4 1966171168
        %v1188 = vunpack.c.0.s8 %v1187
        %v1189 = vlaneseq
        %v1190 = vshrl.u32 %v1189, 7
        %v1191 = vsub.s32 %v1188, %v1190
        %v1192 = vrot.slane %v1164, %v1191
        %v1193 = vcombine.high %v1171, %v1171
        %v1194 = vcombine.high %v1178, %v1178
        %v1195 = vcombine.high %v1185, %v1185
        %v1196 = vcombine.high %v1192, %v1192
        %v1198 = vunpack.c.l.s4 1966171168
        %v1199 = vunpack.c.0.s8 %v1198
        %v1200 = vlaneseq
        %v1201 = vshrl.u32 %v1200, 7
        %v1202 = vsub.s32 %v1199, %v1201
        %v1203 = vrot.slane %v994, %v1202
        %v1205 = vunpack.c.l.s4 1966171168
        %v1206 = vunpack.c.0.s8 %v1205
        %v1207 = vlaneseq
        %v1208 = vshrl.u32 %v1207, 7
        %v1209 = vsub.s32 %v1206, %v1208
        %v1210 = vrot.slane %v1203, %v1209
        %v1364 = vunpack.c.l.b16 %v995
        %v1365 = vunpack.c.l.b16 %v996
        %v1366 = vunpack.c.l.b16 %v997
        %v1367 = vunpack.c.l.b16 %v998
        %v1368 = vunpack.c.l.b16 %v999
        %v1369 = vunpack.c.l.b16 %v1000
        %v1370 = vunpack.c.l.b16 %v1001
        %v1371 = vunpack.c.l.b16 %v1002
        %v1372 = vunpack.c.l.b16 %v1003
        %v1373 = vunpack.c.l.b16 %v1004
        %v1374 = vunpack.c.l.b16 %v1005
        %v1375 = vunpack.c.l.b16 %v1006
        %v1376 = vunpack.c.l.b16 %v1007
        %v1377 = vunpack.c.l.b16 %v1008
        %v1378 = vunpack.c.l.b16 %v1009
        %v1379 = vunpack.c.l.b16 %v1010
        %v1380 = vunpack.c.l.b16 %v1011
        %v1381 = vunpack.c.l.b16 %v1012
        %v1382 = vunpack.c.l.b16 %v1013
        %v1383 = vunpack.c.l.b16 %v1014
        %v1384 = vunpack.c.l.b16 %v1015
        %v1385 = vunpack.c.l.b16 %v1016
        %v1386 = vunpack.c.l.b16 %v1017
        %v1387 = vunpack.c.l.b16 %v1018
        %v1388 = vunpack.c.l.b16 %v1019
        %v1389 = vunpack.c.l.b16 %v1020
        %v1390 = vunpack.c.l.b16 %v1021
        %v1391 = vunpack.c.l.b16 %v1022
        %v1392 = vunpack.c.l.b16 %v1023
        %v1393 = vunpack.c.l.b16 %v1024
        %v1394 = vunpack.c.l.b16 %v1025
        %v1395 = vunpack.c.l.b16 %v1026
        %v1396 = vunpack.c.l.b16 %v1027
        %v1397 = vunpack.c.l.b16 %v1028
        %v1398 = vunpack.c.l.b16 %v1029
        %v1399 = vunpack.c.l.b16 %v1030
        %v1400 = vunpack.c.l.b16 %v1031
        %v1401 = vunpack.c.l.b16 %v1032
        %v1402 = vunpack.c.l.b16 %v1033
        %v1403 = vunpack.c.l.b16 %v1034
        %v1404 = vunpack.c.l.b16 %v1035
        %v1405 = vunpack.c.l.b16 %v1036
        %v1406 = vunpack.c.l.b16 %v1037
        %v1407 = vunpack.c.l.b16 %v1038
        %v1408 = vunpack.c.l.b16 %v1039
        %v1409 = vunpack.c.l.b16 %v1040
        %v1410 = vunpack.c.l.b16 %v1041
        %v1411 = vunpack.c.l.b16 %v1042
        %v1412 = vunpack.c.l.b16 %v1043
        %v1413 = vunpack.c.l.b16 %v1044
        %v1414 = vunpack.c.l.b16 %v1045
        %v1415 = vunpack.c.l.b16 %v1046
        %v1416 = vunpack.c.l.b16 %v1047
        %v1417 = vunpack.c.l.b16 %v1048
        %v1418 = vunpack.c.l.b16 %v1049
        %v1419 = vunpack.c.l.b16 %v1050
        %v1420 = vunpack.c.l.b16 %v1051
        %v1421 = vunpack.c.l.b16 %v1052
        %v1422 = vunpack.c.l.b16 %v1053
        %v1423 = vunpack.c.l.b16 %v1054
        %v1424 = vunpack.c.l.b16 %v1055
        %v1425 = vunpack.c.l.b16 %v1056
        %v1426 = vunpack.c.l.b16 %v1057
        %v1427 = vunpack.c.l.b16 %v1058
        %v1428 = vunpack.c.l.b16 %v1059
        %v1429 = vunpack.c.l.b16 %v1060
        %v1430 = vunpack.c.l.b16 %v1061
        %v1431 = vunpack.c.l.b16 %v1062
        %v1432 = vunpack.c.l.b16 %v1063
        %v1433 = vunpack.c.l.b16 %v1064
        %v1434 = vunpack.c.l.b16 %v1065
        %v1435 = vunpack.c.l.b16 %v1066
        %v1436 = vunpack.c.l.b16 %v1067
        %v1437 = vunpack.c.l.b16 %v1068
        %v1438 = vunpack.c.l.b16 %v1069
        %v1439 = vunpack.c.l.b16 %v1070
        %v1440 = vunpack.c.l.b16 %v1071
        %v1441 = vunpack.c.l.b16 %v1072
        %v1442 = vunpack.c.l.b16 %v1073
        %v1443 = vunpack.c.l.b16 %v1074
        %v1444 = vunpack.c.l.b16 %v1075
        %v1445 = vunpack.c.l.b16 %v1076
        %v1446 = vunpack.c.l.b16 %v1077
        %v1447 = vunpack.c.l.b16 %v1078
        %v1448 = vunpack.c.l.b16 %v1079
        %v1449 = vunpack.c.l.b16 %v1080
        %v1450 = vunpack.c.l.b16 %v1081
        %v1451 = vunpack.c.l.b16 %v1082
        %v1452 = vunpack.c.l.b16 %v1083
        %v1453 = vunpack.c.l.b16 %v1084
        %v1454 = vunpack.c.l.b16 %v1085
        %v1455 = vunpack.c.l.b16 %v1086
        %v1456 = vunpack.c.l.b16 %v1087
        %v1457 = vunpack.c.l.b16 %v1088
        %v1458 = vunpack.c.l.b16 %v1089
        %v1459 = vunpack.c.l.b16 %v1090
        %v1460 = vunpack.c.l.b16 %v1091
        %v1461 = vunpack.c.l.b16 %v1092
        %v1462 = vunpack.c.l.b16 %v1093
        %v1463 = vunpack.c.l.b16 %v1094
        %v1464 = vunpack.c.l.b16 %v1095
        %v1465 = vunpack.c.l.b16 %v1096
        %v1466 = vunpack.c.l.b16 %v1097
        %v1467 = vunpack.c.l.b16 %v1098
        %v1468 = vunpack.c.l.b16 %v1099
        %v1469 = vunpack.c.l.b16 %v1100
        %v1470 = vunpack.c.l.b16 %v1101
        %v1471 = vunpack.c.l.b16 %v1102
        %v1472 = vunpack.c.l.b16 %v1103
        %v1473 = vunpack.c.l.b16 %v1104
        %v1474 = vunpack.c.l.b16 %v1105
        %v1475 = vunpack.c.l.b16 %v1106
        %v1476 = vunpack.c.l.b16 %v1107
        %v1477 = vunpack.c.l.b16 %v1108
        %v1478 = vunpack.c.l.b16 %v1109
        %v1479 = vunpack.c.l.b16 %v1110
        %v1480 = vunpack.c.l.b16 %v1111
        %v1481 = vunpack.c.l.b16 %v1112
        %v1482 = vunpack.c.l.b16 %v1113
        %v1483 = vunpack.c.l.b16 %v1114
        %v1484 = vunpack.c.l.b16 %v1115
        %v1485 = vunpack.c.l.b16 %v1116
        %v1486 = vunpack.c.l.b16 %v1117
        %v1487 = vunpack.c.l.b16 %v1118
        %v1488 = vunpack.c.l.b16 %v1119
        %v1489 = vunpack.c.l.b16 %v1120
        %v1490 = vunpack.c.l.b16 %v1121
        %v1491 = vunpack.c.l.b16 %v1122
        %v1492 = vunpack.c.l.b16 %v1123
        %v1493 = vunpack.c.l.b16 %v1124
        %v1494 = vunpack.c.l.b16 %v1125
        %v1495 = vunpack.c.l.b16 %v1126
        %v1496 = vunpack.c.l.b16 %v1127
        %v1497 = vunpack.c.l.b16 %v1128
        %v1498 = vunpack.c.l.b16 %v1129
        %v1499 = vunpack.c.l.b16 %v1130
        %v1500 = vunpack.c.l.b16 %v1131
        %v1501 = vunpack.c.l.b16 %v1132
        %v1502 = vunpack.c.l.b16 %v1133
        %v1503 = vunpack.c.l.b16 %v1134
        %v1504 = vunpack.c.l.b16 %v1135
        %v1505 = vunpack.c.l.b16 %v1136
        %v1506 = vunpack.c.l.b16 %v1137
        %v1507 = vunpack.c.l.b16 %v1138
        %v1508 = vpack.c.b16 %v1365, %v1364
        %v1509 = vpack.c.b16 %v1367, %v1366
        %v1510 = vpack.c.b16 %v1369, %v1368
        %v1511 = vpack.c.b16 %v1371, %v1370
        %v1512 = vpack.c.b16 %v1373, %v1372
        %v1513 = vpack.c.b16 %v1375, %v1374
        %v1514 = vpack.c.b16 %v1377, %v1376
        %v1515 = vpack.c.b16 %v1379, %v1378
        %v1516 = vpack.c.b16 %v1381, %v1380
        %v1517 = vpack.c.b16 %v1383, %v1382
        %v1518 = vpack.c.b16 %v1385, %v1384
        %v1519 = vpack.c.b16 %v1387, %v1386
        %v1520 = vpack.c.b16 %v1389, %v1388
        %v1521 = vpack.c.b16 %v1391, %v1390
        %v1522 = vpack.c.b16 %v1393, %v1392
        %v1523 = vpack.c.b16 %v1395, %v1394
        %v1524 = vpack.c.b16 %v1397, %v1396
        %v1525 = vpack.c.b16 %v1399, %v1398
        %v1526 = vpack.c.b16 %v1401, %v1400
        %v1527 = vpack.c.b16 %v1403, %v1402
        %v1528 = vpack.c.b16 %v1405, %v1404
        %v1529 = vpack.c.b16 %v1407, %v1406
        %v1530 = vpack.c.b16 %v1409, %v1408
        %v1531 = vpack.c.b16 %v1411, %v1410
        %v1532 = vpack.c.b16 %v1413, %v1412
        %v1533 = vpack.c.b16 %v1415, %v1414
        %v1534 = vpack.c.b16 %v1417, %v1416
        %v1535 = vpack.c.b16 %v1419, %v1418
        %v1536 = vpack.c.b16 %v1421, %v1420
        %v1537 = vpack.c.b16 %v1423, %v1422
        %v1538 = vpack.c.b16 %v1425, %v1424
        %v1539 = vpack.c.b16 %v1427, %v1426
        %v1540 = vpack.c.b16 %v1429, %v1428
        %v1541 = vpack.c.b16 %v1431, %v1430
        %v1542 = vpack.c.b16 %v1433, %v1432
        %v1543 = vpack.c.b16 %v1435, %v1434
        %v1544 = vpack.c.b16 %v1437, %v1436
        %v1545 = vpack.c.b16 %v1439, %v1438
        %v1546 = vpack.c.b16 %v1441, %v1440
        %v1547 = vpack.c.b16 %v1443, %v1442
        %v1548 = vpack.c.b16 %v1445, %v1444
        %v1549 = vpack.c.b16 %v1447, %v1446
        %v1550 = vpack.c.b16 %v1449, %v1448
        %v1551 = vpack.c.b16 %v1451, %v1450
        %v1552 = vpack.c.b16 %v1453, %v1452
        %v1553 = vpack.c.b16 %v1455, %v1454
        %v1554 = vpack.c.b16 %v1457, %v1456
        %v1555 = vpack.c.b16 %v1459, %v1458
        %v1556 = vpack.c.b16 %v1461, %v1460
        %v1557 = vpack.c.b16 %v1463, %v1462
        %v1558 = vpack.c.b16 %v1465, %v1464
        %v1559 = vpack.c.b16 %v1467, %v1466
        %v1560 = vpack.c.b16 %v1469, %v1468
        %v1561 = vpack.c.b16 %v1471, %v1470
        %v1562 = vpack.c.b16 %v1473, %v1472
        %v1563 = vpack.c.b16 %v1475, %v1474
        %v1564 = vpack.c.b16 %v1477, %v1476
        %v1565 = vpack.c.b16 %v1479, %v1478
        %v1566 = vpack.c.b16 %v1481, %v1480
        %v1567 = vpack.c.b16 %v1483, %v1482
        %v1568 = vpack.c.b16 %v1485, %v1484
        %v1569 = vpack.c.b16 %v1487, %v1486
        %v1570 = vpack.c.b16 %v1489, %v1488
        %v1571 = vpack.c.b16 %v1491, %v1490
        %v1572 = vpack.c.b16 %v1493, %v1492
        %v1573 = vpack.c.b16 %v1495, %v1494
        %v1574 = vpack.c.b16 %v1497, %v1496
        %v1575 = vpack.c.b16 %v1499, %v1498
        %v1576 = vpack.c.b16 %v1501, %v1500
        %v1577 = vpack.c.b16 %v1503, %v1502
        %v1578 = vpack.c.b16 %v1505, %v1504
        %v1579 = vpack.c.b16 %v1507, %v1506
        %1652 = vmatprep.subr.bf16.mxu0 0
        %1653 = vmatpush1.bf16.msra.mxu0 %v1508
        %1654 = vmatprep.subr.bf16.mxu0 0
        %1655 = vmatpush1.bf16.msra.mxu0 %v1509
        %1656 = vmatprep.subr.bf16.mxu0 0
        %1657 = vmatpush1.bf16.msra.mxu0 %v1510
        %1658 = vmatprep.subr.bf16.mxu0 0
        %1659 = vmatpush1.bf16.msra.mxu0 %v1511
        %1660 = vmatprep.subr.bf16.mxu0 0
        %1661 = vmatpush1.bf16.msra.mxu0 %v1512
        %1662 = vmatprep.subr.bf16.mxu0 0
        %1663 = vmatpush1.bf16.msra.mxu0 %v1513
        %1664 = vmatprep.subr.bf16.mxu0 0
        %1665 = vmatpush1.bf16.msra.mxu0 %v1514
        %1666 = vmatprep.subr.bf16.mxu0 0
        %1667 = vmatpush1.bf16.msra.mxu0 %v1515
        %1668 = vmatprep.subr.bf16.mxu0 0
        %1669 = vmatpush1.bf16.msra.mxu0 %v1516
        %1670 = vmatprep.subr.bf16.mxu0 0
        %1671 = vmatpush1.bf16.msra.mxu0 %v1517
        %1672 = vmatprep.subr.bf16.mxu0 0
        %1673 = vmatpush1.bf16.msra.mxu0 %v1518
        %1674 = vmatprep.subr.bf16.mxu0 0
        %1675 = vmatpush1.bf16.msra.mxu0 %v1519
        %1676 = vmatprep.subr.bf16.mxu0 0
        %1677 = vmatpush1.bf16.msra.mxu0 %v1520
        %1678 = vmatprep.subr.bf16.mxu0 0
        %1679 = vmatpush1.bf16.msra.mxu0 %v1521
        %1680 = vmatprep.subr.bf16.mxu0 0
        %1681 = vmatpush1.bf16.msra.mxu0 %v1522
        %1682 = vmatprep.subr.bf16.mxu0 0
        %1683 = vmatpush1.bf16.msra.mxu0 %v1523
        %1684 = vmatprep.mubr.bf16.mxu0 %v1185
        %1685 = vmatmul.mubr.bf16.gmra.mrb[0].mxu0 %v1171
        %v1686 = vpop.f32.mrb[0].mxu0
        %v1687 = vadd.f32 %v1144, %v1686
        %v1688 = vpop.f32.mrb[0].mxu0
        %v1689 = vpop.f32.mrb[0].mxu0
        %v1690 = vpop.f32.mrb[0].mxu0
        %1691 = vdwg.mxu0
        %1692 = vmatprep.subr.bf16.mxu0 0
        %1693 = vmatpush1.bf16.msra.mxu0 %v1524
        %1694 = vmatprep.subr.bf16.mxu0 0
        %1695 = vmatpush1.bf16.msra.mxu0 %v1525
        %1696 = vmatprep.subr.bf16.mxu0 0
        %1697 = vmatpush1.bf16.msra.mxu0 %v1526
        %1698 = vmatprep.subr.bf16.mxu0 0
        %1699 = vmatpush1.bf16.msra.mxu0 %v1527
        %1700 = vmatprep.subr.bf16.mxu0 0
        %1701 = vmatpush1.bf16.msra.mxu0 %v1528
        %1702 = vmatprep.subr.bf16.mxu0 0
        %1703 = vmatpush1.bf16.msra.mxu0 %v1529
        %1704 = vmatprep.subr.bf16.mxu0 0
        %1705 = vmatpush1.bf16.msra.mxu0 %v1530
        %1706 = vmatprep.subr.bf16.mxu0 0
        %1707 = vmatpush1.bf16.msra.mxu0 %v1531
        %1708 = vmatprep.subr.bf16.mxu0 0
        %1709 = vmatpush1.bf16.msra.mxu0 %v1532
        %1710 = vmatprep.subr.bf16.mxu0 0
        %1711 = vmatpush1.bf16.msra.mxu0 %v1533
        %1712 = vmatprep.subr.bf16.mxu0 0
        %1713 = vmatpush1.bf16.msra.mxu0 %v1534
        %1714 = vmatprep.subr.bf16.mxu0 0
        %1715 = vmatpush1.bf16.msra.mxu0 %v1535
        %1716 = vmatprep.subr.bf16.mxu0 0
        %1717 = vmatpush1.bf16.msra.mxu0 %v1536
        %1718 = vmatprep.subr.bf16.mxu0 0
        %1719 = vmatpush1.bf16.msra.mxu0 %v1537
        %1720 = vmatprep.subr.bf16.mxu0 0
        %1721 = vmatpush1.bf16.msra.mxu0 %v1538
        %1722 = vmatprep.subr.bf16.mxu0 0
        %1723 = vmatpush1.bf16.msra.mxu0 %v1539
        %1724 = vmatprep.mubr.bf16.mxu0 %v1195
        %1725 = vmatmul.mubr.bf16.gmra.mrb[0].mxu0 %v1193
        %v1726 = vpop.f32.mrb[0].mxu0
        %v1727 = vadd.f32 %v1687, %v1726
        %v1728 = vpop.f32.mrb[0].mxu0
        %v1729 = vpop.f32.mrb[0].mxu0
        %v1730 = vpop.f32.mrb[0].mxu0
        %1731 = vdwg.mxu0
        %1732 = vmatprep.subr.bf16.mxu0 0
        %1733 = vmatpush1.bf16.msra.mxu0 %v1540
        %1734 = vmatprep.subr.bf16.mxu0 0
        %1735 = vmatpush1.bf16.msra.mxu0 %v1541
        %1736 = vmatprep.subr.bf16.mxu0 0
        %1737 = vmatpush1.bf16.msra.mxu0 %v1542
        %1738 = vmatprep.subr.bf16.mxu0 0
        %1739 = vmatpush1.bf16.msra.mxu0 %v1543
        %1740 = vmatprep.subr.bf16.mxu0 0
        %1741 = vmatpush1.bf16.msra.mxu0 %v1544
        %1742 = vmatprep.subr.bf16.mxu0 0
        %1743 = vmatpush1.bf16.msra.mxu0 %v1545
        %1744 = vmatprep.subr.bf16.mxu0 0
        %1745 = vmatpush1.bf16.msra.mxu0 %v1546
        %1746 = vmatprep.subr.bf16.mxu0 0
        %1747 = vmatpush1.bf16.msra.mxu0 %v1547
        %1748 = vmatprep.subr.bf16.mxu0 0
        %1749 = vmatpush1.bf16.msra.mxu0 %v1548
        %1750 = vmatprep.subr.bf16.mxu0 0
        %1751 = vmatpush1.bf16.msra.mxu0 %v1549
        %1752 = vmatprep.subr.bf16.mxu0 0
        %1753 = vmatpush1.bf16.msra.mxu0 %v1550
        %1754 = vmatprep.subr.bf16.mxu0 0
        %1755 = vmatpush1.bf16.msra.mxu0 %v1551
        %1756 = vmatprep.subr.bf16.mxu0 0
        %1757 = vmatpush1.bf16.msra.mxu0 %v1552
        %1758 = vmatprep.subr.bf16.mxu0 0
        %1759 = vmatpush1.bf16.msra.mxu0 %v1553
        %1760 = vmatprep.subr.bf16.mxu0 0
        %1761 = vmatpush1.bf16.msra.mxu0 %v1554
        %1762 = vmatprep.subr.bf16.mxu0 0
        %1763 = vmatpush1.bf16.msra.mxu0 %v1555
        %1764 = vmatprep.mubr.bf16.mxu0 %v1192
        %1765 = vmatmul.mubr.bf16.gmra.mrb[0].mxu0 %v1178
        %v1766 = vpop.f32.mrb[0].mxu0
        %v1767 = vadd.f32 %v1727, %v1766
        %v1768 = vpop.f32.mrb[0].mxu0
        %v1769 = vpop.f32.mrb[0].mxu0
        %v1770 = vpop.f32.mrb[0].mxu0
        %1771 = vdwg.mxu0
        %1772 = vmatprep.subr.bf16.mxu0 0
        %1773 = vmatpush1.bf16.msra.mxu0 %v1556
        %1774 = vmatprep.subr.bf16.mxu0 0
        %1775 = vmatpush1.bf16.msra.mxu0 %v1557
        %1776 = vmatprep.subr.bf16.mxu0 0
        %1777 = vmatpush1.bf16.msra.mxu0 %v1558
        %1778 = vmatprep.subr.bf16.mxu0 0
        %1779 = vmatpush1.bf16.msra.mxu0 %v1559
        %1780 = vmatprep.subr.bf16.mxu0 0
        %1781 = vmatpush1.bf16.msra.mxu0 %v1560
        %1782 = vmatprep.subr.bf16.mxu0 0
        %1783 = vmatpush1.bf16.msra.mxu0 %v1561
        %1784 = vmatprep.subr.bf16.mxu0 0
        %1785 = vmatpush1.bf16.msra.mxu0 %v1562
        %1786 = vmatprep.subr.bf16.mxu0 0
        %1787 = vmatpush1.bf16.msra.mxu0 %v1563
        %1788 = vmatprep.subr.bf16.mxu0 0
        %1789 = vmatpush1.bf16.msra.mxu0 %v1564
        %1790 = vmatprep.subr.bf16.mxu0 0
        %1791 = vmatpush1.bf16.msra.mxu0 %v1565
        %1792 = vmatprep.subr.bf16.mxu0 0
        %1793 = vmatpush1.bf16.msra.mxu0 %v1566
        %1794 = vmatprep.subr.bf16.mxu0 0
        %1795 = vmatpush1.bf16.msra.mxu0 %v1567
        %1796 = vmatprep.subr.bf16.mxu0 0
        %1797 = vmatpush1.bf16.msra.mxu0 %v1568
        %1798 = vmatprep.subr.bf16.mxu0 0
        %1799 = vmatpush1.bf16.msra.mxu0 %v1569
        %1800 = vmatprep.subr.bf16.mxu0 0
        %1801 = vmatpush1.bf16.msra.mxu0 %v1570
        %1802 = vmatprep.subr.bf16.mxu0 0
        %1803 = vmatpush1.bf16.msra.mxu0 %v1571
        %1804 = vmatprep.mubr.bf16.mxu0 %v1196
        %1805 = vmatmul.mubr.bf16.gmra.mrb[0].mxu0 %v1194
        %v1806 = vpop.f32.mrb[0].mxu0
        %v1807 = vadd.f32 %v1767, %v1806
        %v1808 = vpop.f32.mrb[0].mxu0
        %v1809 = vpop.f32.mrb[0].mxu0
        %v1810 = vpop.f32.mrb[0].mxu0
        %1811 = vdwg.mxu0
        %1812 = vmatprep.subr.bf16.mxu0 0
        %1813 = vmatpush1.bf16.msra.mxu0 %v1572
        %1814 = vmatprep.subr.bf16.mxu0 0
        %1815 = vmatpush1.bf16.msra.mxu0 %v1573
        %1816 = vmatprep.subr.bf16.mxu0 0
        %1817 = vmatpush1.bf16.msra.mxu0 %v1574
        %1818 = vmatprep.subr.bf16.mxu0 0
        %1819 = vmatpush1.bf16.msra.mxu0 %v1575
        %1820 = vmatprep.subr.bf16.mxu0 0
        %1821 = vmatpush1.bf16.msra.mxu0 %v1576
        %1822 = vmatprep.subr.bf16.mxu0 0
        %1823 = vmatpush1.bf16.msra.mxu0 %v1577
        %1824 = vmatprep.subr.bf16.mxu0 0
        %1825 = vmatpush1.bf16.msra.mxu0 %v1578
        %1826 = vmatprep.subr.bf16.mxu0 0
        %1827 = vmatpush1.bf16.msra.mxu0 %v1579
        %1828 = vmatprep.subr.bf16.mxu0 0
        %1829 = vmatpush1.bf16.msra.mxu0 0
        %1830 = vmatprep.subr.bf16.mxu0 0
        %1831 = vmatpush1.bf16.msra.mxu0 0
        %1832 = vmatprep.subr.bf16.mxu0 0
        %1833 = vmatpush1.bf16.msra.mxu0 0
        %1834 = vmatprep.subr.bf16.mxu0 0
        %1835 = vmatpush1.bf16.msra.mxu0 0
        %1836 = vmatprep.subr.bf16.mxu0 0
        %1837 = vmatpush1.bf16.msra.mxu0 0
        %1838 = vmatprep.subr.bf16.mxu0 0
        %1839 = vmatpush1.bf16.msra.mxu0 0
        %1840 = vmatprep.subr.bf16.mxu0 0
        %1841 = vmatpush1.bf16.msra.mxu0 0
        %1842 = vmatprep.subr.bf16.mxu0 0
        %1843 = vmatpush1.bf16.msra.mxu0 0
        %1844 = vmatprep.mubr.bf16.mxu0 0
        %1845 = vmatmul.mubr.bf16.gmra.mrb[0].mxu0 %v1210
        %v1846 = vpop.f32.mrb[0].mxu0
        %v1847 = vadd.f32 %v1807, %v1846
        %v1848 = vpop.f32.mrb[0].mxu0
        %v1849 = vpop.f32.mrb[0].mxu0
        %v1850 = vpop.f32.mrb[0].mxu0
        %1851 = vdwg.mxu0
        %v1852 = vmax.f32 %v1847, 0.0
        %v1853 = vld [vmem:[#allocation2] sm:$0xff]
        %v1854 = vld [vmem:[#allocation2 + $0x8] sm:$0xff]
        %v1855 = vpack.c.bf16 %v1852, %v1852
        %v1856 = vld [vmem:[%s984] sm:$0xff]
        %v1857 = vld [vmem:[%s984 + $0x8] sm:$0xff]
        %v1858 = vld [vmem:[%s984 + $0x10] sm:$0xff]
        %v1859 = vld [vmem:[%s984 + $0x18] sm:$0xff]
        %v1860 = vld [vmem:[%s984 + $0x20] sm:$0xff]
        %v1861 = vld [vmem:[%s984 + $0x28] sm:$0xff]
        %v1862 = vld [vmem:[%s984 + $0x30] sm:$0xff]
        %v1863 = vld [vmem:[%s984 + $0x38] sm:$0xff]
        %v1864 = vld [vmem:[%s984 + $0x40] sm:$0xff]
        %v1865 = vld [vmem:[%s984 + $0x48] sm:$0xff]
        %v1866 = vld [vmem:[%s984 + $0x50] sm:$0xff]
        %v1867 = vld [vmem:[%s984 + $0x58] sm:$0xff]
        %v1868 = vld [vmem:[%s984 + $0x60] sm:$0xff]
        %v1869 = vld [vmem:[%s984 + $0x68] sm:$0xff]
        %v1870 = vld [vmem:[%s984 + $0x70] sm:$0xff]
        %v1871 = vld [vmem:[%s984 + $0x78] sm:$0xff]
        %v1872 = vld [vmem:[%s984 + $0x80] sm:$0xff]
        %v1873 = vld [vmem:[%s984 + $0x88] sm:$0xff]
        %v1874 = vld [vmem:[%s984 + $0x90] sm:$0xff]
        %v1875 = vld [vmem:[%s984 + $0x98] sm:$0xff]
        %v1876 = vld [vmem:[%s984 + $0xa0] sm:$0xff]
        %v1877 = vld [vmem:[%s984 + $0xa8] sm:$0xff]
        %v1878 = vld [vmem:[%s984 + $0xb0] sm:$0xff]
        %v1879 = vld [vmem:[%s984 + $0xb8] sm:$0xff]
        %v1880 = vld [vmem:[%s984 + $0xc0] sm:$0xff]
        %v1881 = vld [vmem:[%s984 + $0xc8] sm:$0xff]
        %v1882 = vld [vmem:[%s984 + $0xd0] sm:$0xff]
        %v1883 = vld [vmem:[%s984 + $0xd8] sm:$0xff]
        %v1884 = vld [vmem:[%s984 + $0xe0] sm:$0xff]
        %v1885 = vld [vmem:[%s984 + $0xe8] sm:$0xff]
        %v1886 = vld [vmem:[%s984 + $0xf0] sm:$0xff]
        %v1887 = vld [vmem:[%s984 + $0xf8] sm:$0xff]
        %v1888 = vld [vmem:[%s984 + $0x100] sm:$0xff]
        %v1889 = vld [vmem:[%s984 + $0x108] sm:$0xff]
        %v1890 = vld [vmem:[%s984 + $0x110] sm:$0xff]
        %v1891 = vld [vmem:[%s984 + $0x118] sm:$0xff]
        %v1892 = vld [vmem:[%s984 + $0x120] sm:$0xff]
        %v1893 = vld [vmem:[%s984 + $0x128] sm:$0xff]
        %v1894 = vld [vmem:[%s984 + $0x130] sm:$0xff]
        %v1895 = vld [vmem:[%s984 + $0x138] sm:$0xff]
        %v1896 = vld [vmem:[%s984 + $0x140] sm:$0xff]
        %v1897 = vld [vmem:[%s984 + $0x148] sm:$0xff]
        %v1898 = vld [vmem:[%s984 + $0x150] sm:$0xff]
        %v1899 = vld [vmem:[%s984 + $0x158] sm:$0xff]
        %v1900 = vld [vmem:[%s984 + $0x160] sm:$0xff]
        %v1901 = vld [vmem:[%s984 + $0x168] sm:$0xff]
        %v1902 = vld [vmem:[%s984 + $0x170] sm:$0xff]
        %v1903 = vld [vmem:[%s984 + $0x178] sm:$0xff]
        %v1904 = vld [vmem:[%s984 + $0x180] sm:$0xff]
        %v1905 = vld [vmem:[%s984 + $0x188] sm:$0xff]
        %v1906 = vld [vmem:[%s984 + $0x190] sm:$0xff]
        %v1907 = vld [vmem:[%s984 + $0x198] sm:$0xff]
        %v1908 = vld [vmem:[%s984 + $0x1a0] sm:$0xff]
        %v1909 = vld [vmem:[%s984 + $0x1a8] sm:$0xff]
        %v1910 = vld [vmem:[%s984 + $0x1b0] sm:$0xff]
        %v1911 = vld [vmem:[%s984 + $0x1b8] sm:$0xff]
        %v1912 = vld [vmem:[%s984 + $0x1c0] sm:$0xff]
        %v1913 = vld [vmem:[%s984 + $0x1c8] sm:$0xff]
        %v1914 = vld [vmem:[%s984 + $0x1d0] sm:$0xff]
        %v1915 = vld [vmem:[%s984 + $0x1d8] sm:$0xff]
        %v1916 = vld [vmem:[%s984 + $0x1e0] sm:$0xff]
        %v1917 = vld [vmem:[%s984 + $0x1e8] sm:$0xff]
        %v1918 = vld [vmem:[%s984 + $0x1f0] sm:$0xff]
        %v1919 = vld [vmem:[%s984 + $0x1f8] sm:$0xff]
        %v1984 = vunpack.c.l.b16 %v1856
        %v1985 = vunpack.c.h.b16 %v1856
        %v1986 = vunpack.c.l.b16 %v1857
        %v1987 = vunpack.c.h.b16 %v1857
        %v1988 = vunpack.c.l.b16 %v1858
        %v1989 = vunpack.c.h.b16 %v1858
        %v1990 = vunpack.c.l.b16 %v1859
        %v1991 = vunpack.c.h.b16 %v1859
        %v1992 = vunpack.c.l.b16 %v1860
        %v1993 = vunpack.c.h.b16 %v1860
        %v1994 = vunpack.c.l.b16 %v1861
        %v1995 = vunpack.c.h.b16 %v1861
        %v1996 = vunpack.c.l.b16 %v1862
        %v1997 = vunpack.c.h.b16 %v1862
        %v1998 = vunpack.c.l.b16 %v1863
        %v1999 = vunpack.c.h.b16 %v1863
        %v2000 = vunpack.c.l.b16 %v1864
        %v2001 = vunpack.c.h.b16 %v1864
        %v2002 = vunpack.c.l.b16 %v1865
        %v2003 = vunpack.c.h.b16 %v1865
        %v2004 = vunpack.c.l.b16 %v1866
        %v2005 = vunpack.c.h.b16 %v1866
        %v2006 = vunpack.c.l.b16 %v1867
        %v2007 = vunpack.c.h.b16 %v1867
        %v2008 = vunpack.c.l.b16 %v1868
        %v2009 = vunpack.c.h.b16 %v1868
        %v2010 = vunpack.c.l.b16 %v1869
        %v2011 = vunpack.c.h.b16 %v1869
        %v2012 = vunpack.c.l.b16 %v1870
        %v2013 = vunpack.c.h.b16 %v1870
        %v2014 = vunpack.c.l.b16 %v1871
        %v2015 = vunpack.c.h.b16 %v1871
        %v2016 = vunpack.c.l.b16 %v1872
        %v2017 = vunpack.c.h.b16 %v1872
        %v2018 = vunpack.c.l.b16 %v1873
        %v2019 = vunpack.c.h.b16 %v1873
        %v2020 = vunpack.c.l.b16 %v1874
        %v2021 = vunpack.c.h.b16 %v1874
        %v2022 = vunpack.c.l.b16 %v1875
        %v2023 = vunpack.c.h.b16 %v1875
        %v2024 = vunpack.c.l.b16 %v1876
        %v2025 = vunpack.c.h.b16 %v1876
        %v2026 = vunpack.c.l.b16 %v1877
        %v2027 = vunpack.c.h.b16 %v1877
        %v2028 = vunpack.c.l.b16 %v1878
        %v2029 = vunpack.c.h.b16 %v1878
        %v2030 = vunpack.c.l.b16 %v1879
        %v2031 = vunpack.c.h.b16 %v1879
        %v2032 = vunpack.c.l.b16 %v1880
        %v2033 = vunpack.c.h.b16 %v1880
        %v2034 = vunpack.c.l.b16 %v1881
        %v2035 = vunpack.c.h.b16 %v1881
        %v2036 = vunpack.c.l.b16 %v1882
        %v2037 = vunpack.c.h.b16 %v1882
        %v2038 = vunpack.c.l.b16 %v1883
        %v2039 = vunpack.c.h.b16 %v1883
        %v2040 = vunpack.c.l.b16 %v1884
        %v2041 = vunpack.c.h.b16 %v1884
        %v2042 = vunpack.c.l.b16 %v1885
        %v2043 = vunpack.c.h.b16 %v1885
        %v2044 = vunpack.c.l.b16 %v1886
        %v2045 = vunpack.c.h.b16 %v1886
        %v2046 = vunpack.c.l.b16 %v1887
        %v2047 = vunpack.c.h.b16 %v1887
        %v2048 = vunpack.c.l.b16 %v1888
        %v2049 = vunpack.c.h.b16 %v1888
        %v2050 = vunpack.c.l.b16 %v1889
        %v2051 = vunpack.c.h.b16 %v1889
        %v2052 = vunpack.c.l.b16 %v1890
        %v2053 = vunpack.c.h.b16 %v1890
        %v2054 = vunpack.c.l.b16 %v1891
        %v2055 = vunpack.c.h.b16 %v1891
        %v2056 = vunpack.c.l.b16 %v1892
        %v2057 = vunpack.c.h.b16 %v1892
        %v2058 = vunpack.c.l.b16 %v1893
        %v2059 = vunpack.c.h.b16 %v1893
        %v2060 = vunpack.c.l.b16 %v1894
        %v2061 = vunpack.c.h.b16 %v1894
        %v2062 = vunpack.c.l.b16 %v1895
        %v2063 = vunpack.c.h.b16 %v1895
        %v2064 = vunpack.c.l.b16 %v1896
        %v2065 = vunpack.c.h.b16 %v1896
        %v2066 = vunpack.c.l.b16 %v1897
        %v2067 = vunpack.c.h.b16 %v1897
        %v2068 = vunpack.c.l.b16 %v1898
        %v2069 = vunpack.c.h.b16 %v1898
        %v2070 = vunpack.c.l.b16 %v1899
        %v2071 = vunpack.c.h.b16 %v1899
        %v2072 = vunpack.c.l.b16 %v1900
        %v2073 = vunpack.c.h.b16 %v1900
        %v2074 = vunpack.c.l.b16 %v1901
        %v2075 = vunpack.c.h.b16 %v1901
        %v2076 = vunpack.c.l.b16 %v1902
        %v2077 = vunpack.c.h.b16 %v1902
        %v2078 = vunpack.c.l.b16 %v1903
        %v2079 = vunpack.c.h.b16 %v1903
        %v2080 = vunpack.c.l.b16 %v1904
        %v2081 = vunpack.c.h.b16 %v1904
        %v2082 = vunpack.c.l.b16 %v1905
        %v2083 = vunpack.c.h.b16 %v1905
        %v2084 = vunpack.c.l.b16 %v1906
        %v2085 = vunpack.c.h.b16 %v1906
        %v2086 = vunpack.c.l.b16 %v1907
        %v2087 = vunpack.c.h.b16 %v1907
        %v2088 = vunpack.c.l.b16 %v1908
        %v2089 = vunpack.c.h.b16 %v1908
        %v2090 = vunpack.c.l.b16 %v1909
        %v2091 = vunpack.c.h.b16 %v1909
        %v2092 = vunpack.c.l.b16 %v1910
        %v2093 = vunpack.c.h.b16 %v1910
        %v2094 = vunpack.c.l.b16 %v1911
        %v2095 = vunpack.c.h.b16 %v1911
        %v2096 = vunpack.c.l.b16 %v1912
        %v2097 = vunpack.c.h.b16 %v1912
        %v2098 = vunpack.c.l.b16 %v1913
        %v2099 = vunpack.c.h.b16 %v1913
        %v2100 = vunpack.c.l.b16 %v1914
        %v2101 = vunpack.c.h.b16 %v1914
        %v2102 = vunpack.c.l.b16 %v1915
        %v2103 = vunpack.c.h.b16 %v1915
        %v2104 = vunpack.c.l.b16 %v1916
        %v2105 = vunpack.c.h.b16 %v1916
        %v2106 = vunpack.c.l.b16 %v1917
        %v2107 = vunpack.c.h.b16 %v1917
        %v2108 = vunpack.c.l.b16 %v1918
        %v2109 = vunpack.c.h.b16 %v1918
        %v2110 = vunpack.c.l.b16 %v1919
        %v2111 = vunpack.c.h.b16 %v1919
        %v2112 = vpack.c.b16 %v1992, %v1984
        %v2113 = vpack.c.b16 %v1993, %v1985
        %v2114 = vpack.c.b16 %v1994, %v1986
        %v2115 = vpack.c.b16 %v1995, %v1987
        %v2116 = vpack.c.b16 %v1996, %v1988
        %v2117 = vpack.c.b16 %v1997, %v1989
        %v2118 = vpack.c.b16 %v1998, %v1990
        %v2119 = vpack.c.b16 %v1999, %v1991
        %v2120 = vpack.c.b16 %v2008, %v2000
        %v2121 = vpack.c.b16 %v2009, %v2001
        %v2122 = vpack.c.b16 %v2010, %v2002
        %v2123 = vpack.c.b16 %v2011, %v2003
        %v2124 = vpack.c.b16 %v2012, %v2004
        %v2125 = vpack.c.b16 %v2013, %v2005
        %v2126 = vpack.c.b16 %v2014, %v2006
        %v2127 = vpack.c.b16 %v2015, %v2007
        %v2128 = vpack.c.b16 %v2024, %v2016
        %v2129 = vpack.c.b16 %v2025, %v2017
        %v2130 = vpack.c.b16 %v2026, %v2018
        %v2131 = vpack.c.b16 %v2027, %v2019
        %v2132 = vpack.c.b16 %v2028, %v2020
        %v2133 = vpack.c.b16 %v2029, %v2021
        %v2134 = vpack.c.b16 %v2030, %v2022
        %v2135 = vpack.c.b16 %v2031, %v2023
        %v2136 = vpack.c.b16 %v2040, %v2032
        %v2137 = vpack.c.b16 %v2041, %v2033
        %v2138 = vpack.c.b16 %v2042, %v2034
        %v2139 = vpack.c.b16 %v2043, %v2035
        %v2140 = vpack.c.b16 %v2044, %v2036
        %v2141 = vpack.c.b16 %v2045, %v2037
        %v2142 = vpack.c.b16 %v2046, %v2038
        %v2143 = vpack.c.b16 %v2047, %v2039
        %v2144 = vpack.c.b16 %v2056, %v2048
        %v2145 = vpack.c.b16 %v2057, %v2049
        %v2146 = vpack.c.b16 %v2058, %v2050
        %v2147 = vpack.c.b16 %v2059, %v2051
        %v2148 = vpack.c.b16 %v2060, %v2052
        %v2149 = vpack.c.b16 %v2061, %v2053
        %v2150 = vpack.c.b16 %v2062, %v2054
        %v2151 = vpack.c.b16 %v2063, %v2055
        %v2152 = vpack.c.b16 %v2072, %v2064
        %v2153 = vpack.c.b16 %v2073, %v2065
        %v2154 = vpack.c.b16 %v2074, %v2066
        %v2155 = vpack.c.b16 %v2075, %v2067
        %v2156 = vpack.c.b16 %v2076, %v2068
        %v2157 = vpack.c.b16 %v2077, %v2069
        %v2158 = vpack.c.b16 %v2078, %v2070
        %v2159 = vpack.c.b16 %v2079, %v2071
        %v2160 = vpack.c.b16 %v2088, %v2080
        %v2161 = vpack.c.b16 %v2089, %v2081
        %v2162 = vpack.c.b16 %v2090, %v2082
        %v2163 = vpack.c.b16 %v2091, %v2083
        %v2164 = vpack.c.b16 %v2092, %v2084
        %v2165 = vpack.c.b16 %v2093, %v2085
        %v2166 = vpack.c.b16 %v2094, %v2086
        %v2167 = vpack.c.b16 %v2095, %v2087
        %v2168 = vpack.c.b16 %v2104, %v2096
        %v2169 = vpack.c.b16 %v2105, %v2097
        %v2170 = vpack.c.b16 %v2106, %v2098
        %v2171 = vpack.c.b16 %v2107, %v2099
        %v2172 = vpack.c.b16 %v2108, %v2100
        %v2173 = vpack.c.b16 %v2109, %v2101
        %v2174 = vpack.c.b16 %v2110, %v2102
        %v2175 = vpack.c.b16 %v2111, %v2103
        %2240 = vmatprep.subr.bf16.mxu0 %v2113
        %2241 = vmatpush1.bf16.msra.mxu0 %v2112
        %2242 = vmatprep.subr.bf16.mxu0 %v2121
        %2243 = vmatpush1.bf16.msra.mxu0 %v2120
        %2244 = vmatprep.subr.bf16.mxu0 %v2129
        %2245 = vmatpush1.bf16.msra.mxu0 %v2128
        %2246 = vmatprep.subr.bf16.mxu0 %v2137
        %2247 = vmatpush1.bf16.msra.mxu0 %v2136
        %2248 = vmatprep.subr.bf16.mxu0 %v2145
        %2249 = vmatpush1.bf16.msra.mxu0 %v2144
        %2250 = vmatprep.subr.bf16.mxu0 %v2153
        %2251 = vmatpush1.bf16.msra.mxu0 %v2152
        %2252 = vmatprep.subr.bf16.mxu0 %v2161
        %2253 = vmatpush1.bf16.msra.mxu0 %v2160
        %2254 = vmatprep.subr.bf16.mxu0 %v2169
        %2255 = vmatpush1.bf16.msra.mxu0 %v2168
        %2256 = vmatprep.subr.bf16.mxu0 0
        %2257 = vmatpush1.bf16.msra.mxu0 0
        %2258 = vmatprep.subr.bf16.mxu0 0
        %2259 = vmatpush1.bf16.msra.mxu0 0
        %2260 = vmatprep.subr.bf16.mxu0 0
        %2261 = vmatpush1.bf16.msra.mxu0 0
        %2262 = vmatprep.subr.bf16.mxu0 0
        %2263 = vmatpush1.bf16.msra.mxu0 0
        %2264 = vmatprep.subr.bf16.mxu0 0
        %2265 = vmatpush1.bf16.msra.mxu0 0
        %2266 = vmatprep.subr.bf16.mxu0 0
        %2267 = vmatpush1.bf16.msra.mxu0 0
        %2268 = vmatprep.subr.bf16.mxu0 0
        %2269 = vmatpush1.bf16.msra.mxu0 0
        %2270 = vmatprep.subr.bf16.mxu0 0
        %2271 = vmatpush1.bf16.msra.mxu0 0
        %2272 = vmatprep.mubr.bf16.mxu0 0
        %2273 = vmatmul.mubr.bf16.gmra.mrb[0].mxu0 %v1855
        %v2274 = vpop.f32.mrb[0].mxu0
        %v2275 = vadd.f32 0.0, %v2274
        %v2276 = vpop.f32.mrb[0].mxu0
        %v2277 = vadd.f32 0.0, %v2276
        %v2278 = vpop.f32.mrb[0].mxu0
        %v2279 = vpop.f32.mrb[0].mxu0
        %2280 = vdwg.mxu0
        %2281 = vmatprep.subr.bf16.mxu0 %v2115
        %2282 = vmatpush1.bf16.msra.mxu0 %v2114
        %2283 = vmatprep.subr.bf16.mxu0 %v2123
        %2284 = vmatpush1.bf16.msra.mxu0 %v2122
        %2285 = vmatprep.subr.bf16.mxu0 %v2131
        %2286 = vmatpush1.bf16.msra.mxu0 %v2130
        %2287 = vmatprep.subr.bf16.mxu0 %v2139
        %2288 = vmatpush1.bf16.msra.mxu0 %v2138
        %2289 = vmatprep.subr.bf16.mxu0 %v2147
        %2290 = vmatpush1.bf16.msra.mxu0 %v2146
        %2291 = vmatprep.subr.bf16.mxu0 %v2155
        %2292 = vmatpush1.bf16.msra.mxu0 %v2154
        %2293 = vmatprep.subr.bf16.mxu0 %v2163
        %2294 = vmatpush1.bf16.msra.mxu0 %v2162
        %2295 = vmatprep.subr.bf16.mxu0 %v2171
        %2296 = vmatpush1.bf16.msra.mxu0 %v2170
        %2297 = vmatprep.subr.bf16.mxu0 0
        %2298 = vmatpush1.bf16.msra.mxu0 0
        %2299 = vmatprep.subr.bf16.mxu0 0
        %2300 = vmatpush1.bf16.msra.mxu0 0
        %2301 = vmatprep.subr.bf16.mxu0 0
        %2302 = vmatpush1.bf16.msra.mxu0 0
        %2303 = vmatprep.subr.bf16.mxu0 0
        %2304 = vmatpush1.bf16.msra.mxu0 0
        %2305 = vmatprep.subr.bf16.mxu0 0
        %2306 = vmatpush1.bf16.msra.mxu0 0
        %2307 = vmatprep.subr.bf16.mxu0 0
        %2308 = vmatpush1.bf16.msra.mxu0 0
        %2309 = vmatprep.subr.bf16.mxu0 0
        %2310 = vmatpush1.bf16.msra.mxu0 0
        %2311 = vmatprep.subr.bf16.mxu0 0
        %2312 = vmatpush1.bf16.msra.mxu0 0
        %2313 = vmatprep.mubr.bf16.mxu0 0
        %2314 = vmatmul.mubr.bf16.gmra.mrb[0].mxu0 %v1855
        %v2315 = vpop.f32.mrb[0].mxu0
        %v2316 = vadd.f32 0.0, %v2315
        %v2317 = vpop.f32.mrb[0].mxu0
        %v2318 = vadd.f32 0.0, %v2317
        %v2319 = vpop.f32.mrb[0].mxu0
        %v2320 = vpop.f32.mrb[0].mxu0
        %2321 = vdwg.mxu0
        %2322 = vmatprep.subr.bf16.mxu0 %v2117
        %2323 = vmatpush1.bf16.msra.mxu0 %v2116
        %2324 = vmatprep.subr.bf16.mxu0 %v2125
        %2325 = vmatpush1.bf16.msra.mxu0 %v2124
        %2326 = vmatprep.subr.bf16.mxu0 %v2133
        %2327 = vmatpush1.bf16.msra.mxu0 %v2132
        %2328 = vmatprep.subr.bf16.mxu0 %v2141
        %2329 = vmatpush1.bf16.msra.mxu0 %v2140
        %2330 = vmatprep.subr.bf16.mxu0 %v2149
        %2331 = vmatpush1.bf16.msra.mxu0 %v2148
        %2332 = vmatprep.subr.bf16.mxu0 %v2157
        %2333 = vmatpush1.bf16.msra.mxu0 %v2156
        %2334 = vmatprep.subr.bf16.mxu0 %v2165
        %2335 = vmatpush1.bf16.msra.mxu0 %v2164
        %2336 = vmatprep.subr.bf16.mxu0 %v2173
        %2337 = vmatpush1.bf16.msra.mxu0 %v2172
        %2338 = vmatprep.subr.bf16.mxu0 0
        %2339 = vmatpush1.bf16.msra.mxu0 0
        %2340 = vmatprep.subr.bf16.mxu0 0
        %2341 = vmatpush1.bf16.msra.mxu0 0
        %2342 = vmatprep.subr.bf16.mxu0 0
        %2343 = vmatpush1.bf16.msra.mxu0 0
        %2344 = vmatprep.subr.bf16.mxu0 0
        %2345 = vmatpush1.bf16.msra.mxu0 0
        %2346 = vmatprep.subr.bf16.mxu0 0
        %2347 = vmatpush1.bf16.msra.mxu0 0
        %2348 = vmatprep.subr.bf16.mxu0 0
        %2349 = vmatpush1.bf16.msra.mxu0 0
        %2350 = vmatprep.subr.bf16.mxu0 0
        %2351 = vmatpush1.bf16.msra.mxu0 0
        %2352 = vmatprep.subr.bf16.mxu0 0
        %2353 = vmatpush1.bf16.msra.mxu0 0
        %2354 = vmatprep.mubr.bf16.mxu0 0
        %2355 = vmatmul.mubr.bf16.gmra.mrb[0].mxu0 %v1855
        %v2356 = vpop.f32.mrb[0].mxu0
        %v2357 = vadd.f32 0.0, %v2356
        %v2358 = vpop.f32.mrb[0].mxu0
        %v2359 = vadd.f32 0.0, %v2358
        %v2360 = vpop.f32.mrb[0].mxu0
        %v2361 = vpop.f32.mrb[0].mxu0
        %2362 = vdwg.mxu0
        %2363 = vmatprep.subr.bf16.mxu0 %v2119
        %2364 = vmatpush1.bf16.msra.mxu0 %v2118
        %2365 = vmatprep.subr.bf16.mxu0 %v2127
        %2366 = vmatpush1.bf16.msra.mxu0 %v2126
        %2367 = vmatprep.subr.bf16.mxu0 %v2135
        %2368 = vmatpush1.bf16.msra.mxu0 %v2134
        %2369 = vmatprep.subr.bf16.mxu0 %v2143
        %2370 = vmatpush1.bf16.msra.mxu0 %v2142
        %2371 = vmatprep.subr.bf16.mxu0 %v2151
        %2372 = vmatpush1.bf16.msra.mxu0 %v2150
        %2373 = vmatprep.subr.bf16.mxu0 %v2159
        %2374 = vmatpush1.bf16.msra.mxu0 %v2158
        %2375 = vmatprep.subr.bf16.mxu0 %v2167
        %2376 = vmatpush1.bf16.msra.mxu0 %v2166
        %2377 = vmatprep.subr.bf16.mxu0 %v2175
        %2378 = vmatpush1.bf16.msra.mxu0 %v2174
        %2379 = vmatprep.subr.bf16.mxu0 0
        %2380 = vmatpush1.bf16.msra.mxu0 0
        %2381 = vmatprep.subr.bf16.mxu0 0
        %2382 = vmatpush1.bf16.msra.mxu0 0
        %2383 = vmatprep.subr.bf16.mxu0 0
        %2384 = vmatpush1.bf16.msra.mxu0 0
        %2385 = vmatprep.subr.bf16.mxu0 0
        %2386 = vmatpush1.bf16.msra.mxu0 0
        %2387 = vmatprep.subr.bf16.mxu0 0
        %2388 = vmatpush1.bf16.msra.mxu0 0
        %2389 = vmatprep.subr.bf16.mxu0 0
        %2390 = vmatpush1.bf16.msra.mxu0 0
        %2391 = vmatprep.subr.bf16.mxu0 0
        %2392 = vmatpush1.bf16.msra.mxu0 0
        %2393 = vmatprep.subr.bf16.mxu0 0
        %2394 = vmatpush1.bf16.msra.mxu0 0
        %2395 = vmatprep.mubr.bf16.mxu0 0
        %2396 = vmatmul.mubr.bf16.gmra.mrb[0].mxu0 %v1855
        %v2397 = vpop.f32.mrb[0].mxu0
        %v2398 = vadd.f32 0.0, %v2397
        %v2399 = vpop.f32.mrb[0].mxu0
        %v2400 = vadd.f32 0.0, %v2399
        %v2401 = vpop.f32.mrb[0].mxu0
        %v2402 = vpop.f32.mrb[0].mxu0
        %2403 = vdwg.mxu0
        %v2412 = vcombine.low %v2275, %v2277
        %v2413 = vcombine.low %v2316, %v2318
        %v2415 = vunpack.c.l.s4 1983009808
        %v2416 = vunpack.c.0.s8 %v2415
        %v2417 = vlaneseq
        %v2418 = vshrl.u32 %v2417, 7
        %v2419 = vsub.s32 %v2416, %v2418
        %v2420 = vrot.slane %v2412, %v2419
        %v2422 = vunpack.c.l.s4 1983009808
        %v2423 = vunpack.c.0.s8 %v2422
        %v2424 = vlaneseq
        %v2425 = vshrl.u32 %v2424, 7
        %v2426 = vsub.s32 %v2423, %v2425
        %v2427 = vrot.slane %v2413, %v2426
        %v2428 = vcombine.low %v2420, %v2427
        %v2429 = vcombine.low %v2357, %v2359
        %v2430 = vcombine.low %v2398, %v2400
        %v2432 = vunpack.c.l.s4 1983009808
        %v2433 = vunpack.c.0.s8 %v2432
        %v2434 = vlaneseq
        %v2435 = vshrl.u32 %v2434, 7
        %v2436 = vsub.s32 %v2433, %v2435
        %v2437 = vrot.slane %v2429, %v2436
        %v2439 = vunpack.c.l.s4 1983009808
        %v2440 = vunpack.c.0.s8 %v2439
        %v2441 = vlaneseq
        %v2442 = vshrl.u32 %v2441, 7
        %v2443 = vsub.s32 %v2440, %v2442
        %v2444 = vrot.slane %v2430, %v2443
        %v2445 = vcombine.low %v2437, %v2444
        %v2448 = vadd.f32 %v1853, %v2428
        %v2449 = vadd.f32 %v1854, %v2445
        %2450 = vst [vmem:[#allocation2] sm:$0xff] %v2448
        %2451 = vst [vmem:[#allocation2 + $0x8] sm:$0xff] %v2449
        %p2452 = scmp.eq.s32.totalorder %s22, 7
        // Predicated region
        $region106: #{crater_forward.7} parent=92 // pred_check
          %p2453 = pneg %p2452
        $region107: #{crater_forward.7} parent=92 // pred_check_branch
          %2455 = sbr.rel (%p2453) target = $region109
        $region108: #{crater_forward.7} parent=92 // pred_region
          %v2456 = vld [vmem:[#allocation2] sm:$0xff]
          %v2457 = vld [vmem:[#allocation2 + $0x8] sm:$0xff]
          %v2458 = vld [vmem:[%s4] sm:$0xff]
          %v2460 = vlaneseq
          %v2461 = vshrl.u32 %v2460, 7
          %v2462 = vsub.s32 0, %v2461
          %v2463 = vrot.slane %v2458, %v2462
          %v2464 = vlaneseq
          %v2465 = vshrl.u32 %v2464, 7
          %v2466 = vsub.s32 1, %v2465
          %v2467 = vrot.slane %v2458, %v2466
          %v2468 = vlaneseq
          %v2469 = vshrl.u32 %v2468, 7
          %v2470 = vsub.s32 2, %v2469
          %v2471 = vrot.slane %v2458, %v2470
          %v2472 = vlaneseq
          %v2473 = vshrl.u32 %v2472, 7
          %v2474 = vsub.s32 3, %v2473
          %v2475 = vrot.slane %v2458, %v2474
          %v2476 = vlaneseq
          %v2477 = vshrl.u32 %v2476, 7
          %v2478 = vsub.s32 4, %v2477
          %v2479 = vrot.slane %v2458, %v2478
          %v2480 = vlaneseq
          %v2481 = vshrl.u32 %v2480, 7
          %v2482 = vsub.s32 5, %v2481
          %v2483 = vrot.slane %v2458, %v2482
          %v2484 = vlaneseq
          %v2485 = vshrl.u32 %v2484, 7
          %v2486 = vsub.s32 6, %v2485
          %v2487 = vrot.slane %v2458, %v2486
          %v2488 = vlaneseq
          %v2489 = vshrl.u32 %v2488, 7
          %v2490 = vsub.s32 7, %v2489
          %v2491 = vrot.slane %v2458, %v2490
          %v2492 = vcombine.low %v2463, %v2467
          %v2493 = vcombine.low %v2471, %v2475
          %v2495 = vunpack.c.l.s4 1983009808
          %v2496 = vunpack.c.0.s8 %v2495
          %v2497 = vlaneseq
          %v2498 = vshrl.u32 %v2497, 7
          %v2499 = vsub.s32 %v2496, %v2498
          %v2500 = vrot.slane %v2492, %v2499
          %v2502 = vunpack.c.l.s4 1983009808
          %v2503 = vunpack.c.0.s8 %v2502
          %v2504 = vlaneseq
          %v2505 = vshrl.u32 %v2504, 7
          %v2506 = vsub.s32 %v2503, %v2505
          %v2507 = vrot.slane %v2493, %v2506
          %v2508 = vcombine.low %v2500, %v2507
          %v2509 = vcombine.low %v2479, %v2483
          %v2510 = vcombine.low %v2487, %v2491
          %v2512 = vunpack.c.l.s4 1983009808
          %v2513 = vunpack.c.0.s8 %v2512
          %v2514 = vlaneseq
          %v2515 = vshrl.u32 %v2514, 7
          %v2516 = vsub.s32 %v2513, %v2515
          %v2517 = vrot.slane %v2509, %v2516
          %v2519 = vunpack.c.l.s4 1983009808
          %v2520 = vunpack.c.0.s8 %v2519
          %v2521 = vlaneseq
          %v2522 = vshrl.u32 %v2521, 7
          %v2523 = vsub.s32 %v2520, %v2522
          %v2524 = vrot.slane %v2510, %v2523
          %v2525 = vcombine.low %v2517, %v2524
          %v2528 = vadd.f32 %v2456, %v2508
          %v2529 = vadd.f32 %v2457, %v2525
          %v2530 = vmax.f32 %v2528, 0.0
          %v2531 = vmax.f32 %v2529, 0.0
          %v2534 = vcombine.high %v2530, %v2530
          %v2536 = vunpack.c.l.s4 1983009808
          %v2537 = vunpack.c.0.s8 %v2536
          %v2538 = vlaneseq
          %v2539 = vshrl.u32 %v2538, 7
          %v2540 = vsub.s32 %v2537, %v2539
          %v2541 = vrot.slane %v2530, %v2540
          %v2543 = vunpack.c.l.s4 1983009808
          %v2544 = vunpack.c.0.s8 %v2543
          %v2545 = vlaneseq
          %v2546 = vshrl.u32 %v2545, 7
          %v2547 = vsub.s32 %v2544, %v2546
          %v2548 = vrot.slane %v2534, %v2547
          %v2549 = vcombine.high %v2541, %v2541
          %v2550 = vcombine.high %v2548, %v2548
          %v2551 = vcombine.high %v2531, %v2531
          %v2553 = vunpack.c.l.s4 1983009808
          %v2554 = vunpack.c.0.s8 %v2553
          %v2555 = vlaneseq
          %v2556 = vshrl.u32 %v2555, 7
          %v2557 = vsub.s32 %v2554, %v2556
          %v2558 = vrot.slane %v2531, %v2557
          %v2560 = vunpack.c.l.s4 1983009808
          %v2561 = vunpack.c.0.s8 %v2560
          %v2562 = vlaneseq
          %v2563 = vshrl.u32 %v2562, 7
          %v2564 = vsub.s32 %v2561, %v2563
          %v2565 = vrot.slane %v2551, %v2564
          %v2566 = vcombine.high %v2558, %v2558
          %v2567 = vcombine.high %v2565, %v2565
          %v2576 = vpack.c.bf16 %v2541, %v2541
          %v2577 = vpack.c.bf16 %v2549, %v2549
          %v2578 = vpack.c.bf16 %v2548, %v2548
          %v2579 = vpack.c.bf16 %v2550, %v2550
          %v2580 = vpack.c.bf16 %v2558, %v2558
          %v2581 = vpack.c.bf16 %v2566, %v2566
          %v2582 = vpack.c.bf16 %v2565, %v2565
          %v2583 = vpack.c.bf16 %v2567, %v2567
          %v2584 = vld [vmem:[#allocation4] sm:$0xff]
          %v2585 = vld [vmem:[#allocation4 + $0x8] sm:$0xff]
          %v2586 = vld [vmem:[#allocation4 + $0x10] sm:$0xff]
          %v2587 = vld [vmem:[#allocation4 + $0x18] sm:$0xff]
          %v2588 = vld [vmem:[#allocation4 + $0x20] sm:$0xff]
          %v2589 = vld [vmem:[#allocation4 + $0x28] sm:$0xff]
          %v2590 = vld [vmem:[#allocation4 + $0x30] sm:$0xff]
          %v2591 = vld [vmem:[#allocation4 + $0x38] sm:$0xff]
          %v2592 = vld [vmem:[#allocation4 + $0x40] sm:$0xff]
          %v2593 = vld [vmem:[#allocation4 + $0x48] sm:$0xff]
          %v2594 = vld [vmem:[#allocation4 + $0x50] sm:$0xff]
          %v2595 = vld [vmem:[#allocation4 + $0x58] sm:$0xff]
          %v2596 = vld [vmem:[#allocation4 + $0x60] sm:$0xff]
          %v2597 = vld [vmem:[#allocation4 + $0x68] sm:$0xff]
          %v2598 = vld [vmem:[#allocation4 + $0x70] sm:$0xff]
          %v2599 = vld [vmem:[#allocation4 + $0x78] sm:$0xff]
          %v2600 = vld [vmem:[#allocation4 + $0x80] sm:$0xff]
          %v2601 = vld [vmem:[#allocation4 + $0x88] sm:$0xff]
          %v2602 = vld [vmem:[#allocation4 + $0x90] sm:$0xff]
          %v2603 = vld [vmem:[#allocation4 + $0x98] sm:$0xff]
          %v2604 = vld [vmem:[#allocation4 + $0xa0] sm:$0xff]
          %v2605 = vld [vmem:[#allocation4 + $0xa8] sm:$0xff]
          %v2606 = vld [vmem:[#allocation4 + $0xb0] sm:$0xff]
          %v2607 = vld [vmem:[#allocation4 + $0xb8] sm:$0xff]
          %v2608 = vld [vmem:[#allocation4 + $0xc0] sm:$0xff]
          %v2609 = vld [vmem:[#allocation4 + $0xc8] sm:$0xff]
          %v2610 = vld [vmem:[#allocation4 + $0xd0] sm:$0xff]
          %v2611 = vld [vmem:[#allocation4 + $0xd8] sm:$0xff]
          %v2612 = vld [vmem:[#allocation4 + $0xe0] sm:$0xff]
          %v2613 = vld [vmem:[#allocation4 + $0xe8] sm:$0xff]
          %v2614 = vld [vmem:[#allocation4 + $0xf0] sm:$0xff]
          %v2615 = vld [vmem:[#allocation4 + $0xf8] sm:$0xff]
          %v2616 = vld [vmem:[#allocation4 + $0x100] sm:$0xff]
          %v2617 = vld [vmem:[#allocation4 + $0x108] sm:$0xff]
          %v2618 = vld [vmem:[#allocation4 + $0x110] sm:$0xff]
          %v2619 = vld [vmem:[#allocation4 + $0x118] sm:$0xff]
          %v2620 = vld [vmem:[#allocation4 + $0x120] sm:$0xff]
          %v2621 = vld [vmem:[#allocation4 + $0x128] sm:$0xff]
          %v2622 = vld [vmem:[#allocation4 + $0x130] sm:$0xff]
          %v2623 = vld [vmem:[#allocation4 + $0x138] sm:$0xff]
          %v2624 = vld [vmem:[#allocation4 + $0x140] sm:$0xff]
          %v2625 = vld [vmem:[#allocation4 + $0x148] sm:$0xff]
          %v2626 = vld [vmem:[#allocation4 + $0x150] sm:$0xff]
          %v2627 = vld [vmem:[#allocation4 + $0x158] sm:$0xff]
          %v2628 = vld [vmem:[#allocation4 + $0x160] sm:$0xff]
          %v2629 = vld [vmem:[#allocation4 + $0x168] sm:$0xff]
          %v2630 = vld [vmem:[#allocation4 + $0x170] sm:$0xff]
          %v2631 = vld [vmem:[#allocation4 + $0x178] sm:$0xff]
          %v2632 = vld [vmem:[#allocation4 + $0x180] sm:$0xff]
          %v2633 = vld [vmem:[#allocation4 + $0x188] sm:$0xff]
          %v2634 = vld [vmem:[#allocation4 + $0x190] sm:$0xff]
          %v2635 = vld [vmem:[#allocation4 + $0x198] sm:$0xff]
          %v2636 = vld [vmem:[#allocation4 + $0x1a0] sm:$0xff]
          %v2637 = vld [vmem:[#allocation4 + $0x1a8] sm:$0xff]
          %v2638 = vld [vmem:[#allocation4 + $0x1b0] sm:$0xff]
          %v2639 = vld [vmem:[#allocation4 + $0x1b8] sm:$0xff]
          %v2640 = vld [vmem:[#allocation4 + $0x1c0] sm:$0xff]
          %v2641 = vld [vmem:[#allocation4 + $0x1c8] sm:$0xff]
          %v2642 = vld [vmem:[#allocation4 + $0x1d0] sm:$0xff]
          %v2643 = vld [vmem:[#allocation4 + $0x1d8] sm:$0xff]
          %v2644 = vld [vmem:[#allocation4 + $0x1e0] sm:$0xff]
          %v2645 = vld [vmem:[#allocation4 + $0x1e8] sm:$0xff]
          %v2646 = vld [vmem:[#allocation4 + $0x1f0] sm:$0xff]
          %v2647 = vld [vmem:[#allocation4 + $0x1f8] sm:$0xff]
          %v2648 = vld [vmem:[#allocation4 + $0x200] sm:$0xff]
          %v2649 = vld [vmem:[#allocation4 + $0x208] sm:$0xff]
          %v2650 = vld [vmem:[#allocation4 + $0x210] sm:$0xff]
          %v2651 = vld [vmem:[#allocation4 + $0x218] sm:$0xff]
          %v2652 = vld [vmem:[#allocation4 + $0x220] sm:$0xff]
          %v2653 = vld [vmem:[#allocation4 + $0x228] sm:$0xff]
          %v2654 = vld [vmem:[#allocation4 + $0x230] sm:$0xff]
          %v2655 = vld [vmem:[#allocation4 + $0x238] sm:$0xff]
          %v2656 = vld [vmem:[#allocation4 + $0x240] sm:$0xff]
          %v2657 = vld [vmem:[#allocation4 + $0x248] sm:$0xff]
          %v2658 = vld [vmem:[#allocation4 + $0x250] sm:$0xff]
          %v2659 = vld [vmem:[#allocation4 + $0x258] sm:$0xff]
          %v2660 = vld [vmem:[#allocation4 + $0x260] sm:$0xff]
          %v2661 = vld [vmem:[#allocation4 + $0x268] sm:$0xff]
          %v2662 = vld [vmem:[#allocation4 + $0x270] sm:$0xff]
          %v2663 = vld [vmem:[#allocation4 + $0x278] sm:$0xff]
          %v2664 = vld [vmem:[#allocation4 + $0x280] sm:$0xff]
          %v2665 = vld [vmem:[#allocation4 + $0x288] sm:$0xff]
          %v2666 = vld [vmem:[#allocation4 + $0x290] sm:$0xff]
          %v2667 = vld [vmem:[#allocation4 + $0x298] sm:$0xff]
          %v2668 = vld [vmem:[#allocation4 + $0x2a0] sm:$0xff]
          %v2669 = vld [vmem:[#allocation4 + $0x2a8] sm:$0xff]
          %v2670 = vld [vmem:[#allocation4 + $0x2b0] sm:$0xff]
          %v2671 = vld [vmem:[#allocation4 + $0x2b8] sm:$0xff]
          %v2672 = vld [vmem:[#allocation4 + $0x2c0] sm:$0xff]
          %v2673 = vld [vmem:[#allocation4 + $0x2c8] sm:$0xff]
          %v2674 = vld [vmem:[#allocation4 + $0x2d0] sm:$0xff]
          %v2675 = vld [vmem:[#allocation4 + $0x2d8] sm:$0xff]
          %v2676 = vld [vmem:[#allocation4 + $0x2e0] sm:$0xff]
          %v2677 = vld [vmem:[#allocation4 + $0x2e8] sm:$0xff]
          %v2678 = vld [vmem:[#allocation4 + $0x2f0] sm:$0xff]
          %v2679 = vld [vmem:[#allocation4 + $0x2f8] sm:$0xff]
          %v2680 = vld [vmem:[#allocation4 + $0x300] sm:$0xff]
          %v2681 = vld [vmem:[#allocation4 + $0x308] sm:$0xff]
          %v2682 = vld [vmem:[#allocation4 + $0x310] sm:$0xff]
          %v2683 = vld [vmem:[#allocation4 + $0x318] sm:$0xff]
          %v2684 = vld [vmem:[#allocation4 + $0x320] sm:$0xff]
          %v2685 = vld [vmem:[#allocation4 + $0x328] sm:$0xff]
          %v2686 = vld [vmem:[#allocation4 + $0x330] sm:$0xff]
          %v2687 = vld [vmem:[#allocation4 + $0x338] sm:$0xff]
          %v2688 = vld [vmem:[#allocation4 + $0x340] sm:$0xff]
          %v2689 = vld [vmem:[#allocation4 + $0x348] sm:$0xff]
          %v2690 = vld [vmem:[#allocation4 + $0x350] sm:$0xff]
          %v2691 = vld [vmem:[#allocation4 + $0x358] sm:$0xff]
          %v2692 = vld [vmem:[#allocation4 + $0x360] sm:$0xff]
          %v2693 = vld [vmem:[#allocation4 + $0x368] sm:$0xff]
          %v2694 = vld [vmem:[#allocation4 + $0x370] sm:$0xff]
          %v2695 = vld [vmem:[#allocation4 + $0x378] sm:$0xff]
          %v2696 = vld [vmem:[#allocation4 + $0x380] sm:$0xff]
          %v2697 = vld [vmem:[#allocation4 + $0x388] sm:$0xff]
          %v2698 = vld [vmem:[#allocation4 + $0x390] sm:$0xff]
          %v2699 = vld [vmem:[#allocation4 + $0x398] sm:$0xff]
          %v2700 = vld [vmem:[#allocation4 + $0x3a0] sm:$0xff]
          %v2701 = vld [vmem:[#allocation4 + $0x3a8] sm:$0xff]
          %v2702 = vld [vmem:[#allocation4 + $0x3b0] sm:$0xff]
          %v2703 = vld [vmem:[#allocation4 + $0x3b8] sm:$0xff]
          %v2704 = vld [vmem:[#allocation4 + $0x3c0] sm:$0xff]
          %v2705 = vld [vmem:[#allocation4 + $0x3c8] sm:$0xff]
          %v2706 = vld [vmem:[#allocation4 + $0x3d0] sm:$0xff]
          %v2707 = vld [vmem:[#allocation4 + $0x3d8] sm:$0xff]
          %v2708 = vld [vmem:[#allocation4 + $0x3e0] sm:$0xff]
          %v2709 = vld [vmem:[#allocation4 + $0x3e8] sm:$0xff]
          %v2710 = vld [vmem:[#allocation4 + $0x3f0] sm:$0xff]
          %v2711 = vld [vmem:[#allocation4 + $0x3f8] sm:$0xff]
          %v2712 = vld [vmem:[#allocation4 + $0x400] sm:$0xff]
          %v2713 = vld [vmem:[#allocation4 + $0x408] sm:$0xff]
          %v2714 = vld [vmem:[#allocation4 + $0x410] sm:$0xff]
          %v2715 = vld [vmem:[#allocation4 + $0x418] sm:$0xff]
          %v2716 = vld [vmem:[#allocation4 + $0x420] sm:$0xff]
          %v2717 = vld [vmem:[#allocation4 + $0x428] sm:$0xff]
          %v2718 = vld [vmem:[#allocation4 + $0x430] sm:$0xff]
          %v2719 = vld [vmem:[#allocation4 + $0x438] sm:$0xff]
          %v2720 = vld [vmem:[#allocation4 + $0x440] sm:$0xff]
          %v2721 = vld [vmem:[#allocation4 + $0x448] sm:$0xff]
          %v2722 = vld [vmem:[#allocation4 + $0x450] sm:$0xff]
          %v2723 = vld [vmem:[#allocation4 + $0x458] sm:$0xff]
          %v2724 = vld [vmem:[#allocation4 + $0x460] sm:$0xff]
          %v2725 = vld [vmem:[#allocation4 + $0x468] sm:$0xff]
          %v2726 = vld [vmem:[#allocation4 + $0x470] sm:$0xff]
          %v2727 = vld [vmem:[#allocation4 + $0x478] sm:$0xff]
          %v2728 = vld [vmem:[#allocation4 + $0x480] sm:$0xff]
          %v2729 = vld [vmem:[#allocation4 + $0x488] sm:$0xff]
          %v2730 = vld [vmem:[#allocation4 + $0x490] sm:$0xff]
          %v2731 = vld [vmem:[#allocation4 + $0x498] sm:$0xff]
          %v2732 = vld [vmem:[#allocation4 + $0x4a0] sm:$0xff]
          %v2733 = vld [vmem:[#allocation4 + $0x4a8] sm:$0xff]
          %v2734 = vld [vmem:[#allocation4 + $0x4b0] sm:$0xff]
          %v2735 = vld [vmem:[#allocation4 + $0x4b8] sm:$0xff]
          %v2736 = vld [vmem:[#allocation4 + $0x4c0] sm:$0xff]
          %v2737 = vld [vmem:[#allocation4 + $0x4c8] sm:$0xff]
          %v2738 = vld [vmem:[#allocation4 + $0x4d0] sm:$0xff]
          %v2739 = vld [vmem:[#allocation4 + $0x4d8] sm:$0xff]
          %v2740 = vld [vmem:[#allocation4 + $0x4e0] sm:$0xff]
          %v2741 = vld [vmem:[#allocation4 + $0x4e8] sm:$0xff]
          %v2742 = vld [vmem:[#allocation4 + $0x4f0] sm:$0xff]
          %v2743 = vld [vmem:[#allocation4 + $0x4f8] sm:$0xff]
          %v2744 = vld [vmem:[#allocation4 + $0x500] sm:$0xff]
          %v2745 = vld [vmem:[#allocation4 + $0x508] sm:$0xff]
          %v2746 = vld [vmem:[#allocation4 + $0x510] sm:$0xff]
          %v2747 = vld [vmem:[#allocation4 + $0x518] sm:$0xff]
          %v2748 = vld [vmem:[#allocation4 + $0x520] sm:$0xff]
          %v2749 = vld [vmem:[#allocation4 + $0x528] sm:$0xff]
          %v2750 = vld [vmem:[#allocation4 + $0x530] sm:$0xff]
          %v2751 = vld [vmem:[#allocation4 + $0x538] sm:$0xff]
          %v2752 = vld [vmem:[#allocation4 + $0x540] sm:$0xff]
          %v2753 = vld [vmem:[#allocation4 + $0x548] sm:$0xff]
          %v2754 = vld [vmem:[#allocation4 + $0x550] sm:$0xff]
          %v2755 = vld [vmem:[#allocation4 + $0x558] sm:$0xff]
          %v2756 = vld [vmem:[#allocation4 + $0x560] sm:$0xff]
          %v2757 = vld [vmem:[#allocation4 + $0x568] sm:$0xff]
          %v2758 = vld [vmem:[#allocation4 + $0x570] sm:$0xff]
          %v2759 = vld [vmem:[#allocation4 + $0x578] sm:$0xff]
          %v2760 = vld [vmem:[#allocation4 + $0x580] sm:$0xff]
          %v2761 = vld [vmem:[#allocation4 + $0x588] sm:$0xff]
          %v2762 = vld [vmem:[#allocation4 + $0x590] sm:$0xff]
          %v2763 = vld [vmem:[#allocation4 + $0x598] sm:$0xff]
          %v2764 = vld [vmem:[#allocation4 + $0x5a0] sm:$0xff]
          %v2765 = vld [vmem:[#allocation4 + $0x5a8] sm:$0xff]
          %v2766 = vld [vmem:[#allocation4 + $0x5b0] sm:$0xff]
          %v2767 = vld [vmem:[#allocation4 + $0x5b8] sm:$0xff]
          %v2768 = vld [vmem:[#allocation4 + $0x5c0] sm:$0xff]
          %v2769 = vld [vmem:[#allocation4 + $0x5c8] sm:$0xff]
          %v2770 = vld [vmem:[#allocation4 + $0x5d0] sm:$0xff]
          %v2771 = vld [vmem:[#allocation4 + $0x5d8] sm:$0xff]
          %v2772 = vld [vmem:[#allocation4 + $0x5e0] sm:$0xff]
          %v2773 = vld [vmem:[#allocation4 + $0x5e8] sm:$0xff]
          %v2774 = vld [vmem:[#allocation4 + $0x5f0] sm:$0xff]
          %v2775 = vld [vmem:[#allocation4 + $0x5f8] sm:$0xff]
          %v2776 = vld [vmem:[#allocation4 + $0x600] sm:$0xff]
          %v2777 = vld [vmem:[#allocation4 + $0x608] sm:$0xff]
          %v2778 = vld [vmem:[#allocation4 + $0x610] sm:$0xff]
          %v2779 = vld [vmem:[#allocation4 + $0x618] sm:$0xff]
          %v2780 = vld [vmem:[#allocation4 + $0x620] sm:$0xff]
          %v2781 = vld [vmem:[#allocation4 + $0x628] sm:$0xff]
          %v2782 = vld [vmem:[#allocation4 + $0x630] sm:$0xff]
          %v2783 = vld [vmem:[#allocation4 + $0x638] sm:$0xff]
          %v2784 = vld [vmem:[#allocation4 + $0x640] sm:$0xff]
          %v2785 = vld [vmem:[#allocation4 + $0x648] sm:$0xff]
          %v2786 = vld [vmem:[#allocation4 + $0x650] sm:$0xff]
          %v2787 = vld [vmem:[#allocation4 + $0x658] sm:$0xff]
          %v2788 = vld [vmem:[#allocation4 + $0x660] sm:$0xff]
          %v2789 = vld [vmem:[#allocation4 + $0x668] sm:$0xff]
          %v2790 = vld [vmem:[#allocation4 + $0x670] sm:$0xff]
          %v2791 = vld [vmem:[#allocation4 + $0x678] sm:$0xff]
          %v2792 = vld [vmem:[#allocation4 + $0x680] sm:$0xff]
          %v2793 = vld [vmem:[#allocation4 + $0x688] sm:$0xff]
          %v2794 = vld [vmem:[#allocation4 + $0x690] sm:$0xff]
          %v2795 = vld [vmem:[#allocation4 + $0x698] sm:$0xff]
          %v2796 = vld [vmem:[#allocation4 + $0x6a0] sm:$0xff]
          %v2797 = vld [vmem:[#allocation4 + $0x6a8] sm:$0xff]
          %v2798 = vld [vmem:[#allocation4 + $0x6b0] sm:$0xff]
          %v2799 = vld [vmem:[#allocation4 + $0x6b8] sm:$0xff]
          %v2800 = vld [vmem:[#allocation4 + $0x6c0] sm:$0xff]
          %v2801 = vld [vmem:[#allocation4 + $0x6c8] sm:$0xff]
          %v2802 = vld [vmem:[#allocation4 + $0x6d0] sm:$0xff]
          %v2803 = vld [vmem:[#allocation4 + $0x6d8] sm:$0xff]
          %v2804 = vld [vmem:[#allocation4 + $0x6e0] sm:$0xff]
          %v2805 = vld [vmem:[#allocation4 + $0x6e8] sm:$0xff]
          %v2806 = vld [vmem:[#allocation4 + $0x6f0] sm:$0xff]
          %v2807 = vld [vmem:[#allocation4 + $0x6f8] sm:$0xff]
          %v2808 = vld [vmem:[#allocation4 + $0x700] sm:$0xff]
          %v2809 = vld [vmem:[#allocation4 + $0x708] sm:$0xff]
          %v2810 = vld [vmem:[#allocation4 + $0x710] sm:$0xff]
          %v2811 = vld [vmem:[#allocation4 + $0x718] sm:$0xff]
          %v2812 = vld [vmem:[#allocation4 + $0x720] sm:$0xff]
          %v2813 = vld [vmem:[#allocation4 + $0x728] sm:$0xff]
          %v2814 = vld [vmem:[#allocation4 + $0x730] sm:$0xff]
          %v2815 = vld [vmem:[#allocation4 + $0x738] sm:$0xff]
          %v2816 = vld [vmem:[#allocation4 + $0x740] sm:$0xff]
          %v2817 = vld [vmem:[#allocation4 + $0x748] sm:$0xff]
          %v2818 = vld [vmem:[#allocation4 + $0x750] sm:$0xff]
          %v2819 = vld [vmem:[#allocation4 + $0x758] sm:$0xff]
          %v2820 = vld [vmem:[#allocation4 + $0x760] sm:$0xff]
          %v2821 = vld [vmem:[#allocation4 + $0x768] sm:$0xff]
          %v2822 = vld [vmem:[#allocation4 + $0x770] sm:$0xff]
          %v2823 = vld [vmem:[#allocation4 + $0x778] sm:$0xff]
          %v2824 = vld [vmem:[#allocation4 + $0x780] sm:$0xff]
          %v2825 = vld [vmem:[#allocation4 + $0x788] sm:$0xff]
          %v2826 = vld [vmem:[#allocation4 + $0x790] sm:$0xff]
          %v2827 = vld [vmem:[#allocation4 + $0x798] sm:$0xff]
          %v2828 = vld [vmem:[#allocation4 + $0x7a0] sm:$0xff]
          %v2829 = vld [vmem:[#allocation4 + $0x7a8] sm:$0xff]
          %v2830 = vld [vmem:[#allocation4 + $0x7b0] sm:$0xff]
          %v2831 = vld [vmem:[#allocation4 + $0x7b8] sm:$0xff]
          %v2832 = vld [vmem:[#allocation4 + $0x7c0] sm:$0xff]
          %v2833 = vld [vmem:[#allocation4 + $0x7c8] sm:$0xff]
          %v2834 = vld [vmem:[#allocation4 + $0x7d0] sm:$0xff]
          %v2835 = vld [vmem:[#allocation4 + $0x7d8] sm:$0xff]
          %v2836 = vld [vmem:[#allocation4 + $0x7e0] sm:$0xff]
          %v2837 = vld [vmem:[#allocation4 + $0x7e8] sm:$0xff]
          %v2838 = vld [vmem:[#allocation4 + $0x7f0] sm:$0xff]
          %v2839 = vld [vmem:[#allocation4 + $0x7f8] sm:$0xff]
          %v2840 = vld [vmem:[#allocation4 + $0x800] sm:$0xff]
          %v2841 = vld [vmem:[#allocation4 + $0x808] sm:$0xff]
          %v2842 = vld [vmem:[#allocation4 + $0x810] sm:$0xff]
          %v2843 = vld [vmem:[#allocation4 + $0x818] sm:$0xff]
          %v2844 = vld [vmem:[#allocation4 + $0x820] sm:$0xff]
          %v2845 = vld [vmem:[#allocation4 + $0x828] sm:$0xff]
          %v2846 = vld [vmem:[#allocation4 + $0x830] sm:$0xff]
          %v2847 = vld [vmem:[#allocation4 + $0x838] sm:$0xff]
          %v2848 = vld [vmem:[#allocation4 + $0x840] sm:$0xff]
          %v2849 = vld [vmem:[#allocation4 + $0x848] sm:$0xff]
          %v2850 = vld [vmem:[#allocation4 + $0x850] sm:$0xff]
          %v2851 = vld [vmem:[#allocation4 + $0x858] sm:$0xff]
          %v2852 = vld [vmem:[#allocation4 + $0x860] sm:$0xff]
          %v2853 = vld [vmem:[#allocation4 + $0x868] sm:$0xff]
          %v2854 = vld [vmem:[#allocation4 + $0x870] sm:$0xff]
          %v2855 = vld [vmem:[#allocation4 + $0x878] sm:$0xff]
          %v2856 = vld [vmem:[#allocation4 + $0x880] sm:$0xff]
          %v2857 = vld [vmem:[#allocation4 + $0x888] sm:$0xff]
          %v2858 = vld [vmem:[#allocation4 + $0x890] sm:$0xff]
          %v2859 = vld [vmem:[#allocation4 + $0x898] sm:$0xff]
          %v2860 = vld [vmem:[#allocation4 + $0x8a0] sm:$0xff]
          %v2861 = vld [vmem:[#allocation4 + $0x8a8] sm:$0xff]
          %v2862 = vld [vmem:[#allocation4 + $0x8b0] sm:$0xff]
          %v2863 = vld [vmem:[#allocation4 + $0x8b8] sm:$0xff]
          %v2864 = vld [vmem:[#allocation4 + $0x8c0] sm:$0xff]
          %v2865 = vld [vmem:[#allocation4 + $0x8c8] sm:$0xff]
          %v2866 = vld [vmem:[#allocation4 + $0x8d0] sm:$0xff]
          %v2867 = vld [vmem:[#allocation4 + $0x8d8] sm:$0xff]
          %v2868 = vld [vmem:[#allocation4 + $0x8e0] sm:$0xff]
          %v2869 = vld [vmem:[#allocation4 + $0x8e8] sm:$0xff]
          %v2870 = vld [vmem:[#allocation4 + $0x8f0] sm:$0xff]
          %v2871 = vld [vmem:[#allocation4 + $0x8f8] sm:$0xff]
          %v2872 = vld [vmem:[#allocation4 + $0x900] sm:$0xff]
          %v2873 = vld [vmem:[#allocation4 + $0x908] sm:$0xff]
          %v2874 = vld [vmem:[#allocation4 + $0x910] sm:$0xff]
          %v2875 = vld [vmem:[#allocation4 + $0x918] sm:$0xff]
          %v2876 = vld [vmem:[#allocation4 + $0x920] sm:$0xff]
          %v2877 = vld [vmem:[#allocation4 + $0x928] sm:$0xff]
          %v2878 = vld [vmem:[#allocation4 + $0x930] sm:$0xff]
          %v2879 = vld [vmem:[#allocation4 + $0x938] sm:$0xff]
          %v2880 = vld [vmem:[#allocation4 + $0x940] sm:$0xff]
          %v2881 = vld [vmem:[#allocation4 + $0x948] sm:$0xff]
          %v2882 = vld [vmem:[#allocation4 + $0x950] sm:$0xff]
          %v2883 = vld [vmem:[#allocation4 + $0x958] sm:$0xff]
          %v2884 = vld [vmem:[#allocation4 + $0x960] sm:$0xff]
          %v2885 = vld [vmem:[#allocation4 + $0x968] sm:$0xff]
          %v2886 = vld [vmem:[#allocation4 + $0x970] sm:$0xff]
          %v2887 = vld [vmem:[#allocation4 + $0x978] sm:$0xff]
          %v2888 = vld [vmem:[#allocation4 + $0x980] sm:$0xff]
          %v2889 = vld [vmem:[#allocation4 + $0x988] sm:$0xff]
          %v2890 = vld [vmem:[#allocation4 + $0x990] sm:$0xff]
          %v2891 = vld [vmem:[#allocation4 + $0x998] sm:$0xff]
          %v2892 = vld [vmem:[#allocation4 + $0x9a0] sm:$0xff]
          %v2893 = vld [vmem:[#allocation4 + $0x9a8] sm:$0xff]
          %v2894 = vld [vmem:[#allocation4 + $0x9b0] sm:$0xff]
          %v2895 = vld [vmem:[#allocation4 + $0x9b8] sm:$0xff]
          %v2896 = vld [vmem:[#allocation4 + $0x9c0] sm:$0xff]
          %v2897 = vld [vmem:[#allocation4 + $0x9c8] sm:$0xff]
          %v2898 = vld [vmem:[#allocation4 + $0x9d0] sm:$0xff]
          %v2899 = vld [vmem:[#allocation4 + $0x9d8] sm:$0xff]
          %v2900 = vld [vmem:[#allocation4 + $0x9e0] sm:$0xff]
          %v2901 = vld [vmem:[#allocation4 + $0x9e8] sm:$0xff]
          %v2902 = vld [vmem:[#allocation4 + $0x9f0] sm:$0xff]
          %v2903 = vld [vmem:[#allocation4 + $0x9f8] sm:$0xff]
          %v2904 = vld [vmem:[#allocation4 + $0xa00] sm:$0xff]
          %v2905 = vld [vmem:[#allocation4 + $0xa08] sm:$0xff]
          %v2906 = vld [vmem:[#allocation4 + $0xa10] sm:$0xff]
          %v2907 = vld [vmem:[#allocation4 + $0xa18] sm:$0xff]
          %v2908 = vld [vmem:[#allocation4 + $0xa20] sm:$0xff]
          %v2909 = vld [vmem:[#allocation4 + $0xa28] sm:$0xff]
          %v2910 = vld [vmem:[#allocation4 + $0xa30] sm:$0xff]
          %v2911 = vld [vmem:[#allocation4 + $0xa38] sm:$0xff]
          %v2912 = vld [vmem:[#allocation4 + $0xa40] sm:$0xff]
          %v2913 = vld [vmem:[#allocation4 + $0xa48] sm:$0xff]
          %v2914 = vld [vmem:[#allocation4 + $0xa50] sm:$0xff]
          %v2915 = vld [vmem:[#allocation4 + $0xa58] sm:$0xff]
          %v2916 = vld [vmem:[#allocation4 + $0xa60] sm:$0xff]
          %v2917 = vld [vmem:[#allocation4 + $0xa68] sm:$0xff]
          %v2918 = vld [vmem:[#allocation4 + $0xa70] sm:$0xff]
          %v2919 = vld [vmem:[#allocation4 + $0xa78] sm:$0xff]
          %v2920 = vld [vmem:[#allocation4 + $0xa80] sm:$0xff]
          %v2921 = vld [vmem:[#allocation4 + $0xa88] sm:$0xff]
          %v2922 = vld [vmem:[#allocation4 + $0xa90] sm:$0xff]
          %v2923 = vld [vmem:[#allocation4 + $0xa98] sm:$0xff]
          %v2924 = vld [vmem:[#allocation4 + $0xaa0] sm:$0xff]
          %v2925 = vld [vmem:[#allocation4 + $0xaa8] sm:$0xff]
          %v2926 = vld [vmem:[#allocation4 + $0xab0] sm:$0xff]
          %v2927 = vld [vmem:[#allocation4 + $0xab8] sm:$0xff]
          %v2928 = vld [vmem:[#allocation4 + $0xac0] sm:$0xff]
          %v2929 = vld [vmem:[#allocation4 + $0xac8] sm:$0xff]
          %v2930 = vld [vmem:[#allocation4 + $0xad0] sm:$0xff]
          %v2931 = vld [vmem:[#allocation4 + $0xad8] sm:$0xff]
          %v2932 = vld [vmem:[#allocation4 + $0xae0] sm:$0xff]
          %v2933 = vld [vmem:[#allocation4 + $0xae8] sm:$0xff]
          %v2934 = vld [vmem:[#allocation4 + $0xaf0] sm:$0xff]
          %v2935 = vld [vmem:[#allocation4 + $0xaf8] sm:$0xff]
          %v2936 = vld [vmem:[#allocation4 + $0xb00] sm:$0xff]
          %v2937 = vld [vmem:[#allocation4 + $0xb08] sm:$0xff]
          %v2938 = vld [vmem:[#allocation4 + $0xb10] sm:$0xff]
          %v2939 = vld [vmem:[#allocation4 + $0xb18] sm:$0xff]
          %v2940 = vld [vmem:[#allocation4 + $0xb20] sm:$0xff]
          %v2941 = vld [vmem:[#allocation4 + $0xb28] sm:$0xff]
          %v2942 = vld [vmem:[#allocation4 + $0xb30] sm:$0xff]
          %v2943 = vld [vmem:[#allocation4 + $0xb38] sm:$0xff]
          %v2944 = vld [vmem:[#allocation4 + $0xb40] sm:$0xff]
          %v2945 = vld [vmem:[#allocation4 + $0xb48] sm:$0xff]
          %v2946 = vld [vmem:[#allocation4 + $0xb50] sm:$0xff]
          %v2947 = vld [vmem:[#allocation4 + $0xb58] sm:$0xff]
          %v2948 = vld [vmem:[#allocation4 + $0xb60] sm:$0xff]
          %v2949 = vld [vmem:[#allocation4 + $0xb68] sm:$0xff]
          %v2950 = vld [vmem:[#allocation4 + $0xb70] sm:$0xff]
          %v2951 = vld [vmem:[#allocation4 + $0xb78] sm:$0xff]
          %v2952 = vld [vmem:[#allocation4 + $0xb80] sm:$0xff]
          %v2953 = vld [vmem:[#allocation4 + $0xb88] sm:$0xff]
          %v2954 = vld [vmem:[#allocation4 + $0xb90] sm:$0xff]
          %v2955 = vld [vmem:[#allocation4 + $0xb98] sm:$0xff]
          %v2956 = vld [vmem:[#allocation4 + $0xba0] sm:$0xff]
          %v2957 = vld [vmem:[#allocation4 + $0xba8] sm:$0xff]
          %v2958 = vld [vmem:[#allocation4 + $0xbb0] sm:$0xff]
          %v2959 = vld [vmem:[#allocation4 + $0xbb8] sm:$0xff]
          %v2960 = vld [vmem:[#allocation4 + $0xbc0] sm:$0xff]
          %v2961 = vld [vmem:[#allocation4 + $0xbc8] sm:$0xff]
          %v2962 = vld [vmem:[#allocation4 + $0xbd0] sm:$0xff]
          %v2963 = vld [vmem:[#allocation4 + $0xbd8] sm:$0xff]
          %v2964 = vld [vmem:[#allocation4 + $0xbe0] sm:$0xff]
          %v2965 = vld [vmem:[#allocation4 + $0xbe8] sm:$0xff]
          %v2966 = vld [vmem:[#allocation4 + $0xbf0] sm:$0xff]
          %v2967 = vld [vmem:[#allocation4 + $0xbf8] sm:$0xff]
          %v2968 = vld [vmem:[#allocation4 + $0xc00] sm:$0xff]
          %v2969 = vld [vmem:[#allocation4 + $0xc08] sm:$0xff]
          %v2970 = vld [vmem:[#allocation4 + $0xc10] sm:$0xff]
          %v2971 = vld [vmem:[#allocation4 + $0xc18] sm:$0xff]
          %v2972 = vld [vmem:[#allocation4 + $0xc20] sm:$0xff]
          %v2973 = vld [vmem:[#allocation4 + $0xc28] sm:$0xff]
          %v2974 = vld [vmem:[#allocation4 + $0xc30] sm:$0xff]
          %v2975 = vld [vmem:[#allocation4 + $0xc38] sm:$0xff]
          %v2976 = vld [vmem:[#allocation4 + $0xc40] sm:$0xff]
          %v2977 = vld [vmem:[#allocation4 + $0xc48] sm:$0xff]
          %v2978 = vld [vmem:[#allocation4 + $0xc50] sm:$0xff]
          %v2979 = vld [vmem:[#allocation4 + $0xc58] sm:$0xff]
          %v2980 = vld [vmem:[#allocation4 + $0xc60] sm:$0xff]
          %v2981 = vld [vmem:[#allocation4 + $0xc68] sm:$0xff]
          %v2982 = vld [vmem:[#allocation4 + $0xc70] sm:$0xff]
          %v2983 = vld [vmem:[#allocation4 + $0xc78] sm:$0xff]
          %v2984 = vld [vmem:[#allocation4 + $0xc80] sm:$0xff]
          %v2985 = vld [vmem:[#allocation4 + $0xc88] sm:$0xff]
          %v2986 = vld [vmem:[#allocation4 + $0xc90] sm:$0xff]
          %v2987 = vld [vmem:[#allocation4 + $0xc98] sm:$0xff]
          %v2988 = vld [vmem:[#allocation4 + $0xca0] sm:$0xff]
          %v2989 = vld [vmem:[#allocation4 + $0xca8] sm:$0xff]
          %v2990 = vld [vmem:[#allocation4 + $0xcb0] sm:$0xff]
          %v2991 = vld [vmem:[#allocation4 + $0xcb8] sm:$0xff]
          %v2992 = vld [vmem:[#allocation4 + $0xcc0] sm:$0xff]
          %v2993 = vld [vmem:[#allocation4 + $0xcc8] sm:$0xff]
          %v2994 = vld [vmem:[#allocation4 + $0xcd0] sm:$0xff]
          %v2995 = vld [vmem:[#allocation4 + $0xcd8] sm:$0xff]
          %v2996 = vld [vmem:[#allocation4 + $0xce0] sm:$0xff]
          %v2997 = vld [vmem:[#allocation4 + $0xce8] sm:$0xff]
          %v2998 = vld [vmem:[#allocation4 + $0xcf0] sm:$0xff]
          %v2999 = vld [vmem:[#allocation4 + $0xcf8] sm:$0xff]
          %v3000 = vld [vmem:[#allocation4 + $0xd00] sm:$0xff]
          %v3001 = vld [vmem:[#allocation4 + $0xd08] sm:$0xff]
          %v3002 = vld [vmem:[#allocation4 + $0xd10] sm:$0xff]
          %v3003 = vld [vmem:[#allocation4 + $0xd18] sm:$0xff]
          %v3004 = vld [vmem:[#allocation4 + $0xd20] sm:$0xff]
          %v3005 = vld [vmem:[#allocation4 + $0xd28] sm:$0xff]
          %v3006 = vld [vmem:[#allocation4 + $0xd30] sm:$0xff]
          %v3007 = vld [vmem:[#allocation4 + $0xd38] sm:$0xff]
          %v3008 = vld [vmem:[#allocation4 + $0xd40] sm:$0xff]
          %v3009 = vld [vmem:[#allocation4 + $0xd48] sm:$0xff]
          %v3010 = vld [vmem:[#allocation4 + $0xd50] sm:$0xff]
          %v3011 = vld [vmem:[#allocation4 + $0xd58] sm:$0xff]
          %v3012 = vld [vmem:[#allocation4 + $0xd60] sm:$0xff]
          %v3013 = vld [vmem:[#allocation4 + $0xd68] sm:$0xff]
          %v3014 = vld [vmem:[#allocation4 + $0xd70] sm:$0xff]
          %v3015 = vld [vmem:[#allocation4 + $0xd78] sm:$0xff]
          %v3016 = vld [vmem:[#allocation4 + $0xd80] sm:$0xff]
          %v3017 = vld [vmem:[#allocation4 + $0xd88] sm:$0xff]
          %v3018 = vld [vmem:[#allocation4 + $0xd90] sm:$0xff]
          %v3019 = vld [vmem:[#allocation4 + $0xd98] sm:$0xff]
          %v3020 = vld [vmem:[#allocation4 + $0xda0] sm:$0xff]
          %v3021 = vld [vmem:[#allocation4 + $0xda8] sm:$0xff]
          %v3022 = vld [vmem:[#allocation4 + $0xdb0] sm:$0xff]
          %v3023 = vld [vmem:[#allocation4 + $0xdb8] sm:$0xff]
          %v3024 = vld [vmem:[#allocation4 + $0xdc0] sm:$0xff]
          %v3025 = vld [vmem:[#allocation4 + $0xdc8] sm:$0xff]
          %v3026 = vld [vmem:[#allocation4 + $0xdd0] sm:$0xff]
          %v3027 = vld [vmem:[#allocation4 + $0xdd8] sm:$0xff]
          %v3028 = vld [vmem:[#allocation4 + $0xde0] sm:$0xff]
          %v3029 = vld [vmem:[#allocation4 + $0xde8] sm:$0xff]
          %v3030 = vld [vmem:[#allocation4 + $0xdf0] sm:$0xff]
          %v3031 = vld [vmem:[#allocation4 + $0xdf8] sm:$0xff]
          %v3032 = vld [vmem:[#allocation4 + $0xe00] sm:$0xff]
          %v3033 = vld [vmem:[#allocation4 + $0xe08] sm:$0xff]
          %v3034 = vld [vmem:[#allocation4 + $0xe10] sm:$0xff]
          %v3035 = vld [vmem:[#allocation4 + $0xe18] sm:$0xff]
          %v3036 = vld [vmem:[#allocation4 + $0xe20] sm:$0xff]
          %v3037 = vld [vmem:[#allocation4 + $0xe28] sm:$0xff]
          %v3038 = vld [vmem:[#allocation4 + $0xe30] sm:$0xff]
          %v3039 = vld [vmem:[#allocation4 + $0xe38] sm:$0xff]
          %v3040 = vld [vmem:[#allocation4 + $0xe40] sm:$0xff]
          %v3041 = vld [vmem:[#allocation4 + $0xe48] sm:$0xff]
          %v3042 = vld [vmem:[#allocation4 + $0xe50] sm:$0xff]
          %v3043 = vld [vmem:[#allocation4 + $0xe58] sm:$0xff]
          %v3044 = vld [vmem:[#allocation4 + $0xe60] sm:$0xff]
          %v3045 = vld [vmem:[#allocation4 + $0xe68] sm:$0xff]
          %v3046 = vld [vmem:[#allocation4 + $0xe70] sm:$0xff]
          %v3047 = vld [vmem:[#allocation4 + $0xe78] sm:$0xff]
          %v3048 = vld [vmem:[#allocation4 + $0xe80] sm:$0xff]
          %v3049 = vld [vmem:[#allocation4 + $0xe88] sm:$0xff]
          %v3050 = vld [vmem:[#allocation4 + $0xe90] sm:$0xff]
          %v3051 = vld [vmem:[#allocation4 + $0xe98] sm:$0xff]
          %v3052 = vld [vmem:[#allocation4 + $0xea0] sm:$0xff]
          %v3053 = vld [vmem:[#allocation4 + $0xea8] sm:$0xff]
          %v3054 = vld [vmem:[#allocation4 + $0xeb0] sm:$0xff]
          %v3055 = vld [vmem:[#allocation4 + $0xeb8] sm:$0xff]
          %v3056 = vld [vmem:[#allocation4 + $0xec0] sm:$0xff]
          %v3057 = vld [vmem:[#allocation4 + $0xec8] sm:$0xff]
          %v3058 = vld [vmem:[#allocation4 + $0xed0] sm:$0xff]
          %v3059 = vld [vmem:[#allocation4 + $0xed8] sm:$0xff]
          %v3060 = vld [vmem:[#allocation4 + $0xee0] sm:$0xff]
          %v3061 = vld [vmem:[#allocation4 + $0xee8] sm:$0xff]
          %v3062 = vld [vmem:[#allocation4 + $0xef0] sm:$0xff]
          %v3063 = vld [vmem:[#allocation4 + $0xef8] sm:$0xff]
          %v3064 = vld [vmem:[#allocation4 + $0xf00] sm:$0xff]
          %v3065 = vld [vmem:[#allocation4 + $0xf08] sm:$0xff]
          %v3066 = vld [vmem:[#allocation4 + $0xf10] sm:$0xff]
          %v3067 = vld [vmem:[#allocation4 + $0xf18] sm:$0xff]
          %v3068 = vld [vmem:[#allocation4 + $0xf20] sm:$0xff]
          %v3069 = vld [vmem:[#allocation4 + $0xf28] sm:$0xff]
          %v3070 = vld [vmem:[#allocation4 + $0xf30] sm:$0xff]
          %v3071 = vld [vmem:[#allocation4 + $0xf38] sm:$0xff]
          %v3072 = vld [vmem:[#allocation4 + $0xf40] sm:$0xff]
          %v3073 = vld [vmem:[#allocation4 + $0xf48] sm:$0xff]
          %v3074 = vld [vmem:[#allocation4 + $0xf50] sm:$0xff]
          %v3075 = vld [vmem:[#allocation4 + $0xf58] sm:$0xff]
          %v3076 = vld [vmem:[#allocation4 + $0xf60] sm:$0xff]
          %v3077 = vld [vmem:[#allocation4 + $0xf68] sm:$0xff]
          %v3078 = vld [vmem:[#allocation4 + $0xf70] sm:$0xff]
          %v3079 = vld [vmem:[#allocation4 + $0xf78] sm:$0xff]
          %v3080 = vld [vmem:[#allocation4 + $0xf80] sm:$0xff]
          %v3081 = vld [vmem:[#allocation4 + $0xf88] sm:$0xff]
          %v3082 = vld [vmem:[#allocation4 + $0xf90] sm:$0xff]
          %v3083 = vld [vmem:[#allocation4 + $0xf98] sm:$0xff]
          %v3084 = vld [vmem:[#allocation4 + $0xfa0] sm:$0xff]
          %v3085 = vld [vmem:[#allocation4 + $0xfa8] sm:$0xff]
          %v3086 = vld [vmem:[#allocation4 + $0xfb0] sm:$0xff]
          %v3087 = vld [vmem:[#allocation4 + $0xfb8] sm:$0xff]
          %v3088 = vld [vmem:[#allocation4 + $0xfc0] sm:$0xff]
          %v3089 = vld [vmem:[#allocation4 + $0xfc8] sm:$0xff]
          %v3090 = vld [vmem:[#allocation4 + $0xfd0] sm:$0xff]
          %v3091 = vld [vmem:[#allocation4 + $0xfd8] sm:$0xff]
          %v3092 = vld [vmem:[#allocation4 + $0xfe0] sm:$0xff]
          %v3093 = vld [vmem:[#allocation4 + $0xfe8] sm:$0xff]
          %v3094 = vld [vmem:[#allocation4 + $0xff0] sm:$0xff]
          %v3095 = vld [vmem:[#allocation4 + $0xff8] sm:$0xff]
          %v3096 = vld [vmem:[%s6] sm:$0xff]
          %v3098 = vlaneseq
          %v3099 = vshrl.u32 %v3098, 7
          %v3100 = vsub.s32 0, %v3099
          %v3101 = vrot.slane %v3096, %v3100
          %v3102 = vlaneseq
          %v3103 = vshrl.u32 %v3102, 7
          %v3104 = vsub.s32 1, %v3103
          %v3105 = vrot.slane %v3096, %v3104
          %v3106 = vlaneseq
          %v3107 = vshrl.u32 %v3106, 7
          %v3108 = vsub.s32 2, %v3107
          %v3109 = vrot.slane %v3096, %v3108
          %v3110 = vlaneseq
          %v3111 = vshrl.u32 %v3110, 7
          %v3112 = vsub.s32 3, %v3111
          %v3113 = vrot.slane %v3096, %v3112
          %v3114 = vlaneseq
          %v3115 = vshrl.u32 %v3114, 7
          %v3116 = vsub.s32 4, %v3115
          %v3117 = vrot.slane %v3096, %v3116
          %v3118 = vlaneseq
          %v3119 = vshrl.u32 %v3118, 7
          %v3120 = vsub.s32 5, %v3119
          %v3121 = vrot.slane %v3096, %v3120
          %v3122 = vlaneseq
          %v3123 = vshrl.u32 %v3122, 7
          %v3124 = vsub.s32 6, %v3123
          %v3125 = vrot.slane %v3096, %v3124
          %v3126 = vlaneseq
          %v3127 = vshrl.u32 %v3126, 7
          %v3128 = vsub.s32 7, %v3127
          %v3129 = vrot.slane %v3096, %v3128
          %v3650 = vunpack.c.l.b16 %v2584
          %v3651 = vunpack.c.h.b16 %v2584
          %v3652 = vunpack.c.l.b16 %v2585
          %v3653 = vunpack.c.h.b16 %v2585
          %v3654 = vunpack.c.l.b16 %v2586
          %v3655 = vunpack.c.h.b16 %v2586
          %v3656 = vunpack.c.l.b16 %v2587
          %v3657 = vunpack.c.h.b16 %v2587
          %v3658 = vunpack.c.l.b16 %v2588
          %v3659 = vunpack.c.h.b16 %v2588
          %v3660 = vunpack.c.l.b16 %v2589
          %v3661 = vunpack.c.h.b16 %v2589
          %v3662 = vunpack.c.l.b16 %v2590
          %v3663 = vunpack.c.h.b16 %v2590
          %v3664 = vunpack.c.l.b16 %v2591
          %v3665 = vunpack.c.h.b16 %v2591
          %v3666 = vunpack.c.l.b16 %v2592
          %v3667 = vunpack.c.h.b16 %v2592
          %v3668 = vunpack.c.l.b16 %v2593
          %v3669 = vunpack.c.h.b16 %v2593
          %v3670 = vunpack.c.l.b16 %v2594
          %v3671 = vunpack.c.h.b16 %v2594
          %v3672 = vunpack.c.l.b16 %v2595
          %v3673 = vunpack.c.h.b16 %v2595
          %v3674 = vunpack.c.l.b16 %v2596
          %v3675 = vunpack.c.h.b16 %v2596
          %v3676 = vunpack.c.l.b16 %v2597
          %v3677 = vunpack.c.h.b16 %v2597
          %v3678 = vunpack.c.l.b16 %v2598
          %v3679 = vunpack.c.h.b16 %v2598
          %v3680 = vunpack.c.l.b16 %v2599
          %v3681 = vunpack.c.h.b16 %v2599
          %v3682 = vunpack.c.l.b16 %v2600
          %v3683 = vunpack.c.h.b16 %v2600
          %v3684 = vunpack.c.l.b16 %v2601
          %v3685 = vunpack.c.h.b16 %v2601
          %v3686 = vunpack.c.l.b16 %v2602
          %v3687 = vunpack.c.h.b16 %v2602
          %v3688 = vunpack.c.l.b16 %v2603
          %v3689 = vunpack.c.h.b16 %v2603
          %v3690 = vunpack.c.l.b16 %v2604
          %v3691 = vunpack.c.h.b16 %v2604
          %v3692 = vunpack.c.l.b16 %v2605
          %v3693 = vunpack.c.h.b16 %v2605
          %v3694 = vunpack.c.l.b16 %v2606
          %v3695 = vunpack.c.h.b16 %v2606
          %v3696 = vunpack.c.l.b16 %v2607
          %v3697 = vunpack.c.h.b16 %v2607
          %v3698 = vunpack.c.l.b16 %v2608
          %v3699 = vunpack.c.h.b16 %v2608
          %v3700 = vunpack.c.l.b16 %v2609
          %v3701 = vunpack.c.h.b16 %v2609
          %v3702 = vunpack.c.l.b16 %v2610
          %v3703 = vunpack.c.h.b16 %v2610
          %v3704 = vunpack.c.l.b16 %v2611
          %v3705 = vunpack.c.h.b16 %v2611
          %v3706 = vunpack.c.l.b16 %v2612
          %v3707 = vunpack.c.h.b16 %v2612
          %v3708 = vunpack.c.l.b16 %v2613
          %v3709 = vunpack.c.h.b16 %v2613
          %v3710 = vunpack.c.l.b16 %v2614
          %v3711 = vunpack.c.h.b16 %v2614
          %v3712 = vunpack.c.l.b16 %v2615
          %v3713 = vunpack.c.h.b16 %v2615
          %v3714 = vunpack.c.l.b16 %v2616
          %v3715 = vunpack.c.h.b16 %v2616
          %v3716 = vunpack.c.l.b16 %v2617
          %v3717 = vunpack.c.h.b16 %v2617
          %v3718 = vunpack.c.l.b16 %v2618
          %v3719 = vunpack.c.h.b16 %v2618
          %v3720 = vunpack.c.l.b16 %v2619
          %v3721 = vunpack.c.h.b16 %v2619
          %v3722 = vunpack.c.l.b16 %v2620
          %v3723 = vunpack.c.h.b16 %v2620
          %v3724 = vunpack.c.l.b16 %v2621
          %v3725 = vunpack.c.h.b16 %v2621
          %v3726 = vunpack.c.l.b16 %v2622
          %v3727 = vunpack.c.h.b16 %v2622
          %v3728 = vunpack.c.l.b16 %v2623
          %v3729 = vunpack.c.h.b16 %v2623
          %v3730 = vunpack.c.l.b16 %v2624
          %v3731 = vunpack.c.h.b16 %v2624
          %v3732 = vunpack.c.l.b16 %v2625
          %v3733 = vunpack.c.h.b16 %v2625
          %v3734 = vunpack.c.l.b16 %v2626
          %v3735 = vunpack.c.h.b16 %v2626
          %v3736 = vunpack.c.l.b16 %v2627
          %v3737 = vunpack.c.h.b16 %v2627
          %v3738 = vunpack.c.l.b16 %v2628
          %v3739 = vunpack.c.h.b16 %v2628
          %v3740 = vunpack.c.l.b16 %v2629
          %v3741 = vunpack.c.h.b16 %v2629
          %v3742 = vunpack.c.l.b16 %v2630
          %v3743 = vunpack.c.h.b16 %v2630
          %v3744 = vunpack.c.l.b16 %v2631
          %v3745 = vunpack.c.h.b16 %v2631
          %v3746 = vunpack.c.l.b16 %v2632
          %v3747 = vunpack.c.h.b16 %v2632
          %v3748 = vunpack.c.l.b16 %v2633
          %v3749 = vunpack.c.h.b16 %v2633
          %v3750 = vunpack.c.l.b16 %v2634
          %v3751 = vunpack.c.h.b16 %v2634
          %v3752 = vunpack.c.l.b16 %v2635
          %v3753 = vunpack.c.h.b16 %v2635
          %v3754 = vunpack.c.l.b16 %v2636
          %v3755 = vunpack.c.h.b16 %v2636
          %v3756 = vunpack.c.l.b16 %v2637
          %v3757 = vunpack.c.h.b16 %v2637
          %v3758 = vunpack.c.l.b16 %v2638
          %v3759 = vunpack.c.h.b16 %v2638
          %v3760 = vunpack.c.l.b16 %v2639
          %v3761 = vunpack.c.h.b16 %v2639
          %v3762 = vunpack.c.l.b16 %v2640
          %v3763 = vunpack.c.h.b16 %v2640
          %v3764 = vunpack.c.l.b16 %v2641
          %v3765 = vunpack.c.h.b16 %v2641
          %v3766 = vunpack.c.l.b16 %v2642
          %v3767 = vunpack.c.h.b16 %v2642
          %v3768 = vunpack.c.l.b16 %v2643
          %v3769 = vunpack.c.h.b16 %v2643
          %v3770 = vunpack.c.l.b16 %v2644
          %v3771 = vunpack.c.h.b16 %v2644
          %v3772 = vunpack.c.l.b16 %v2645
          %v3773 = vunpack.c.h.b16 %v2645
          %v3774 = vunpack.c.l.b16 %v2646
          %v3775 = vunpack.c.h.b16 %v2646
          %v3776 = vunpack.c.l.b16 %v2647
          %v3777 = vunpack.c.h.b16 %v2647
          %v3778 = vunpack.c.l.b16 %v2648
          %v3779 = vunpack.c.h.b16 %v2648
          %v3780 = vunpack.c.l.b16 %v2649
          %v3781 = vunpack.c.h.b16 %v2649
          %v3782 = vunpack.c.l.b16 %v2650
          %v3783 = vunpack.c.h.b16 %v2650
          %v3784 = vunpack.c.l.b16 %v2651
          %v3785 = vunpack.c.h.b16 %v2651
          %v3786 = vunpack.c.l.b16 %v2652
          %v3787 = vunpack.c.h.b16 %v2652
          %v3788 = vunpack.c.l.b16 %v2653
          %v3789 = vunpack.c.h.b16 %v2653
          %v3790 = vunpack.c.l.b16 %v2654
          %v3791 = vunpack.c.h.b16 %v2654
          %v3792 = vunpack.c.l.b16 %v2655
          %v3793 = vunpack.c.h.b16 %v2655
          %v3794 = vunpack.c.l.b16 %v2656
          %v3795 = vunpack.c.h.b16 %v2656
          %v3796 = vunpack.c.l.b16 %v2657
          %v3797 = vunpack.c.h.b16 %v2657
          %v3798 = vunpack.c.l.b16 %v2658
          %v3799 = vunpack.c.h.b16 %v2658
          %v3800 = vunpack.c.l.b16 %v2659
          %v3801 = vunpack.c.h.b16 %v2659
          %v3802 = vunpack.c.l.b16 %v2660
          %v3803 = vunpack.c.h.b16 %v2660
          %v3804 = vunpack.c.l.b16 %v2661
          %v3805 = vunpack.c.h.b16 %v2661
          %v3806 = vunpack.c.l.b16 %v2662
          %v3807 = vunpack.c.h.b16 %v2662
          %v3808 = vunpack.c.l.b16 %v2663
          %v3809 = vunpack.c.h.b16 %v2663
          %v3810 = vunpack.c.l.b16 %v2664
          %v3811 = vunpack.c.h.b16 %v2664
          %v3812 = vunpack.c.l.b16 %v2665
          %v3813 = vunpack.c.h.b16 %v2665
          %v3814 = vunpack.c.l.b16 %v2666
          %v3815 = vunpack.c.h.b16 %v2666
          %v3816 = vunpack.c.l.b16 %v2667
          %v3817 = vunpack.c.h.b16 %v2667
          %v3818 = vunpack.c.l.b16 %v2668
          %v3819 = vunpack.c.h.b16 %v2668
          %v3820 = vunpack.c.l.b16 %v2669
          %v3821 = vunpack.c.h.b16 %v2669
          %v3822 = vunpack.c.l.b16 %v2670
          %v3823 = vunpack.c.h.b16 %v2670
          %v3824 = vunpack.c.l.b16 %v2671
          %v3825 = vunpack.c.h.b16 %v2671
          %v3826 = vunpack.c.l.b16 %v2672
          %v3827 = vunpack.c.h.b16 %v2672
          %v3828 = vunpack.c.l.b16 %v2673
          %v3829 = vunpack.c.h.b16 %v2673
          %v3830 = vunpack.c.l.b16 %v2674
          %v3831 = vunpack.c.h.b16 %v2674
          %v3832 = vunpack.c.l.b16 %v2675
          %v3833 = vunpack.c.h.b16 %v2675
          %v3834 = vunpack.c.l.b16 %v2676
          %v3835 = vunpack.c.h.b16 %v2676
          %v3836 = vunpack.c.l.b16 %v2677
          %v3837 = vunpack.c.h.b16 %v2677
          %v3838 = vunpack.c.l.b16 %v2678
          %v3839 = vunpack.c.h.b16 %v2678
          %v3840 = vunpack.c.l.b16 %v2679
          %v3841 = vunpack.c.h.b16 %v2679
          %v3842 = vunpack.c.l.b16 %v2680
          %v3843 = vunpack.c.h.b16 %v2680
          %v3844 = vunpack.c.l.b16 %v2681
          %v3845 = vunpack.c.h.b16 %v2681
          %v3846 = vunpack.c.l.b16 %v2682
          %v3847 = vunpack.c.h.b16 %v2682
          %v3848 = vunpack.c.l.b16 %v2683
          %v3849 = vunpack.c.h.b16 %v2683
          %v3850 = vunpack.c.l.b16 %v2684
          %v3851 = vunpack.c.h.b16 %v2684
          %v3852 = vunpack.c.l.b16 %v2685
          %v3853 = vunpack.c.h.b16 %v2685
          %v3854 = vunpack.c.l.b16 %v2686
          %v3855 = vunpack.c.h.b16 %v2686
          %v3856 = vunpack.c.l.b16 %v2687
          %v3857 = vunpack.c.h.b16 %v2687
          %v3858 = vunpack.c.l.b16 %v2688
          %v3859 = vunpack.c.h.b16 %v2688
          %v3860 = vunpack.c.l.b16 %v2689
          %v3861 = vunpack.c.h.b16 %v2689
          %v3862 = vunpack.c.l.b16 %v2690
          %v3863 = vunpack.c.h.b16 %v2690
          %v3864 = vunpack.c.l.b16 %v2691
          %v3865 = vunpack.c.h.b16 %v2691
          %v3866 = vunpack.c.l.b16 %v2692
          %v3867 = vunpack.c.h.b16 %v2692
          %v3868 = vunpack.c.l.b16 %v2693
          %v3869 = vunpack.c.h.b16 %v2693
          %v3870 = vunpack.c.l.b16 %v2694
          %v3871 = vunpack.c.h.b16 %v2694
          %v3872 = vunpack.c.l.b16 %v2695
          %v3873 = vunpack.c.h.b16 %v2695
          %v3874 = vunpack.c.l.b16 %v2696
          %v3875 = vunpack.c.h.b16 %v2696
          %v3876 = vunpack.c.l.b16 %v2697
          %v3877 = vunpack.c.h.b16 %v2697
          %v3878 = vunpack.c.l.b16 %v2698
          %v3879 = vunpack.c.h.b16 %v2698
          %v3880 = vunpack.c.l.b16 %v2699
          %v3881 = vunpack.c.h.b16 %v2699
          %v3882 = vunpack.c.l.b16 %v2700
          %v3883 = vunpack.c.h.b16 %v2700
          %v3884 = vunpack.c.l.b16 %v2701
          %v3885 = vunpack.c.h.b16 %v2701
          %v3886 = vunpack.c.l.b16 %v2702
          %v3887 = vunpack.c.h.b16 %v2702
          %v3888 = vunpack.c.l.b16 %v2703
          %v3889 = vunpack.c.h.b16 %v2703
          %v3890 = vunpack.c.l.b16 %v2704
          %v3891 = vunpack.c.h.b16 %v2704
          %v3892 = vunpack.c.l.b16 %v2705
          %v3893 = vunpack.c.h.b16 %v2705
          %v3894 = vunpack.c.l.b16 %v2706
          %v3895 = vunpack.c.h.b16 %v2706
          %v3896 = vunpack.c.l.b16 %v2707
          %v3897 = vunpack.c.h.b16 %v2707
          %v3898 = vunpack.c.l.b16 %v2708
          %v3899 = vunpack.c.h.b16 %v2708
          %v3900 = vunpack.c.l.b16 %v2709
          %v3901 = vunpack.c.h.b16 %v2709
          %v3902 = vunpack.c.l.b16 %v2710
          %v3903 = vunpack.c.h.b16 %v2710
          %v3904 = vunpack.c.l.b16 %v2711
          %v3905 = vunpack.c.h.b16 %v2711
          %v3906 = vunpack.c.l.b16 %v2712
          %v3907 = vunpack.c.h.b16 %v2712
          %v3908 = vunpack.c.l.b16 %v2713
          %v3909 = vunpack.c.h.b16 %v2713
          %v3910 = vunpack.c.l.b16 %v2714
          %v3911 = vunpack.c.h.b16 %v2714
          %v3912 = vunpack.c.l.b16 %v2715
          %v3913 = vunpack.c.h.b16 %v2715
          %v3914 = vunpack.c.l.b16 %v2716
          %v3915 = vunpack.c.h.b16 %v2716
          %v3916 = vunpack.c.l.b16 %v2717
          %v3917 = vunpack.c.h.b16 %v2717
          %v3918 = vunpack.c.l.b16 %v2718
          %v3919 = vunpack.c.h.b16 %v2718
          %v3920 = vunpack.c.l.b16 %v2719
          %v3921 = vunpack.c.h.b16 %v2719
          %v3922 = vunpack.c.l.b16 %v2720
          %v3923 = vunpack.c.h.b16 %v2720
          %v3924 = vunpack.c.l.b16 %v2721
          %v3925 = vunpack.c.h.b16 %v2721
          %v3926 = vunpack.c.l.b16 %v2722
          %v3927 = vunpack.c.h.b16 %v2722
          %v3928 = vunpack.c.l.b16 %v2723
          %v3929 = vunpack.c.h.b16 %v2723
          %v3930 = vunpack.c.l.b16 %v2724
          %v3931 = vunpack.c.h.b16 %v2724
          %v3932 = vunpack.c.l.b16 %v2725
          %v3933 = vunpack.c.h.b16 %v2725
          %v3934 = vunpack.c.l.b16 %v2726
          %v3935 = vunpack.c.h.b16 %v2726
          %v3936 = vunpack.c.l.b16 %v2727
          %v3937 = vunpack.c.h.b16 %v2727
          %v3938 = vunpack.c.l.b16 %v2728
          %v3939 = vunpack.c.h.b16 %v2728
          %v3940 = vunpack.c.l.b16 %v2729
          %v3941 = vunpack.c.h.b16 %v2729
          %v3942 = vunpack.c.l.b16 %v2730
          %v3943 = vunpack.c.h.b16 %v2730
          %v3944 = vunpack.c.l.b16 %v2731
          %v3945 = vunpack.c.h.b16 %v2731
          %v3946 = vunpack.c.l.b16 %v2732
          %v3947 = vunpack.c.h.b16 %v2732
          %v3948 = vunpack.c.l.b16 %v2733
          %v3949 = vunpack.c.h.b16 %v2733
          %v3950 = vunpack.c.l.b16 %v2734
          %v3951 = vunpack.c.h.b16 %v2734
          %v3952 = vunpack.c.l.b16 %v2735
          %v3953 = vunpack.c.h.b16 %v2735
          %v3954 = vunpack.c.l.b16 %v2736
          %v3955 = vunpack.c.h.b16 %v2736
          %v3956 = vunpack.c.l.b16 %v2737
          %v3957 = vunpack.c.h.b16 %v2737
          %v3958 = vunpack.c.l.b16 %v2738
          %v3959 = vunpack.c.h.b16 %v2738
          %v3960 = vunpack.c.l.b16 %v2739
          %v3961 = vunpack.c.h.b16 %v2739
          %v3962 = vunpack.c.l.b16 %v2740
          %v3963 = vunpack.c.h.b16 %v2740
          %v3964 = vunpack.c.l.b16 %v2741
          %v3965 = vunpack.c.h.b16 %v2741
          %v3966 = vunpack.c.l.b16 %v2742
          %v3967 = vunpack.c.h.b16 %v2742
          %v3968 = vunpack.c.l.b16 %v2743
          %v3969 = vunpack.c.h.b16 %v2743
          %v3970 = vunpack.c.l.b16 %v2744
          %v3971 = vunpack.c.h.b16 %v2744
          %v3972 = vunpack.c.l.b16 %v2745
          %v3973 = vunpack.c.h.b16 %v2745
          %v3974 = vunpack.c.l.b16 %v2746
          %v3975 = vunpack.c.h.b16 %v2746
          %v3976 = vunpack.c.l.b16 %v2747
          %v3977 = vunpack.c.h.b16 %v2747
          %v3978 = vunpack.c.l.b16 %v2748
          %v3979 = vunpack.c.h.b16 %v2748
          %v3980 = vunpack.c.l.b16 %v2749
          %v3981 = vunpack.c.h.b16 %v2749
          %v3982 = vunpack.c.l.b16 %v2750
          %v3983 = vunpack.c.h.b16 %v2750
          %v3984 = vunpack.c.l.b16 %v2751
          %v3985 = vunpack.c.h.b16 %v2751
          %v3986 = vunpack.c.l.b16 %v2752
          %v3987 = vunpack.c.h.b16 %v2752
          %v3988 = vunpack.c.l.b16 %v2753
          %v3989 = vunpack.c.h.b16 %v2753
          %v3990 = vunpack.c.l.b16 %v2754
          %v3991 = vunpack.c.h.b16 %v2754
          %v3992 = vunpack.c.l.b16 %v2755
          %v3993 = vunpack.c.h.b16 %v2755
          %v3994 = vunpack.c.l.b16 %v2756
          %v3995 = vunpack.c.h.b16 %v2756
          %v3996 = vunpack.c.l.b16 %v2757
          %v3997 = vunpack.c.h.b16 %v2757
          %v3998 = vunpack.c.l.b16 %v2758
          %v3999 = vunpack.c.h.b16 %v2758
          %v4000 = vunpack.c.l.b16 %v2759
          %v4001 = vunpack.c.h.b16 %v2759
          %v4002 = vunpack.c.l.b16 %v2760
          %v4003 = vunpack.c.h.b16 %v2760
          %v4004 = vunpack.c.l.b16 %v2761
          %v4005 = vunpack.c.h.b16 %v2761
          %v4006 = vunpack.c.l.b16 %v2762
          %v4007 = vunpack.c.h.b16 %v2762
          %v4008 = vunpack.c.l.b16 %v2763
          %v4009 = vunpack.c.h.b16 %v2763
          %v4010 = vunpack.c.l.b16 %v2764
          %v4011 = vunpack.c.h.b16 %v2764
          %v4012 = vunpack.c.l.b16 %v2765
          %v4013 = vunpack.c.h.b16 %v2765
          %v4014 = vunpack.c.l.b16 %v2766
          %v4015 = vunpack.c.h.b16 %v2766
          %v4016 = vunpack.c.l.b16 %v2767
          %v4017 = vunpack.c.h.b16 %v2767
          %v4018 = vunpack.c.l.b16 %v2768
          %v4019 = vunpack.c.h.b16 %v2768
          %v4020 = vunpack.c.l.b16 %v2769
          %v4021 = vunpack.c.h.b16 %v2769
          %v4022 = vunpack.c.l.b16 %v2770
          %v4023 = vunpack.c.h.b16 %v2770
          %v4024 = vunpack.c.l.b16 %v2771
          %v4025 = vunpack.c.h.b16 %v2771
          %v4026 = vunpack.c.l.b16 %v2772
          %v4027 = vunpack.c.h.b16 %v2772
          %v4028 = vunpack.c.l.b16 %v2773
          %v4029 = vunpack.c.h.b16 %v2773
          %v4030 = vunpack.c.l.b16 %v2774
          %v4031 = vunpack.c.h.b16 %v2774
          %v4032 = vunpack.c.l.b16 %v2775
          %v4033 = vunpack.c.h.b16 %v2775
          %v4034 = vunpack.c.l.b16 %v2776
          %v4035 = vunpack.c.h.b16 %v2776
          %v4036 = vunpack.c.l.b16 %v2777
          %v4037 = vunpack.c.h.b16 %v2777
          %v4038 = vunpack.c.l.b16 %v2778
          %v4039 = vunpack.c.h.b16 %v2778
          %v4040 = vunpack.c.l.b16 %v2779
          %v4041 = vunpack.c.h.b16 %v2779
          %v4042 = vunpack.c.l.b16 %v2780
          %v4043 = vunpack.c.h.b16 %v2780
          %v4044 = vunpack.c.l.b16 %v2781
          %v4045 = vunpack.c.h.b16 %v2781
          %v4046 = vunpack.c.l.b16 %v2782
          %v4047 = vunpack.c.h.b16 %v2782
          %v4048 = vunpack.c.l.b16 %v2783
          %v4049 = vunpack.c.h.b16 %v2783
          %v4050 = vunpack.c.l.b16 %v2784
          %v4051 = vunpack.c.h.b16 %v2784
          %v4052 = vunpack.c.l.b16 %v2785
          %v4053 = vunpack.c.h.b16 %v2785
          %v4054 = vunpack.c.l.b16 %v2786
          %v4055 = vunpack.c.h.b16 %v2786
          %v4056 = vunpack.c.l.b16 %v2787
          %v4057 = vunpack.c.h.b16 %v2787
          %v4058 = vunpack.c.l.b16 %v2788
          %v4059 = vunpack.c.h.b16 %v2788
          %v4060 = vunpack.c.l.b16 %v2789
          %v4061 = vunpack.c.h.b16 %v2789
          %v4062 = vunpack.c.l.b16 %v2790
          %v4063 = vunpack.c.h.b16 %v2790
          %v4064 = vunpack.c.l.b16 %v2791
          %v4065 = vunpack.c.h.b16 %v2791
          %v4066 = vunpack.c.l.b16 %v2792
          %v4067 = vunpack.c.h.b16 %v2792
          %v4068 = vunpack.c.l.b16 %v2793
          %v4069 = vunpack.c.h.b16 %v2793
          %v4070 = vunpack.c.l.b16 %v2794
          %v4071 = vunpack.c.h.b16 %v2794
          %v4072 = vunpack.c.l.b16 %v2795
          %v4073 = vunpack.c.h.b16 %v2795
          %v4074 = vunpack.c.l.b16 %v2796
          %v4075 = vunpack.c.h.b16 %v2796
          %v4076 = vunpack.c.l.b16 %v2797
          %v4077 = vunpack.c.h.b16 %v2797
          %v4078 = vunpack.c.l.b16 %v2798
          %v4079 = vunpack.c.h.b16 %v2798
          %v4080 = vunpack.c.l.b16 %v2799
          %v4081 = vunpack.c.h.b16 %v2799
          %v4082 = vunpack.c.l.b16 %v2800
          %v4083 = vunpack.c.h.b16 %v2800
          %v4084 = vunpack.c.l.b16 %v2801
          %v4085 = vunpack.c.h.b16 %v2801
          %v4086 = vunpack.c.l.b16 %v2802
          %v4087 = vunpack.c.h.b16 %v2802
          %v4088 = vunpack.c.l.b16 %v2803
          %v4089 = vunpack.c.h.b16 %v2803
          %v4090 = vunpack.c.l.b16 %v2804
          %v4091 = vunpack.c.h.b16 %v2804
          %v4092 = vunpack.c.l.b16 %v2805
          %v4093 = vunpack.c.h.b16 %v2805
          %v4094 = vunpack.c.l.b16 %v2806
          %v4095 = vunpack.c.h.b16 %v2806
          %v4096 = vunpack.c.l.b16 %v2807
          %v4097 = vunpack.c.h.b16 %v2807
          %v4098 = vunpack.c.l.b16 %v2808
          %v4099 = vunpack.c.h.b16 %v2808
          %v4100 = vunpack.c.l.b16 %v2809
          %v4101 = vunpack.c.h.b16 %v2809
          %v4102 = vunpack.c.l.b16 %v2810
          %v4103 = vunpack.c.h.b16 %v2810
          %v4104 = vunpack.c.l.b16 %v2811
          %v4105 = vunpack.c.h.b16 %v2811
          %v4106 = vunpack.c.l.b16 %v2812
          %v4107 = vunpack.c.h.b16 %v2812
          %v4108 = vunpack.c.l.b16 %v2813
          %v4109 = vunpack.c.h.b16 %v2813
          %v4110 = vunpack.c.l.b16 %v2814
          %v4111 = vunpack.c.h.b16 %v2814
          %v4112 = vunpack.c.l.b16 %v2815
          %v4113 = vunpack.c.h.b16 %v2815
          %v4114 = vunpack.c.l.b16 %v2816
          %v4115 = vunpack.c.h.b16 %v2816
          %v4116 = vunpack.c.l.b16 %v2817
          %v4117 = vunpack.c.h.b16 %v2817
          %v4118 = vunpack.c.l.b16 %v2818
          %v4119 = vunpack.c.h.b16 %v2818
          %v4120 = vunpack.c.l.b16 %v2819
          %v4121 = vunpack.c.h.b16 %v2819
          %v4122 = vunpack.c.l.b16 %v2820
          %v4123 = vunpack.c.h.b16 %v2820
          %v4124 = vunpack.c.l.b16 %v2821
          %v4125 = vunpack.c.h.b16 %v2821
          %v4126 = vunpack.c.l.b16 %v2822
          %v4127 = vunpack.c.h.b16 %v2822
          %v4128 = vunpack.c.l.b16 %v2823
          %v4129 = vunpack.c.h.b16 %v2823
          %v4130 = vunpack.c.l.b16 %v2824
          %v4131 = vunpack.c.h.b16 %v2824
          %v4132 = vunpack.c.l.b16 %v2825
          %v4133 = vunpack.c.h.b16 %v2825
          %v4134 = vunpack.c.l.b16 %v2826
          %v4135 = vunpack.c.h.b16 %v2826
          %v4136 = vunpack.c.l.b16 %v2827
          %v4137 = vunpack.c.h.b16 %v2827
          %v4138 = vunpack.c.l.b16 %v2828
          %v4139 = vunpack.c.h.b16 %v2828
          %v4140 = vunpack.c.l.b16 %v2829
          %v4141 = vunpack.c.h.b16 %v2829
          %v4142 = vunpack.c.l.b16 %v2830
          %v4143 = vunpack.c.h.b16 %v2830
          %v4144 = vunpack.c.l.b16 %v2831
          %v4145 = vunpack.c.h.b16 %v2831
          %v4146 = vunpack.c.l.b16 %v2832
          %v4147 = vunpack.c.h.b16 %v2832
          %v4148 = vunpack.c.l.b16 %v2833
          %v4149 = vunpack.c.h.b16 %v2833
          %v4150 = vunpack.c.l.b16 %v2834
          %v4151 = vunpack.c.h.b16 %v2834
          %v4152 = vunpack.c.l.b16 %v2835
          %v4153 = vunpack.c.h.b16 %v2835
          %v4154 = vunpack.c.l.b16 %v2836
          %v4155 = vunpack.c.h.b16 %v2836
          %v4156 = vunpack.c.l.b16 %v2837
          %v4157 = vunpack.c.h.b16 %v2837
          %v4158 = vunpack.c.l.b16 %v2838
          %v4159 = vunpack.c.h.b16 %v2838
          %v4160 = vunpack.c.l.b16 %v2839
          %v4161 = vunpack.c.h.b16 %v2839
          %v4162 = vunpack.c.l.b16 %v2840
          %v4163 = vunpack.c.h.b16 %v2840
          %v4164 = vunpack.c.l.b16 %v2841
          %v4165 = vunpack.c.h.b16 %v2841
          %v4166 = vunpack.c.l.b16 %v2842
          %v4167 = vunpack.c.h.b16 %v2842
          %v4168 = vunpack.c.l.b16 %v2843
          %v4169 = vunpack.c.h.b16 %v2843
          %v4170 = vunpack.c.l.b16 %v2844
          %v4171 = vunpack.c.h.b16 %v2844
          %v4172 = vunpack.c.l.b16 %v2845
          %v4173 = vunpack.c.h.b16 %v2845
          %v4174 = vunpack.c.l.b16 %v2846
          %v4175 = vunpack.c.h.b16 %v2846
          %v4176 = vunpack.c.l.b16 %v2847
          %v4177 = vunpack.c.h.b16 %v2847
          %v4178 = vunpack.c.l.b16 %v2848
          %v4179 = vunpack.c.h.b16 %v2848
          %v4180 = vunpack.c.l.b16 %v2849
          %v4181 = vunpack.c.h.b16 %v2849
          %v4182 = vunpack.c.l.b16 %v2850
          %v4183 = vunpack.c.h.b16 %v2850
          %v4184 = vunpack.c.l.b16 %v2851
          %v4185 = vunpack.c.h.b16 %v2851
          %v4186 = vunpack.c.l.b16 %v2852
          %v4187 = vunpack.c.h.b16 %v2852
          %v4188 = vunpack.c.l.b16 %v2853
          %v4189 = vunpack.c.h.b16 %v2853
          %v4190 = vunpack.c.l.b16 %v2854
          %v4191 = vunpack.c.h.b16 %v2854
          %v4192 = vunpack.c.l.b16 %v2855
          %v4193 = vunpack.c.h.b16 %v2855
          %v4194 = vunpack.c.l.b16 %v2856
          %v4195 = vunpack.c.h.b16 %v2856
          %v4196 = vunpack.c.l.b16 %v2857
          %v4197 = vunpack.c.h.b16 %v2857
          %v4198 = vunpack.c.l.b16 %v2858
          %v4199 = vunpack.c.h.b16 %v2858
          %v4200 = vunpack.c.l.b16 %v2859
          %v4201 = vunpack.c.h.b16 %v2859
          %v4202 = vunpack.c.l.b16 %v2860
          %v4203 = vunpack.c.h.b16 %v2860
          %v4204 = vunpack.c.l.b16 %v2861
          %v4205 = vunpack.c.h.b16 %v2861
          %v4206 = vunpack.c.l.b16 %v2862
          %v4207 = vunpack.c.h.b16 %v2862
          %v4208 = vunpack.c.l.b16 %v2863
          %v4209 = vunpack.c.h.b16 %v2863
          %v4210 = vunpack.c.l.b16 %v2864
          %v4211 = vunpack.c.h.b16 %v2864
          %v4212 = vunpack.c.l.b16 %v2865
          %v4213 = vunpack.c.h.b16 %v2865
          %v4214 = vunpack.c.l.b16 %v2866
          %v4215 = vunpack.c.h.b16 %v2866
          %v4216 = vunpack.c.l.b16 %v2867
          %v4217 = vunpack.c.h.b16 %v2867
          %v4218 = vunpack.c.l.b16 %v2868
          %v4219 = vunpack.c.h.b16 %v2868
          %v4220 = vunpack.c.l.b16 %v2869
          %v4221 = vunpack.c.h.b16 %v2869
          %v4222 = vunpack.c.l.b16 %v2870
          %v4223 = vunpack.c.h.b16 %v2870
          %v4224 = vunpack.c.l.b16 %v2871
          %v4225 = vunpack.c.h.b16 %v2871
          %v4226 = vunpack.c.l.b16 %v2872
          %v4227 = vunpack.c.h.b16 %v2872
          %v4228 = vunpack.c.l.b16 %v2873
          %v4229 = vunpack.c.h.b16 %v2873
          %v4230 = vunpack.c.l.b16 %v2874
          %v4231 = vunpack.c.h.b16 %v2874
          %v4232 = vunpack.c.l.b16 %v2875
          %v4233 = vunpack.c.h.b16 %v2875
          %v4234 = vunpack.c.l.b16 %v2876
          %v4235 = vunpack.c.h.b16 %v2876
          %v4236 = vunpack.c.l.b16 %v2877
          %v4237 = vunpack.c.h.b16 %v2877
          %v4238 = vunpack.c.l.b16 %v2878
          %v4239 = vunpack.c.h.b16 %v2878
          %v4240 = vunpack.c.l.b16 %v2879
          %v4241 = vunpack.c.h.b16 %v2879
          %v4242 = vunpack.c.l.b16 %v2880
          %v4243 = vunpack.c.h.b16 %v2880
          %v4244 = vunpack.c.l.b16 %v2881
          %v4245 = vunpack.c.h.b16 %v2881
          %v4246 = vunpack.c.l.b16 %v2882
          %v4247 = vunpack.c.h.b16 %v2882
          %v4248 = vunpack.c.l.b16 %v2883
          %v4249 = vunpack.c.h.b16 %v2883
          %v4250 = vunpack.c.l.b16 %v2884
          %v4251 = vunpack.c.h.b16 %v2884
          %v4252 = vunpack.c.l.b16 %v2885
          %v4253 = vunpack.c.h.b16 %v2885
          %v4254 = vunpack.c.l.b16 %v2886
          %v4255 = vunpack.c.h.b16 %v2886
          %v4256 = vunpack.c.l.b16 %v2887
          %v4257 = vunpack.c.h.b16 %v2887
          %v4258 = vunpack.c.l.b16 %v2888
          %v4259 = vunpack.c.h.b16 %v2888
          %v4260 = vunpack.c.l.b16 %v2889
          %v4261 = vunpack.c.h.b16 %v2889
          %v4262 = vunpack.c.l.b16 %v2890
          %v4263 = vunpack.c.h.b16 %v2890
          %v4264 = vunpack.c.l.b16 %v2891
          %v4265 = vunpack.c.h.b16 %v2891
          %v4266 = vunpack.c.l.b16 %v2892
          %v4267 = vunpack.c.h.b16 %v2892
          %v4268 = vunpack.c.l.b16 %v2893
          %v4269 = vunpack.c.h.b16 %v2893
          %v4270 = vunpack.c.l.b16 %v2894
          %v4271 = vunpack.c.h.b16 %v2894
          %v4272 = vunpack.c.l.b16 %v2895
          %v4273 = vunpack.c.h.b16 %v2895
          %v4274 = vunpack.c.l.b16 %v2896
          %v4275 = vunpack.c.h.b16 %v2896
          %v4276 = vunpack.c.l.b16 %v2897
          %v4277 = vunpack.c.h.b16 %v2897
          %v4278 = vunpack.c.l.b16 %v2898
          %v4279 = vunpack.c.h.b16 %v2898
          %v4280 = vunpack.c.l.b16 %v2899
          %v4281 = vunpack.c.h.b16 %v2899
          %v4282 = vunpack.c.l.b16 %v2900
          %v4283 = vunpack.c.h.b16 %v2900
          %v4284 = vunpack.c.l.b16 %v2901
          %v4285 = vunpack.c.h.b16 %v2901
          %v4286 = vunpack.c.l.b16 %v2902
          %v4287 = vunpack.c.h.b16 %v2902
          %v4288 = vunpack.c.l.b16 %v2903
          %v4289 = vunpack.c.h.b16 %v2903
          %v4290 = vunpack.c.l.b16 %v2904
          %v4291 = vunpack.c.h.b16 %v2904
          %v4292 = vunpack.c.l.b16 %v2905
          %v4293 = vunpack.c.h.b16 %v2905
          %v4294 = vunpack.c.l.b16 %v2906
          %v4295 = vunpack.c.h.b16 %v2906
          %v4296 = vunpack.c.l.b16 %v2907
          %v4297 = vunpack.c.h.b16 %v2907
          %v4298 = vunpack.c.l.b16 %v2908
          %v4299 = vunpack.c.h.b16 %v2908
          %v4300 = vunpack.c.l.b16 %v2909
          %v4301 = vunpack.c.h.b16 %v2909
          %v4302 = vunpack.c.l.b16 %v2910
          %v4303 = vunpack.c.h.b16 %v2910
          %v4304 = vunpack.c.l.b16 %v2911
          %v4305 = vunpack.c.h.b16 %v2911
          %v4306 = vunpack.c.l.b16 %v2912
          %v4307 = vunpack.c.h.b16 %v2912
          %v4308 = vunpack.c.l.b16 %v2913
          %v4309 = vunpack.c.h.b16 %v2913
          %v4310 = vunpack.c.l.b16 %v2914
          %v4311 = vunpack.c.h.b16 %v2914
          %v4312 = vunpack.c.l.b16 %v2915
          %v4313 = vunpack.c.h.b16 %v2915
          %v4314 = vunpack.c.l.b16 %v2916
          %v4315 = vunpack.c.h.b16 %v2916
          %v4316 = vunpack.c.l.b16 %v2917
          %v4317 = vunpack.c.h.b16 %v2917
          %v4318 = vunpack.c.l.b16 %v2918
          %v4319 = vunpack.c.h.b16 %v2918
          %v4320 = vunpack.c.l.b16 %v2919
          %v4321 = vunpack.c.h.b16 %v2919
          %v4322 = vunpack.c.l.b16 %v2920
          %v4323 = vunpack.c.h.b16 %v2920
          %v4324 = vunpack.c.l.b16 %v2921
          %v4325 = vunpack.c.h.b16 %v2921
          %v4326 = vunpack.c.l.b16 %v2922
          %v4327 = vunpack.c.h.b16 %v2922
          %v4328 = vunpack.c.l.b16 %v2923
          %v4329 = vunpack.c.h.b16 %v2923
          %v4330 = vunpack.c.l.b16 %v2924
          %v4331 = vunpack.c.h.b16 %v2924
          %v4332 = vunpack.c.l.b16 %v2925
          %v4333 = vunpack.c.h.b16 %v2925
          %v4334 = vunpack.c.l.b16 %v2926
          %v4335 = vunpack.c.h.b16 %v2926
          %v4336 = vunpack.c.l.b16 %v2927
          %v4337 = vunpack.c.h.b16 %v2927
          %v4338 = vunpack.c.l.b16 %v2928
          %v4339 = vunpack.c.h.b16 %v2928
          %v4340 = vunpack.c.l.b16 %v2929
          %v4341 = vunpack.c.h.b16 %v2929
          %v4342 = vunpack.c.l.b16 %v2930
          %v4343 = vunpack.c.h.b16 %v2930
          %v4344 = vunpack.c.l.b16 %v2931
          %v4345 = vunpack.c.h.b16 %v2931
          %v4346 = vunpack.c.l.b16 %v2932
          %v4347 = vunpack.c.h.b16 %v2932
          %v4348 = vunpack.c.l.b16 %v2933
          %v4349 = vunpack.c.h.b16 %v2933
          %v4350 = vunpack.c.l.b16 %v2934
          %v4351 = vunpack.c.h.b16 %v2934
          %v4352 = vunpack.c.l.b16 %v2935
          %v4353 = vunpack.c.h.b16 %v2935
          %v4354 = vunpack.c.l.b16 %v2936
          %v4355 = vunpack.c.h.b16 %v2936
          %v4356 = vunpack.c.l.b16 %v2937
          %v4357 = vunpack.c.h.b16 %v2937
          %v4358 = vunpack.c.l.b16 %v2938
          %v4359 = vunpack.c.h.b16 %v2938
          %v4360 = vunpack.c.l.b16 %v2939
          %v4361 = vunpack.c.h.b16 %v2939
          %v4362 = vunpack.c.l.b16 %v2940
          %v4363 = vunpack.c.h.b16 %v2940
          %v4364 = vunpack.c.l.b16 %v2941
          %v4365 = vunpack.c.h.b16 %v2941
          %v4366 = vunpack.c.l.b16 %v2942
          %v4367 = vunpack.c.h.b16 %v2942
          %v4368 = vunpack.c.l.b16 %v2943
          %v4369 = vunpack.c.h.b16 %v2943
          %v4370 = vunpack.c.l.b16 %v2944
          %v4371 = vunpack.c.h.b16 %v2944
          %v4372 = vunpack.c.l.b16 %v2945
          %v4373 = vunpack.c.h.b16 %v2945
          %v4374 = vunpack.c.l.b16 %v2946
          %v4375 = vunpack.c.h.b16 %v2946
          %v4376 = vunpack.c.l.b16 %v2947
          %v4377 = vunpack.c.h.b16 %v2947
          %v4378 = vunpack.c.l.b16 %v2948
          %v4379 = vunpack.c.h.b16 %v2948
          %v4380 = vunpack.c.l.b16 %v2949
          %v4381 = vunpack.c.h.b16 %v2949
          %v4382 = vunpack.c.l.b16 %v2950
          %v4383 = vunpack.c.h.b16 %v2950
          %v4384 = vunpack.c.l.b16 %v2951
          %v4385 = vunpack.c.h.b16 %v2951
          %v4386 = vunpack.c.l.b16 %v2952
          %v4387 = vunpack.c.h.b16 %v2952
          %v4388 = vunpack.c.l.b16 %v2953
          %v4389 = vunpack.c.h.b16 %v2953
          %v4390 = vunpack.c.l.b16 %v2954
          %v4391 = vunpack.c.h.b16 %v2954
          %v4392 = vunpack.c.l.b16 %v2955
          %v4393 = vunpack.c.h.b16 %v2955
          %v4394 = vunpack.c.l.b16 %v2956
          %v4395 = vunpack.c.h.b16 %v2956
          %v4396 = vunpack.c.l.b16 %v2957
          %v4397 = vunpack.c.h.b16 %v2957
          %v4398 = vunpack.c.l.b16 %v2958
          %v4399 = vunpack.c.h.b16 %v2958
          %v4400 = vunpack.c.l.b16 %v2959
          %v4401 = vunpack.c.h.b16 %v2959
          %v4402 = vunpack.c.l.b16 %v2960
          %v4403 = vunpack.c.h.b16 %v2960
          %v4404 = vunpack.c.l.b16 %v2961
          %v4405 = vunpack.c.h.b16 %v2961
          %v4406 = vunpack.c.l.b16 %v2962
          %v4407 = vunpack.c.h.b16 %v2962
          %v4408 = vunpack.c.l.b16 %v2963
          %v4409 = vunpack.c.h.b16 %v2963
          %v4410 = vunpack.c.l.b16 %v2964
          %v4411 = vunpack.c.h.b16 %v2964
          %v4412 = vunpack.c.l.b16 %v2965
          %v4413 = vunpack.c.h.b16 %v2965
          %v4414 = vunpack.c.l.b16 %v2966
          %v4415 = vunpack.c.h.b16 %v2966
          %v4416 = vunpack.c.l.b16 %v2967
          %v4417 = vunpack.c.h.b16 %v2967
          %v4418 = vunpack.c.l.b16 %v2968
          %v4419 = vunpack.c.h.b16 %v2968
          %v4420 = vunpack.c.l.b16 %v2969
          %v4421 = vunpack.c.h.b16 %v2969
          %v4422 = vunpack.c.l.b16 %v2970
          %v4423 = vunpack.c.h.b16 %v2970
          %v4424 = vunpack.c.l.b16 %v2971
          %v4425 = vunpack.c.h.b16 %v2971
          %v4426 = vunpack.c.l.b16 %v2972
          %v4427 = vunpack.c.h.b16 %v2972
          %v4428 = vunpack.c.l.b16 %v2973
          %v4429 = vunpack.c.h.b16 %v2973
          %v4430 = vunpack.c.l.b16 %v2974
          %v4431 = vunpack.c.h.b16 %v2974
          %v4432 = vunpack.c.l.b16 %v2975
          %v4433 = vunpack.c.h.b16 %v2975
          %v4434 = vunpack.c.l.b16 %v2976
          %v4435 = vunpack.c.h.b16 %v2976
          %v4436 = vunpack.c.l.b16 %v2977
          %v4437 = vunpack.c.h.b16 %v2977
          %v4438 = vunpack.c.l.b16 %v2978
          %v4439 = vunpack.c.h.b16 %v2978
          %v4440 = vunpack.c.l.b16 %v2979
          %v4441 = vunpack.c.h.b16 %v2979
          %v4442 = vunpack.c.l.b16 %v2980
          %v4443 = vunpack.c.h.b16 %v2980
          %v4444 = vunpack.c.l.b16 %v2981
          %v4445 = vunpack.c.h.b16 %v2981
          %v4446 = vunpack.c.l.b16 %v2982
          %v4447 = vunpack.c.h.b16 %v2982
          %v4448 = vunpack.c.l.b16 %v2983
          %v4449 = vunpack.c.h.b16 %v2983
          %v4450 = vunpack.c.l.b16 %v2984
          %v4451 = vunpack.c.h.b16 %v2984
          %v4452 = vunpack.c.l.b16 %v2985
          %v4453 = vunpack.c.h.b16 %v2985
          %v4454 = vunpack.c.l.b16 %v2986
          %v4455 = vunpack.c.h.b16 %v2986
          %v4456 = vunpack.c.l.b16 %v2987
          %v4457 = vunpack.c.h.b16 %v2987
          %v4458 = vunpack.c.l.b16 %v2988
          %v4459 = vunpack.c.h.b16 %v2988
          %v4460 = vunpack.c.l.b16 %v2989
          %v4461 = vunpack.c.h.b16 %v2989
          %v4462 = vunpack.c.l.b16 %v2990
          %v4463 = vunpack.c.h.b16 %v2990
          %v4464 = vunpack.c.l.b16 %v2991
          %v4465 = vunpack.c.h.b16 %v2991
          %v4466 = vunpack.c.l.b16 %v2992
          %v4467 = vunpack.c.h.b16 %v2992
          %v4468 = vunpack.c.l.b16 %v2993
          %v4469 = vunpack.c.h.b16 %v2993
          %v4470 = vunpack.c.l.b16 %v2994
          %v4471 = vunpack.c.h.b16 %v2994
          %v4472 = vunpack.c.l.b16 %v2995
          %v4473 = vunpack.c.h.b16 %v2995
          %v4474 = vunpack.c.l.b16 %v2996
          %v4475 = vunpack.c.h.b16 %v2996
          %v4476 = vunpack.c.l.b16 %v2997
          %v4477 = vunpack.c.h.b16 %v2997
          %v4478 = vunpack.c.l.b16 %v2998
          %v4479 = vunpack.c.h.b16 %v2998
          %v4480 = vunpack.c.l.b16 %v2999
          %v4481 = vunpack.c.h.b16 %v2999
          %v4482 = vunpack.c.l.b16 %v3000
          %v4483 = vunpack.c.h.b16 %v3000
          %v4484 = vunpack.c.l.b16 %v3001
          %v4485 = vunpack.c.h.b16 %v3001
          %v4486 = vunpack.c.l.b16 %v3002
          %v4487 = vunpack.c.h.b16 %v3002
          %v4488 = vunpack.c.l.b16 %v3003
          %v4489 = vunpack.c.h.b16 %v3003
          %v4490 = vunpack.c.l.b16 %v3004
          %v4491 = vunpack.c.h.b16 %v3004
          %v4492 = vunpack.c.l.b16 %v3005
          %v4493 = vunpack.c.h.b16 %v3005
          %v4494 = vunpack.c.l.b16 %v3006
          %v4495 = vunpack.c.h.b16 %v3006
          %v4496 = vunpack.c.l.b16 %v3007
          %v4497 = vunpack.c.h.b16 %v3007
          %v4498 = vunpack.c.l.b16 %v3008
          %v4499 = vunpack.c.h.b16 %v3008
          %v4500 = vunpack.c.l.b16 %v3009
          %v4501 = vunpack.c.h.b16 %v3009
          %v4502 = vunpack.c.l.b16 %v3010
          %v4503 = vunpack.c.h.b16 %v3010
          %v4504 = vunpack.c.l.b16 %v3011
          %v4505 = vunpack.c.h.b16 %v3011
          %v4506 = vunpack.c.l.b16 %v3012
          %v4507 = vunpack.c.h.b16 %v3012
          %v4508 = vunpack.c.l.b16 %v3013
          %v4509 = vunpack.c.h.b16 %v3013
          %v4510 = vunpack.c.l.b16 %v3014
          %v4511 = vunpack.c.h.b16 %v3014
          %v4512 = vunpack.c.l.b16 %v3015
          %v4513 = vunpack.c.h.b16 %v3015
          %v4514 = vunpack.c.l.b16 %v3016
          %v4515 = vunpack.c.h.b16 %v3016
          %v4516 = vunpack.c.l.b16 %v3017
          %v4517 = vunpack.c.h.b16 %v3017
          %v4518 = vunpack.c.l.b16 %v3018
          %v4519 = vunpack.c.h.b16 %v3018
          %v4520 = vunpack.c.l.b16 %v3019
          %v4521 = vunpack.c.h.b16 %v3019
          %v4522 = vunpack.c.l.b16 %v3020
          %v4523 = vunpack.c.h.b16 %v3020
          %v4524 = vunpack.c.l.b16 %v3021
          %v4525 = vunpack.c.h.b16 %v3021
          %v4526 = vunpack.c.l.b16 %v3022
          %v4527 = vunpack.c.h.b16 %v3022
          %v4528 = vunpack.c.l.b16 %v3023
          %v4529 = vunpack.c.h.b16 %v3023
          %v4530 = vunpack.c.l.b16 %v3024
          %v4531 = vunpack.c.h.b16 %v3024
          %v4532 = vunpack.c.l.b16 %v3025
          %v4533 = vunpack.c.h.b16 %v3025
          %v4534 = vunpack.c.l.b16 %v3026
          %v4535 = vunpack.c.h.b16 %v3026
          %v4536 = vunpack.c.l.b16 %v3027
          %v4537 = vunpack.c.h.b16 %v3027
          %v4538 = vunpack.c.l.b16 %v3028
          %v4539 = vunpack.c.h.b16 %v3028
          %v4540 = vunpack.c.l.b16 %v3029
          %v4541 = vunpack.c.h.b16 %v3029
          %v4542 = vunpack.c.l.b16 %v3030
          %v4543 = vunpack.c.h.b16 %v3030
          %v4544 = vunpack.c.l.b16 %v3031
          %v4545 = vunpack.c.h.b16 %v3031
          %v4546 = vunpack.c.l.b16 %v3032
          %v4547 = vunpack.c.h.b16 %v3032
          %v4548 = vunpack.c.l.b16 %v3033
          %v4549 = vunpack.c.h.b16 %v3033
          %v4550 = vunpack.c.l.b16 %v3034
          %v4551 = vunpack.c.h.b16 %v3034
          %v4552 = vunpack.c.l.b16 %v3035
          %v4553 = vunpack.c.h.b16 %v3035
          %v4554 = vunpack.c.l.b16 %v3036
          %v4555 = vunpack.c.h.b16 %v3036
          %v4556 = vunpack.c.l.b16 %v3037
          %v4557 = vunpack.c.h.b16 %v3037
          %v4558 = vunpack.c.l.b16 %v3038
          %v4559 = vunpack.c.h.b16 %v3038
          %v4560 = vunpack.c.l.b16 %v3039
          %v4561 = vunpack.c.h.b16 %v3039
          %v4562 = vunpack.c.l.b16 %v3040
          %v4563 = vunpack.c.h.b16 %v3040
          %v4564 = vunpack.c.l.b16 %v3041
          %v4565 = vunpack.c.h.b16 %v3041
          %v4566 = vunpack.c.l.b16 %v3042
          %v4567 = vunpack.c.h.b16 %v3042
          %v4568 = vunpack.c.l.b16 %v3043
          %v4569 = vunpack.c.h.b16 %v3043
          %v4570 = vunpack.c.l.b16 %v3044
          %v4571 = vunpack.c.h.b16 %v3044
          %v4572 = vunpack.c.l.b16 %v3045
          %v4573 = vunpack.c.h.b16 %v3045
          %v4574 = vunpack.c.l.b16 %v3046
          %v4575 = vunpack.c.h.b16 %v3046
          %v4576 = vunpack.c.l.b16 %v3047
          %v4577 = vunpack.c.h.b16 %v3047
          %v4578 = vunpack.c.l.b16 %v3048
          %v4579 = vunpack.c.h.b16 %v3048
          %v4580 = vunpack.c.l.b16 %v3049
          %v4581 = vunpack.c.h.b16 %v3049
          %v4582 = vunpack.c.l.b16 %v3050
          %v4583 = vunpack.c.h.b16 %v3050
          %v4584 = vunpack.c.l.b16 %v3051
          %v4585 = vunpack.c.h.b16 %v3051
          %v4586 = vunpack.c.l.b16 %v3052
          %v4587 = vunpack.c.h.b16 %v3052
          %v4588 = vunpack.c.l.b16 %v3053
          %v4589 = vunpack.c.h.b16 %v3053
          %v4590 = vunpack.c.l.b16 %v3054
          %v4591 = vunpack.c.h.b16 %v3054
          %v4592 = vunpack.c.l.b16 %v3055
          %v4593 = vunpack.c.h.b16 %v3055
          %v4594 = vunpack.c.l.b16 %v3056
          %v4595 = vunpack.c.h.b16 %v3056
          %v4596 = vunpack.c.l.b16 %v3057
          %v4597 = vunpack.c.h.b16 %v3057
          %v4598 = vunpack.c.l.b16 %v3058
          %v4599 = vunpack.c.h.b16 %v3058
          %v4600 = vunpack.c.l.b16 %v3059
          %v4601 = vunpack.c.h.b16 %v3059
          %v4602 = vunpack.c.l.b16 %v3060
          %v4603 = vunpack.c.h.b16 %v3060
          %v4604 = vunpack.c.l.b16 %v3061
          %v4605 = vunpack.c.h.b16 %v3061
          %v4606 = vunpack.c.l.b16 %v3062
          %v4607 = vunpack.c.h.b16 %v3062
          %v4608 = vunpack.c.l.b16 %v3063
          %v4609 = vunpack.c.h.b16 %v3063
          %v4610 = vunpack.c.l.b16 %v3064
          %v4611 = vunpack.c.h.b16 %v3064
          %v4612 = vunpack.c.l.b16 %v3065
          %v4613 = vunpack.c.h.b16 %v3065
          %v4614 = vunpack.c.l.b16 %v3066
          %v4615 = vunpack.c.h.b16 %v3066
          %v4616 = vunpack.c.l.b16 %v3067
          %v4617 = vunpack.c.h.b16 %v3067
          %v4618 = vunpack.c.l.b16 %v3068
          %v4619 = vunpack.c.h.b16 %v3068
          %v4620 = vunpack.c.l.b16 %v3069
          %v4621 = vunpack.c.h.b16 %v3069
          %v4622 = vunpack.c.l.b16 %v3070
          %v4623 = vunpack.c.h.b16 %v3070
          %v4624 = vunpack.c.l.b16 %v3071
          %v4625 = vunpack.c.h.b16 %v3071
          %v4626 = vunpack.c.l.b16 %v3072
          %v4627 = vunpack.c.h.b16 %v3072
          %v4628 = vunpack.c.l.b16 %v3073
          %v4629 = vunpack.c.h.b16 %v3073
          %v4630 = vunpack.c.l.b16 %v3074
          %v4631 = vunpack.c.h.b16 %v3074
          %v4632 = vunpack.c.l.b16 %v3075
          %v4633 = vunpack.c.h.b16 %v3075
          %v4634 = vunpack.c.l.b16 %v3076
          %v4635 = vunpack.c.h.b16 %v3076
          %v4636 = vunpack.c.l.b16 %v3077
          %v4637 = vunpack.c.h.b16 %v3077
          %v4638 = vunpack.c.l.b16 %v3078
          %v4639 = vunpack.c.h.b16 %v3078
          %v4640 = vunpack.c.l.b16 %v3079
          %v4641 = vunpack.c.h.b16 %v3079
          %v4642 = vunpack.c.l.b16 %v3080
          %v4643 = vunpack.c.h.b16 %v3080
          %v4644 = vunpack.c.l.b16 %v3081
          %v4645 = vunpack.c.h.b16 %v3081
          %v4646 = vunpack.c.l.b16 %v3082
          %v4647 = vunpack.c.h.b16 %v3082
          %v4648 = vunpack.c.l.b16 %v3083
          %v4649 = vunpack.c.h.b16 %v3083
          %v4650 = vunpack.c.l.b16 %v3084
          %v4651 = vunpack.c.h.b16 %v3084
          %v4652 = vunpack.c.l.b16 %v3085
          %v4653 = vunpack.c.h.b16 %v3085
          %v4654 = vunpack.c.l.b16 %v3086
          %v4655 = vunpack.c.h.b16 %v3086
          %v4656 = vunpack.c.l.b16 %v3087
          %v4657 = vunpack.c.h.b16 %v3087
          %v4658 = vunpack.c.l.b16 %v3088
          %v4659 = vunpack.c.h.b16 %v3088
          %v4660 = vunpack.c.l.b16 %v3089
          %v4661 = vunpack.c.h.b16 %v3089
          %v4662 = vunpack.c.l.b16 %v3090
          %v4663 = vunpack.c.h.b16 %v3090
          %v4664 = vunpack.c.l.b16 %v3091
          %v4665 = vunpack.c.h.b16 %v3091
          %v4666 = vunpack.c.l.b16 %v3092
          %v4667 = vunpack.c.h.b16 %v3092
          %v4668 = vunpack.c.l.b16 %v3093
          %v4669 = vunpack.c.h.b16 %v3093
          %v4670 = vunpack.c.l.b16 %v3094
          %v4671 = vunpack.c.h.b16 %v3094
          %v4672 = vunpack.c.l.b16 %v3095
          %v4673 = vunpack.c.h.b16 %v3095
          %v4674 = vpack.c.b16 %v3658, %v3650
          %v4675 = vpack.c.b16 %v3659, %v3651
          %v4676 = vpack.c.b16 %v3660, %v3652
          %v4677 = vpack.c.b16 %v3661, %v3653
          %v4678 = vpack.c.b16 %v3662, %v3654
          %v4679 = vpack.c.b16 %v3663, %v3655
          %v4680 = vpack.c.b16 %v3664, %v3656
          %v4681 = vpack.c.b16 %v3665, %v3657
          %v4682 = vpack.c.b16 %v3674, %v3666
          %v4683 = vpack.c.b16 %v3675, %v3667
          %v4684 = vpack.c.b16 %v3676, %v3668
          %v4685 = vpack.c.b16 %v3677, %v3669
          %v4686 = vpack.c.b16 %v3678, %v3670
          %v4687 = vpack.c.b16 %v3679, %v3671
          %v4688 = vpack.c.b16 %v3680, %v3672
          %v4689 = vpack.c.b16 %v3681, %v3673
          %v4690 = vpack.c.b16 %v3690, %v3682
          %v4691 = vpack.c.b16 %v3691, %v3683
          %v4692 = vpack.c.b16 %v3692, %v3684
          %v4693 = vpack.c.b16 %v3693, %v3685
          %v4694 = vpack.c.b16 %v3694, %v3686
          %v4695 = vpack.c.b16 %v3695, %v3687
          %v4696 = vpack.c.b16 %v3696, %v3688
          %v4697 = vpack.c.b16 %v3697, %v3689
          %v4698 = vpack.c.b16 %v3706, %v3698
          %v4699 = vpack.c.b16 %v3707, %v3699
          %v4700 = vpack.c.b16 %v3708, %v3700
          %v4701 = vpack.c.b16 %v3709, %v3701
          %v4702 = vpack.c.b16 %v3710, %v3702
          %v4703 = vpack.c.b16 %v3711, %v3703
          %v4704 = vpack.c.b16 %v3712, %v3704
          %v4705 = vpack.c.b16 %v3713, %v3705
          %v4706 = vpack.c.b16 %v3722, %v3714
          %v4707 = vpack.c.b16 %v3723, %v3715
          %v4708 = vpack.c.b16 %v3724, %v3716
          %v4709 = vpack.c.b16 %v3725, %v3717
          %v4710 = vpack.c.b16 %v3726, %v3718
          %v4711 = vpack.c.b16 %v3727, %v3719
          %v4712 = vpack.c.b16 %v3728, %v3720
          %v4713 = vpack.c.b16 %v3729, %v3721
          %v4714 = vpack.c.b16 %v3738, %v3730
          %v4715 = vpack.c.b16 %v3739, %v3731
          %v4716 = vpack.c.b16 %v3740, %v3732
          %v4717 = vpack.c.b16 %v3741, %v3733
          %v4718 = vpack.c.b16 %v3742, %v3734
          %v4719 = vpack.c.b16 %v3743, %v3735
          %v4720 = vpack.c.b16 %v3744, %v3736
          %v4721 = vpack.c.b16 %v3745, %v3737
          %v4722 = vpack.c.b16 %v3754, %v3746
          %v4723 = vpack.c.b16 %v3755, %v3747
          %v4724 = vpack.c.b16 %v3756, %v3748
          %v4725 = vpack.c.b16 %v3757, %v3749
          %v4726 = vpack.c.b16 %v3758, %v3750
          %v4727 = vpack.c.b16 %v3759, %v3751
          %v4728 = vpack.c.b16 %v3760, %v3752
          %v4729 = vpack.c.b16 %v3761, %v3753
          %v4730 = vpack.c.b16 %v3770, %v3762
          %v4731 = vpack.c.b16 %v3771, %v3763
          %v4732 = vpack.c.b16 %v3772, %v3764
          %v4733 = vpack.c.b16 %v3773, %v3765
          %v4734 = vpack.c.b16 %v3774, %v3766
          %v4735 = vpack.c.b16 %v3775, %v3767
          %v4736 = vpack.c.b16 %v3776, %v3768
          %v4737 = vpack.c.b16 %v3777, %v3769
          %v4738 = vpack.c.b16 %v3786, %v3778
          %v4739 = vpack.c.b16 %v3787, %v3779
          %v4740 = vpack.c.b16 %v3788, %v3780
          %v4741 = vpack.c.b16 %v3789, %v3781
          %v4742 = vpack.c.b16 %v3790, %v3782
          %v4743 = vpack.c.b16 %v3791, %v3783
          %v4744 = vpack.c.b16 %v3792, %v3784
          %v4745 = vpack.c.b16 %v3793, %v3785
          %v4746 = vpack.c.b16 %v3802, %v3794
          %v4747 = vpack.c.b16 %v3803, %v3795
          %v4748 = vpack.c.b16 %v3804, %v3796
          %v4749 = vpack.c.b16 %v3805, %v3797
          %v4750 = vpack.c.b16 %v3806, %v3798
          %v4751 = vpack.c.b16 %v3807, %v3799
          %v4752 = vpack.c.b16 %v3808, %v3800
          %v4753 = vpack.c.b16 %v3809, %v3801
          %v4754 = vpack.c.b16 %v3818, %v3810
          %v4755 = vpack.c.b16 %v3819, %v3811
          %v4756 = vpack.c.b16 %v3820, %v3812
          %v4757 = vpack.c.b16 %v3821, %v3813
          %v4758 = vpack.c.b16 %v3822, %v3814
          %v4759 = vpack.c.b16 %v3823, %v3815
          %v4760 = vpack.c.b16 %v3824, %v3816
          %v4761 = vpack.c.b16 %v3825, %v3817
          %v4762 = vpack.c.b16 %v3834, %v3826
          %v4763 = vpack.c.b16 %v3835, %v3827
          %v4764 = vpack.c.b16 %v3836, %v3828
          %v4765 = vpack.c.b16 %v3837, %v3829
          %v4766 = vpack.c.b16 %v3838, %v3830
          %v4767 = vpack.c.b16 %v3839, %v3831
          %v4768 = vpack.c.b16 %v3840, %v3832
          %v4769 = vpack.c.b16 %v3841, %v3833
          %v4770 = vpack.c.b16 %v3850, %v3842
          %v4771 = vpack.c.b16 %v3851, %v3843
          %v4772 = vpack.c.b16 %v3852, %v3844
          %v4773 = vpack.c.b16 %v3853, %v3845
          %v4774 = vpack.c.b16 %v3854, %v3846
          %v4775 = vpack.c.b16 %v3855, %v3847
          %v4776 = vpack.c.b16 %v3856, %v3848
          %v4777 = vpack.c.b16 %v3857, %v3849
          %v4778 = vpack.c.b16 %v3866, %v3858
          %v4779 = vpack.c.b16 %v3867, %v3859
          %v4780 = vpack.c.b16 %v3868, %v3860
          %v4781 = vpack.c.b16 %v3869, %v3861
          %v4782 = vpack.c.b16 %v3870, %v3862
          %v4783 = vpack.c.b16 %v3871, %v3863
          %v4784 = vpack.c.b16 %v3872, %v3864
          %v4785 = vpack.c.b16 %v3873, %v3865
          %v4786 = vpack.c.b16 %v3882, %v3874
          %v4787 = vpack.c.b16 %v3883, %v3875
          %v4788 = vpack.c.b16 %v3884, %v3876
          %v4789 = vpack.c.b16 %v3885, %v3877
          %v4790 = vpack.c.b16 %v3886, %v3878
          %v4791 = vpack.c.b16 %v3887, %v3879
          %v4792 = vpack.c.b16 %v3888, %v3880
          %v4793 = vpack.c.b16 %v3889, %v3881
          %v4794 = vpack.c.b16 %v3898, %v3890
          %v4795 = vpack.c.b16 %v3899, %v3891
          %v4796 = vpack.c.b16 %v3900, %v3892
          %v4797 = vpack.c.b16 %v3901, %v3893
          %v4798 = vpack.c.b16 %v3902, %v3894
          %v4799 = vpack.c.b16 %v3903, %v3895
          %v4800 = vpack.c.b16 %v3904, %v3896
          %v4801 = vpack.c.b16 %v3905, %v3897
          %v4802 = vpack.c.b16 %v3914, %v3906
          %v4803 = vpack.c.b16 %v3915, %v3907
          %v4804 = vpack.c.b16 %v3916, %v3908
          %v4805 = vpack.c.b16 %v3917, %v3909
          %v4806 = vpack.c.b16 %v3918, %v3910
          %v4807 = vpack.c.b16 %v3919, %v3911
          %v4808 = vpack.c.b16 %v3920, %v3912
          %v4809 = vpack.c.b16 %v3921, %v3913
          %v4810 = vpack.c.b16 %v3930, %v3922
          %v4811 = vpack.c.b16 %v3931, %v3923
          %v4812 = vpack.c.b16 %v3932, %v3924
          %v4813 = vpack.c.b16 %v3933, %v3925
          %v4814 = vpack.c.b16 %v3934, %v3926
          %v4815 = vpack.c.b16 %v3935, %v3927
          %v4816 = vpack.c.b16 %v3936, %v3928
          %v4817 = vpack.c.b16 %v3937, %v3929
          %v4818 = vpack.c.b16 %v3946, %v3938
          %v4819 = vpack.c.b16 %v3947, %v3939
          %v4820 = vpack.c.b16 %v3948, %v3940
          %v4821 = vpack.c.b16 %v3949, %v3941
          %v4822 = vpack.c.b16 %v3950, %v3942
          %v4823 = vpack.c.b16 %v3951, %v3943
          %v4824 = vpack.c.b16 %v3952, %v3944
          %v4825 = vpack.c.b16 %v3953, %v3945
          %v4826 = vpack.c.b16 %v3962, %v3954
          %v4827 = vpack.c.b16 %v3963, %v3955
          %v4828 = vpack.c.b16 %v3964, %v3956
          %v4829 = vpack.c.b16 %v3965, %v3957
          %v4830 = vpack.c.b16 %v3966, %v3958
          %v4831 = vpack.c.b16 %v3967, %v3959
          %v4832 = vpack.c.b16 %v3968, %v3960
          %v4833 = vpack.c.b16 %v3969, %v3961
          %v4834 = vpack.c.b16 %v3978, %v3970
          %v4835 = vpack.c.b16 %v3979, %v3971
          %v4836 = vpack.c.b16 %v3980, %v3972
          %v4837 = vpack.c.b16 %v3981, %v3973
          %v4838 = vpack.c.b16 %v3982, %v3974
          %v4839 = vpack.c.b16 %v3983, %v3975
          %v4840 = vpack.c.b16 %v3984, %v3976
          %v4841 = vpack.c.b16 %v3985, %v3977
          %v4842 = vpack.c.b16 %v3994, %v3986
          %v4843 = vpack.c.b16 %v3995, %v3987
          %v4844 = vpack.c.b16 %v3996, %v3988
          %v4845 = vpack.c.b16 %v3997, %v3989
          %v4846 = vpack.c.b16 %v3998, %v3990
          %v4847 = vpack.c.b16 %v3999, %v3991
          %v4848 = vpack.c.b16 %v4000, %v3992
          %v4849 = vpack.c.b16 %v4001, %v3993
          %v4850 = vpack.c.b16 %v4010, %v4002
          %v4851 = vpack.c.b16 %v4011, %v4003
          %v4852 = vpack.c.b16 %v4012, %v4004
          %v4853 = vpack.c.b16 %v4013, %v4005
          %v4854 = vpack.c.b16 %v4014, %v4006
          %v4855 = vpack.c.b16 %v4015, %v4007
          %v4856 = vpack.c.b16 %v4016, %v4008
          %v4857 = vpack.c.b16 %v4017, %v4009
          %v4858 = vpack.c.b16 %v4026, %v4018
          %v4859 = vpack.c.b16 %v4027, %v4019
          %v4860 = vpack.c.b16 %v4028, %v4020
          %v4861 = vpack.c.b16 %v4029, %v4021
          %v4862 = vpack.c.b16 %v4030, %v4022
          %v4863 = vpack.c.b16 %v4031, %v4023
          %v4864 = vpack.c.b16 %v4032, %v4024
          %v4865 = vpack.c.b16 %v4033, %v4025
          %v4866 = vpack.c.b16 %v4042, %v4034
          %v4867 = vpack.c.b16 %v4043, %v4035
          %v4868 = vpack.c.b16 %v4044, %v4036
          %v4869 = vpack.c.b16 %v4045, %v4037
          %v4870 = vpack.c.b16 %v4046, %v4038
          %v4871 = vpack.c.b16 %v4047, %v4039
          %v4872 = vpack.c.b16 %v4048, %v4040
          %v4873 = vpack.c.b16 %v4049, %v4041
          %v4874 = vpack.c.b16 %v4058, %v4050
          %v4875 = vpack.c.b16 %v4059, %v4051
          %v4876 = vpack.c.b16 %v4060, %v4052
          %v4877 = vpack.c.b16 %v4061, %v4053
          %v4878 = vpack.c.b16 %v4062, %v4054
          %v4879 = vpack.c.b16 %v4063, %v4055
          %v4880 = vpack.c.b16 %v4064, %v4056
          %v4881 = vpack.c.b16 %v4065, %v4057
          %v4882 = vpack.c.b16 %v4074, %v4066
          %v4883 = vpack.c.b16 %v4075, %v4067
          %v4884 = vpack.c.b16 %v4076, %v4068
          %v4885 = vpack.c.b16 %v4077, %v4069
          %v4886 = vpack.c.b16 %v4078, %v4070
          %v4887 = vpack.c.b16 %v4079, %v4071
          %v4888 = vpack.c.b16 %v4080, %v4072
          %v4889 = vpack.c.b16 %v4081, %v4073
          %v4890 = vpack.c.b16 %v4090, %v4082
          %v4891 = vpack.c.b16 %v4091, %v4083
          %v4892 = vpack.c.b16 %v4092, %v4084
          %v4893 = vpack.c.b16 %v4093, %v4085
          %v4894 = vpack.c.b16 %v4094, %v4086
          %v4895 = vpack.c.b16 %v4095, %v4087
          %v4896 = vpack.c.b16 %v4096, %v4088
          %v4897 = vpack.c.b16 %v4097, %v4089
          %v4898 = vpack.c.b16 %v4106, %v4098
          %v4899 = vpack.c.b16 %v4107, %v4099
          %v4900 = vpack.c.b16 %v4108, %v4100
          %v4901 = vpack.c.b16 %v4109, %v4101
          %v4902 = vpack.c.b16 %v4110, %v4102
          %v4903 = vpack.c.b16 %v4111, %v4103
          %v4904 = vpack.c.b16 %v4112, %v4104
          %v4905 = vpack.c.b16 %v4113, %v4105
          %v4906 = vpack.c.b16 %v4122, %v4114
          %v4907 = vpack.c.b16 %v4123, %v4115
          %v4908 = vpack.c.b16 %v4124, %v4116
          %v4909 = vpack.c.b16 %v4125, %v4117
          %v4910 = vpack.c.b16 %v4126, %v4118
          %v4911 = vpack.c.b16 %v4127, %v4119
          %v4912 = vpack.c.b16 %v4128, %v4120
          %v4913 = vpack.c.b16 %v4129, %v4121
          %v4914 = vpack.c.b16 %v4138, %v4130
          %v4915 = vpack.c.b16 %v4139, %v4131
          %v4916 = vpack.c.b16 %v4140, %v4132
          %v4917 = vpack.c.b16 %v4141, %v4133
          %v4918 = vpack.c.b16 %v4142, %v4134
          %v4919 = vpack.c.b16 %v4143, %v4135
          %v4920 = vpack.c.b16 %v4144, %v4136
          %v4921 = vpack.c.b16 %v4145, %v4137
          %v4922 = vpack.c.b16 %v4154, %v4146
          %v4923 = vpack.c.b16 %v4155, %v4147
          %v4924 = vpack.c.b16 %v4156, %v4148
          %v4925 = vpack.c.b16 %v4157, %v4149
          %v4926 = vpack.c.b16 %v4158, %v4150
          %v4927 = vpack.c.b16 %v4159, %v4151
          %v4928 = vpack.c.b16 %v4160, %v4152
          %v4929 = vpack.c.b16 %v4161, %v4153
          %v4930 = vpack.c.b16 %v4170, %v4162
          %v4931 = vpack.c.b16 %v4171, %v4163
          %v4932 = vpack.c.b16 %v4172, %v4164
          %v4933 = vpack.c.b16 %v4173, %v4165
          %v4934 = vpack.c.b16 %v4174, %v4166
          %v4935 = vpack.c.b16 %v4175, %v4167
          %v4936 = vpack.c.b16 %v4176, %v4168
          %v4937 = vpack.c.b16 %v4177, %v4169
          %v4938 = vpack.c.b16 %v4186, %v4178
          %v4939 = vpack.c.b16 %v4187, %v4179
          %v4940 = vpack.c.b16 %v4188, %v4180
          %v4941 = vpack.c.b16 %v4189, %v4181
          %v4942 = vpack.c.b16 %v4190, %v4182
          %v4943 = vpack.c.b16 %v4191, %v4183
          %v4944 = vpack.c.b16 %v4192, %v4184
          %v4945 = vpack.c.b16 %v4193, %v4185
          %v4946 = vpack.c.b16 %v4202, %v4194
          %v4947 = vpack.c.b16 %v4203, %v4195
          %v4948 = vpack.c.b16 %v4204, %v4196
          %v4949 = vpack.c.b16 %v4205, %v4197
          %v4950 = vpack.c.b16 %v4206, %v4198
          %v4951 = vpack.c.b16 %v4207, %v4199
          %v4952 = vpack.c.b16 %v4208, %v4200
          %v4953 = vpack.c.b16 %v4209, %v4201
          %v4954 = vpack.c.b16 %v4218, %v4210
          %v4955 = vpack.c.b16 %v4219, %v4211
          %v4956 = vpack.c.b16 %v4220, %v4212
          %v4957 = vpack.c.b16 %v4221, %v4213
          %v4958 = vpack.c.b16 %v4222, %v4214
          %v4959 = vpack.c.b16 %v4223, %v4215
          %v4960 = vpack.c.b16 %v4224, %v4216
          %v4961 = vpack.c.b16 %v4225, %v4217
          %v4962 = vpack.c.b16 %v4234, %v4226
          %v4963 = vpack.c.b16 %v4235, %v4227
          %v4964 = vpack.c.b16 %v4236, %v4228
          %v4965 = vpack.c.b16 %v4237, %v4229
          %v4966 = vpack.c.b16 %v4238, %v4230
          %v4967 = vpack.c.b16 %v4239, %v4231
          %v4968 = vpack.c.b16 %v4240, %v4232
          %v4969 = vpack.c.b16 %v4241, %v4233
          %v4970 = vpack.c.b16 %v4250, %v4242
          %v4971 = vpack.c.b16 %v4251, %v4243
          %v4972 = vpack.c.b16 %v4252, %v4244
          %v4973 = vpack.c.b16 %v4253, %v4245
          %v4974 = vpack.c.b16 %v4254, %v4246
          %v4975 = vpack.c.b16 %v4255, %v4247
          %v4976 = vpack.c.b16 %v4256, %v4248
          %v4977 = vpack.c.b16 %v4257, %v4249
          %v4978 = vpack.c.b16 %v4266, %v4258
          %v4979 = vpack.c.b16 %v4267, %v4259
          %v4980 = vpack.c.b16 %v4268, %v4260
          %v4981 = vpack.c.b16 %v4269, %v4261
          %v4982 = vpack.c.b16 %v4270, %v4262
          %v4983 = vpack.c.b16 %v4271, %v4263
          %v4984 = vpack.c.b16 %v4272, %v4264
          %v4985 = vpack.c.b16 %v4273, %v4265
          %v4986 = vpack.c.b16 %v4282, %v4274
          %v4987 = vpack.c.b16 %v4283, %v4275
          %v4988 = vpack.c.b16 %v4284, %v4276
          %v4989 = vpack.c.b16 %v4285, %v4277
          %v4990 = vpack.c.b16 %v4286, %v4278
          %v4991 = vpack.c.b16 %v4287, %v4279
          %v4992 = vpack.c.b16 %v4288, %v4280
          %v4993 = vpack.c.b16 %v4289, %v4281
          %v4994 = vpack.c.b16 %v4298, %v4290
          %v4995 = vpack.c.b16 %v4299, %v4291
          %v4996 = vpack.c.b16 %v4300, %v4292
          %v4997 = vpack.c.b16 %v4301, %v4293
          %v4998 = vpack.c.b16 %v4302, %v4294
          %v4999 = vpack.c.b16 %v4303, %v4295
          %v5000 = vpack.c.b16 %v4304, %v4296
          %v5001 = vpack.c.b16 %v4305, %v4297
          %v5002 = vpack.c.b16 %v4314, %v4306
          %v5003 = vpack.c.b16 %v4315, %v4307
          %v5004 = vpack.c.b16 %v4316, %v4308
          %v5005 = vpack.c.b16 %v4317, %v4309
          %v5006 = vpack.c.b16 %v4318, %v4310
          %v5007 = vpack.c.b16 %v4319, %v4311
          %v5008 = vpack.c.b16 %v4320, %v4312
          %v5009 = vpack.c.b16 %v4321, %v4313
          %v5010 = vpack.c.b16 %v4330, %v4322
          %v5011 = vpack.c.b16 %v4331, %v4323
          %v5012 = vpack.c.b16 %v4332, %v4324
          %v5013 = vpack.c.b16 %v4333, %v4325
          %v5014 = vpack.c.b16 %v4334, %v4326
          %v5015 = vpack.c.b16 %v4335, %v4327
          %v5016 = vpack.c.b16 %v4336, %v4328
          %v5017 = vpack.c.b16 %v4337, %v4329
          %v5018 = vpack.c.b16 %v4346, %v4338
          %v5019 = vpack.c.b16 %v4347, %v4339
          %v5020 = vpack.c.b16 %v4348, %v4340
          %v5021 = vpack.c.b16 %v4349, %v4341
          %v5022 = vpack.c.b16 %v4350, %v4342
          %v5023 = vpack.c.b16 %v4351, %v4343
          %v5024 = vpack.c.b16 %v4352, %v4344
          %v5025 = vpack.c.b16 %v4353, %v4345
          %v5026 = vpack.c.b16 %v4362, %v4354
          %v5027 = vpack.c.b16 %v4363, %v4355
          %v5028 = vpack.c.b16 %v4364, %v4356
          %v5029 = vpack.c.b16 %v4365, %v4357
          %v5030 = vpack.c.b16 %v4366, %v4358
          %v5031 = vpack.c.b16 %v4367, %v4359
          %v5032 = vpack.c.b16 %v4368, %v4360
          %v5033 = vpack.c.b16 %v4369, %v4361
          %v5034 = vpack.c.b16 %v4378, %v4370
          %v5035 = vpack.c.b16 %v4379, %v4371
          %v5036 = vpack.c.b16 %v4380, %v4372
          %v5037 = vpack.c.b16 %v4381, %v4373
          %v5038 = vpack.c.b16 %v4382, %v4374
          %v5039 = vpack.c.b16 %v4383, %v4375
          %v5040 = vpack.c.b16 %v4384, %v4376
          %v5041 = vpack.c.b16 %v4385, %v4377
          %v5042 = vpack.c.b16 %v4394, %v4386
          %v5043 = vpack.c.b16 %v4395, %v4387
          %v5044 = vpack.c.b16 %v4396, %v4388
          %v5045 = vpack.c.b16 %v4397, %v4389
          %v5046 = vpack.c.b16 %v4398, %v4390
          %v5047 = vpack.c.b16 %v4399, %v4391
          %v5048 = vpack.c.b16 %v4400, %v4392
          %v5049 = vpack.c.b16 %v4401, %v4393
          %v5050 = vpack.c.b16 %v4410, %v4402
          %v5051 = vpack.c.b16 %v4411, %v4403
          %v5052 = vpack.c.b16 %v4412, %v4404
          %v5053 = vpack.c.b16 %v4413, %v4405
          %v5054 = vpack.c.b16 %v4414, %v4406
          %v5055 = vpack.c.b16 %v4415, %v4407
          %v5056 = vpack.c.b16 %v4416, %v4408
          %v5057 = vpack.c.b16 %v4417, %v4409
          %v5058 = vpack.c.b16 %v4426, %v4418
          %v5059 = vpack.c.b16 %v4427, %v4419
          %v5060 = vpack.c.b16 %v4428, %v4420
          %v5061 = vpack.c.b16 %v4429, %v4421
          %v5062 = vpack.c.b16 %v4430, %v4422
          %v5063 = vpack.c.b16 %v4431, %v4423
          %v5064 = vpack.c.b16 %v4432, %v4424
          %v5065 = vpack.c.b16 %v4433, %v4425
          %v5066 = vpack.c.b16 %v4442, %v4434
          %v5067 = vpack.c.b16 %v4443, %v4435
          %v5068 = vpack.c.b16 %v4444, %v4436
          %v5069 = vpack.c.b16 %v4445, %v4437
          %v5070 = vpack.c.b16 %v4446, %v4438
          %v5071 = vpack.c.b16 %v4447, %v4439
          %v5072 = vpack.c.b16 %v4448, %v4440
          %v5073 = vpack.c.b16 %v4449, %v4441
          %v5074 = vpack.c.b16 %v4458, %v4450
          %v5075 = vpack.c.b16 %v4459, %v4451
          %v5076 = vpack.c.b16 %v4460, %v4452
          %v5077 = vpack.c.b16 %v4461, %v4453
          %v5078 = vpack.c.b16 %v4462, %v4454
          %v5079 = vpack.c.b16 %v4463, %v4455
          %v5080 = vpack.c.b16 %v4464, %v4456
          %v5081 = vpack.c.b16 %v4465, %v4457
          %v5082 = vpack.c.b16 %v4474, %v4466
          %v5083 = vpack.c.b16 %v4475, %v4467
          %v5084 = vpack.c.b16 %v4476, %v4468
          %v5085 = vpack.c.b16 %v4477, %v4469
          %v5086 = vpack.c.b16 %v4478, %v4470
          %v5087 = vpack.c.b16 %v4479, %v4471
          %v5088 = vpack.c.b16 %v4480, %v4472
          %v5089 = vpack.c.b16 %v4481, %v4473
          %v5090 = vpack.c.b16 %v4490, %v4482
          %v5091 = vpack.c.b16 %v4491, %v4483
          %v5092 = vpack.c.b16 %v4492, %v4484
          %v5093 = vpack.c.b16 %v4493, %v4485
          %v5094 = vpack.c.b16 %v4494, %v4486
          %v5095 = vpack.c.b16 %v4495, %v4487
          %v5096 = vpack.c.b16 %v4496, %v4488
          %v5097 = vpack.c.b16 %v4497, %v4489
          %v5098 = vpack.c.b16 %v4506, %v4498
          %v5099 = vpack.c.b16 %v4507, %v4499
          %v5100 = vpack.c.b16 %v4508, %v4500
          %v5101 = vpack.c.b16 %v4509, %v4501
          %v5102 = vpack.c.b16 %v4510, %v4502
          %v5103 = vpack.c.b16 %v4511, %v4503
          %v5104 = vpack.c.b16 %v4512, %v4504
          %v5105 = vpack.c.b16 %v4513, %v4505
          %v5106 = vpack.c.b16 %v4522, %v4514
          %v5107 = vpack.c.b16 %v4523, %v4515
          %v5108 = vpack.c.b16 %v4524, %v4516
          %v5109 = vpack.c.b16 %v4525, %v4517
          %v5110 = vpack.c.b16 %v4526, %v4518
          %v5111 = vpack.c.b16 %v4527, %v4519
          %v5112 = vpack.c.b16 %v4528, %v4520
          %v5113 = vpack.c.b16 %v4529, %v4521
          %v5114 = vpack.c.b16 %v4538, %v4530
          %v5115 = vpack.c.b16 %v4539, %v4531
          %v5116 = vpack.c.b16 %v4540, %v4532
          %v5117 = vpack.c.b16 %v4541, %v4533
          %v5118 = vpack.c.b16 %v4542, %v4534
          %v5119 = vpack.c.b16 %v4543, %v4535
          %v5120 = vpack.c.b16 %v4544, %v4536
          %v5121 = vpack.c.b16 %v4545, %v4537
          %v5122 = vpack.c.b16 %v4554, %v4546
          %v5123 = vpack.c.b16 %v4555, %v4547
          %v5124 = vpack.c.b16 %v4556, %v4548
          %v5125 = vpack.c.b16 %v4557, %v4549
          %v5126 = vpack.c.b16 %v4558, %v4550
          %v5127 = vpack.c.b16 %v4559, %v4551
          %v5128 = vpack.c.b16 %v4560, %v4552
          %v5129 = vpack.c.b16 %v4561, %v4553
          %v5130 = vpack.c.b16 %v4570, %v4562
          %v5131 = vpack.c.b16 %v4571, %v4563
          %v5132 = vpack.c.b16 %v4572, %v4564
          %v5133 = vpack.c.b16 %v4573, %v4565
          %v5134 = vpack.c.b16 %v4574, %v4566
          %v5135 = vpack.c.b16 %v4575, %v4567
          %v5136 = vpack.c.b16 %v4576, %v4568
          %v5137 = vpack.c.b16 %v4577, %v4569
          %v5138 = vpack.c.b16 %v4586, %v4578
          %v5139 = vpack.c.b16 %v4587, %v4579
          %v5140 = vpack.c.b16 %v4588, %v4580
          %v5141 = vpack.c.b16 %v4589, %v4581
          %v5142 = vpack.c.b16 %v4590, %v4582
          %v5143 = vpack.c.b16 %v4591, %v4583
          %v5144 = vpack.c.b16 %v4592, %v4584
          %v5145 = vpack.c.b16 %v4593, %v4585
          %v5146 = vpack.c.b16 %v4602, %v4594
          %v5147 = vpack.c.b16 %v4603, %v4595
          %v5148 = vpack.c.b16 %v4604, %v4596
          %v5149 = vpack.c.b16 %v4605, %v4597
          %v5150 = vpack.c.b16 %v4606, %v4598
          %v5151 = vpack.c.b16 %v4607, %v4599
          %v5152 = vpack.c.b16 %v4608, %v4600
          %v5153 = vpack.c.b16 %v4609, %v4601
          %v5154 = vpack.c.b16 %v4618, %v4610
          %v5155 = vpack.c.b16 %v4619, %v4611
          %v5156 = vpack.c.b16 %v4620, %v4612
          %v5157 = vpack.c.b16 %v4621, %v4613
          %v5158 = vpack.c.b16 %v4622, %v4614
          %v5159 = vpack.c.b16 %v4623, %v4615
          %v5160 = vpack.c.b16 %v4624, %v4616
          %v5161 = vpack.c.b16 %v4625, %v4617
          %v5162 = vpack.c.b16 %v4634, %v4626
          %v5163 = vpack.c.b16 %v4635, %v4627
          %v5164 = vpack.c.b16 %v4636, %v4628
          %v5165 = vpack.c.b16 %v4637, %v4629
          %v5166 = vpack.c.b16 %v4638, %v4630
          %v5167 = vpack.c.b16 %v4639, %v4631
          %v5168 = vpack.c.b16 %v4640, %v4632
          %v5169 = vpack.c.b16 %v4641, %v4633
          %v5170 = vpack.c.b16 %v4650, %v4642
          %v5171 = vpack.c.b16 %v4651, %v4643
          %v5172 = vpack.c.b16 %v4652, %v4644
          %v5173 = vpack.c.b16 %v4653, %v4645
          %v5174 = vpack.c.b16 %v4654, %v4646
          %v5175 = vpack.c.b16 %v4655, %v4647
          %v5176 = vpack.c.b16 %v4656, %v4648
          %v5177 = vpack.c.b16 %v4657, %v4649
          %v5178 = vpack.c.b16 %v4666, %v4658
          %v5179 = vpack.c.b16 %v4667, %v4659
          %v5180 = vpack.c.b16 %v4668, %v4660
          %v5181 = vpack.c.b16 %v4669, %v4661
          %v5182 = vpack.c.b16 %v4670, %v4662
          %v5183 = vpack.c.b16 %v4671, %v4663
          %v5184 = vpack.c.b16 %v4672, %v4664
          %v5185 = vpack.c.b16 %v4673, %v4665
          %5698 = vmatprep.subr.bf16.mxu0 %v4675
          %5699 = vmatpush1.bf16.msra.mxu0 %v4674
          %5700 = vmatprep.subr.bf16.mxu0 %v4683
          %5701 = vmatpush1.bf16.msra.mxu0 %v4682
          %5702 = vmatprep.subr.bf16.mxu0 %v4691
          %5703 = vmatpush1.bf16.msra.mxu0 %v4690
          %5704 = vmatprep.subr.bf16.mxu0 %v4699
          %5705 = vmatpush1.bf16.msra.mxu0 %v4698
          %5706 = vmatprep.subr.bf16.mxu0 %v4707
          %5707 = vmatpush1.bf16.msra.mxu0 %v4706
          %5708 = vmatprep.subr.bf16.mxu0 %v4715
          %5709 = vmatpush1.bf16.msra.mxu0 %v4714
          %5710 = vmatprep.subr.bf16.mxu0 %v4723
          %5711 = vmatpush1.bf16.msra.mxu0 %v4722
          %5712 = vmatprep.subr.bf16.mxu0 %v4731
          %5713 = vmatpush1.bf16.msra.mxu0 %v4730
          %5714 = vmatprep.subr.bf16.mxu0 %v4739
          %5715 = vmatpush1.bf16.msra.mxu0 %v4738
          %5716 = vmatprep.subr.bf16.mxu0 %v4747
          %5717 = vmatpush1.bf16.msra.mxu0 %v4746
          %5718 = vmatprep.subr.bf16.mxu0 %v4755
          %5719 = vmatpush1.bf16.msra.mxu0 %v4754
          %5720 = vmatprep.subr.bf16.mxu0 %v4763
          %5721 = vmatpush1.bf16.msra.mxu0 %v4762
          %5722 = vmatprep.subr.bf16.mxu0 %v4771
          %5723 = vmatpush1.bf16.msra.mxu0 %v4770
          %5724 = vmatprep.subr.bf16.mxu0 %v4779
          %5725 = vmatpush1.bf16.msra.mxu0 %v4778
          %5726 = vmatprep.subr.bf16.mxu0 %v4787
          %5727 = vmatpush1.bf16.msra.mxu0 %v4786
          %5728 = vmatprep.subr.bf16.mxu0 %v4795
          %5729 = vmatpush1.bf16.msra.mxu0 %v4794
          %5730 = vmatprep.mubr.bf16.mxu0 %v2577
          %5731 = vmatmul.mubr.bf16.gmra.mrb[0].mxu0 %v2576
          %v5732 = vpop.f32.mrb[0].mxu0
          %v5733 = vadd.f32 %v3101, %v5732
          %v5734 = vpop.f32.mrb[0].mxu0
          %v5735 = vadd.f32 %v3105, %v5734
          %v5736 = vpop.f32.mrb[0].mxu0
          %v5737 = vpop.f32.mrb[0].mxu0
          %5738 = vdwg.mxu0
          %5739 = vmatprep.subr.bf16.mxu0 %v4803
          %5740 = vmatpush1.bf16.msra.mxu0 %v4802
          %5741 = vmatprep.subr.bf16.mxu0 %v4811
          %5742 = vmatpush1.bf16.msra.mxu0 %v4810
          %5743 = vmatprep.subr.bf16.mxu0 %v4819
          %5744 = vmatpush1.bf16.msra.mxu0 %v4818
          %5745 = vmatprep.subr.bf16.mxu0 %v4827
          %5746 = vmatpush1.bf16.msra.mxu0 %v4826
          %5747 = vmatprep.subr.bf16.mxu0 %v4835
          %5748 = vmatpush1.bf16.msra.mxu0 %v4834
          %5749 = vmatprep.subr.bf16.mxu0 %v4843
          %5750 = vmatpush1.bf16.msra.mxu0 %v4842
          %5751 = vmatprep.subr.bf16.mxu0 %v4851
          %5752 = vmatpush1.bf16.msra.mxu0 %v4850
          %5753 = vmatprep.subr.bf16.mxu0 %v4859
          %5754 = vmatpush1.bf16.msra.mxu0 %v4858
          %5755 = vmatprep.subr.bf16.mxu0 %v4867
          %5756 = vmatpush1.bf16.msra.mxu0 %v4866
          %5757 = vmatprep.subr.bf16.mxu0 %v4875
          %5758 = vmatpush1.bf16.msra.mxu0 %v4874
          %5759 = vmatprep.subr.bf16.mxu0 %v4883
          %5760 = vmatpush1.bf16.msra.mxu0 %v4882
          %5761 = vmatprep.subr.bf16.mxu0 %v4891
          %5762 = vmatpush1.bf16.msra.mxu0 %v4890
          %5763 = vmatprep.subr.bf16.mxu0 %v4899
          %5764 = vmatpush1.bf16.msra.mxu0 %v4898
          %5765 = vmatprep.subr.bf16.mxu0 %v4907
          %5766 = vmatpush1.bf16.msra.mxu0 %v4906
          %5767 = vmatprep.subr.bf16.mxu0 %v4915
          %5768 = vmatpush1.bf16.msra.mxu0 %v4914
          %5769 = vmatprep.subr.bf16.mxu0 %v4923
          %5770 = vmatpush1.bf16.msra.mxu0 %v4922
          %5771 = vmatprep.mubr.bf16.mxu0 %v2579
          %5772 = vmatmul.mubr.bf16.gmra.mrb[0].mxu0 %v2578
          %v5773 = vpop.f32.mrb[0].mxu0
          %v5774 = vadd.f32 %v5733, %v5773
          %v5775 = vpop.f32.mrb[0].mxu0
          %v5776 = vadd.f32 %v5735, %v5775
          %v5777 = vpop.f32.mrb[0].mxu0
          %v5778 = vpop.f32.mrb[0].mxu0
          %5779 = vdwg.mxu0
          %5780 = vmatprep.subr.bf16.mxu0 %v4931
          %5781 = vmatpush1.bf16.msra.mxu0 %v4930
          %5782 = vmatprep.subr.bf16.mxu0 %v4939
          %5783 = vmatpush1.bf16.msra.mxu0 %v4938
          %5784 = vmatprep.subr.bf16.mxu0 %v4947
          %5785 = vmatpush1.bf16.msra.mxu0 %v4946
          %5786 = vmatprep.subr.bf16.mxu0 %v4955
          %5787 = vmatpush1.bf16.msra.mxu0 %v4954
          %5788 = vmatprep.subr.bf16.mxu0 %v4963
          %5789 = vmatpush1.bf16.msra.mxu0 %v4962
          %5790 = vmatprep.subr.bf16.mxu0 %v4971
          %5791 = vmatpush1.bf16.msra.mxu0 %v4970
          %5792 = vmatprep.subr.bf16.mxu0 %v4979
          %5793 = vmatpush1.bf16.msra.mxu0 %v4978
          %5794 = vmatprep.subr.bf16.mxu0 %v4987
          %5795 = vmatpush1.bf16.msra.mxu0 %v4986
          %5796 = vmatprep.subr.bf16.mxu0 %v4995
          %5797 = vmatpush1.bf16.msra.mxu0 %v4994
          %5798 = vmatprep.subr.bf16.mxu0 %v5003
          %5799 = vmatpush1.bf16.msra.mxu0 %v5002
          %5800 = vmatprep.subr.bf16.mxu0 %v5011
          %5801 = vmatpush1.bf16.msra.mxu0 %v5010
          %5802 = vmatprep.subr.bf16.mxu0 %v5019
          %5803 = vmatpush1.bf16.msra.mxu0 %v5018
          %5804 = vmatprep.subr.bf16.mxu0 %v5027
          %5805 = vmatpush1.bf16.msra.mxu0 %v5026
          %5806 = vmatprep.subr.bf16.mxu0 %v5035
          %5807 = vmatpush1.bf16.msra.mxu0 %v5034
          %5808 = vmatprep.subr.bf16.mxu0 %v5043
          %5809 = vmatpush1.bf16.msra.mxu0 %v5042
          %5810 = vmatprep.subr.bf16.mxu0 %v5051
          %5811 = vmatpush1.bf16.msra.mxu0 %v5050
          %5812 = vmatprep.mubr.bf16.mxu0 %v2581
          %5813 = vmatmul.mubr.bf16.gmra.mrb[0].mxu0 %v2580
          %v5814 = vpop.f32.mrb[0].mxu0
          %v5815 = vadd.f32 %v5774, %v5814
          %v5816 = vpop.f32.mrb[0].mxu0
          %v5817 = vadd.f32 %v5776, %v5816
          %v5818 = vpop.f32.mrb[0].mxu0
          %v5819 = vpop.f32.mrb[0].mxu0
          %5820 = vdwg.mxu0
          %5821 = vmatprep.subr.bf16.mxu0 %v5059
          %5822 = vmatpush1.bf16.msra.mxu0 %v5058
          %5823 = vmatprep.subr.bf16.mxu0 %v5067
          %5824 = vmatpush1.bf16.msra.mxu0 %v5066
          %5825 = vmatprep.subr.bf16.mxu0 %v5075
          %5826 = vmatpush1.bf16.msra.mxu0 %v5074
          %5827 = vmatprep.subr.bf16.mxu0 %v5083
          %5828 = vmatpush1.bf16.msra.mxu0 %v5082
          %5829 = vmatprep.subr.bf16.mxu0 %v5091
          %5830 = vmatpush1.bf16.msra.mxu0 %v5090
          %5831 = vmatprep.subr.bf16.mxu0 %v5099
          %5832 = vmatpush1.bf16.msra.mxu0 %v5098
          %5833 = vmatprep.subr.bf16.mxu0 %v5107
          %5834 = vmatpush1.bf16.msra.mxu0 %v5106
          %5835 = vmatprep.subr.bf16.mxu0 %v5115
          %5836 = vmatpush1.bf16.msra.mxu0 %v5114
          %5837 = vmatprep.subr.bf16.mxu0 %v5123
          %5838 = vmatpush1.bf16.msra.mxu0 %v5122
          %5839 = vmatprep.subr.bf16.mxu0 %v5131
          %5840 = vmatpush1.bf16.msra.mxu0 %v5130
          %5841 = vmatprep.subr.bf16.mxu0 %v5139
          %5842 = vmatpush1.bf16.msra.mxu0 %v5138
          %5843 = vmatprep.subr.bf16.mxu0 %v5147
          %5844 = vmatpush1.bf16.msra.mxu0 %v5146
          %5845 = vmatprep.subr.bf16.mxu0 %v5155
          %5846 = vmatpush1.bf16.msra.mxu0 %v5154
          %5847 = vmatprep.subr.bf16.mxu0 %v5163
          %5848 = vmatpush1.bf16.msra.mxu0 %v5162
          %5849 = vmatprep.subr.bf16.mxu0 %v5171
          %5850 = vmatpush1.bf16.msra.mxu0 %v5170
          %5851 = vmatprep.subr.bf16.mxu0 %v5179
          %5852 = vmatpush1.bf16.msra.mxu0 %v5178
          %5853 = vmatprep.mubr.bf16.mxu0 %v2583
          %5854 = vmatmul.mubr.bf16.gmra.mrb[0].mxu0 %v2582
          %v5855 = vpop.f32.mrb[0].mxu0
          %v5856 = vadd.f32 %v5815, %v5855
          %v5857 = vpop.f32.mrb[0].mxu0
          %v5858 = vadd.f32 %v5817, %v5857
          %v5859 = vpop.f32.mrb[0].mxu0
          %v5860 = vpop.f32.mrb[0].mxu0
          %5861 = vdwg.mxu0
          %5862 = vmatprep.subr.bf16.mxu0 %v4677
          %5863 = vmatpush1.bf16.msra.mxu0 %v4676
          %5864 = vmatprep.subr.bf16.mxu0 %v4685
          %5865 = vmatpush1.bf16.msra.mxu0 %v4684
          %5866 = vmatprep.subr.bf16.mxu0 %v4693
          %5867 = vmatpush1.bf16.msra.mxu0 %v4692
          %5868 = vmatprep.subr.bf16.mxu0 %v4701
          %5869 = vmatpush1.bf16.msra.mxu0 %v4700
          %5870 = vmatprep.subr.bf16.mxu0 %v4709
          %5871 = vmatpush1.bf16.msra.mxu0 %v4708
          %5872 = vmatprep.subr.bf16.mxu0 %v4717
          %5873 = vmatpush1.bf16.msra.mxu0 %v4716
          %5874 = vmatprep.subr.bf16.mxu0 %v4725
          %5875 = vmatpush1.bf16.msra.mxu0 %v4724
          %5876 = vmatprep.subr.bf16.mxu0 %v4733
          %5877 = vmatpush1.bf16.msra.mxu0 %v4732
          %5878 = vmatprep.subr.bf16.mxu0 %v4741
          %5879 = vmatpush1.bf16.msra.mxu0 %v4740
          %5880 = vmatprep.subr.bf16.mxu0 %v4749
          %5881 = vmatpush1.bf16.msra.mxu0 %v4748
          %5882 = vmatprep.subr.bf16.mxu0 %v4757
          %5883 = vmatpush1.bf16.msra.mxu0 %v4756
          %5884 = vmatprep.subr.bf16.mxu0 %v4765
          %5885 = vmatpush1.bf16.msra.mxu0 %v4764
          %5886 = vmatprep.subr.bf16.mxu0 %v4773
          %5887 = vmatpush1.bf16.msra.mxu0 %v4772
          %5888 = vmatprep.subr.bf16.mxu0 %v4781
          %5889 = vmatpush1.bf16.msra.mxu0 %v4780
          %5890 = vmatprep.subr.bf16.mxu0 %v4789
          %5891 = vmatpush1.bf16.msra.mxu0 %v4788
          %5892 = vmatprep.subr.bf16.mxu0 %v4797
          %5893 = vmatpush1.bf16.msra.mxu0 %v4796
          %5894 = vmatprep.mubr.bf16.mxu0 %v2577
          %5895 = vmatmul.mubr.bf16.gmra.mrb[0].mxu0 %v2576
          %v5896 = vpop.f32.mrb[0].mxu0
          %v5897 = vadd.f32 %v3109, %v5896
          %v5898 = vpop.f32.mrb[0].mxu0
          %v5899 = vadd.f32 %v3113, %v5898
          %v5900 = vpop.f32.mrb[0].mxu0
          %v5901 = vpop.f32.mrb[0].mxu0
          %5902 = vdwg.mxu0
          %5903 = vmatprep.subr.bf16.mxu0 %v4805
          %5904 = vmatpush1.bf16.msra.mxu0 %v4804
          %5905 = vmatprep.subr.bf16.mxu0 %v4813
          %5906 = vmatpush1.bf16.msra.mxu0 %v4812
          %5907 = vmatprep.subr.bf16.mxu0 %v4821
          %5908 = vmatpush1.bf16.msra.mxu0 %v4820
          %5909 = vmatprep.subr.bf16.mxu0 %v4829
          %5910 = vmatpush1.bf16.msra.mxu0 %v4828
          %5911 = vmatprep.subr.bf16.mxu0 %v4837
          %5912 = vmatpush1.bf16.msra.mxu0 %v4836
          %5913 = vmatprep.subr.bf16.mxu0 %v4845
          %5914 = vmatpush1.bf16.msra.mxu0 %v4844
          %5915 = vmatprep.subr.bf16.mxu0 %v4853
          %5916 = vmatpush1.bf16.msra.mxu0 %v4852
          %5917 = vmatprep.subr.bf16.mxu0 %v4861
          %5918 = vmatpush1.bf16.msra.mxu0 %v4860
          %5919 = vmatprep.subr.bf16.mxu0 %v4869
          %5920 = vmatpush1.bf16.msra.mxu0 %v4868
          %5921 = vmatprep.subr.bf16.mxu0 %v4877
          %5922 = vmatpush1.bf16.msra.mxu0 %v4876
          %5923 = vmatprep.subr.bf16.mxu0 %v4885
          %5924 = vmatpush1.bf16.msra.mxu0 %v4884
          %5925 = vmatprep.subr.bf16.mxu0 %v4893
          %5926 = vmatpush1.bf16.msra.mxu0 %v4892
          %5927 = vmatprep.subr.bf16.mxu0 %v4901
          %5928 = vmatpush1.bf16.msra.mxu0 %v4900
          %5929 = vmatprep.subr.bf16.mxu0 %v4909
          %5930 = vmatpush1.bf16.msra.mxu0 %v4908
          %5931 = vmatprep.subr.bf16.mxu0 %v4917
          %5932 = vmatpush1.bf16.msra.mxu0 %v4916
          %5933 = vmatprep.subr.bf16.mxu0 %v4925
          %5934 = vmatpush1.bf16.msra.mxu0 %v4924
          %5935 = vmatprep.mubr.bf16.mxu0 %v2579
          %5936 = vmatmul.mubr.bf16.gmra.mrb[0].mxu0 %v2578
          %v5937 = vpop.f32.mrb[0].mxu0
          %v5938 = vadd.f32 %v5897, %v5937
          %v5939 = vpop.f32.mrb[0].mxu0
          %v5940 = vadd.f32 %v5899, %v5939
          %v5941 = vpop.f32.mrb[0].mxu0
          %v5942 = vpop.f32.mrb[0].mxu0
          %5943 = vdwg.mxu0
          %5944 = vmatprep.subr.bf16.mxu0 %v4933
          %5945 = vmatpush1.bf16.msra.mxu0 %v4932
          %5946 = vmatprep.subr.bf16.mxu0 %v4941
          %5947 = vmatpush1.bf16.msra.mxu0 %v4940
          %5948 = vmatprep.subr.bf16.mxu0 %v4949
          %5949 = vmatpush1.bf16.msra.mxu0 %v4948
          %5950 = vmatprep.subr.bf16.mxu0 %v4957
          %5951 = vmatpush1.bf16.msra.mxu0 %v4956
          %5952 = vmatprep.subr.bf16.mxu0 %v4965
          %5953 = vmatpush1.bf16.msra.mxu0 %v4964
          %5954 = vmatprep.subr.bf16.mxu0 %v4973
          %5955 = vmatpush1.bf16.msra.mxu0 %v4972
          %5956 = vmatprep.subr.bf16.mxu0 %v4981
          %5957 = vmatpush1.bf16.msra.mxu0 %v4980
          %5958 = vmatprep.subr.bf16.mxu0 %v4989
          %5959 = vmatpush1.bf16.msra.mxu0 %v4988
          %5960 = vmatprep.subr.bf16.mxu0 %v4997
          %5961 = vmatpush1.bf16.msra.mxu0 %v4996
          %5962 = vmatprep.subr.bf16.mxu0 %v5005
          %5963 = vmatpush1.bf16.msra.mxu0 %v5004
          %5964 = vmatprep.subr.bf16.mxu0 %v5013
          %5965 = vmatpush1.bf16.msra.mxu0 %v5012
          %5966 = vmatprep.subr.bf16.mxu0 %v5021
          %5967 = vmatpush1.bf16.msra.mxu0 %v5020
          %5968 = vmatprep.subr.bf16.mxu0 %v5029
          %5969 = vmatpush1.bf16.msra.mxu0 %v5028
          %5970 = vmatprep.subr.bf16.mxu0 %v5037
          %5971 = vmatpush1.bf16.msra.mxu0 %v5036
          %5972 = vmatprep.subr.bf16.mxu0 %v5045
          %5973 = vmatpush1.bf16.msra.mxu0 %v5044
          %5974 = vmatprep.subr.bf16.mxu0 %v5053
          %5975 = vmatpush1.bf16.msra.mxu0 %v5052
          %5976 = vmatprep.mubr.bf16.mxu0 %v2581
          %5977 = vmatmul.mubr.bf16.gmra.mrb[0].mxu0 %v2580
          %v5978 = vpop.f32.mrb[0].mxu0
          %v5979 = vadd.f32 %v5938, %v5978
          %v5980 = vpop.f32.mrb[0].mxu0
          %v5981 = vadd.f32 %v5940, %v5980
          %v5982 = vpop.f32.mrb[0].mxu0
          %v5983 = vpop.f32.mrb[0].mxu0
          %5984 = vdwg.mxu0
          %5985 = vmatprep.subr.bf16.mxu0 %v5061
          %5986 = vmatpush1.bf16.msra.mxu0 %v5060
          %5987 = vmatprep.subr.bf16.mxu0 %v5069
          %5988 = vmatpush1.bf16.msra.mxu0 %v5068
          %5989 = vmatprep.subr.bf16.mxu0 %v5077
          %5990 = vmatpush1.bf16.msra.mxu0 %v5076
          %5991 = vmatprep.subr.bf16.mxu0 %v5085
          %5992 = vmatpush1.bf16.msra.mxu0 %v5084
          %5993 = vmatprep.subr.bf16.mxu0 %v5093
          %5994 = vmatpush1.bf16.msra.mxu0 %v5092
          %5995 = vmatprep.subr.bf16.mxu0 %v5101
          %5996 = vmatpush1.bf16.msra.mxu0 %v5100
          %5997 = vmatprep.subr.bf16.mxu0 %v5109
          %5998 = vmatpush1.bf16.msra.mxu0 %v5108
          %5999 = vmatprep.subr.bf16.mxu0 %v5117
          %6000 = vmatpush1.bf16.msra.mxu0 %v5116
          %6001 = vmatprep.subr.bf16.mxu0 %v5125
          %6002 = vmatpush1.bf16.msra.mxu0 %v5124
          %6003 = vmatprep.subr.bf16.mxu0 %v5133
          %6004 = vmatpush1.bf16.msra.mxu0 %v5132
          %6005 = vmatprep.subr.bf16.mxu0 %v5141
          %6006 = vmatpush1.bf16.msra.mxu0 %v5140
          %6007 = vmatprep.subr.bf16.mxu0 %v5149
          %6008 = vmatpush1.bf16.msra.mxu0 %v5148
          %6009 = vmatprep.subr.bf16.mxu0 %v5157
          %6010 = vmatpush1.bf16.msra.mxu0 %v5156
          %6011 = vmatprep.subr.bf16.mxu0 %v5165
          %6012 = vmatpush1.bf16.msra.mxu0 %v5164
          %6013 = vmatprep.subr.bf16.mxu0 %v5173
          %6014 = vmatpush1.bf16.msra.mxu0 %v5172
          %6015 = vmatprep.subr.bf16.mxu0 %v5181
          %6016 = vmatpush1.bf16.msra.mxu0 %v5180
          %6017 = vmatprep.mubr.bf16.mxu0 %v2583
          %6018 = vmatmul.mubr.bf16.gmra.mrb[0].mxu0 %v2582
          %v6019 = vpop.f32.mrb[0].mxu0
          %v6020 = vadd.f32 %v5979, %v6019
          %v6021 = vpop.f32.mrb[0].mxu0
          %v6022 = vadd.f32 %v5981, %v6021
          %v6023 = vpop.f32.mrb[0].mxu0
          %v6024 = vpop.f32.mrb[0].mxu0
          %6025 = vdwg.mxu0
          %6026 = vmatprep.subr.bf16.mxu0 %v4679
          %6027 = vmatpush1.bf16.msra.mxu0 %v4678
          %6028 = vmatprep.subr.bf16.mxu0 %v4687
          %6029 = vmatpush1.bf16.msra.mxu0 %v4686
          %6030 = vmatprep.subr.bf16.mxu0 %v4695
          %6031 = vmatpush1.bf16.msra.mxu0 %v4694
          %6032 = vmatprep.subr.bf16.mxu0 %v4703
          %6033 = vmatpush1.bf16.msra.mxu0 %v4702
          %6034 = vmatprep.subr.bf16.mxu0 %v4711
          %6035 = vmatpush1.bf16.msra.mxu0 %v4710
          %6036 = vmatprep.subr.bf16.mxu0 %v4719
          %6037 = vmatpush1.bf16.msra.mxu0 %v4718
          %6038 = vmatprep.subr.bf16.mxu0 %v4727
          %6039 = vmatpush1.bf16.msra.mxu0 %v4726
          %6040 = vmatprep.subr.bf16.mxu0 %v4735
          %6041 = vmatpush1.bf16.msra.mxu0 %v4734
          %6042 = vmatprep.subr.bf16.mxu0 %v4743
          %6043 = vmatpush1.bf16.msra.mxu0 %v4742
          %6044 = vmatprep.subr.bf16.mxu0 %v4751
          %6045 = vmatpush1.bf16.msra.mxu0 %v4750
          %6046 = vmatprep.subr.bf16.mxu0 %v4759
          %6047 = vmatpush1.bf16.msra.mxu0 %v4758
          %6048 = vmatprep.subr.bf16.mxu0 %v4767
          %6049 = vmatpush1.bf16.msra.mxu0 %v4766
          %6050 = vmatprep.subr.bf16.mxu0 %v4775
          %6051 = vmatpush1.bf16.msra.mxu0 %v4774
          %6052 = vmatprep.subr.bf16.mxu0 %v4783
          %6053 = vmatpush1.bf16.msra.mxu0 %v4782
          %6054 = vmatprep.subr.bf16.mxu0 %v4791
          %6055 = vmatpush1.bf16.msra.mxu0 %v4790
          %6056 = vmatprep.subr.bf16.mxu0 %v4799
          %6057 = vmatpush1.bf16.msra.mxu0 %v4798
          %6058 = vmatprep.mubr.bf16.mxu0 %v2577
          %6059 = vmatmul.mubr.bf16.gmra.mrb[0].mxu0 %v2576
          %v6060 = vpop.f32.mrb[0].mxu0
          %v6061 = vadd.f32 %v3117, %v6060
          %v6062 = vpop.f32.mrb[0].mxu0
          %v6063 = vadd.f32 %v3121, %v6062
          %v6064 = vpop.f32.mrb[0].mxu0
          %v6065 = vpop.f32.mrb[0].mxu0
          %6066 = vdwg.mxu0
          %6067 = vmatprep.subr.bf16.mxu0 %v4807
          %6068 = vmatpush1.bf16.msra.mxu0 %v4806
          %6069 = vmatprep.subr.bf16.mxu0 %v4815
          %6070 = vmatpush1.bf16.msra.mxu0 %v4814
          %6071 = vmatprep.subr.bf16.mxu0 %v4823
          %6072 = vmatpush1.bf16.msra.mxu0 %v4822
          %6073 = vmatprep.subr.bf16.mxu0 %v4831
          %6074 = vmatpush1.bf16.msra.mxu0 %v4830
          %6075 = vmatprep.subr.bf16.mxu0 %v4839
          %6076 = vmatpush1.bf16.msra.mxu0 %v4838
          %6077 = vmatprep.subr.bf16.mxu0 %v4847
          %6078 = vmatpush1.bf16.msra.mxu0 %v4846
          %6079 = vmatprep.subr.bf16.mxu0 %v4855
          %6080 = vmatpush1.bf16.msra.mxu0 %v4854
          %6081 = vmatprep.subr.bf16.mxu0 %v4863
          %6082 = vmatpush1.bf16.msra.mxu0 %v4862
          %6083 = vmatprep.subr.bf16.mxu0 %v4871
          %6084 = vmatpush1.bf16.msra.mxu0 %v4870
          %6085 = vmatprep.subr.bf16.mxu0 %v4879
          %6086 = vmatpush1.bf16.msra.mxu0 %v4878
          %6087 = vmatprep.subr.bf16.mxu0 %v4887
          %6088 = vmatpush1.bf16.msra.mxu0 %v4886
          %6089 = vmatprep.subr.bf16.mxu0 %v4895
          %6090 = vmatpush1.bf16.msra.mxu0 %v4894
          %6091 = vmatprep.subr.bf16.mxu0 %v4903
          %6092 = vmatpush1.bf16.msra.mxu0 %v4902
          %6093 = vmatprep.subr.bf16.mxu0 %v4911
          %6094 = vmatpush1.bf16.msra.mxu0 %v4910
          %6095 = vmatprep.subr.bf16.mxu0 %v4919
          %6096 = vmatpush1.bf16.msra.mxu0 %v4918
          %6097 = vmatprep.subr.bf16.mxu0 %v4927
          %6098 = vmatpush1.bf16.msra.mxu0 %v4926
          %6099 = vmatprep.mubr.bf16.mxu0 %v2579
          %6100 = vmatmul.mubr.bf16.gmra.mrb[0].mxu0 %v2578
          %v6101 = vpop.f32.mrb[0].mxu0
          %v6102 = vadd.f32 %v6061, %v6101
          %v6103 = vpop.f32.mrb[0].mxu0
          %v6104 = vadd.f32 %v6063, %v6103
          %v6105 = vpop.f32.mrb[0].mxu0
          %v6106 = vpop.f32.mrb[0].mxu0
          %6107 = vdwg.mxu0
          %6108 = vmatprep.subr.bf16.mxu0 %v4935
          %6109 = vmatpush1.bf16.msra.mxu0 %v4934
          %6110 = vmatprep.subr.bf16.mxu0 %v4943
          %6111 = vmatpush1.bf16.msra.mxu0 %v4942
          %6112 = vmatprep.subr.bf16.mxu0 %v4951
          %6113 = vmatpush1.bf16.msra.mxu0 %v4950
          %6114 = vmatprep.subr.bf16.mxu0 %v4959
          %6115 = vmatpush1.bf16.msra.mxu0 %v4958
          %6116 = vmatprep.subr.bf16.mxu0 %v4967
          %6117 = vmatpush1.bf16.msra.mxu0 %v4966
          %6118 = vmatprep.subr.bf16.mxu0 %v4975
          %6119 = vmatpush1.bf16.msra.mxu0 %v4974
          %6120 = vmatprep.subr.bf16.mxu0 %v4983
          %6121 = vmatpush1.bf16.msra.mxu0 %v4982
          %6122 = vmatprep.subr.bf16.mxu0 %v4991
          %6123 = vmatpush1.bf16.msra.mxu0 %v4990
          %6124 = vmatprep.subr.bf16.mxu0 %v4999
          %6125 = vmatpush1.bf16.msra.mxu0 %v4998
          %6126 = vmatprep.subr.bf16.mxu0 %v5007
          %6127 = vmatpush1.bf16.msra.mxu0 %v5006
          %6128 = vmatprep.subr.bf16.mxu0 %v5015
          %6129 = vmatpush1.bf16.msra.mxu0 %v5014
          %6130 = vmatprep.subr.bf16.mxu0 %v5023
          %6131 = vmatpush1.bf16.msra.mxu0 %v5022
          %6132 = vmatprep.subr.bf16.mxu0 %v5031
          %6133 = vmatpush1.bf16.msra.mxu0 %v5030
          %6134 = vmatprep.subr.bf16.mxu0 %v5039
          %6135 = vmatpush1.bf16.msra.mxu0 %v5038
          %6136 = vmatprep.subr.bf16.mxu0 %v5047
          %6137 = vmatpush1.bf16.msra.mxu0 %v5046
          %6138 = vmatprep.subr.bf16.mxu0 %v5055
          %6139 = vmatpush1.bf16.msra.mxu0 %v5054
          %6140 = vmatprep.mubr.bf16.mxu0 %v2581
          %6141 = vmatmul.mubr.bf16.gmra.mrb[0].mxu0 %v2580
          %v6142 = vpop.f32.mrb[0].mxu0
          %v6143 = vadd.f32 %v6102, %v6142
          %v6144 = vpop.f32.mrb[0].mxu0
          %v6145 = vadd.f32 %v6104, %v6144
          %v6146 = vpop.f32.mrb[0].mxu0
          %v6147 = vpop.f32.mrb[0].mxu0
          %6148 = vdwg.mxu0
          %6149 = vmatprep.subr.bf16.mxu0 %v5063
          %6150 = vmatpush1.bf16.msra.mxu0 %v5062
          %6151 = vmatprep.subr.bf16.mxu0 %v5071
          %6152 = vmatpush1.bf16.msra.mxu0 %v5070
          %6153 = vmatprep.subr.bf16.mxu0 %v5079
          %6154 = vmatpush1.bf16.msra.mxu0 %v5078
          %6155 = vmatprep.subr.bf16.mxu0 %v5087
          %6156 = vmatpush1.bf16.msra.mxu0 %v5086
          %6157 = vmatprep.subr.bf16.mxu0 %v5095
          %6158 = vmatpush1.bf16.msra.mxu0 %v5094
          %6159 = vmatprep.subr.bf16.mxu0 %v5103
          %6160 = vmatpush1.bf16.msra.mxu0 %v5102
          %6161 = vmatprep.subr.bf16.mxu0 %v5111
          %6162 = vmatpush1.bf16.msra.mxu0 %v5110
          %6163 = vmatprep.subr.bf16.mxu0 %v5119
          %6164 = vmatpush1.bf16.msra.mxu0 %v5118
          %6165 = vmatprep.subr.bf16.mxu0 %v5127
          %6166 = vmatpush1.bf16.msra.mxu0 %v5126
          %6167 = vmatprep.subr.bf16.mxu0 %v5135
          %6168 = vmatpush1.bf16.msra.mxu0 %v5134
          %6169 = vmatprep.subr.bf16.mxu0 %v5143
          %6170 = vmatpush1.bf16.msra.mxu0 %v5142
          %6171 = vmatprep.subr.bf16.mxu0 %v5151
          %6172 = vmatpush1.bf16.msra.mxu0 %v5150
          %6173 = vmatprep.subr.bf16.mxu0 %v5159
          %6174 = vmatpush1.bf16.msra.mxu0 %v5158
          %6175 = vmatprep.subr.bf16.mxu0 %v5167
          %6176 = vmatpush1.bf16.msra.mxu0 %v5166
          %6177 = vmatprep.subr.bf16.mxu0 %v5175
          %6178 = vmatpush1.bf16.msra.mxu0 %v5174
          %6179 = vmatprep.subr.bf16.mxu0 %v5183
          %6180 = vmatpush1.bf16.msra.mxu0 %v5182
          %6181 = vmatprep.mubr.bf16.mxu0 %v2583
          %6182 = vmatmul.mubr.bf16.gmra.mrb[0].mxu0 %v2582
          %v6183 = vpop.f32.mrb[0].mxu0
          %v6184 = vadd.f32 %v6143, %v6183
          %v6185 = vpop.f32.mrb[0].mxu0
          %v6186 = vadd.f32 %v6145, %v6185
          %v6187 = vpop.f32.mrb[0].mxu0
          %v6188 = vpop.f32.mrb[0].mxu0
          %6189 = vdwg.mxu0
          %6190 = vmatprep.subr.bf16.mxu0 %v4681
          %6191 = vmatpush1.bf16.msra.mxu0 %v4680
          %6192 = vmatprep.subr.bf16.mxu0 %v4689
          %6193 = vmatpush1.bf16.msra.mxu0 %v4688
          %6194 = vmatprep.subr.bf16.mxu0 %v4697
          %6195 = vmatpush1.bf16.msra.mxu0 %v4696
          %6196 = vmatprep.subr.bf16.mxu0 %v4705
          %6197 = vmatpush1.bf16.msra.mxu0 %v4704
          %6198 = vmatprep.subr.bf16.mxu0 %v4713
          %6199 = vmatpush1.bf16.msra.mxu0 %v4712
          %6200 = vmatprep.subr.bf16.mxu0 %v4721
          %6201 = vmatpush1.bf16.msra.mxu0 %v4720
          %6202 = vmatprep.subr.bf16.mxu0 %v4729
          %6203 = vmatpush1.bf16.msra.mxu0 %v4728
          %6204 = vmatprep.subr.bf16.mxu0 %v4737
          %6205 = vmatpush1.bf16.msra.mxu0 %v4736
          %6206 = vmatprep.subr.bf16.mxu0 %v4745
          %6207 = vmatpush1.bf16.msra.mxu0 %v4744
          %6208 = vmatprep.subr.bf16.mxu0 %v4753
          %6209 = vmatpush1.bf16.msra.mxu0 %v4752
          %6210 = vmatprep.subr.bf16.mxu0 %v4761
          %6211 = vmatpush1.bf16.msra.mxu0 %v4760
          %6212 = vmatprep.subr.bf16.mxu0 %v4769
          %6213 = vmatpush1.bf16.msra.mxu0 %v4768
          %6214 = vmatprep.subr.bf16.mxu0 %v4777
          %6215 = vmatpush1.bf16.msra.mxu0 %v4776
          %6216 = vmatprep.subr.bf16.mxu0 %v4785
          %6217 = vmatpush1.bf16.msra.mxu0 %v4784
          %6218 = vmatprep.subr.bf16.mxu0 %v4793
          %6219 = vmatpush1.bf16.msra.mxu0 %v4792
          %6220 = vmatprep.subr.bf16.mxu0 %v4801
          %6221 = vmatpush1.bf16.msra.mxu0 %v4800
          %6222 = vmatprep.mubr.bf16.mxu0 %v2577
          %6223 = vmatmul.mubr.bf16.gmra.mrb[0].mxu0 %v2576
          %v6224 = vpop.f32.mrb[0].mxu0
          %v6225 = vadd.f32 %v3125, %v6224
          %v6226 = vpop.f32.mrb[0].mxu0
          %v6227 = vadd.f32 %v3129, %v6226
          %v6228 = vpop.f32.mrb[0].mxu0
          %v6229 = vpop.f32.mrb[0].mxu0
          %6230 = vdwg.mxu0
          %6231 = vmatprep.subr.bf16.mxu0 %v4809
          %6232 = vmatpush1.bf16.msra.mxu0 %v4808
          %6233 = vmatprep.subr.bf16.mxu0 %v4817
          %6234 = vmatpush1.bf16.msra.mxu0 %v4816
          %6235 = vmatprep.subr.bf16.mxu0 %v4825
          %6236 = vmatpush1.bf16.msra.mxu0 %v4824
          %6237 = vmatprep.subr.bf16.mxu0 %v4833
          %6238 = vmatpush1.bf16.msra.mxu0 %v4832
          %6239 = vmatprep.subr.bf16.mxu0 %v4841
          %6240 = vmatpush1.bf16.msra.mxu0 %v4840
          %6241 = vmatprep.subr.bf16.mxu0 %v4849
          %6242 = vmatpush1.bf16.msra.mxu0 %v4848
          %6243 = vmatprep.subr.bf16.mxu0 %v4857
          %6244 = vmatpush1.bf16.msra.mxu0 %v4856
          %6245 = vmatprep.subr.bf16.mxu0 %v4865
          %6246 = vmatpush1.bf16.msra.mxu0 %v4864
          %6247 = vmatprep.subr.bf16.mxu0 %v4873
          %6248 = vmatpush1.bf16.msra.mxu0 %v4872
          %6249 = vmatprep.subr.bf16.mxu0 %v4881
          %6250 = vmatpush1.bf16.msra.mxu0 %v4880
          %6251 = vmatprep.subr.bf16.mxu0 %v4889
          %6252 = vmatpush1.bf16.msra.mxu0 %v4888
          %6253 = vmatprep.subr.bf16.mxu0 %v4897
          %6254 = vmatpush1.bf16.msra.mxu0 %v4896
          %6255 = vmatprep.subr.bf16.mxu0 %v4905
          %6256 = vmatpush1.bf16.msra.mxu0 %v4904
          %6257 = vmatprep.subr.bf16.mxu0 %v4913
          %6258 = vmatpush1.bf16.msra.mxu0 %v4912
          %6259 = vmatprep.subr.bf16.mxu0 %v4921
          %6260 = vmatpush1.bf16.msra.mxu0 %v4920
          %6261 = vmatprep.subr.bf16.mxu0 %v4929
          %6262 = vmatpush1.bf16.msra.mxu0 %v4928
          %6263 = vmatprep.mubr.bf16.mxu0 %v2579
          %6264 = vmatmul.mubr.bf16.gmra.mrb[0].mxu0 %v2578
          %v6265 = vpop.f32.mrb[0].mxu0
          %v6266 = vadd.f32 %v6225, %v6265
          %v6267 = vpop.f32.mrb[0].mxu0
          %v6268 = vadd.f32 %v6227, %v6267
          %v6269 = vpop.f32.mrb[0].mxu0
          %v6270 = vpop.f32.mrb[0].mxu0
          %6271 = vdwg.mxu0
          %6272 = vmatprep.subr.bf16.mxu0 %v4937
          %6273 = vmatpush1.bf16.msra.mxu0 %v4936
          %6274 = vmatprep.subr.bf16.mxu0 %v4945
          %6275 = vmatpush1.bf16.msra.mxu0 %v4944
          %6276 = vmatprep.subr.bf16.mxu0 %v4953
          %6277 = vmatpush1.bf16.msra.mxu0 %v4952
          %6278 = vmatprep.subr.bf16.mxu0 %v4961
          %6279 = vmatpush1.bf16.msra.mxu0 %v4960
          %6280 = vmatprep.subr.bf16.mxu0 %v4969
          %6281 = vmatpush1.bf16.msra.mxu0 %v4968
          %6282 = vmatprep.subr.bf16.mxu0 %v4977
          %6283 = vmatpush1.bf16.msra.mxu0 %v4976
          %6284 = vmatprep.subr.bf16.mxu0 %v4985
          %6285 = vmatpush1.bf16.msra.mxu0 %v4984
          %6286 = vmatprep.subr.bf16.mxu0 %v4993
          %6287 = vmatpush1.bf16.msra.mxu0 %v4992
          %6288 = vmatprep.subr.bf16.mxu0 %v5001
          %6289 = vmatpush1.bf16.msra.mxu0 %v5000
          %6290 = vmatprep.subr.bf16.mxu0 %v5009
          %6291 = vmatpush1.bf16.msra.mxu0 %v5008
          %6292 = vmatprep.subr.bf16.mxu0 %v5017
          %6293 = vmatpush1.bf16.msra.mxu0 %v5016
          %6294 = vmatprep.subr.bf16.mxu0 %v5025
          %6295 = vmatpush1.bf16.msra.mxu0 %v5024
          %6296 = vmatprep.subr.bf16.mxu0 %v5033
          %6297 = vmatpush1.bf16.msra.mxu0 %v5032
          %6298 = vmatprep.subr.bf16.mxu0 %v5041
          %6299 = vmatpush1.bf16.msra.mxu0 %v5040
          %6300 = vmatprep.subr.bf16.mxu0 %v5049
          %6301 = vmatpush1.bf16.msra.mxu0 %v5048
          %6302 = vmatprep.subr.bf16.mxu0 %v5057
          %6303 = vmatpush1.bf16.msra.mxu0 %v5056
          %6304 = vmatprep.mubr.bf16.mxu0 %v2581
          %6305 = vmatmul.mubr.bf16.gmra.mrb[0].mxu0 %v2580
          %v6306 = vpop.f32.mrb[0].mxu0
          %v6307 = vadd.f32 %v6266, %v6306
          %v6308 = vpop.f32.mrb[0].mxu0
          %v6309 = vadd.f32 %v6268, %v6308
          %v6310 = vpop.f32.mrb[0].mxu0
          %v6311 = vpop.f32.mrb[0].mxu0
          %6312 = vdwg.mxu0
          %6313 = vmatprep.subr.bf16.mxu0 %v5065
          %6314 = vmatpush1.bf16.msra.mxu0 %v5064
          %6315 = vmatprep.subr.bf16.mxu0 %v5073
          %6316 = vmatpush1.bf16.msra.mxu0 %v5072
          %6317 = vmatprep.subr.bf16.mxu0 %v5081
          %6318 = vmatpush1.bf16.msra.mxu0 %v5080
          %6319 = vmatprep.subr.bf16.mxu0 %v5089
          %6320 = vmatpush1.bf16.msra.mxu0 %v5088
          %6321 = vmatprep.subr.bf16.mxu0 %v5097
          %6322 = vmatpush1.bf16.msra.mxu0 %v5096
          %6323 = vmatprep.subr.bf16.mxu0 %v5105
          %6324 = vmatpush1.bf16.msra.mxu0 %v5104
          %6325 = vmatprep.subr.bf16.mxu0 %v5113
          %6326 = vmatpush1.bf16.msra.mxu0 %v5112
          %6327 = vmatprep.subr.bf16.mxu0 %v5121
          %6328 = vmatpush1.bf16.msra.mxu0 %v5120
          %6329 = vmatprep.subr.bf16.mxu0 %v5129
          %6330 = vmatpush1.bf16.msra.mxu0 %v5128
          %6331 = vmatprep.subr.bf16.mxu0 %v5137
          %6332 = vmatpush1.bf16.msra.mxu0 %v5136
          %6333 = vmatprep.subr.bf16.mxu0 %v5145
          %6334 = vmatpush1.bf16.msra.mxu0 %v5144
          %6335 = vmatprep.subr.bf16.mxu0 %v5153
          %6336 = vmatpush1.bf16.msra.mxu0 %v5152
          %6337 = vmatprep.subr.bf16.mxu0 %v5161
          %6338 = vmatpush1.bf16.msra.mxu0 %v5160
          %6339 = vmatprep.subr.bf16.mxu0 %v5169
          %6340 = vmatpush1.bf16.msra.mxu0 %v5168
          %6341 = vmatprep.subr.bf16.mxu0 %v5177
          %6342 = vmatpush1.bf16.msra.mxu0 %v5176
          %6343 = vmatprep.subr.bf16.mxu0 %v5185
          %6344 = vmatpush1.bf16.msra.mxu0 %v5184
          %6345 = vmatprep.mubr.bf16.mxu0 %v2583
          %6346 = vmatmul.mubr.bf16.gmra.mrb[0].mxu0 %v2582
          %v6347 = vpop.f32.mrb[0].mxu0
          %v6348 = vadd.f32 %v6307, %v6347
          %v6349 = vpop.f32.mrb[0].mxu0
          %v6350 = vadd.f32 %v6309, %v6349
          %v6351 = vpop.f32.mrb[0].mxu0
          %v6352 = vpop.f32.mrb[0].mxu0
          %6353 = vdwg.mxu0
          %v6354 = vpack.c.bf16 %v5856, %v5856
          %v6355 = vpack.c.bf16 %v5858, %v5858
          %v6356 = vpack.c.bf16 %v6020, %v6020
          %v6357 = vpack.c.bf16 %v6022, %v6022
          %v6358 = vpack.c.bf16 %v6184, %v6184
          %v6359 = vpack.c.bf16 %v6186, %v6186
          %v6360 = vpack.c.bf16 %v6348, %v6348
          %v6361 = vpack.c.bf16 %v6350, %v6350
          %v6362 = vld [vmem:[%s7] sm:$0xf]
          %v6363 = vld [vmem:[%s7 + $0x4] sm:$0xf]
          %v6364 = vld [vmem:[%s7 + $0x8] sm:$0xf]
          %v6365 = vld [vmem:[%s7 + $0xc] sm:$0xf]
          %v6366 = vld [vmem:[%s7 + $0x10] sm:$0xf]
          %v6367 = vld [vmem:[%s7 + $0x14] sm:$0xf]
          %v6368 = vld [vmem:[%s7 + $0x18] sm:$0xf]
          %v6369 = vld [vmem:[%s7 + $0x1c] sm:$0xf]
          %v6370 = vld [vmem:[%s7 + $0x20] sm:$0xf]
          %v6371 = vld [vmem:[%s7 + $0x24] sm:$0xf]
          %v6372 = vld [vmem:[%s7 + $0x28] sm:$0xf]
          %v6373 = vld [vmem:[%s7 + $0x2c] sm:$0xf]
          %v6374 = vld [vmem:[%s7 + $0x30] sm:$0xf]
          %v6375 = vld [vmem:[%s7 + $0x34] sm:$0xf]
          %v6376 = vld [vmem:[%s7 + $0x38] sm:$0xf]
          %v6377 = vld [vmem:[%s7 + $0x3c] sm:$0xf]
          %v6378 = vld [vmem:[%s7 + $0x40] sm:$0xf]
          %v6379 = vld [vmem:[%s7 + $0x44] sm:$0xf]
          %v6380 = vld [vmem:[%s7 + $0x48] sm:$0xf]
          %v6381 = vld [vmem:[%s7 + $0x4c] sm:$0xf]
          %v6382 = vld [vmem:[%s7 + $0x50] sm:$0xf]
          %v6383 = vld [vmem:[%s7 + $0x54] sm:$0xf]
          %v6384 = vld [vmem:[%s7 + $0x58] sm:$0xf]
          %v6385 = vld [vmem:[%s7 + $0x5c] sm:$0xf]
          %v6386 = vld [vmem:[%s7 + $0x60] sm:$0xf]
          %v6387 = vld [vmem:[%s7 + $0x64] sm:$0xf]
          %v6388 = vld [vmem:[%s7 + $0x68] sm:$0xf]
          %v6389 = vld [vmem:[%s7 + $0x6c] sm:$0xf]
          %v6390 = vld [vmem:[%s7 + $0x70] sm:$0xf]
          %v6391 = vld [vmem:[%s7 + $0x74] sm:$0xf]
          %v6392 = vld [vmem:[%s7 + $0x78] sm:$0xf]
          %v6393 = vld [vmem:[%s7 + $0x7c] sm:$0xf]
          %v6394 = vld [vmem:[%s7 + $0x80] sm:$0xf]
          %v6395 = vld [vmem:[%s7 + $0x84] sm:$0xf]
          %v6396 = vld [vmem:[%s7 + $0x88] sm:$0xf]
          %v6397 = vld [vmem:[%s7 + $0x8c] sm:$0xf]
          %v6398 = vld [vmem:[%s7 + $0x90] sm:$0xf]
          %v6399 = vld [vmem:[%s7 + $0x94] sm:$0xf]
          %v6400 = vld [vmem:[%s7 + $0x98] sm:$0xf]
          %v6401 = vld [vmem:[%s7 + $0x9c] sm:$0xf]
          %v6402 = vld [vmem:[%s7 + $0xa0] sm:$0xf]
          %v6403 = vld [vmem:[%s7 + $0xa4] sm:$0xf]
          %v6404 = vld [vmem:[%s7 + $0xa8] sm:$0xf]
          %v6405 = vld [vmem:[%s7 + $0xac] sm:$0xf]
          %v6406 = vld [vmem:[%s7 + $0xb0] sm:$0xf]
          %v6407 = vld [vmem:[%s7 + $0xb4] sm:$0xf]
          %v6408 = vld [vmem:[%s7 + $0xb8] sm:$0xf]
          %v6409 = vld [vmem:[%s7 + $0xbc] sm:$0xf]
          %v6410 = vld [vmem:[%s7 + $0xc0] sm:$0xf]
          %v6411 = vld [vmem:[%s7 + $0xc4] sm:$0xf]
          %v6412 = vld [vmem:[%s7 + $0xc8] sm:$0xf]
          %v6413 = vld [vmem:[%s7 + $0xcc] sm:$0xf]
          %v6414 = vld [vmem:[%s7 + $0xd0] sm:$0xf]
          %v6415 = vld [vmem:[%s7 + $0xd4] sm:$0xf]
          %v6416 = vld [vmem:[%s7 + $0xd8] sm:$0xf]
          %v6417 = vld [vmem:[%s7 + $0xdc] sm:$0xf]
          %v6418 = vld [vmem:[%s7 + $0xe0] sm:$0xf]
          %v6419 = vld [vmem:[%s7 + $0xe4] sm:$0xf]
          %v6420 = vld [vmem:[%s7 + $0xe8] sm:$0xf]
          %v6421 = vld [vmem:[%s7 + $0xec] sm:$0xf]
          %v6422 = vld [vmem:[%s7 + $0xf0] sm:$0xf]
          %v6423 = vld [vmem:[%s7 + $0xf4] sm:$0xf]
          %v6424 = vld [vmem:[%s7 + $0xf8] sm:$0xf]
          %v6425 = vld [vmem:[%s7 + $0xfc] sm:$0xf]
          %v6426 = vld [vmem:[%s7 + $0x100] sm:$0xf]
          %v6427 = vld [vmem:[%s7 + $0x104] sm:$0xf]
          %v6428 = vld [vmem:[%s7 + $0x108] sm:$0xf]
          %v6429 = vld [vmem:[%s7 + $0x10c] sm:$0xf]
          %v6430 = vld [vmem:[%s7 + $0x110] sm:$0xf]
          %v6431 = vld [vmem:[%s7 + $0x114] sm:$0xf]
          %v6432 = vld [vmem:[%s7 + $0x118] sm:$0xf]
          %v6433 = vld [vmem:[%s7 + $0x11c] sm:$0xf]
          %v6434 = vld [vmem:[%s7 + $0x120] sm:$0xf]
          %v6435 = vld [vmem:[%s7 + $0x124] sm:$0xf]
          %v6436 = vld [vmem:[%s7 + $0x128] sm:$0xf]
          %v6437 = vld [vmem:[%s7 + $0x12c] sm:$0xf]
          %v6438 = vld [vmem:[%s7 + $0x130] sm:$0xf]
          %v6439 = vld [vmem:[%s7 + $0x134] sm:$0xf]
          %v6440 = vld [vmem:[%s7 + $0x138] sm:$0xf]
          %v6441 = vld [vmem:[%s7 + $0x13c] sm:$0xf]
          %v6442 = vld [vmem:[%s7 + $0x140] sm:$0xf]
          %v6443 = vld [vmem:[%s7 + $0x144] sm:$0xf]
          %v6444 = vld [vmem:[%s7 + $0x148] sm:$0xf]
          %v6445 = vld [vmem:[%s7 + $0x14c] sm:$0xf]
          %v6446 = vld [vmem:[%s7 + $0x150] sm:$0xf]
          %v6447 = vld [vmem:[%s7 + $0x154] sm:$0xf]
          %v6448 = vld [vmem:[%s7 + $0x158] sm:$0xf]
          %v6449 = vld [vmem:[%s7 + $0x15c] sm:$0xf]
          %v6450 = vld [vmem:[%s7 + $0x160] sm:$0xf]
          %v6451 = vld [vmem:[%s7 + $0x164] sm:$0xf]
          %v6452 = vld [vmem:[%s7 + $0x168] sm:$0xf]
          %v6453 = vld [vmem:[%s7 + $0x16c] sm:$0xf]
          %v6454 = vld [vmem:[%s7 + $0x170] sm:$0xf]
          %v6455 = vld [vmem:[%s7 + $0x174] sm:$0xf]
          %v6456 = vld [vmem:[%s7 + $0x178] sm:$0xf]
          %v6457 = vld [vmem:[%s7 + $0x17c] sm:$0xf]
          %v6458 = vld [vmem:[%s7 + $0x180] sm:$0xf]
          %v6459 = vld [vmem:[%s7 + $0x184] sm:$0xf]
          %v6460 = vld [vmem:[%s7 + $0x188] sm:$0xf]
          %v6461 = vld [vmem:[%s7 + $0x18c] sm:$0xf]
          %v6462 = vld [vmem:[%s7 + $0x190] sm:$0xf]
          %v6463 = vld [vmem:[%s7 + $0x194] sm:$0xf]
          %v6464 = vld [vmem:[%s7 + $0x198] sm:$0xf]
          %v6465 = vld [vmem:[%s7 + $0x19c] sm:$0xf]
          %v6466 = vld [vmem:[%s7 + $0x1a0] sm:$0xf]
          %v6467 = vld [vmem:[%s7 + $0x1a4] sm:$0xf]
          %v6468 = vld [vmem:[%s7 + $0x1a8] sm:$0xf]
          %v6469 = vld [vmem:[%s7 + $0x1ac] sm:$0xf]
          %v6470 = vld [vmem:[%s7 + $0x1b0] sm:$0xf]
          %v6471 = vld [vmem:[%s7 + $0x1b4] sm:$0xf]
          %v6472 = vld [vmem:[%s7 + $0x1b8] sm:$0xf]
          %v6473 = vld [vmem:[%s7 + $0x1bc] sm:$0xf]
          %v6474 = vld [vmem:[%s7 + $0x1c0] sm:$0xf]
          %v6475 = vld [vmem:[%s7 + $0x1c4] sm:$0xf]
          %v6476 = vld [vmem:[%s7 + $0x1c8] sm:$0xf]
          %v6477 = vld [vmem:[%s7 + $0x1cc] sm:$0xf]
          %v6478 = vld [vmem:[%s7 + $0x1d0] sm:$0xf]
          %v6479 = vld [vmem:[%s7 + $0x1d4] sm:$0xf]
          %v6480 = vld [vmem:[%s7 + $0x1d8] sm:$0xf]
          %v6481 = vld [vmem:[%s7 + $0x1dc] sm:$0xf]
          %v6482 = vld [vmem:[%s7 + $0x1e0] sm:$0xf]
          %v6483 = vld [vmem:[%s7 + $0x1e4] sm:$0xf]
          %v6484 = vld [vmem:[%s7 + $0x1e8] sm:$0xf]
          %v6485 = vld [vmem:[%s7 + $0x1ec] sm:$0xf]
          %v6486 = vld [vmem:[%s7 + $0x1f0] sm:$0xf]
          %v6487 = vld [vmem:[%s7 + $0x1f4] sm:$0xf]
          %v6488 = vld [vmem:[%s7 + $0x1f8] sm:$0xf]
          %v6489 = vld [vmem:[%s7 + $0x1fc] sm:$0xf]
          %v6490 = vld [vmem:[%s8] sm:$0x1]
          %v6492 = vlaneseq
          %v6493 = vshrl.u32 %v6492, 7
          %v6494 = vsub.s32 0, %v6493
          %v6495 = vrot.slane %v6490, %v6494
          %v6625 = vunpack.c.l.b16 %v6362
          %v6626 = vunpack.c.l.b16 %v6363
          %v6627 = vunpack.c.l.b16 %v6364
          %v6628 = vunpack.c.l.b16 %v6365
          %v6629 = vunpack.c.l.b16 %v6366
          %v6630 = vunpack.c.l.b16 %v6367
          %v6631 = vunpack.c.l.b16 %v6368
          %v6632 = vunpack.c.l.b16 %v6369
          %v6633 = vunpack.c.l.b16 %v6370
          %v6634 = vunpack.c.l.b16 %v6371
          %v6635 = vunpack.c.l.b16 %v6372
          %v6636 = vunpack.c.l.b16 %v6373
          %v6637 = vunpack.c.l.b16 %v6374
          %v6638 = vunpack.c.l.b16 %v6375
          %v6639 = vunpack.c.l.b16 %v6376
          %v6640 = vunpack.c.l.b16 %v6377
          %v6641 = vunpack.c.l.b16 %v6378
          %v6642 = vunpack.c.l.b16 %v6379
          %v6643 = vunpack.c.l.b16 %v6380
          %v6644 = vunpack.c.l.b16 %v6381
          %v6645 = vunpack.c.l.b16 %v6382
          %v6646 = vunpack.c.l.b16 %v6383
          %v6647 = vunpack.c.l.b16 %v6384
          %v6648 = vunpack.c.l.b16 %v6385
          %v6649 = vunpack.c.l.b16 %v6386
          %v6650 = vunpack.c.l.b16 %v6387
          %v6651 = vunpack.c.l.b16 %v6388
          %v6652 = vunpack.c.l.b16 %v6389
          %v6653 = vunpack.c.l.b16 %v6390
          %v6654 = vunpack.c.l.b16 %v6391
          %v6655 = vunpack.c.l.b16 %v6392
          %v6656 = vunpack.c.l.b16 %v6393
          %v6657 = vunpack.c.l.b16 %v6394
          %v6658 = vunpack.c.l.b16 %v6395
          %v6659 = vunpack.c.l.b16 %v6396
          %v6660 = vunpack.c.l.b16 %v6397
          %v6661 = vunpack.c.l.b16 %v6398
          %v6662 = vunpack.c.l.b16 %v6399
          %v6663 = vunpack.c.l.b16 %v6400
          %v6664 = vunpack.c.l.b16 %v6401
          %v6665 = vunpack.c.l.b16 %v6402
          %v6666 = vunpack.c.l.b16 %v6403
          %v6667 = vunpack.c.l.b16 %v6404
          %v6668 = vunpack.c.l.b16 %v6405
          %v6669 = vunpack.c.l.b16 %v6406
          %v6670 = vunpack.c.l.b16 %v6407
          %v6671 = vunpack.c.l.b16 %v6408
          %v6672 = vunpack.c.l.b16 %v6409
          %v6673 = vunpack.c.l.b16 %v6410
          %v6674 = vunpack.c.l.b16 %v6411
          %v6675 = vunpack.c.l.b16 %v6412
          %v6676 = vunpack.c.l.b16 %v6413
          %v6677 = vunpack.c.l.b16 %v6414
          %v6678 = vunpack.c.l.b16 %v6415
          %v6679 = vunpack.c.l.b16 %v6416
          %v6680 = vunpack.c.l.b16 %v6417
          %v6681 = vunpack.c.l.b16 %v6418
          %v6682 = vunpack.c.l.b16 %v6419
          %v6683 = vunpack.c.l.b16 %v6420
          %v6684 = vunpack.c.l.b16 %v6421
          %v6685 = vunpack.c.l.b16 %v6422
          %v6686 = vunpack.c.l.b16 %v6423
          %v6687 = vunpack.c.l.b16 %v6424
          %v6688 = vunpack.c.l.b16 %v6425
          %v6689 = vunpack.c.l.b16 %v6426
          %v6690 = vunpack.c.l.b16 %v6427
          %v6691 = vunpack.c.l.b16 %v6428
          %v6692 = vunpack.c.l.b16 %v6429
          %v6693 = vunpack.c.l.b16 %v6430
          %v6694 = vunpack.c.l.b16 %v6431
          %v6695 = vunpack.c.l.b16 %v6432
          %v6696 = vunpack.c.l.b16 %v6433
          %v6697 = vunpack.c.l.b16 %v6434
          %v6698 = vunpack.c.l.b16 %v6435
          %v6699 = vunpack.c.l.b16 %v6436
          %v6700 = vunpack.c.l.b16 %v6437
          %v6701 = vunpack.c.l.b16 %v6438
          %v6702 = vunpack.c.l.b16 %v6439
          %v6703 = vunpack.c.l.b16 %v6440
          %v6704 = vunpack.c.l.b16 %v6441
          %v6705 = vunpack.c.l.b16 %v6442
          %v6706 = vunpack.c.l.b16 %v6443
          %v6707 = vunpack.c.l.b16 %v6444
          %v6708 = vunpack.c.l.b16 %v6445
          %v6709 = vunpack.c.l.b16 %v6446
          %v6710 = vunpack.c.l.b16 %v6447
          %v6711 = vunpack.c.l.b16 %v6448
          %v6712 = vunpack.c.l.b16 %v6449
          %v6713 = vunpack.c.l.b16 %v6450
          %v6714 = vunpack.c.l.b16 %v6451
          %v6715 = vunpack.c.l.b16 %v6452
          %v6716 = vunpack.c.l.b16 %v6453
          %v6717 = vunpack.c.l.b16 %v6454
          %v6718 = vunpack.c.l.b16 %v6455
          %v6719 = vunpack.c.l.b16 %v6456
          %v6720 = vunpack.c.l.b16 %v6457
          %v6721 = vunpack.c.l.b16 %v6458
          %v6722 = vunpack.c.l.b16 %v6459
          %v6723 = vunpack.c.l.b16 %v6460
          %v6724 = vunpack.c.l.b16 %v6461
          %v6725 = vunpack.c.l.b16 %v6462
          %v6726 = vunpack.c.l.b16 %v6463
          %v6727 = vunpack.c.l.b16 %v6464
          %v6728 = vunpack.c.l.b16 %v6465
          %v6729 = vunpack.c.l.b16 %v6466
          %v6730 = vunpack.c.l.b16 %v6467
          %v6731 = vunpack.c.l.b16 %v6468
          %v6732 = vunpack.c.l.b16 %v6469
          %v6733 = vunpack.c.l.b16 %v6470
          %v6734 = vunpack.c.l.b16 %v6471
          %v6735 = vunpack.c.l.b16 %v6472
          %v6736 = vunpack.c.l.b16 %v6473
          %v6737 = vunpack.c.l.b16 %v6474
          %v6738 = vunpack.c.l.b16 %v6475
          %v6739 = vunpack.c.l.b16 %v6476
          %v6740 = vunpack.c.l.b16 %v6477
          %v6741 = vunpack.c.l.b16 %v6478
          %v6742 = vunpack.c.l.b16 %v6479
          %v6743 = vunpack.c.l.b16 %v6480
          %v6744 = vunpack.c.l.b16 %v6481
          %v6745 = vunpack.c.l.b16 %v6482
          %v6746 = vunpack.c.l.b16 %v6483
          %v6747 = vunpack.c.l.b16 %v6484
          %v6748 = vunpack.c.l.b16 %v6485
          %v6749 = vunpack.c.l.b16 %v6486
          %v6750 = vunpack.c.l.b16 %v6487
          %v6751 = vunpack.c.l.b16 %v6488
          %v6752 = vunpack.c.l.b16 %v6489
          %v6753 = vpack.c.b16 %v6626, %v6625
          %v6754 = vpack.c.b16 %v6628, %v6627
          %v6755 = vpack.c.b16 %v6630, %v6629
          %v6756 = vpack.c.b16 %v6632, %v6631
          %v6757 = vpack.c.b16 %v6634, %v6633
          %v6758 = vpack.c.b16 %v6636, %v6635
          %v6759 = vpack.c.b16 %v6638, %v6637
          %v6760 = vpack.c.b16 %v6640, %v6639
          %v6761 = vpack.c.b16 %v6642, %v6641
          %v6762 = vpack.c.b16 %v6644, %v6643
          %v6763 = vpack.c.b16 %v6646, %v6645
          %v6764 = vpack.c.b16 %v6648, %v6647
          %v6765 = vpack.c.b16 %v6650, %v6649
          %v6766 = vpack.c.b16 %v6652, %v6651
          %v6767 = vpack.c.b16 %v6654, %v6653
          %v6768 = vpack.c.b16 %v6656, %v6655
          %v6769 = vpack.c.b16 %v6658, %v6657
          %v6770 = vpack.c.b16 %v6660, %v6659
          %v6771 = vpack.c.b16 %v6662, %v6661
          %v6772 = vpack.c.b16 %v6664, %v6663
          %v6773 = vpack.c.b16 %v6666, %v6665
          %v6774 = vpack.c.b16 %v6668, %v6667
          %v6775 = vpack.c.b16 %v6670, %v6669
          %v6776 = vpack.c.b16 %v6672, %v6671
          %v6777 = vpack.c.b16 %v6674, %v6673
          %v6778 = vpack.c.b16 %v6676, %v6675
          %v6779 = vpack.c.b16 %v6678, %v6677
          %v6780 = vpack.c.b16 %v6680, %v6679
          %v6781 = vpack.c.b16 %v6682, %v6681
          %v6782 = vpack.c.b16 %v6684, %v6683
          %v6783 = vpack.c.b16 %v6686, %v6685
          %v6784 = vpack.c.b16 %v6688, %v6687
          %v6785 = vpack.c.b16 %v6690, %v6689
          %v6786 = vpack.c.b16 %v6692, %v6691
          %v6787 = vpack.c.b16 %v6694, %v6693
          %v6788 = vpack.c.b16 %v6696, %v6695
          %v6789 = vpack.c.b16 %v6698, %v6697
          %v6790 = vpack.c.b16 %v6700, %v6699
          %v6791 = vpack.c.b16 %v6702, %v6701
          %v6792 = vpack.c.b16 %v6704, %v6703
          %v6793 = vpack.c.b16 %v6706, %v6705
          %v6794 = vpack.c.b16 %v6708, %v6707
          %v6795 = vpack.c.b16 %v6710, %v6709
          %v6796 = vpack.c.b16 %v6712, %v6711
          %v6797 = vpack.c.b16 %v6714, %v6713
          %v6798 = vpack.c.b16 %v6716, %v6715
          %v6799 = vpack.c.b16 %v6718, %v6717
          %v6800 = vpack.c.b16 %v6720, %v6719
          %v6801 = vpack.c.b16 %v6722, %v6721
          %v6802 = vpack.c.b16 %v6724, %v6723
          %v6803 = vpack.c.b16 %v6726, %v6725
          %v6804 = vpack.c.b16 %v6728, %v6727
          %v6805 = vpack.c.b16 %v6730, %v6729
          %v6806 = vpack.c.b16 %v6732, %v6731
          %v6807 = vpack.c.b16 %v6734, %v6733
          %v6808 = vpack.c.b16 %v6736, %v6735
          %v6809 = vpack.c.b16 %v6738, %v6737
          %v6810 = vpack.c.b16 %v6740, %v6739
          %v6811 = vpack.c.b16 %v6742, %v6741
          %v6812 = vpack.c.b16 %v6744, %v6743
          %v6813 = vpack.c.b16 %v6746, %v6745
          %v6814 = vpack.c.b16 %v6748, %v6747
          %v6815 = vpack.c.b16 %v6750, %v6749
          %v6816 = vpack.c.b16 %v6752, %v6751
          %6881 = vmatprep.subr.bf16.mxu0 0
          %6882 = vmatpush1.bf16.msra.mxu0 %v6753
          %6883 = vmatprep.subr.bf16.mxu0 0
          %6884 = vmatpush1.bf16.msra.mxu0 %v6754
          %6885 = vmatprep.subr.bf16.mxu0 0
          %6886 = vmatpush1.bf16.msra.mxu0 %v6755
          %6887 = vmatprep.subr.bf16.mxu0 0
          %6888 = vmatpush1.bf16.msra.mxu0 %v6756
          %6889 = vmatprep.subr.bf16.mxu0 0
          %6890 = vmatpush1.bf16.msra.mxu0 %v6757
          %6891 = vmatprep.subr.bf16.mxu0 0
          %6892 = vmatpush1.bf16.msra.mxu0 %v6758
          %6893 = vmatprep.subr.bf16.mxu0 0
          %6894 = vmatpush1.bf16.msra.mxu0 %v6759
          %6895 = vmatprep.subr.bf16.mxu0 0
          %6896 = vmatpush1.bf16.msra.mxu0 %v6760
          %6897 = vmatprep.subr.bf16.mxu0 0
          %6898 = vmatpush1.bf16.msra.mxu0 %v6761
          %6899 = vmatprep.subr.bf16.mxu0 0
          %6900 = vmatpush1.bf16.msra.mxu0 %v6762
          %6901 = vmatprep.subr.bf16.mxu0 0
          %6902 = vmatpush1.bf16.msra.mxu0 %v6763
          %6903 = vmatprep.subr.bf16.mxu0 0
          %6904 = vmatpush1.bf16.msra.mxu0 %v6764
          %6905 = vmatprep.subr.bf16.mxu0 0
          %6906 = vmatpush1.bf16.msra.mxu0 %v6765
          %6907 = vmatprep.subr.bf16.mxu0 0
          %6908 = vmatpush1.bf16.msra.mxu0 %v6766
          %6909 = vmatprep.subr.bf16.mxu0 0
          %6910 = vmatpush1.bf16.msra.mxu0 %v6767
          %6911 = vmatprep.subr.bf16.mxu0 0
          %6912 = vmatpush1.bf16.msra.mxu0 %v6768
          %6913 = vmatprep.mubr.bf16.mxu0 %v6355
          %6914 = vmatmul.mubr.bf16.gmra.mrb[0].mxu0 %v6354
          %v6915 = vpop.f32.mrb[0].mxu0
          %v6916 = vadd.f32 %v6495, %v6915
          %v6917 = vpop.f32.mrb[0].mxu0
          %v6918 = vpop.f32.mrb[0].mxu0
          %v6919 = vpop.f32.mrb[0].mxu0
          %6920 = vdwg.mxu0
          %6921 = vmatprep.subr.bf16.mxu0 0
          %6922 = vmatpush1.bf16.msra.mxu0 %v6769
          %6923 = vmatprep.subr.bf16.mxu0 0
          %6924 = vmatpush1.bf16.msra.mxu0 %v6770
          %6925 = vmatprep.subr.bf16.mxu0 0
          %6926 = vmatpush1.bf16.msra.mxu0 %v6771
          %6927 = vmatprep.subr.bf16.mxu0 0
          %6928 = vmatpush1.bf16.msra.mxu0 %v6772
          %6929 = vmatprep.subr.bf16.mxu0 0
          %6930 = vmatpush1.bf16.msra.mxu0 %v6773
          %6931 = vmatprep.subr.bf16.mxu0 0
          %6932 = vmatpush1.bf16.msra.mxu0 %v6774
          %6933 = vmatprep.subr.bf16.mxu0 0
          %6934 = vmatpush1.bf16.msra.mxu0 %v6775
          %6935 = vmatprep.subr.bf16.mxu0 0
          %6936 = vmatpush1.bf16.msra.mxu0 %v6776
          %6937 = vmatprep.subr.bf16.mxu0 0
          %6938 = vmatpush1.bf16.msra.mxu0 %v6777
          %6939 = vmatprep.subr.bf16.mxu0 0
          %6940 = vmatpush1.bf16.msra.mxu0 %v6778
          %6941 = vmatprep.subr.bf16.mxu0 0
          %6942 = vmatpush1.bf16.msra.mxu0 %v6779
          %6943 = vmatprep.subr.bf16.mxu0 0
          %6944 = vmatpush1.bf16.msra.mxu0 %v6780
          %6945 = vmatprep.subr.bf16.mxu0 0
          %6946 = vmatpush1.bf16.msra.mxu0 %v6781
          %6947 = vmatprep.subr.bf16.mxu0 0
          %6948 = vmatpush1.bf16.msra.mxu0 %v6782
          %6949 = vmatprep.subr.bf16.mxu0 0
          %6950 = vmatpush1.bf16.msra.mxu0 %v6783
          %6951 = vmatprep.subr.bf16.mxu0 0
          %6952 = vmatpush1.bf16.msra.mxu0 %v6784
          %6953 = vmatprep.mubr.bf16.mxu0 %v6357
          %6954 = vmatmul.mubr.bf16.gmra.mrb[0].mxu0 %v6356
          %v6955 = vpop.f32.mrb[0].mxu0
          %v6956 = vadd.f32 %v6916, %v6955
          %v6957 = vpop.f32.mrb[0].mxu0
          %v6958 = vpop.f32.mrb[0].mxu0
          %v6959 = vpop.f32.mrb[0].mxu0
          %6960 = vdwg.mxu0
          %6961 = vmatprep.subr.bf16.mxu0 0
          %6962 = vmatpush1.bf16.msra.mxu0 %v6785
          %6963 = vmatprep.subr.bf16.mxu0 0
          %6964 = vmatpush1.bf16.msra.mxu0 %v6786
          %6965 = vmatprep.subr.bf16.mxu0 0
          %6966 = vmatpush1.bf16.msra.mxu0 %v6787
          %6967 = vmatprep.subr.bf16.mxu0 0
          %6968 = vmatpush1.bf16.msra.mxu0 %v6788
          %6969 = vmatprep.subr.bf16.mxu0 0
          %6970 = vmatpush1.bf16.msra.mxu0 %v6789
          %6971 = vmatprep.subr.bf16.mxu0 0
          %6972 = vmatpush1.bf16.msra.mxu0 %v6790
          %6973 = vmatprep.subr.bf16.mxu0 0
          %6974 = vmatpush1.bf16.msra.mxu0 %v6791
          %6975 = vmatprep.subr.bf16.mxu0 0
          %6976 = vmatpush1.bf16.msra.mxu0 %v6792
          %6977 = vmatprep.subr.bf16.mxu0 0
          %6978 = vmatpush1.bf16.msra.mxu0 %v6793
          %6979 = vmatprep.subr.bf16.mxu0 0
          %6980 = vmatpush1.bf16.msra.mxu0 %v6794
          %6981 = vmatprep.subr.bf16.mxu0 0
          %6982 = vmatpush1.bf16.msra.mxu0 %v6795
          %6983 = vmatprep.subr.bf16.mxu0 0
          %6984 = vmatpush1.bf16.msra.mxu0 %v6796
          %6985 = vmatprep.subr.bf16.mxu0 0
          %6986 = vmatpush1.bf16.msra.mxu0 %v6797
          %6987 = vmatprep.subr.bf16.mxu0 0
          %6988 = vmatpush1.bf16.msra.mxu0 %v6798
          %6989 = vmatprep.subr.bf16.mxu0 0
          %6990 = vmatpush1.bf16.msra.mxu0 %v6799
          %6991 = vmatprep.subr.bf16.mxu0 0
          %6992 = vmatpush1.bf16.msra.mxu0 %v6800
          %6993 = vmatprep.mubr.bf16.mxu0 %v6359
          %6994 = vmatmul.mubr.bf16.gmra.mrb[0].mxu0 %v6358
          %v6995 = vpop.f32.mrb[0].mxu0
          %v6996 = vadd.f32 %v6956, %v6995
          %v6997 = vpop.f32.mrb[0].mxu0
          %v6998 = vpop.f32.mrb[0].mxu0
          %v6999 = vpop.f32.mrb[0].mxu0
          %7000 = vdwg.mxu0
          %7001 = vmatprep.subr.bf16.mxu0 0
          %7002 = vmatpush1.bf16.msra.mxu0 %v6801
          %7003 = vmatprep.subr.bf16.mxu0 0
          %7004 = vmatpush1.bf16.msra.mxu0 %v6802
          %7005 = vmatprep.subr.bf16.mxu0 0
          %7006 = vmatpush1.bf16.msra.mxu0 %v6803
          %7007 = vmatprep.subr.bf16.mxu0 0
          %7008 = vmatpush1.bf16.msra.mxu0 %v6804
          %7009 = vmatprep.subr.bf16.mxu0 0
          %7010 = vmatpush1.bf16.msra.mxu0 %v6805
          %7011 = vmatprep.subr.bf16.mxu0 0
          %7012 = vmatpush1.bf16.msra.mxu0 %v6806
          %7013 = vmatprep.subr.bf16.mxu0 0
          %7014 = vmatpush1.bf16.msra.mxu0 %v6807
          %7015 = vmatprep.subr.bf16.mxu0 0
          %7016 = vmatpush1.bf16.msra.mxu0 %v6808
          %7017 = vmatprep.subr.bf16.mxu0 0
          %7018 = vmatpush1.bf16.msra.mxu0 %v6809
          %7019 = vmatprep.subr.bf16.mxu0 0
          %7020 = vmatpush1.bf16.msra.mxu0 %v6810
          %7021 = vmatprep.subr.bf16.mxu0 0
          %7022 = vmatpush1.bf16.msra.mxu0 %v6811
          %7023 = vmatprep.subr.bf16.mxu0 0
          %7024 = vmatpush1.bf16.msra.mxu0 %v6812
          %7025 = vmatprep.subr.bf16.mxu0 0
          %7026 = vmatpush1.bf16.msra.mxu0 %v6813
          %7027 = vmatprep.subr.bf16.mxu0 0
          %7028 = vmatpush1.bf16.msra.mxu0 %v6814
          %7029 = vmatprep.subr.bf16.mxu0 0
          %7030 = vmatpush1.bf16.msra.mxu0 %v6815
          %7031 = vmatprep.subr.bf16.mxu0 0
          %7032 = vmatpush1.bf16.msra.mxu0 %v6816
          %7033 = vmatprep.mubr.bf16.mxu0 %v6361
          %7034 = vmatmul.mubr.bf16.gmra.mrb[0].mxu0 %v6360
          %v7035 = vpop.f32.mrb[0].mxu0
          %v7036 = vadd.f32 %v6996, %v7035
          %v7037 = vpop.f32.mrb[0].mxu0
          %v7038 = vpop.f32.mrb[0].mxu0
          %v7039 = vpop.f32.mrb[0].mxu0
          %7040 = vdwg.mxu0
          %vm7041 = vcmask 17408
          %7042 = vst.msk [vmem:[#allocation7] sm:$0x3] %vm7041, %v7036
        $region109: #{crater_forward.7} parent=92 // pred_fallthru
          _
        // Predicated region
        $region110: #{crater_forward.7} parent=92 // pred_check
          %p7043 = pneg %p239
        $region111: #{crater_forward.7} parent=92 // pred_check_branch
          %7045 = sbr.rel (%p7043) target = $region113
        $region112: #{crater_forward.7} parent=92 // pred_region
          %s7047 = ssub.s32 32, 32
          %7048 = vsyncadd [#allocation6], %s7047
          %s7050 = sshll.u32 [#allocation7], 4
          %s7051 = int_to_ptr.vmem [resolvable:$true] %s7050
          %7053 = dma.vmem_to_hbm [thread:$0]  %s7051, 32, %s9, [#allocation6]
        $region113: #{crater_forward.7} parent=92 // pred_fallthru
          _
        // Predicated region
        $region114: #{crater_forward.7} parent=92 // pred_check
          %p7054 = pneg %p239
        $region115: #{crater_forward.7} parent=92 // pred_check_branch
          %7056 = sbr.rel (%p7054) target = $region117
        $region116: #{crater_forward.7} parent=92 // pred_region
          %7057 = dma.done [#allocation6], 32
        $region117: #{crater_forward.7} parent=92 // pred_fallthru
          _
      $region93: #{crater_forward.7} parent=5 // pred_fallthru
        _
      %p7058 = scmp.le.s32.totalorder 2, %s17
      // Predicated region
      $region118: #{crater_forward.7} parent=5 // pred_check
        %p7059 = pneg %p7058
      $region119: #{crater_forward.7} parent=5 // pred_check_branch
        %7061 = sbr.rel (%p7059) target = $region121
      $region120: #{crater_forward.7} parent=5 // pred_region
        %s7062 = ssub.s32 %s17, 2
      $region121: #{crater_forward.7} parent=5 // pred_fallthru
        _
    $region6: #{crater_forward.7} parent=1 // loop_footer
      %s21 = sadd.s32 1, %s17
    $region7: #{crater_forward.7} parent=1 // loop_footer_branch
      %16 = sbr.rel target = $region3
    $region8: #{crater_forward.7} parent=1 // loop_exit
      _
    %7063 = vsyncpa [#allocation5], 1
    %s7064 = scalar_lea.sflag [#allocation5], 1
    %7065 = vsyncpa %s7064, 1
    %7066 = vsyncpa [#allocation6], 1
    %s7067 = scalar_lea.sflag [#allocation6], 1
    %7068 = vsyncpa %s7067, 1

</llo_original>
